<compile_context>
chip_gen: v6e
topology: v6e:2x2x1
jax: 0.10.0
libtpu: 0.0.40
codegen_flags: <defaults>
</compile_context>

<pallas_src>
import functools

import jax
import jax.numpy as jnp
from jax.experimental import pallas as pl
from jax.experimental.pallas import tpu as pltpu


# --------------------------------------------------------------------------
# Pallas kernels
# --------------------------------------------------------------------------
def _conv_relu_pool_kernel(p_ref, w_ref, b_ref, o_ref):
    """One batch element: 4 pooling-quadrant im2col matmuls, ReLU, 2x2 max.

    p_ref: (1, 4, P, Kd) bf16   rows of quadrant q are the conv outputs at
                                (2*oh2 + dh, 2*ow2 + dw), q = dh*2 + dw
    w_ref: (Kd, C)        bf16
    b_ref: (1, C)         f32
    o_ref: (1, P, C)      f32   pooled, ReLU'd, channels-last
    """
    w = w_ref[...]
    b = b_ref[...]

    def quad(q):
        acc = jnp.dot(p_ref[0, q], w, preferred_element_type=jnp.float32)
        return jnp.maximum(acc + b, 0.0)

    o_ref[0] = jnp.maximum(jnp.maximum(quad(0), quad(1)),
                           jnp.maximum(quad(2), quad(3)))


def _conv_relu_pool_kwta_kernel(p_ref, w_ref, b_ref, o_ref, *, k):
    """conv2 + ReLU + 2x2 pool + local k-WTA (top-k across channels per
    spatial location), all on a single (P, C) tile per batch element."""
    w = w_ref[...]
    b = b_ref[...]

    def quad(q):
        acc = jnp.dot(p_ref[0, q], w, preferred_element_type=jnp.float32)
        return jnp.maximum(acc + b, 0.0)

    x = jnp.maximum(jnp.maximum(quad(0), quad(1)),
                    jnp.maximum(quad(2), quad(3)))              # (P, C) f32

    P, C = x.shape
    col = jax.lax.broadcasted_iota(jnp.int32, (P, C), 1)
    neg_inf = jnp.float32(-jnp.inf)

    def body(_, selected):
        masked = jnp.where(selected > 0, neg_inf, x)
        row_max = jnp.max(masked, axis=-1, keepdims=True)
        is_max = masked == row_max
        first = jnp.min(jnp.where(is_max, col, C), axis=-1, keepdims=True)
        return jnp.maximum(selected, (col == first).astype(jnp.float32))

    # k is small & static -> fully unrolled for LLO scheduling visibility.
    selected = jax.lax.fori_loop(0, k, body,
                                 jnp.zeros((P, C), jnp.float32), unroll=True)
    o_ref[0] = x * selected


def _dense_head_kernel(x_ref, w1_ref, b1_ref, w2_ref, b2_ref, w3_ref, b3_ref,
                       o_ref):
    """Fused dense1 -> ReLU -> dense2 -> ReLU -> output -> log-softmax.
    All weights resident in VMEM; epilogue math in f32 (v5e-safe)."""
    h = jnp.dot(x_ref[...], w1_ref[...], preferred_element_type=jnp.float32)
    h = jnp.maximum(h + b1_ref[...], 0.0)
    h = jnp.dot(h, w2_ref[...], preferred_element_type=jnp.float32)
    h = jnp.maximum(h + b2_ref[...], 0.0)
    logits = jnp.dot(h, w3_ref[...],
                     preferred_element_type=jnp.float32) + b3_ref[...]
    shifted = logits - jnp.max(logits, axis=-1, keepdims=True)
    lse = jnp.log(jnp.sum(jnp.exp(shifted), axis=-1, keepdims=True))
    o_ref[...] = shifted - lse


# --------------------------------------------------------------------------
# Pallas wrappers
# --------------------------------------------------------------------------
def conv_relu_pool(patches, w, b, kwta_k=None):
    """patches: (B, 4, P, Kd) quadrant-grouped im2col, w: (Kd, C), b: (C,)."""
    B, _, P, Kd = patches.shape
    C = w.shape[1]
    if kwta_k is None:
        kernel = _conv_relu_pool_kernel
    else:
        kernel = functools.partial(_conv_relu_pool_kwta_kernel, k=kwta_k)
    return pl.pallas_call(
        kernel,
        out_shape=jax.ShapeDtypeStruct((B, P, C), jnp.float32),
        grid=(B,),
        in_specs=[
            pl.BlockSpec((1, 4, P, Kd), lambda i: (i, 0, 0, 0)),
            pl.BlockSpec((Kd, C), lambda i: (0, 0)),
            pl.BlockSpec((1, C), lambda i: (0, 0)),
        ],
        out_specs=pl.BlockSpec((1, P, C), lambda i: (i, 0, 0)),
        compiler_params=pltpu.CompilerParams(
            dimension_semantics=("parallel",)),
    )(patches.astype(jnp.bfloat16), w.astype(jnp.bfloat16),
      b.reshape(1, C).astype(jnp.float32))


def dense_head(x, w1, b1, w2, b2, w3, b3):
    """log_softmax(relu(relu(x@w1+b1)@w2+b2)@w3+b3) in one pallas_call.
    Whole arrays are single full-dim VMEM blocks (no padding, no slicing)."""
    B = x.shape[0]
    n_out = w3.shape[1]
    return pl.pallas_call(
        _dense_head_kernel,
        out_shape=jax.ShapeDtypeStruct((B, n_out), jnp.float32),
    )(x.astype(jnp.bfloat16), w1.astype(jnp.bfloat16),
      b1.reshape(1, -1).astype(jnp.float32),
      w2.astype(jnp.float32), b2.reshape(1, -1).astype(jnp.float32),
      w3.astype(jnp.float32), b3.reshape(1, -1).astype(jnp.float32))


# --------------------------------------------------------------------------
# Glue: quadrant-grouped im2col, parameters, full forward
# --------------------------------------------------------------------------
def im2col_quadrants(x, ksize, pad):
    """Channels-last im2col with rows grouped by 2x2 pooling quadrant.

    x: (B, H, W, C) -> (B, 4, (OH//2)*(OW//2), ksize*ksize*C), patch columns
    ordered (kh, kw, c); quadrant q = dh*2 + dw covers conv output
    (2*oh2 + dh, 2*ow2 + dw).
    """
    B, H, W, C = x.shape
    if pad:
        x = jnp.pad(x, ((0, 0), (pad, pad), (pad, pad), (0, 0)))
    OH = H + 2 * pad - ksize + 1
    OW = W + 2 * pad - ksize + 1
    cols = []
    for kh in range(ksize):
        for kw in range(ksize):
            cols.append(x[:, kh:kh + OH, kw:kw + OW, :])       # (B, OH, OW, C)
    p = jnp.stack(cols, axis=3)                                 # (B,OH,OW,K*K,C)
    p = p.reshape(B, OH, OW, ksize * ksize * C)
    p = p.reshape(B, OH // 2, 2, OW // 2, 2, ksize * ksize * C)
    p = p.transpose(0, 2, 4, 1, 3, 5)                           # (B,dh,dw,oh2,ow2,Kd)
    return p.reshape(B, 4, (OH // 2) * (OW // 2), ksize * ksize * C)


def init_params(key):
    ks = jax.random.split(key, 10)

    def u(k, shape, fan_in):
        bound = 1.0 / (fan_in ** 0.5)
        return jax.random.uniform(k, shape, jnp.float32, -bound, bound)

    return dict(
        conv1_w=u(ks[0], (64, 1, 5, 5), 25),     conv1_b=u(ks[1], (64,), 25),
        conv2_w=u(ks[2], (128, 64, 5, 5), 1600), conv2_b=u(ks[3], (128,), 1600),
        dense1_w=u(ks[4], (256, 3200), 3200),    dense1_b=u(ks[5], (256,), 3200),
        dense2_w=u(ks[6], (128, 256), 256),      dense2_b=u(ks[7], (128,), 256),
        output_w=u(ks[8], (10, 128), 128),       output_b=u(ks[9], (10,), 128),
    )


def sdr_cnn_forward(params, x, percent_on=0.15):
    """Forward pass of SDRCNNBase.  x: (B, 1, 28, 28) float32 (NCHW)."""
    B = x.shape[0]
    k = int(round(percent_on * 128))              # KWinners2d local k
    # TODO(synk): training-time duty-cycle / boost-strength state updates of
    # KWinners2d are stateful bookkeeping with no effect on this forward pass
    # (fresh duty cycles => uniform boost); not modeled.

    x = jnp.transpose(x, (0, 2, 3, 1))            # NCHW -> NHWC (C=1: cheap)

    # conv1 (5x5, pad 2) + ReLU + 2x2 pool, fused in one kernel
    p1 = im2col_quadrants(x, 5, 2)                               # (B,4,196,25)
    w1 = params["conv1_w"].transpose(2, 3, 1, 0).reshape(25, 64)
    h1 = conv_relu_pool(p1, w1, params["conv1_b"])               # (B,196,64)
    h1 = h1.reshape(B, 14, 14, 64)

    # conv2 (5x5, pad 0) + ReLU + 2x2 pool + local k-WTA, fused
    p2 = im2col_quadrants(h1, 5, 0)                              # (B,4,25,1600)
    w2 = params["conv2_w"].transpose(2, 3, 1, 0).reshape(1600, 128)
    h2 = conv_relu_pool(p2, w2, params["conv2_b"], kwta_k=k)     # (B,25,128)

    # channels-last flatten; permute dense1 columns once from PyTorch's
    # (c, h, w) flatten order to (h, w, c) so activations need no transpose.
    flat = h2.reshape(B, 25 * 128)
    d1w = params["dense1_w"].reshape(256, 128, 25).transpose(0, 2, 1)
    d1w = d1w.reshape(256, 3200)

    # dense1 -> dense2 -> output -> log-softmax, fused in one kernel
    return dense_head(flat, d1w.T, params["dense1_b"],
                      params["dense2_w"].T, params["dense2_b"],
                      params["output_w"].T, params["output_b"])


if __name__ == "__main__":
    key = jax.random.PRNGKey(0)
    k_x, k_p = jax.random.split(key)
    x = jax.random.normal(k_x, (2, 1, 28, 28), jnp.float32)
    params = init_params(k_p)

    fwd = jax.jit(functools.partial(sdr_cnn_forward, percent_on=0.15))
    logp = jax.block_until_ready(fwd(params, x))

    assert logp.shape == (2, 10)
    assert bool(jnp.all(jnp.isfinite(logp)))
    # log-softmax rows should normalize to 1 in probability space
    assert bool(jnp.allclose(jnp.sum(jnp.exp(logp), axis=1), 1.0, atol=1e-3))
    print("KERNEL_OK")
</pallas_src>

<mosaic_0001>
module attributes {stable_mosaic.version = 11 : i64} {
  func.func @_conv_relu_pool_kernel(%arg0: i32, %arg1: memref<1x4x196x25xbf16, #tpu.memory_space<vmem>>, %arg2: memref<25x64xbf16, #tpu.memory_space<vmem>>, %arg3: memref<1x64xf32, #tpu.memory_space<vmem>>, %arg4: memref<1x196x64xf32, #tpu.memory_space<vmem>>) attributes {dimension_semantics = [#tpu.dimension_semantics<parallel>], iteration_bounds = array<i64: 2>, scalar_prefetch = 0 : i64, scratch_operands = 0 : i64, tpu.core_type = #tpu.core_type<tc>, window_params = [{transform_indices = @transform_0, window_bounds = array<i64: 1, 4, 196, 25>}, {pipeline_mode = #tpu.pipeline_mode<synchronous>, transform_indices = @transform_1, window_bounds = array<i64: 25, 64>}, {pipeline_mode = #tpu.pipeline_mode<synchronous>, transform_indices = @transform_2, window_bounds = array<i64: 1, 64>}, {transform_indices = @transform_3, window_bounds = array<i64: 1, 196, 64>}]} {
    %c0 = arith.constant 0 : index
    %c0_0 = arith.constant 0 : index
    %0 = vector.load %arg2[%c0, %c0_0] : memref<25x64xbf16, #tpu.memory_space<vmem>>, vector<25x64xbf16>
    %c0_1 = arith.constant 0 : index
    %c0_2 = arith.constant 0 : index
    %1 = vector.load %arg3[%c0_1, %c0_2] : memref<1x64xf32, #tpu.memory_space<vmem>>, vector<1x64xf32>
    %c0_3 = arith.constant 0 : index
    %c0_4 = arith.constant 0 : index
    %c0_5 = arith.constant 0 : index
    %c0_6 = arith.constant 0 : index
    %2 = vector.load %arg1[%c0_3, %c0_4, %c0_5, %c0_6] : memref<1x4x196x25xbf16, #tpu.memory_space<vmem>>, vector<1x1x196x25xbf16>
    %3 = vector.shape_cast %2 : vector<1x1x196x25xbf16> to vector<196x25xbf16>
    %cst = arith.constant dense<0.000000e+00> : vector<196x64xf32>
    %4 = tpu.matmul %3, %0, %cst {dimension_numbers = #tpu.dot_dimension_numbers<[1], [0], [0], [1], [0, 0, 1, 1], [], []>} : vector<196x25xbf16>, vector<25x64xbf16>, vector<196x64xf32> -> vector<196x64xf32>
    %5 = vector.broadcast %1 : vector<1x64xf32> to vector<196x64xf32>
    %6 = arith.addf %4, %5 : vector<196x64xf32>
    %cst_7 = arith.constant 0.000000e+00 : f32
    %7 = vector.broadcast %cst_7 : f32 to vector<196x64xf32>
    %8 = arith.maximumf %6, %7 : vector<196x64xf32>
    %c0_8 = arith.constant 0 : index
    %c1 = arith.constant 1 : index
    %c0_9 = arith.constant 0 : index
    %c0_10 = arith.constant 0 : index
    %9 = vector.load %arg1[%c0_8, %c1, %c0_9, %c0_10] : memref<1x4x196x25xbf16, #tpu.memory_space<vmem>>, vector<1x1x196x25xbf16>
    %10 = vector.shape_cast %9 : vector<1x1x196x25xbf16> to vector<196x25xbf16>
    %cst_11 = arith.constant dense<0.000000e+00> : vector<196x64xf32>
    %11 = tpu.matmul %10, %0, %cst_11 {dimension_numbers = #tpu.dot_dimension_numbers<[1], [0], [0], [1], [0, 0, 1, 1], [], []>} : vector<196x25xbf16>, vector<25x64xbf16>, vector<196x64xf32> -> vector<196x64xf32>
    %12 = vector.broadcast %1 : vector<1x64xf32> to vector<196x64xf32>
    %13 = arith.addf %11, %12 : vector<196x64xf32>
    %cst_12 = arith.constant 0.000000e+00 : f32
    %14 = vector.broadcast %cst_12 : f32 to vector<196x64xf32>
    %15 = arith.maximumf %13, %14 : vector<196x64xf32>
    %16 = arith.maximumf %8, %15 : vector<196x64xf32>
    %c0_13 = arith.constant 0 : index
    %c2 = arith.constant 2 : index
    %c0_14 = arith.constant 0 : index
    %c0_15 = arith.constant 0 : index
    %17 = vector.load %arg1[%c0_13, %c2, %c0_14, %c0_15] : memref<1x4x196x25xbf16, #tpu.memory_space<vmem>>, vector<1x1x196x25xbf16>
    %18 = vector.shape_cast %17 : vector<1x1x196x25xbf16> to vector<196x25xbf16>
    %cst_16 = arith.constant dense<0.000000e+00> : vector<196x64xf32>
    %19 = tpu.matmul %18, %0, %cst_16 {dimension_numbers = #tpu.dot_dimension_numbers<[1], [0], [0], [1], [0, 0, 1, 1], [], []>} : vector<196x25xbf16>, vector<25x64xbf16>, vector<196x64xf32> -> vector<196x64xf32>
    %20 = vector.broadcast %1 : vector<1x64xf32> to vector<196x64xf32>
    %21 = arith.addf %19, %20 : vector<196x64xf32>
    %cst_17 = arith.constant 0.000000e+00 : f32
    %22 = vector.broadcast %cst_17 : f32 to vector<196x64xf32>
    %23 = arith.maximumf %21, %22 : vector<196x64xf32>
    %c0_18 = arith.constant 0 : index
    %c3 = arith.constant 3 : index
    %c0_19 = arith.constant 0 : index
    %c0_20 = arith.constant 0 : index
    %24 = vector.load %arg1[%c0_18, %c3, %c0_19, %c0_20] : memref<1x4x196x25xbf16, #tpu.memory_space<vmem>>, vector<1x1x196x25xbf16>
    %25 = vector.shape_cast %24 : vector<1x1x196x25xbf16> to vector<196x25xbf16>
    %cst_21 = arith.constant dense<0.000000e+00> : vector<196x64xf32>
    %26 = tpu.matmul %25, %0, %cst_21 {dimension_numbers = #tpu.dot_dimension_numbers<[1], [0], [0], [1], [0, 0, 1, 1], [], []>} : vector<196x25xbf16>, vector<25x64xbf16>, vector<196x64xf32> -> vector<196x64xf32>
    %27 = vector.broadcast %1 : vector<1x64xf32> to vector<196x64xf32>
    %28 = arith.addf %26, %27 : vector<196x64xf32>
    %cst_22 = arith.constant 0.000000e+00 : f32
    %29 = vector.broadcast %cst_22 : f32 to vector<196x64xf32>
    %30 = arith.maximumf %28, %29 : vector<196x64xf32>
    %31 = arith.maximumf %23, %30 : vector<196x64xf32>
    %32 = arith.maximumf %16, %31 : vector<196x64xf32>
    %c0_23 = arith.constant 0 : index
    %c0_24 = arith.constant 0 : index
    %c0_25 = arith.constant 0 : index
    %33 = vector.load %arg4[%c0_23, %c0_24, %c0_25] : memref<1x196x64xf32, #tpu.memory_space<vmem>>, vector<1x196x64xf32>
    %34 = vector.shape_cast %33 : vector<1x196x64xf32> to vector<196x64xf32>
    %35 = vector.shape_cast %32 : vector<196x64xf32> to vector<1x196x64xf32>
    tpu.vector_store %arg4[%c0_23, %c0_24, %c0_25], %35 {strides = array<i32>} : memref<1x196x64xf32, #tpu.memory_space<vmem>>, vector<1x196x64xf32>,
    return
  }
  func.func @transform_0(%arg0: i32) -> (i32, i32, i32, i32) {
    %c0_i32 = arith.constant 0 : i32
    %c0_i32_0 = arith.constant 0 : i32
    %c0_i32_1 = arith.constant 0 : i32
    %c0_i32_2 = arith.constant 0 : i32
    return %arg0, %c0_i32, %c0_i32_0, %c0_i32_1 : i32, i32, i32, i32
  }
  func.func @transform_1(%arg0: i32) -> (i32, i32) {
    %c0_i32 = arith.constant 0 : i32
    %c0_i32_0 = arith.constant 0 : i32
    %c0_i32_1 = arith.constant 0 : i32
    return %c0_i32, %c0_i32_0 : i32, i32
  }
  func.func @transform_2(%arg0: i32) -> (i32, i32) {
    %c0_i32 = arith.constant 0 : i32
    %c0_i32_0 = arith.constant 0 : i32
    %c0_i32_1 = arith.constant 0 : i32
    return %c0_i32, %c0_i32_0 : i32, i32
  }
  func.func @transform_3(%arg0: i32) -> (i32, i32, i32) {
    %c0_i32 = arith.constant 0 : i32
    %c0_i32_0 = arith.constant 0 : i32
    %c0_i32_1 = arith.constant 0 : i32
    return %arg0, %c0_i32, %c0_i32_0 : i32, i32, i32
  }
}

module attributes {stable_mosaic.version = 11 : i64} {
  func.func @_conv_relu_pool_kwta_kernel(%arg0: i32, %arg1: memref<1x4x25x1600xbf16, #tpu.memory_space<vmem>>, %arg2: memref<1600x128xbf16, #tpu.memory_space<vmem>>, %arg3: memref<1x128xf32, #tpu.memory_space<vmem>>, %arg4: memref<1x25x128xf32, #tpu.memory_space<vmem>>) attributes {dimension_semantics = [#tpu.dimension_semantics<parallel>], iteration_bounds = array<i64: 2>, scalar_prefetch = 0 : i64, scratch_operands = 0 : i64, tpu.core_type = #tpu.core_type<tc>, window_params = [{transform_indices = @transform_0, window_bounds = array<i64: 1, 4, 25, 1600>}, {pipeline_mode = #tpu.pipeline_mode<synchronous>, transform_indices = @transform_1, window_bounds = array<i64: 1600, 128>}, {pipeline_mode = #tpu.pipeline_mode<synchronous>, transform_indices = @transform_2, window_bounds = array<i64: 1, 128>}, {transform_indices = @transform_3, window_bounds = array<i64: 1, 25, 128>}]} {
    %c0 = arith.constant 0 : index
    %c0_0 = arith.constant 0 : index
    %0 = vector.load %arg2[%c0, %c0_0] : memref<1600x128xbf16, #tpu.memory_space<vmem>>, vector<1600x128xbf16>
    %c0_1 = arith.constant 0 : index
    %c0_2 = arith.constant 0 : index
    %1 = vector.load %arg3[%c0_1, %c0_2] : memref<1x128xf32, #tpu.memory_space<vmem>>, vector<1x128xf32>
    %c0_3 = arith.constant 0 : index
    %c0_4 = arith.constant 0 : index
    %c0_5 = arith.constant 0 : index
    %c0_6 = arith.constant 0 : index
    %2 = vector.load %arg1[%c0_3, %c0_4, %c0_5, %c0_6] : memref<1x4x25x1600xbf16, #tpu.memory_space<vmem>>, vector<1x1x25x1600xbf16>
    %3 = vector.shape_cast %2 : vector<1x1x25x1600xbf16> to vector<25x1600xbf16>
    %cst = arith.constant dense<0.000000e+00> : vector<25x128xf32>
    %4 = tpu.matmul %3, %0, %cst {dimension_numbers = #tpu.dot_dimension_numbers<[1], [0], [0], [1], [0, 0, 1, 1], [], []>} : vector<25x1600xbf16>, vector<1600x128xbf16>, vector<25x128xf32> -> vector<25x128xf32>
    %5 = vector.broadcast %1 : vector<1x128xf32> to vector<25x128xf32>
    %6 = arith.addf %4, %5 : vector<25x128xf32>
    %cst_7 = arith.constant 0.000000e+00 : f32
    %7 = vector.broadcast %cst_7 : f32 to vector<25x128xf32>
    %8 = arith.maximumf %6, %7 : vector<25x128xf32>
    %c0_8 = arith.constant 0 : index
    %c1 = arith.constant 1 : index
    %c0_9 = arith.constant 0 : index
    %c0_10 = arith.constant 0 : index
    %9 = vector.load %arg1[%c0_8, %c1, %c0_9, %c0_10] : memref<1x4x25x1600xbf16, #tpu.memory_space<vmem>>, vector<1x1x25x1600xbf16>
    %10 = vector.shape_cast %9 : vector<1x1x25x1600xbf16> to vector<25x1600xbf16>
    %cst_11 = arith.constant dense<0.000000e+00> : vector<25x128xf32>
    %11 = tpu.matmul %10, %0, %cst_11 {dimension_numbers = #tpu.dot_dimension_numbers<[1], [0], [0], [1], [0, 0, 1, 1], [], []>} : vector<25x1600xbf16>, vector<1600x128xbf16>, vector<25x128xf32> -> vector<25x128xf32>
    %12 = vector.broadcast %1 : vector<1x128xf32> to vector<25x128xf32>
    %13 = arith.addf %11, %12 : vector<25x128xf32>
    %cst_12 = arith.constant 0.000000e+00 : f32
    %14 = vector.broadcast %cst_12 : f32 to vector<25x128xf32>
    %15 = arith.maximumf %13, %14 : vector<25x128xf32>
    %16 = arith.maximumf %8, %15 : vector<25x128xf32>
    %c0_13 = arith.constant 0 : index
    %c2 = arith.constant 2 : index
    %c0_14 = arith.constant 0 : index
    %c0_15 = arith.constant 0 : index
    %17 = vector.load %arg1[%c0_13, %c2, %c0_14, %c0_15] : memref<1x4x25x1600xbf16, #tpu.memory_space<vmem>>, vector<1x1x25x1600xbf16>
    %18 = vector.shape_cast %17 : vector<1x1x25x1600xbf16> to vector<25x1600xbf16>
    %cst_16 = arith.constant dense<0.000000e+00> : vector<25x128xf32>
    %19 = tpu.matmul %18, %0, %cst_16 {dimension_numbers = #tpu.dot_dimension_numbers<[1], [0], [0], [1], [0, 0, 1, 1], [], []>} : vector<25x1600xbf16>, vector<1600x128xbf16>, vector<25x128xf32> -> vector<25x128xf32>
    %20 = vector.broadcast %1 : vector<1x128xf32> to vector<25x128xf32>
    %21 = arith.addf %19, %20 : vector<25x128xf32>
    %cst_17 = arith.constant 0.000000e+00 : f32
    %22 = vector.broadcast %cst_17 : f32 to vector<25x128xf32>
    %23 = arith.maximumf %21, %22 : vector<25x128xf32>
    %c0_18 = arith.constant 0 : index
    %c3 = arith.constant 3 : index
    %c0_19 = arith.constant 0 : index
    %c0_20 = arith.constant 0 : index
    %24 = vector.load %arg1[%c0_18, %c3, %c0_19, %c0_20] : memref<1x4x25x1600xbf16, #tpu.memory_space<vmem>>, vector<1x1x25x1600xbf16>
    %25 = vector.shape_cast %24 : vector<1x1x25x1600xbf16> to vector<25x1600xbf16>
    %cst_21 = arith.constant dense<0.000000e+00> : vector<25x128xf32>
    %26 = tpu.matmul %25, %0, %cst_21 {dimension_numbers = #tpu.dot_dimension_numbers<[1], [0], [0], [1], [0, 0, 1, 1], [], []>} : vector<25x1600xbf16>, vector<1600x128xbf16>, vector<25x128xf32> -> vector<25x128xf32>
    %27 = vector.broadcast %1 : vector<1x128xf32> to vector<25x128xf32>
    %28 = arith.addf %26, %27 : vector<25x128xf32>
    %cst_22 = arith.constant 0.000000e+00 : f32
    %29 = vector.broadcast %cst_22 : f32 to vector<25x128xf32>
    %30 = arith.maximumf %28, %29 : vector<25x128xf32>
    %31 = arith.maximumf %23, %30 : vector<25x128xf32>
    %32 = arith.maximumf %16, %31 : vector<25x128xf32>
    %33 = tpu.iota {dimensions = array<i32: 1>} : vector<25x128xi32>
    %cst_23 = arith.constant 0.000000e+00 : f32
    %34 = vector.broadcast %cst_23 : f32 to vector<25x128xf32>
    %cst_24 = arith.constant 0xFF800000 : f32
    %c0_i32 = arith.constant 0 : i32
    %cst_25 = arith.constant 0.000000e+00 : f32
    %35 = vector.broadcast %cst_25 : f32 to vector<25x128xf32>
    %36 = arith.cmpf ogt, %34, %35 : vector<25x128xf32>
    %37 = vector.broadcast %cst_24 : f32 to vector<25x128xf32>
    %38 = arith.select %36, %37, %32 : vector<25x128xi1>, vector<25x128xf32>
    %cst_26 = arith.constant dense<0xFF800000> : vector<25xf32>
    %39 = vector.multi_reduction <maximumf>, %38, %cst_26 [1] : vector<25x128xf32> to vector<25xf32>
    %40 = vector.shape_cast %39 : vector<25xf32> to vector<25x1xf32>
    %41 = vector.broadcast %40 : vector<25x1xf32> to vector<25x128xf32>
    %42 = arith.cmpf oeq, %38, %41 : vector<25x128xf32>
    %c128_i32 = arith.constant 128 : i32
    %43 = vector.broadcast %c128_i32 : i32 to vector<25x128xi32>
    %44 = arith.select %42, %33, %43 : vector<25x128xi1>, vector<25x128xi32>
    %cst_27 = arith.constant dense<2147483647> : vector<25xi32>
    %45 = vector.multi_reduction <minsi>, %44, %cst_27 [1] : vector<25x128xi32> to vector<25xi32>
    %46 = vector.shape_cast %45 : vector<25xi32> to vector<25x1xi32>
    %47 = vector.broadcast %46 : vector<25x1xi32> to vector<25x128xi32>
    %48 = arith.cmpi eq, %33, %47 : vector<25x128xi32>
    %49 = arith.extui %48 : vector<25x128xi1> to vector<25x128xi32>
    %50 = arith.sitofp %49 : vector<25x128xi32> to vector<25x128xf32>
    %51 = arith.maximumf %34, %50 : vector<25x128xf32>
    %c1_i32 = arith.constant 1 : i32
    %cst_28 = arith.constant 0.000000e+00 : f32
    %52 = vector.broadcast %cst_28 : f32 to vector<25x128xf32>
    %53 = arith.cmpf ogt, %51, %52 : vector<25x128xf32>
    %54 = vector.broadcast %cst_24 : f32 to vector<25x128xf32>
    %55 = arith.select %53, %54, %32 : vector<25x128xi1>, vector<25x128xf32>
    %cst_29 = arith.constant dense<0xFF800000> : vector<25xf32>
    %56 = vector.multi_reduction <maximumf>, %55, %cst_29 [1] : vector<25x128xf32> to vector<25xf32>
    %57 = vector.shape_cast %56 : vector<25xf32> to vector<25x1xf32>
    %58 = vector.broadcast %57 : vector<25x1xf32> to vector<25x128xf32>
    %59 = arith.cmpf oeq, %55, %58 : vector<25x128xf32>
    %c128_i32_30 = arith.constant 128 : i32
    %60 = vector.broadcast %c128_i32_30 : i32 to vector<25x128xi32>
    %61 = arith.select %59, %33, %60 : vector<25x128xi1>, vector<25x128xi32>
    %cst_31 = arith.constant dense<2147483647> : vector<25xi32>
    %62 = vector.multi_reduction <minsi>, %61, %cst_31 [1] : vector<25x128xi32> to vector<25xi32>
    %63 = vector.shape_cast %62 : vector<25xi32> to vector<25x1xi32>
    %64 = vector.broadcast %63 : vector<25x1xi32> to vector<25x128xi32>
    %65 = arith.cmpi eq, %33, %64 : vector<25x128xi32>
    %66 = arith.extui %65 : vector<25x128xi1> to vector<25x128xi32>
    %67 = arith.sitofp %66 : vector<25x128xi32> to vector<25x128xf32>
    %68 = arith.maximumf %51, %67 : vector<25x128xf32>
    %c2_i32 = arith.constant 2 : i32
    %cst_32 = arith.constant 0.000000e+00 : f32
    %69 = vector.broadcast %cst_32 : f32 to vector<25x128xf32>
    %70 = arith.cmpf ogt, %68, %69 : vector<25x128xf32>
    %71 = vector.broadcast %cst_24 : f32 to vector<25x128xf32>
    %72 = arith.select %70, %71, %32 : vector<25x128xi1>, vector<25x128xf32>
    %cst_33 = arith.constant dense<0xFF800000> : vector<25xf32>
    %73 = vector.multi_reduction <maximumf>, %72, %cst_33 [1] : vector<25x128xf32> to vector<25xf32>
    %74 = vector.shape_cast %73 : vector<25xf32> to vector<25x1xf32>
    %75 = vector.broadcast %74 : vector<25x1xf32> to vector<25x128xf32>
    %76 = arith.cmpf oeq, %72, %75 : vector<25x128xf32>
    %c128_i32_34 = arith.constant 128 : i32
    %77 = vector.broadcast %c128_i32_34 : i32 to vector<25x128xi32>
    %78 = arith.select %76, %33, %77 : vector<25x128xi1>, vector<25x128xi32>
    %cst_35 = arith.constant dense<2147483647> : vector<25xi32>
    %79 = vector.multi_reduction <minsi>, %78, %cst_35 [1] : vector<25x128xi32> to vector<25xi32>
    %80 = vector.shape_cast %79 : vector<25xi32> to vector<25x1xi32>
    %81 = vector.broadcast %80 : vector<25x1xi32> to vector<25x128xi32>
    %82 = arith.cmpi eq, %33, %81 : vector<25x128xi32>
    %83 = arith.extui %82 : vector<25x128xi1> to vector<25x128xi32>
    %84 = arith.sitofp %83 : vector<25x128xi32> to vector<25x128xf32>
    %85 = arith.maximumf %68, %84 : vector<25x128xf32>
    %c3_i32 = arith.constant 3 : i32
    %cst_36 = arith.constant 0.000000e+00 : f32
    %86 = vector.broadcast %cst_36 : f32 to vector<25x128xf32>
    %87 = arith.cmpf ogt, %85, %86 : vector<25x128xf32>
    %88 = vector.broadcast %cst_24 : f32 to vector<25x128xf32>
    %89 = arith.select %87, %88, %32 : vector<25x128xi1>, vector<25x128xf32>
    %cst_37 = arith.constant dense<0xFF800000> : vector<25xf32>
    %90 = vector.multi_reduction <maximumf>, %89, %cst_37 [1] : vector<25x128xf32> to vector<25xf32>
    %91 = vector.shape_cast %90 : vector<25xf32> to vector<25x1xf32>
    %92 = vector.broadcast %91 : vector<25x1xf32> to vector<25x128xf32>
    %93 = arith.cmpf oeq, %89, %92 : vector<25x128xf32>
    %c128_i32_38 = arith.constant 128 : i32
    %94 = vector.broadcast %c128_i32_38 : i32 to vector<25x128xi32>
    %95 = arith.select %93, %33, %94 : vector<25x128xi1>, vector<25x128xi32>
    %cst_39 = arith.constant dense<2147483647> : vector<25xi32>
    %96 = vector.multi_reduction <minsi>, %95, %cst_39 [1] : vector<25x128xi32> to vector<25xi32>
    %97 = vector.shape_cast %96 : vector<25xi32> to vector<25x1xi32>
    %98 = vector.broadcast %97 : vector<25x1xi32> to vector<25x128xi32>
    %99 = arith.cmpi eq, %33, %98 : vector<25x128xi32>
    %100 = arith.extui %99 : vector<25x128xi1> to vector<25x128xi32>
    %101 = arith.sitofp %100 : vector<25x128xi32> to vector<25x128xf32>
    %102 = arith.maximumf %85, %101 : vector<25x128xf32>
    %c4_i32 = arith.constant 4 : i32
    %cst_40 = arith.constant 0.000000e+00 : f32
    %103 = vector.broadcast %cst_40 : f32 to vector<25x128xf32>
    %104 = arith.cmpf ogt, %102, %103 : vector<25x128xf32>
    %105 = vector.broadcast %cst_24 : f32 to vector<25x128xf32>
    %106 = arith.select %104, %105, %32 : vector<25x128xi1>, vector<25x128xf32>
    %cst_41 = arith.constant dense<0xFF800000> : vector<25xf32>
    %107 = vector.multi_reduction <maximumf>, %106, %cst_41 [1] : vector<25x128xf32> to vector<25xf32>
    %108 = vector.shape_cast %107 : vector<25xf32> to vector<25x1xf32>
    %109 = vector.broadcast %108 : vector<25x1xf32> to vector<25x128xf32>
    %110 = arith.cmpf oeq, %106, %109 : vector<25x128xf32>
    %c128_i32_42 = arith.constant 128 : i32
    %111 = vector.broadcast %c128_i32_42 : i32 to vector<25x128xi32>
    %112 = arith.select %110, %33, %111 : vector<25x128xi1>, vector<25x128xi32>
    %cst_43 = arith.constant dense<2147483647> : vector<25xi32>
    %113 = vector.multi_reduction <minsi>, %112, %cst_43 [1] : vector<25x128xi32> to vector<25xi32>
    %114 = vector.shape_cast %113 : vector<25xi32> to vector<25x1xi32>
    %115 = vector.broadcast %114 : vector<25x1xi32> to vector<25x128xi32>
    %116 = arith.cmpi eq, %33, %115 : vector<25x128xi32>
    %117 = arith.extui %116 : vector<25x128xi1> to vector<25x128xi32>
    %118 = arith.sitofp %117 : vector<25x128xi32> to vector<25x128xf32>
    %119 = arith.maximumf %102, %118 : vector<25x128xf32>
    %c5_i32 = arith.constant 5 : i32
    %cst_44 = arith.constant 0.000000e+00 : f32
    %120 = vector.broadcast %cst_44 : f32 to vector<25x128xf32>
    %121 = arith.cmpf ogt, %119, %120 : vector<25x128xf32>
    %122 = vector.broadcast %cst_24 : f32 to vector<25x128xf32>
    %123 = arith.select %121, %122, %32 : vector<25x128xi1>, vector<25x128xf32>
    %cst_45 = arith.constant dense<0xFF800000> : vector<25xf32>
    %124 = vector.multi_reduction <maximumf>, %123, %cst_45 [1] : vector<25x128xf32> to vector<25xf32>
    %125 = vector.shape_cast %124 : vector<25xf32> to vector<25x1xf32>
    %126 = vector.broadcast %125 : vector<25x1xf32> to vector<25x128xf32>
    %127 = arith.cmpf oeq, %123, %126 : vector<25x128xf32>
    %c128_i32_46 = arith.constant 128 : i32
    %128 = vector.broadcast %c128_i32_46 : i32 to vector<25x128xi32>
    %129 = arith.select %127, %33, %128 : vector<25x128xi1>, vector<25x128xi32>
    %cst_47 = arith.constant dense<2147483647> : vector<25xi32>
    %130 = vector.multi_reduction <minsi>, %129, %cst_47 [1] : vector<25x128xi32> to vector<25xi32>
    %131 = vector.shape_cast %130 : vector<25xi32> to vector<25x1xi32>
    %132 = vector.broadcast %131 : vector<25x1xi32> to vector<25x128xi32>
    %133 = arith.cmpi eq, %33, %132 : vector<25x128xi32>
    %134 = arith.extui %133 : vector<25x128xi1> to vector<25x128xi32>
    %135 = arith.sitofp %134 : vector<25x128xi32> to vector<25x128xf32>
    %136 = arith.maximumf %119, %135 : vector<25x128xf32>
    %c6_i32 = arith.constant 6 : i32
    %cst_48 = arith.constant 0.000000e+00 : f32
    %137 = vector.broadcast %cst_48 : f32 to vector<25x128xf32>
    %138 = arith.cmpf ogt, %136, %137 : vector<25x128xf32>
    %139 = vector.broadcast %cst_24 : f32 to vector<25x128xf32>
    %140 = arith.select %138, %139, %32 : vector<25x128xi1>, vector<25x128xf32>
    %cst_49 = arith.constant dense<0xFF800000> : vector<25xf32>
    %141 = vector.multi_reduction <maximumf>, %140, %cst_49 [1] : vector<25x128xf32> to vector<25xf32>
    %142 = vector.shape_cast %141 : vector<25xf32> to vector<25x1xf32>
    %143 = vector.broadcast %142 : vector<25x1xf32> to vector<25x128xf32>
    %144 = arith.cmpf oeq, %140, %143 : vector<25x128xf32>
    %c128_i32_50 = arith.constant 128 : i32
    %145 = vector.broadcast %c128_i32_50 : i32 to vector<25x128xi32>
    %146 = arith.select %144, %33, %145 : vector<25x128xi1>, vector<25x128xi32>
    %cst_51 = arith.constant dense<2147483647> : vector<25xi32>
    %147 = vector.multi_reduction <minsi>, %146, %cst_51 [1] : vector<25x128xi32> to vector<25xi32>
    %148 = vector.shape_cast %147 : vector<25xi32> to vector<25x1xi32>
    %149 = vector.broadcast %148 : vector<25x1xi32> to vector<25x128xi32>
    %150 = arith.cmpi eq, %33, %149 : vector<25x128xi32>
    %151 = arith.extui %150 : vector<25x128xi1> to vector<25x128xi32>
    %152 = arith.sitofp %151 : vector<25x128xi32> to vector<25x128xf32>
    %153 = arith.maximumf %136, %152 : vector<25x128xf32>
    %c7_i32 = arith.constant 7 : i32
    %cst_52 = arith.constant 0.000000e+00 : f32
    %154 = vector.broadcast %cst_52 : f32 to vector<25x128xf32>
    %155 = arith.cmpf ogt, %153, %154 : vector<25x128xf32>
    %156 = vector.broadcast %cst_24 : f32 to vector<25x128xf32>
    %157 = arith.select %155, %156, %32 : vector<25x128xi1>, vector<25x128xf32>
    %cst_53 = arith.constant dense<0xFF800000> : vector<25xf32>
    %158 = vector.multi_reduction <maximumf>, %157, %cst_53 [1] : vector<25x128xf32> to vector<25xf32>
    %159 = vector.shape_cast %158 : vector<25xf32> to vector<25x1xf32>
    %160 = vector.broadcast %159 : vector<25x1xf32> to vector<25x128xf32>
    %161 = arith.cmpf oeq, %157, %160 : vector<25x128xf32>
    %c128_i32_54 = arith.constant 128 : i32
    %162 = vector.broadcast %c128_i32_54 : i32 to vector<25x128xi32>
    %163 = arith.select %161, %33, %162 : vector<25x128xi1>, vector<25x128xi32>
    %cst_55 = arith.constant dense<2147483647> : vector<25xi32>
    %164 = vector.multi_reduction <minsi>, %163, %cst_55 [1] : vector<25x128xi32> to vector<25xi32>
    %165 = vector.shape_cast %164 : vector<25xi32> to vector<25x1xi32>
    %166 = vector.broadcast %165 : vector<25x1xi32> to vector<25x128xi32>
    %167 = arith.cmpi eq, %33, %166 : vector<25x128xi32>
    %168 = arith.extui %167 : vector<25x128xi1> to vector<25x128xi32>
    %169 = arith.sitofp %168 : vector<25x128xi32> to vector<25x128xf32>
    %170 = arith.maximumf %153, %169 : vector<25x128xf32>
    %c8_i32 = arith.constant 8 : i32
    %cst_56 = arith.constant 0.000000e+00 : f32
    %171 = vector.broadcast %cst_56 : f32 to vector<25x128xf32>
    %172 = arith.cmpf ogt, %170, %171 : vector<25x128xf32>
    %173 = vector.broadcast %cst_24 : f32 to vector<25x128xf32>
    %174 = arith.select %172, %173, %32 : vector<25x128xi1>, vector<25x128xf32>
    %cst_57 = arith.constant dense<0xFF800000> : vector<25xf32>
    %175 = vector.multi_reduction <maximumf>, %174, %cst_57 [1] : vector<25x128xf32> to vector<25xf32>
    %176 = vector.shape_cast %175 : vector<25xf32> to vector<25x1xf32>
    %177 = vector.broadcast %176 : vector<25x1xf32> to vector<25x128xf32>
    %178 = arith.cmpf oeq, %174, %177 : vector<25x128xf32>
    %c128_i32_58 = arith.constant 128 : i32
    %179 = vector.broadcast %c128_i32_58 : i32 to vector<25x128xi32>
    %180 = arith.select %178, %33, %179 : vector<25x128xi1>, vector<25x128xi32>
    %cst_59 = arith.constant dense<2147483647> : vector<25xi32>
    %181 = vector.multi_reduction <minsi>, %180, %cst_59 [1] : vector<25x128xi32> to vector<25xi32>
    %182 = vector.shape_cast %181 : vector<25xi32> to vector<25x1xi32>
    %183 = vector.broadcast %182 : vector<25x1xi32> to vector<25x128xi32>
    %184 = arith.cmpi eq, %33, %183 : vector<25x128xi32>
    %185 = arith.extui %184 : vector<25x128xi1> to vector<25x128xi32>
    %186 = arith.sitofp %185 : vector<25x128xi32> to vector<25x128xf32>
    %187 = arith.maximumf %170, %186 : vector<25x128xf32>
    %c9_i32 = arith.constant 9 : i32
    %cst_60 = arith.constant 0.000000e+00 : f32
    %188 = vector.broadcast %cst_60 : f32 to vector<25x128xf32>
    %189 = arith.cmpf ogt, %187, %188 : vector<25x128xf32>
    %190 = vector.broadcast %cst_24 : f32 to vector<25x128xf32>
    %191 = arith.select %189, %190, %32 : vector<25x128xi1>, vector<25x128xf32>
    %cst_61 = arith.constant dense<0xFF800000> : vector<25xf32>
    %192 = vector.multi_reduction <maximumf>, %191, %cst_61 [1] : vector<25x128xf32> to vector<25xf32>
    %193 = vector.shape_cast %192 : vector<25xf32> to vector<25x1xf32>
    %194 = vector.broadcast %193 : vector<25x1xf32> to vector<25x128xf32>
    %195 = arith.cmpf oeq, %191, %194 : vector<25x128xf32>
    %c128_i32_62 = arith.constant 128 : i32
    %196 = vector.broadcast %c128_i32_62 : i32 to vector<25x128xi32>
    %197 = arith.select %195, %33, %196 : vector<25x128xi1>, vector<25x128xi32>
    %cst_63 = arith.constant dense<2147483647> : vector<25xi32>
    %198 = vector.multi_reduction <minsi>, %197, %cst_63 [1] : vector<25x128xi32> to vector<25xi32>
    %199 = vector.shape_cast %198 : vector<25xi32> to vector<25x1xi32>
    %200 = vector.broadcast %199 : vector<25x1xi32> to vector<25x128xi32>
    %201 = arith.cmpi eq, %33, %200 : vector<25x128xi32>
    %202 = arith.extui %201 : vector<25x128xi1> to vector<25x128xi32>
    %203 = arith.sitofp %202 : vector<25x128xi32> to vector<25x128xf32>
    %204 = arith.maximumf %187, %203 : vector<25x128xf32>
    %c10_i32 = arith.constant 10 : i32
    %cst_64 = arith.constant 0.000000e+00 : f32
    %205 = vector.broadcast %cst_64 : f32 to vector<25x128xf32>
    %206 = arith.cmpf ogt, %204, %205 : vector<25x128xf32>
    %207 = vector.broadcast %cst_24 : f32 to vector<25x128xf32>
    %208 = arith.select %206, %207, %32 : vector<25x128xi1>, vector<25x128xf32>
    %cst_65 = arith.constant dense<0xFF800000> : vector<25xf32>
    %209 = vector.multi_reduction <maximumf>, %208, %cst_65 [1] : vector<25x128xf32> to vector<25xf32>
    %210 = vector.shape_cast %209 : vector<25xf32> to vector<25x1xf32>
    %211 = vector.broadcast %210 : vector<25x1xf32> to vector<25x128xf32>
    %212 = arith.cmpf oeq, %208, %211 : vector<25x128xf32>
    %c128_i32_66 = arith.constant 128 : i32
    %213 = vector.broadcast %c128_i32_66 : i32 to vector<25x128xi32>
    %214 = arith.select %212, %33, %213 : vector<25x128xi1>, vector<25x128xi32>
    %cst_67 = arith.constant dense<2147483647> : vector<25xi32>
    %215 = vector.multi_reduction <minsi>, %214, %cst_67 [1] : vector<25x128xi32> to vector<25xi32>
    %216 = vector.shape_cast %215 : vector<25xi32> to vector<25x1xi32>
    %217 = vector.broadcast %216 : vector<25x1xi32> to vector<25x128xi32>
    %218 = arith.cmpi eq, %33, %217 : vector<25x128xi32>
    %219 = arith.extui %218 : vector<25x128xi1> to vector<25x128xi32>
    %220 = arith.sitofp %219 : vector<25x128xi32> to vector<25x128xf32>
    %221 = arith.maximumf %204, %220 : vector<25x128xf32>
    %c11_i32 = arith.constant 11 : i32
    %cst_68 = arith.constant 0.000000e+00 : f32
    %222 = vector.broadcast %cst_68 : f32 to vector<25x128xf32>
    %223 = arith.cmpf ogt, %221, %222 : vector<25x128xf32>
    %224 = vector.broadcast %cst_24 : f32 to vector<25x128xf32>
    %225 = arith.select %223, %224, %32 : vector<25x128xi1>, vector<25x128xf32>
    %cst_69 = arith.constant dense<0xFF800000> : vector<25xf32>
    %226 = vector.multi_reduction <maximumf>, %225, %cst_69 [1] : vector<25x128xf32> to vector<25xf32>
    %227 = vector.shape_cast %226 : vector<25xf32> to vector<25x1xf32>
    %228 = vector.broadcast %227 : vector<25x1xf32> to vector<25x128xf32>
    %229 = arith.cmpf oeq, %225, %228 : vector<25x128xf32>
    %c128_i32_70 = arith.constant 128 : i32
    %230 = vector.broadcast %c128_i32_70 : i32 to vector<25x128xi32>
    %231 = arith.select %229, %33, %230 : vector<25x128xi1>, vector<25x128xi32>
    %cst_71 = arith.constant dense<2147483647> : vector<25xi32>
    %232 = vector.multi_reduction <minsi>, %231, %cst_71 [1] : vector<25x128xi32> to vector<25xi32>
    %233 = vector.shape_cast %232 : vector<25xi32> to vector<25x1xi32>
    %234 = vector.broadcast %233 : vector<25x1xi32> to vector<25x128xi32>
    %235 = arith.cmpi eq, %33, %234 : vector<25x128xi32>
    %236 = arith.extui %235 : vector<25x128xi1> to vector<25x128xi32>
    %237 = arith.sitofp %236 : vector<25x128xi32> to vector<25x128xf32>
    %238 = arith.maximumf %221, %237 : vector<25x128xf32>
    %c12_i32 = arith.constant 12 : i32
    %cst_72 = arith.constant 0.000000e+00 : f32
    %239 = vector.broadcast %cst_72 : f32 to vector<25x128xf32>
    %240 = arith.cmpf ogt, %238, %239 : vector<25x128xf32>
    %241 = vector.broadcast %cst_24 : f32 to vector<25x128xf32>
    %242 = arith.select %240, %241, %32 : vector<25x128xi1>, vector<25x128xf32>
    %cst_73 = arith.constant dense<0xFF800000> : vector<25xf32>
    %243 = vector.multi_reduction <maximumf>, %242, %cst_73 [1] : vector<25x128xf32> to vector<25xf32>
    %244 = vector.shape_cast %243 : vector<25xf32> to vector<25x1xf32>
    %245 = vector.broadcast %244 : vector<25x1xf32> to vector<25x128xf32>
    %246 = arith.cmpf oeq, %242, %245 : vector<25x128xf32>
    %c128_i32_74 = arith.constant 128 : i32
    %247 = vector.broadcast %c128_i32_74 : i32 to vector<25x128xi32>
    %248 = arith.select %246, %33, %247 : vector<25x128xi1>, vector<25x128xi32>
    %cst_75 = arith.constant dense<2147483647> : vector<25xi32>
    %249 = vector.multi_reduction <minsi>, %248, %cst_75 [1] : vector<25x128xi32> to vector<25xi32>
    %250 = vector.shape_cast %249 : vector<25xi32> to vector<25x1xi32>
    %251 = vector.broadcast %250 : vector<25x1xi32> to vector<25x128xi32>
    %252 = arith.cmpi eq, %33, %251 : vector<25x128xi32>
    %253 = arith.extui %252 : vector<25x128xi1> to vector<25x128xi32>
    %254 = arith.sitofp %253 : vector<25x128xi32> to vector<25x128xf32>
    %255 = arith.maximumf %238, %254 : vector<25x128xf32>
    %c13_i32 = arith.constant 13 : i32
    %cst_76 = arith.constant 0.000000e+00 : f32
    %256 = vector.broadcast %cst_76 : f32 to vector<25x128xf32>
    %257 = arith.cmpf ogt, %255, %256 : vector<25x128xf32>
    %258 = vector.broadcast %cst_24 : f32 to vector<25x128xf32>
    %259 = arith.select %257, %258, %32 : vector<25x128xi1>, vector<25x128xf32>
    %cst_77 = arith.constant dense<0xFF800000> : vector<25xf32>
    %260 = vector.multi_reduction <maximumf>, %259, %cst_77 [1] : vector<25x128xf32> to vector<25xf32>
    %261 = vector.shape_cast %260 : vector<25xf32> to vector<25x1xf32>
    %262 = vector.broadcast %261 : vector<25x1xf32> to vector<25x128xf32>
    %263 = arith.cmpf oeq, %259, %262 : vector<25x128xf32>
    %c128_i32_78 = arith.constant 128 : i32
    %264 = vector.broadcast %c128_i32_78 : i32 to vector<25x128xi32>
    %265 = arith.select %263, %33, %264 : vector<25x128xi1>, vector<25x128xi32>
    %cst_79 = arith.constant dense<2147483647> : vector<25xi32>
    %266 = vector.multi_reduction <minsi>, %265, %cst_79 [1] : vector<25x128xi32> to vector<25xi32>
    %267 = vector.shape_cast %266 : vector<25xi32> to vector<25x1xi32>
    %268 = vector.broadcast %267 : vector<25x1xi32> to vector<25x128xi32>
    %269 = arith.cmpi eq, %33, %268 : vector<25x128xi32>
    %270 = arith.extui %269 : vector<25x128xi1> to vector<25x128xi32>
    %271 = arith.sitofp %270 : vector<25x128xi32> to vector<25x128xf32>
    %272 = arith.maximumf %255, %271 : vector<25x128xf32>
    %c14_i32 = arith.constant 14 : i32
    %cst_80 = arith.constant 0.000000e+00 : f32
    %273 = vector.broadcast %cst_80 : f32 to vector<25x128xf32>
    %274 = arith.cmpf ogt, %272, %273 : vector<25x128xf32>
    %275 = vector.broadcast %cst_24 : f32 to vector<25x128xf32>
    %276 = arith.select %274, %275, %32 : vector<25x128xi1>, vector<25x128xf32>
    %cst_81 = arith.constant dense<0xFF800000> : vector<25xf32>
    %277 = vector.multi_reduction <maximumf>, %276, %cst_81 [1] : vector<25x128xf32> to vector<25xf32>
    %278 = vector.shape_cast %277 : vector<25xf32> to vector<25x1xf32>
    %279 = vector.broadcast %278 : vector<25x1xf32> to vector<25x128xf32>
    %280 = arith.cmpf oeq, %276, %279 : vector<25x128xf32>
    %c128_i32_82 = arith.constant 128 : i32
    %281 = vector.broadcast %c128_i32_82 : i32 to vector<25x128xi32>
    %282 = arith.select %280, %33, %281 : vector<25x128xi1>, vector<25x128xi32>
    %cst_83 = arith.constant dense<2147483647> : vector<25xi32>
    %283 = vector.multi_reduction <minsi>, %282, %cst_83 [1] : vector<25x128xi32> to vector<25xi32>
    %284 = vector.shape_cast %283 : vector<25xi32> to vector<25x1xi32>
    %285 = vector.broadcast %284 : vector<25x1xi32> to vector<25x128xi32>
    %286 = arith.cmpi eq, %33, %285 : vector<25x128xi32>
    %287 = arith.extui %286 : vector<25x128xi1> to vector<25x128xi32>
    %288 = arith.sitofp %287 : vector<25x128xi32> to vector<25x128xf32>
    %289 = arith.maximumf %272, %288 : vector<25x128xf32>
    %c15_i32 = arith.constant 15 : i32
    %cst_84 = arith.constant 0.000000e+00 : f32
    %290 = vector.broadcast %cst_84 : f32 to vector<25x128xf32>
    %291 = arith.cmpf ogt, %289, %290 : vector<25x128xf32>
    %292 = vector.broadcast %cst_24 : f32 to vector<25x128xf32>
    %293 = arith.select %291, %292, %32 : vector<25x128xi1>, vector<25x128xf32>
    %cst_85 = arith.constant dense<0xFF800000> : vector<25xf32>
    %294 = vector.multi_reduction <maximumf>, %293, %cst_85 [1] : vector<25x128xf32> to vector<25xf32>
    %295 = vector.shape_cast %294 : vector<25xf32> to vector<25x1xf32>
    %296 = vector.broadcast %295 : vector<25x1xf32> to vector<25x128xf32>
    %297 = arith.cmpf oeq, %293, %296 : vector<25x128xf32>
    %c128_i32_86 = arith.constant 128 : i32
    %298 = vector.broadcast %c128_i32_86 : i32 to vector<25x128xi32>
    %299 = arith.select %297, %33, %298 : vector<25x128xi1>, vector<25x128xi32>
    %cst_87 = arith.constant dense<2147483647> : vector<25xi32>
    %300 = vector.multi_reduction <minsi>, %299, %cst_87 [1] : vector<25x128xi32> to vector<25xi32>
    %301 = vector.shape_cast %300 : vector<25xi32> to vector<25x1xi32>
    %302 = vector.broadcast %301 : vector<25x1xi32> to vector<25x128xi32>
    %303 = arith.cmpi eq, %33, %302 : vector<25x128xi32>
    %304 = arith.extui %303 : vector<25x128xi1> to vector<25x128xi32>
    %305 = arith.sitofp %304 : vector<25x128xi32> to vector<25x128xf32>
    %306 = arith.maximumf %289, %305 : vector<25x128xf32>
    %c16_i32 = arith.constant 16 : i32
    %cst_88 = arith.constant 0.000000e+00 : f32
    %307 = vector.broadcast %cst_88 : f32 to vector<25x128xf32>
    %308 = arith.cmpf ogt, %306, %307 : vector<25x128xf32>
    %309 = vector.broadcast %cst_24 : f32 to vector<25x128xf32>
    %310 = arith.select %308, %309, %32 : vector<25x128xi1>, vector<25x128xf32>
    %cst_89 = arith.constant dense<0xFF800000> : vector<25xf32>
    %311 = vector.multi_reduction <maximumf>, %310, %cst_89 [1] : vector<25x128xf32> to vector<25xf32>
    %312 = vector.shape_cast %311 : vector<25xf32> to vector<25x1xf32>
    %313 = vector.broadcast %312 : vector<25x1xf32> to vector<25x128xf32>
    %314 = arith.cmpf oeq, %310, %313 : vector<25x128xf32>
    %c128_i32_90 = arith.constant 128 : i32
    %315 = vector.broadcast %c128_i32_90 : i32 to vector<25x128xi32>
    %316 = arith.select %314, %33, %315 : vector<25x128xi1>, vector<25x128xi32>
    %cst_91 = arith.constant dense<2147483647> : vector<25xi32>
    %317 = vector.multi_reduction <minsi>, %316, %cst_91 [1] : vector<25x128xi32> to vector<25xi32>
    %318 = vector.shape_cast %317 : vector<25xi32> to vector<25x1xi32>
    %319 = vector.broadcast %318 : vector<25x1xi32> to vector<25x128xi32>
    %320 = arith.cmpi eq, %33, %319 : vector<25x128xi32>
    %321 = arith.extui %320 : vector<25x128xi1> to vector<25x128xi32>
    %322 = arith.sitofp %321 : vector<25x128xi32> to vector<25x128xf32>
    %323 = arith.maximumf %306, %322 : vector<25x128xf32>
    %c17_i32 = arith.constant 17 : i32
    %cst_92 = arith.constant 0.000000e+00 : f32
    %324 = vector.broadcast %cst_92 : f32 to vector<25x128xf32>
    %325 = arith.cmpf ogt, %323, %324 : vector<25x128xf32>
    %326 = vector.broadcast %cst_24 : f32 to vector<25x128xf32>
    %327 = arith.select %325, %326, %32 : vector<25x128xi1>, vector<25x128xf32>
    %cst_93 = arith.constant dense<0xFF800000> : vector<25xf32>
    %328 = vector.multi_reduction <maximumf>, %327, %cst_93 [1] : vector<25x128xf32> to vector<25xf32>
    %329 = vector.shape_cast %328 : vector<25xf32> to vector<25x1xf32>
    %330 = vector.broadcast %329 : vector<25x1xf32> to vector<25x128xf32>
    %331 = arith.cmpf oeq, %327, %330 : vector<25x128xf32>
    %c128_i32_94 = arith.constant 128 : i32
    %332 = vector.broadcast %c128_i32_94 : i32 to vector<25x128xi32>
    %333 = arith.select %331, %33, %332 : vector<25x128xi1>, vector<25x128xi32>
    %cst_95 = arith.constant dense<2147483647> : vector<25xi32>
    %334 = vector.multi_reduction <minsi>, %333, %cst_95 [1] : vector<25x128xi32> to vector<25xi32>
    %335 = vector.shape_cast %334 : vector<25xi32> to vector<25x1xi32>
    %336 = vector.broadcast %335 : vector<25x1xi32> to vector<25x128xi32>
    %337 = arith.cmpi eq, %33, %336 : vector<25x128xi32>
    %338 = arith.extui %337 : vector<25x128xi1> to vector<25x128xi32>
    %339 = arith.sitofp %338 : vector<25x128xi32> to vector<25x128xf32>
    %340 = arith.maximumf %323, %339 : vector<25x128xf32>
    %c18_i32 = arith.constant 18 : i32
    %cst_96 = arith.constant 0.000000e+00 : f32
    %341 = vector.broadcast %cst_96 : f32 to vector<25x128xf32>
    %342 = arith.cmpf ogt, %340, %341 : vector<25x128xf32>
    %343 = vector.broadcast %cst_24 : f32 to vector<25x128xf32>
    %344 = arith.select %342, %343, %32 : vector<25x128xi1>, vector<25x128xf32>
    %cst_97 = arith.constant dense<0xFF800000> : vector<25xf32>
    %345 = vector.multi_reduction <maximumf>, %344, %cst_97 [1] : vector<25x128xf32> to vector<25xf32>
    %346 = vector.shape_cast %345 : vector<25xf32> to vector<25x1xf32>
    %347 = vector.broadcast %346 : vector<25x1xf32> to vector<25x128xf32>
    %348 = arith.cmpf oeq, %344, %347 : vector<25x128xf32>
    %c128_i32_98 = arith.constant 128 : i32
    %349 = vector.broadcast %c128_i32_98 : i32 to vector<25x128xi32>
    %350 = arith.select %348, %33, %349 : vector<25x128xi1>, vector<25x128xi32>
    %cst_99 = arith.constant dense<2147483647> : vector<25xi32>
    %351 = vector.multi_reduction <minsi>, %350, %cst_99 [1] : vector<25x128xi32> to vector<25xi32>
    %352 = vector.shape_cast %351 : vector<25xi32> to vector<25x1xi32>
    %353 = vector.broadcast %352 : vector<25x1xi32> to vector<25x128xi32>
    %354 = arith.cmpi eq, %33, %353 : vector<25x128xi32>
    %355 = arith.extui %354 : vector<25x128xi1> to vector<25x128xi32>
    %356 = arith.sitofp %355 : vector<25x128xi32> to vector<25x128xf32>
    %357 = arith.maximumf %340, %356 : vector<25x128xf32>
    %358 = arith.mulf %32, %357 : vector<25x128xf32>
    %c0_100 = arith.constant 0 : index
    %c0_101 = arith.constant 0 : index
    %c0_102 = arith.constant 0 : index
    %359 = vector.load %arg4[%c0_100, %c0_101, %c0_102] : memref<1x25x128xf32, #tpu.memory_space<vmem>>, vector<1x25x128xf32>
    %360 = vector.shape_cast %359 : vector<1x25x128xf32> to vector<25x128xf32>
    %361 = vector.shape_cast %358 : vector<25x128xf32> to vector<1x25x128xf32>
    tpu.vector_store %arg4[%c0_100, %c0_101, %c0_102], %361 {strides = array<i32>} : memref<1x25x128xf32, #tpu.memory_space<vmem>>, vector<1x25x128xf32>,
    return
  }
  func.func @transform_0(%arg0: i32) -> (i32, i32, i32, i32) {
    %c0_i32 = arith.constant 0 : i32
    %c0_i32_0 = arith.constant 0 : i32
    %c0_i32_1 = arith.constant 0 : i32
    %c0_i32_2 = arith.constant 0 : i32
    return %arg0, %c0_i32, %c0_i32_0, %c0_i32_1 : i32, i32, i32, i32
  }
  func.func @transform_1(%arg0: i32) -> (i32, i32) {
    %c0_i32 = arith.constant 0 : i32
    %c0_i32_0 = arith.constant 0 : i32
    %c0_i32_1 = arith.constant 0 : i32
    return %c0_i32, %c0_i32_0 : i32, i32
  }
  func.func @transform_2(%arg0: i32) -> (i32, i32) {
    %c0_i32 = arith.constant 0 : i32
    %c0_i32_0 = arith.constant 0 : i32
    %c0_i32_1 = arith.constant 0 : i32
    return %c0_i32, %c0_i32_0 : i32, i32
  }
  func.func @transform_3(%arg0: i32) -> (i32, i32, i32) {
    %c0_i32 = arith.constant 0 : i32
    %c0_i32_0 = arith.constant 0 : i32
    %c0_i32_1 = arith.constant 0 : i32
    return %arg0, %c0_i32, %c0_i32_0 : i32, i32, i32
  }
}

module attributes {stable_mosaic.version = 11 : i64} {
  func.func @_dense_head_kernel(%arg0: memref<2x3200xbf16, #tpu.memory_space<vmem>>, %arg1: memref<3200x256xbf16, #tpu.memory_space<vmem>>, %arg2: memref<1x256xf32, #tpu.memory_space<vmem>>, %arg3: memref<256x128xf32, #tpu.memory_space<vmem>>, %arg4: memref<1x128xf32, #tpu.memory_space<vmem>>, %arg5: memref<128x10xf32, #tpu.memory_space<vmem>>, %arg6: memref<1x10xf32, #tpu.memory_space<vmem>>, %arg7: memref<2x10xf32, #tpu.memory_space<vmem>>) attributes {dimension_semantics = [], scalar_prefetch = 0 : i64, scratch_operands = 0 : i64, tpu.core_type = #tpu.core_type<tc>} {
    %c0 = arith.constant 0 : index
    %c0_0 = arith.constant 0 : index
    %0 = vector.load %arg0[%c0, %c0_0] : memref<2x3200xbf16, #tpu.memory_space<vmem>>, vector<2x3200xbf16>
    %c0_1 = arith.constant 0 : index
    %c0_2 = arith.constant 0 : index
    %1 = vector.load %arg1[%c0_1, %c0_2] : memref<3200x256xbf16, #tpu.memory_space<vmem>>, vector<3200x256xbf16>
    %cst = arith.constant dense<0.000000e+00> : vector<2x256xf32>
    %2 = tpu.matmul %0, %1, %cst {dimension_numbers = #tpu.dot_dimension_numbers<[1], [0], [0], [1], [0, 0, 1, 1], [], []>} : vector<2x3200xbf16>, vector<3200x256xbf16>, vector<2x256xf32> -> vector<2x256xf32>
    %c0_3 = arith.constant 0 : index
    %c0_4 = arith.constant 0 : index
    %3 = vector.load %arg2[%c0_3, %c0_4] : memref<1x256xf32, #tpu.memory_space<vmem>>, vector<1x256xf32>
    %4 = vector.broadcast %3 : vector<1x256xf32> to vector<2x256xf32>
    %5 = arith.addf %2, %4 : vector<2x256xf32>
    %cst_5 = arith.constant 0.000000e+00 : f32
    %6 = vector.broadcast %cst_5 : f32 to vector<2x256xf32>
    %7 = arith.maximumf %5, %6 : vector<2x256xf32>
    %c0_6 = arith.constant 0 : index
    %c0_7 = arith.constant 0 : index
    %8 = vector.load %arg3[%c0_6, %c0_7] : memref<256x128xf32, #tpu.memory_space<vmem>>, vector<256x128xf32>
    %cst_8 = arith.constant dense<0.000000e+00> : vector<2x128xf32>
    %9 = tpu.matmul %7, %8, %cst_8 {dimension_numbers = #tpu.dot_dimension_numbers<[1], [0], [0], [1], [0, 0, 1, 1], [], []>} : vector<2x256xf32>, vector<256x128xf32>, vector<2x128xf32> -> vector<2x128xf32>
    %c0_9 = arith.constant 0 : index
    %c0_10 = arith.constant 0 : index
    %10 = vector.load %arg4[%c0_9, %c0_10] : memref<1x128xf32, #tpu.memory_space<vmem>>, vector<1x128xf32>
    %11 = vector.broadcast %10 : vector<1x128xf32> to vector<2x128xf32>
    %12 = arith.addf %9, %11 : vector<2x128xf32>
    %cst_11 = arith.constant 0.000000e+00 : f32
    %13 = vector.broadcast %cst_11 : f32 to vector<2x128xf32>
    %14 = arith.maximumf %12, %13 : vector<2x128xf32>
    %c0_12 = arith.constant 0 : index
    %c0_13 = arith.constant 0 : index
    %15 = vector.load %arg5[%c0_12, %c0_13] : memref<128x10xf32, #tpu.memory_space<vmem>>, vector<128x10xf32>
    %cst_14 = arith.constant dense<0.000000e+00> : vector<2x10xf32>
    %16 = tpu.matmul %14, %15, %cst_14 {dimension_numbers = #tpu.dot_dimension_numbers<[1], [0], [0], [1], [0, 0, 1, 1], [], []>} : vector<2x128xf32>, vector<128x10xf32>, vector<2x10xf32> -> vector<2x10xf32>
    %c0_15 = arith.constant 0 : index
    %c0_16 = arith.constant 0 : index
    %17 = vector.load %arg6[%c0_15, %c0_16] : memref<1x10xf32, #tpu.memory_space<vmem>>, vector<1x10xf32>
    %18 = vector.broadcast %17 : vector<1x10xf32> to vector<2x10xf32>
    %19 = arith.addf %16, %18 : vector<2x10xf32>
    %cst_17 = arith.constant dense<0xFF800000> : vector<2xf32>
    %20 = vector.multi_reduction <maximumf>, %19, %cst_17 [1] : vector<2x10xf32> to vector<2xf32>
    %21 = vector.shape_cast %20 : vector<2xf32> to vector<2x1xf32>
    %22 = vector.broadcast %21 : vector<2x1xf32> to vector<2x10xf32>
    %23 = arith.subf %19, %22 : vector<2x10xf32>
    %24 = math.exp %23 : vector<2x10xf32>
    %cst_18 = arith.constant dense<0.000000e+00> : vector<2xf32>
    %25 = vector.multi_reduction <add>, %24, %cst_18 [1] : vector<2x10xf32> to vector<2xf32>
    %26 = vector.shape_cast %25 : vector<2xf32> to vector<2x1xf32>
    %27 = math.log %26 : vector<2x1xf32>
    %28 = vector.broadcast %27 : vector<2x1xf32> to vector<2x10xf32>
    %29 = arith.subf %23, %28 : vector<2x10xf32>
    %c0_19 = arith.constant 0 : index
    %c0_20 = arith.constant 0 : index
    %30 = vector.load %arg7[%c0_19, %c0_20] : memref<2x10xf32, #tpu.memory_space<vmem>>, vector<2x10xf32>
    tpu.vector_store %arg7[%c0_19, %c0_20], %29 {strides = array<i32>} : memref<2x10xf32, #tpu.memory_space<vmem>>, vector<2x10xf32>,
    return
  }
}

</mosaic_0001>

<llo_original>
// kernel: sdr_cnn_forward.3
$region0: #{sdr_cnn_forward.3}
  #allocation0 [shape = 'u32[]', space=smem, size = 0x4, offset = 0x4, fixed_abs, tag = 'smem constant byte address 0x4 - core index']
  #allocation1 [shape = 'u32[144,128]{1,0:T(1,128)}', space=vmem, size = 0x12000, scoped, tag = 'internal scratch']
  %s0 = inlined_call_operand.vmem [shape: bf16[2,4,196,25], index: 0, kind: input, shape index: {}]
  %s1 = inlined_call_operand.vmem [shape: bf16[25,64], index: 1, kind: input, shape index: {}]
  %s2 = inlined_call_operand.vmem [shape: f32[1,64], index: 2, kind: input, shape index: {}]
  %s3 = inlined_call_operand.vmem [shape: f32[2,196,64], index: 3, kind: output, shape index: {}]
  %s4 = sld [smem:[#allocation0]]
  $region45: #{sdr_cnn_forward.3} parent=0
    _
  %s6 = ssub.s32 1, %s4
  %s7 = scalar_select 0, %s6, %s4
  loop: start=0, step=1, limit=4
  $region2: #{sdr_cnn_forward.3} parent=0 // loop_pre_header
    _
  $region3: #{sdr_cnn_forward.3} parent=0 // loop_header
    %s9 = sphi 0, %s13
    %p10 = scmp.ge.s32.totalorder %s9, 4
    %s19 = sphi 0, %s21
    %s22 = sphi 0, %s19
    %s23 = sphi 0, %s22
    %s39 = sphi 0, %s23
    %s43 = sphi 0, %s43
    %s45 = sphi 0, %s43
    %s46 = sphi 0, %s45
    %s60 = sphi 0, %s46
    %s64 = sphi 0, %s64
    %s66 = sphi 0, %s64
    %s67 = sphi 0, %s66
    %s81 = sphi 0, %s67
    %s87 = sphi 0, %s89
    %s90 = sphi 0, %s87
    %s91 = sphi 0, %s90
    %s107 = sphi 0, %s91
  $region4: #{sdr_cnn_forward.3} parent=0 // loop_header_branch
    %12 = sbr.rel (%p10) target = $region8
  $region5: #{sdr_cnn_forward.3} parent=0 // loop_body
    %s14 = ssub.s32 %s9, 1
    %s15 = ssub.s32 %s9, 2
    %s16 = sadd.s32 %s9, 1
    %s17 = ssub.s32 %s9, %s16
    %p18 = scmp.eq.s32.totalorder %s17, 0
    %s20 = sadd.s32 %s19, 1
    %s21 = scalar_select %p18, %s19, %s20
    %p24 = pneg %p18
    %p25 = scmp.eq.s32.totalorder %s9, 1
    %p26 = por %p24, %p25
    %p27 = scmp.ne.s32.totalorder %s19, %s22
    %p28 = scmp.eq.s32.totalorder %s9, 0
    %p29 = por %p27, %p28
    %p30 = scmp.ne.s32.totalorder %s19, %s22
    %p31 = scmp.eq.s32.totalorder %s14, 1
    %p32 = por %p30, %p31
    %p33 = scmp.ne.s32.totalorder %s22, %s23
    %p34 = scmp.eq.s32.totalorder %s14, 0
    %p35 = por %p33, %p34
    %p36 = scmp.ne.s32.totalorder %s22, %s23
    %p37 = scmp.eq.s32.totalorder %s15, 1
    %p38 = por %p36, %p37
    %p40 = scmp.ne.s32.totalorder %s23, %s39
    %p41 = scmp.eq.s32.totalorder %s15, 0
    %p42 = por %p40, %p41
    %s44 = sadd.s32 %s43, 1
    %p47 = scmp.eq.s32.totalorder %s9, 1
    %p48 = scmp.ne.s32.totalorder %s43, %s45
    %p49 = scmp.eq.s32.totalorder %s9, 0
    %p50 = por %p48, %p49
    %p51 = scmp.ne.s32.totalorder %s43, %s45
    %p52 = scmp.eq.s32.totalorder %s14, 1
    %p53 = por %p51, %p52
    %p54 = scmp.ne.s32.totalorder %s45, %s46
    %p55 = scmp.eq.s32.totalorder %s14, 0
    %p56 = por %p54, %p55
    %p57 = scmp.ne.s32.totalorder %s45, %s46
    %p58 = scmp.eq.s32.totalorder %s15, 1
    %p59 = por %p57, %p58
    %p61 = scmp.ne.s32.totalorder %s46, %s60
    %p62 = scmp.eq.s32.totalorder %s15, 0
    %p63 = por %p61, %p62
    %s65 = sadd.s32 %s64, 1
    %p68 = scmp.eq.s32.totalorder %s9, 1
    %p69 = scmp.ne.s32.totalorder %s64, %s66
    %p70 = scmp.eq.s32.totalorder %s9, 0
    %p71 = por %p69, %p70
    %p72 = scmp.ne.s32.totalorder %s64, %s66
    %p73 = scmp.eq.s32.totalorder %s14, 1
    %p74 = por %p72, %p73
    %p75 = scmp.ne.s32.totalorder %s66, %s67
    %p76 = scmp.eq.s32.totalorder %s14, 0
    %p77 = por %p75, %p76
    %p78 = scmp.ne.s32.totalorder %s66, %s67
    %p79 = scmp.eq.s32.totalorder %s15, 1
    %p80 = por %p78, %p79
    %p82 = scmp.ne.s32.totalorder %s67, %s81
    %p83 = scmp.eq.s32.totalorder %s15, 0
    %p84 = por %p82, %p83
    %s85 = ssub.s32 %s9, %s16
    %p86 = scmp.eq.s32.totalorder %s85, 0
    %s88 = sadd.s32 %s87, 1
    %s89 = scalar_select %p86, %s87, %s88
    %p92 = pneg %p86
    %p93 = scmp.eq.s32.totalorder %s9, 1
    %p94 = por %p92, %p93
    %p95 = scmp.ne.s32.totalorder %s87, %s90
    %p96 = scmp.eq.s32.totalorder %s9, 0
    %p97 = por %p95, %p96
    %p98 = scmp.ne.s32.totalorder %s87, %s90
    %p99 = scmp.eq.s32.totalorder %s14, 1
    %p100 = por %p98, %p99
    %p101 = scmp.ne.s32.totalorder %s90, %s91
    %p102 = scmp.eq.s32.totalorder %s14, 0
    %p103 = por %p101, %p102
    %p104 = scmp.ne.s32.totalorder %s90, %s91
    %p105 = scmp.eq.s32.totalorder %s15, 1
    %p106 = por %p104, %p105
    %p108 = scmp.ne.s32.totalorder %s91, %s107
    %p109 = scmp.eq.s32.totalorder %s15, 0
    %p110 = por %p108, %p109
    %p111 = scmp.le.s32.totalorder 1, %s9
    %p112 = scmp.lt.s32.totalorder %s9, 3
    %p113 = pnand %p111, %p112
    %p114 = pneg %p113
    // Predicated region
    $region9: #{sdr_cnn_forward.3} parent=5 // pred_check
      _
    $region10: #{sdr_cnn_forward.3} parent=5 // pred_check_branch
      %116 = sbr.rel (%p113) target = $region12
    $region11: #{sdr_cnn_forward.3} parent=5 // pred_region
      %s117 = ssub.s32 %s9, 1
      // Predicated region
      $region13: #{sdr_cnn_forward.3} parent=11 // pred_check
        %p118 = pneg %p56
      $region14: #{sdr_cnn_forward.3} parent=11 // pred_check_branch
        %120 = sbr.rel (%p118) target = $region16
      $region15: #{sdr_cnn_forward.3} parent=11 // pred_region
        _
      $region16: #{sdr_cnn_forward.3} parent=11 // pred_fallthru
        _
      // Predicated region
      $region17: #{sdr_cnn_forward.3} parent=11 // pred_check
        %p121 = pneg %p77
      $region18: #{sdr_cnn_forward.3} parent=11 // pred_check_branch
        %123 = sbr.rel (%p121) target = $region20
      $region19: #{sdr_cnn_forward.3} parent=11 // pred_region
        _
      $region20: #{sdr_cnn_forward.3} parent=11 // pred_fallthru
        _
    $region12: #{sdr_cnn_forward.3} parent=5 // pred_fallthru
      _
    %p124 = scmp.lt.s32.totalorder %s9, 2
    // Predicated region
    $region21: #{sdr_cnn_forward.3} parent=5 // pred_check
      %p125 = pneg %p124
    $region22: #{sdr_cnn_forward.3} parent=5 // pred_check_branch
      %127 = sbr.rel (%p125) target = $region24
    $region23: #{sdr_cnn_forward.3} parent=5 // pred_region
      // Predicated region
      $region25: #{sdr_cnn_forward.3} parent=23 // pred_check
        %p128 = pneg %p29
      $region26: #{sdr_cnn_forward.3} parent=23 // pred_check_branch
        %130 = sbr.rel (%p128) target = $region28
      $region27: #{sdr_cnn_forward.3} parent=23 // pred_region
        %p131 = scmp.lt.s32.totalorder %s9, 1
        %s132 = scalar_select %p131, %s9, 1
        %s133 = smul.addr %s132, 100
        %s134 = smul.addr %s133, 4
        %s135 = scalar_lea.vmem %s0, %s134
      $region28: #{sdr_cnn_forward.3} parent=23 // pred_fallthru
        _
    $region24: #{sdr_cnn_forward.3} parent=5 // pred_fallthru
      _
    %p136 = scmp.le.s32.totalorder 1, %s9
    %p137 = scmp.lt.s32.totalorder %s9, 3
    %p138 = pnand %p136, %p137
    %p139 = pneg %p138
    // Predicated region
    $region29: #{sdr_cnn_forward.3} parent=5 // pred_check
      _
    $region30: #{sdr_cnn_forward.3} parent=5 // pred_check_branch
      %141 = sbr.rel (%p138) target = $region32
    $region31: #{sdr_cnn_forward.3} parent=5 // pred_region
      %s142 = ssub.s32 %s9, 1
      %p143 = scmp.lt.s32.totalorder %s14, 1
      %s144 = scalar_select %p143, %s14, 1
      %s145 = smul.addr %s144, 100
      %s146 = smul.addr %s145, 4
      %s147 = scalar_lea.vmem %s0, %s146
      %p148 = pneg %p35
      %p149 = pneg %p32
      %p150 = pneg %p56
      %p151 = pneg %p53
      %p152 = pneg %p77
      %p153 = pneg %p74
      %p154 = pneg %p103
      %p155 = pneg %p100
      %p156 = scmp.lt.s32.totalorder %s14, 1
      %s157 = scalar_select %p156, %s14, 1
      %s158 = smul.addr %s157, 25
      %s159 = smul.addr %s158, 8
      %s160 = scalar_lea.vmem %s3, %s159
      %p161 = scmp.lt.s32.totalorder %s14, 1
      %s162 = scalar_select %p161, %s14, 1
      %s163 = smul.addr %s162, 100
      %s164 = smul.addr %s163, 4
      %s165 = scalar_lea.vmem %s0, %s164
      %p166 = scmp.lt.s32.totalorder %s14, 1
      %s167 = scalar_select %p166, %s14, 1
      %s168 = smul.addr %s167, 25
      %s169 = smul.addr %s168, 8
      %s170 = scalar_lea.vmem %s3, %s169
      %v172 = vld [vmem:[%s1] sm:$0xf]
      %v173 = vld [vmem:[%s1 + $0x4] sm:$0xf]
      %v174 = vld [vmem:[%s1 + $0x8] sm:$0xf]
      %v175 = vld [vmem:[%s1 + $0xc] sm:$0x1]
      %v176 = vld [vmem:[%s2] sm:$0x1]
      %v177 = vld [vmem:[%s165] sm:$0xf]
      %v178 = vld [vmem:[%s165 + $0x4] sm:$0xf]
      %v179 = vld [vmem:[%s165 + $0x8] sm:$0xf]
      %v180 = vld [vmem:[%s165 + $0xc] sm:$0xf]
      %v181 = vld [vmem:[%s165 + $0x10] sm:$0xf]
      %v182 = vld [vmem:[%s165 + $0x14] sm:$0xf]
      %v183 = vld [vmem:[%s165 + $0x18] sm:$0xf]
      %v184 = vld [vmem:[%s165 + $0x1c] sm:$0xf]
      %v185 = vld [vmem:[%s165 + $0x20] sm:$0xf]
      %v186 = vld [vmem:[%s165 + $0x24] sm:$0xf]
      %v187 = vld [vmem:[%s165 + $0x28] sm:$0xf]
      %v188 = vld [vmem:[%s165 + $0x2c] sm:$0xf]
      %v189 = vld [vmem:[%s165 + $0x30] sm:$0xf]
      %v190 = vld [vmem:[%s165 + $0x34] sm:$0xf]
      %v191 = vld [vmem:[%s165 + $0x38] sm:$0xf]
      %v192 = vld [vmem:[%s165 + $0x3c] sm:$0xf]
      %v193 = vld [vmem:[%s165 + $0x40] sm:$0xf]
      %v194 = vld [vmem:[%s165 + $0x44] sm:$0xf]
      %v195 = vld [vmem:[%s165 + $0x48] sm:$0xf]
      %v196 = vld [vmem:[%s165 + $0x4c] sm:$0xf]
      %v197 = vld [vmem:[%s165 + $0x50] sm:$0xf]
      %v198 = vld [vmem:[%s165 + $0x54] sm:$0xf]
      %v199 = vld [vmem:[%s165 + $0x58] sm:$0xf]
      %v200 = vld [vmem:[%s165 + $0x5c] sm:$0xf]
      %v201 = vld [vmem:[%s165 + $0x60] sm:$0x3]
      %v203 = vlaneseq
      %v204 = vshrl.u32 %v203, 7
      %v205 = vsub.s32 0, %v204
      %v206 = vrot.slane %v176, %v205
      %v233 = vunpack.c.l.b16 %v177
      %v234 = vunpack.c.l.b16 %v178
      %v235 = vunpack.c.l.b16 %v179
      %v236 = vunpack.c.l.b16 %v180
      %v237 = vunpack.c.l.b16 %v181
      %v238 = vunpack.c.l.b16 %v182
      %v239 = vunpack.c.l.b16 %v183
      %v240 = vunpack.c.l.b16 %v184
      %v241 = vunpack.c.l.b16 %v185
      %v242 = vunpack.c.l.b16 %v186
      %v243 = vunpack.c.l.b16 %v187
      %v244 = vunpack.c.l.b16 %v188
      %v245 = vunpack.c.l.b16 %v189
      %v246 = vunpack.c.l.b16 %v190
      %v247 = vunpack.c.l.b16 %v191
      %v248 = vunpack.c.l.b16 %v192
      %v249 = vunpack.c.l.b16 %v193
      %v250 = vunpack.c.l.b16 %v194
      %v251 = vunpack.c.l.b16 %v195
      %v252 = vunpack.c.l.b16 %v196
      %v253 = vunpack.c.l.b16 %v197
      %v254 = vunpack.c.l.b16 %v198
      %v255 = vunpack.c.l.b16 %v199
      %v256 = vunpack.c.l.b16 %v200
      %v257 = vunpack.c.l.b16 %v201
      %v258 = vpack.c.b16 %v234, %v233
      %v259 = vpack.c.b16 %v236, %v235
      %v260 = vpack.c.b16 %v238, %v237
      %v261 = vpack.c.b16 %v240, %v239
      %v262 = vpack.c.b16 %v242, %v241
      %v263 = vpack.c.b16 %v244, %v243
      %v264 = vpack.c.b16 %v246, %v245
      %v265 = vpack.c.b16 %v248, %v247
      %v266 = vpack.c.b16 %v250, %v249
      %v267 = vpack.c.b16 %v252, %v251
      %v268 = vpack.c.b16 %v254, %v253
      %v269 = vpack.c.b16 %v256, %v255
      %v270 = vpack.c.b16 %v257, %v257
      %v275 = vunpack.c.l.b16 %v172
      %v276 = vunpack.c.l.b16 %v173
      %v277 = vunpack.c.l.b16 %v174
      %v278 = vunpack.c.l.b16 %v175
      %v279 = vpack.c.b16 %v276, %v275
      %v280 = vpack.c.b16 %v278, %v277
      %vm282 = vcmask 203776
      %v284 = vsel %vm282, %v258, 0
      %v287 = vsel %vm282, %v259, 0
      %v290 = vsel %vm282, %v260, 0
      %v293 = vsel %vm282, %v261, 0
      %v296 = vsel %vm282, %v262, 0
      %v299 = vsel %vm282, %v263, 0
      %v302 = vsel %vm282, %v264, 0
      %v305 = vsel %vm282, %v265, 0
      %v308 = vsel %vm282, %v266, 0
      %v311 = vsel %vm282, %v267, 0
      %v314 = vsel %vm282, %v268, 0
      %v317 = vsel %vm282, %v269, 0
      %v320 = vsel %vm282, %v270, 0
      %vm322 = vcmask 1043456
      %vm323 = vcmask 1044480
      %v324 = vsel %vm322, 4294967295, 65535
      %v325 = vsel %vm323, %v324, 0
      %v327 = vand.u32 %v280, %v325
      %329 = vmatprep.subr.bf16.mxu0 0
      %330 = vmatpush1.bf16.msra.mxu0 0
      %331 = vmatprep.subr.bf16.mxu0 0
      %332 = vmatpush1.bf16.msra.mxu0 0
      %333 = vmatprep.subr.bf16.mxu0 0
      %334 = vmatpush1.bf16.msra.mxu0 0
      %335 = vmatprep.subr.bf16.mxu0 0
      %336 = vmatpush1.bf16.msra.mxu0 0
      %337 = vmatprep.subr.bf16.mxu0 0
      %338 = vmatpush1.bf16.msra.mxu0 0
      %339 = vmatprep.subr.bf16.mxu0 0
      %340 = vmatpush1.bf16.msra.mxu0 0
      %341 = vmatprep.subr.bf16.mxu0 0
      %342 = vmatpush1.bf16.msra.mxu0 %v327
      %343 = vmatprep.subr.bf16.mxu0 0
      %344 = vmatpush1.bf16.msra.mxu0 %v279
      %345 = vmatprep.subr.bf16.mxu0 0
      %346 = vmatpush2.bf16.msra.mxu0 0
      %347 = vmatprep.subr.bf16.mxu0 0
      %348 = vmatpush2.bf16.msra.mxu0 0
      %349 = vmatprep.subr.bf16.mxu0 0
      %350 = vmatpush2.bf16.msra.mxu0 0
      %351 = vmatprep.subr.bf16.mxu0 0
      %352 = vmatpush2.bf16.msra.mxu0 0
      %353 = vmatprep.subr.bf16.mxu0 0
      %354 = vmatpush2.bf16.msra.mxu0 0
      %355 = vmatprep.subr.bf16.mxu0 0
      %356 = vmatpush2.bf16.msra.mxu0 0
      %357 = vmatprep.subr.bf16.mxu0 0
      %358 = vmatpush2.bf16.msra.mxu0 0
      %359 = vmatprep.subr.bf16.mxu0 0
      %360 = vmatpush2.bf16.msra.mxu0 0
      %361 = vmatprep.mubr.bf16.mxu0 0
      %362 = vmatmul.mubr.bf16.gmra.mxu0 %v284
      %v363 = vpop.f32.mrf.mxu0
      %v364 = vadd.f32 %v206, %v363
      %v365 = vpop.f32.mrf.mxu0
      %v366 = vpop.f32.mrf.mxu0
      %v367 = vadd.f32 %v206, %v366
      %v368 = vpop.f32.mrf.mxu0
      %369 = vmatprep.mubr.bf16.mxu0 0
      %370 = vmatmul.mubr.bf16.gmra.mxu0 %v287
      %v371 = vpop.f32.mrf.mxu0
      %v372 = vadd.f32 %v206, %v371
      %v373 = vpop.f32.mrf.mxu0
      %v374 = vpop.f32.mrf.mxu0
      %v375 = vadd.f32 %v206, %v374
      %v376 = vpop.f32.mrf.mxu0
      %377 = vmatprep.mubr.bf16.mxu0 0
      %378 = vmatmul.mubr.bf16.gmra.mxu0 %v290
      %v379 = vpop.f32.mrf.mxu0
      %v380 = vadd.f32 %v206, %v379
      %v381 = vpop.f32.mrf.mxu0
      %v382 = vpop.f32.mrf.mxu0
      %v383 = vadd.f32 %v206, %v382
      %v384 = vpop.f32.mrf.mxu0
      %385 = vmatprep.mubr.bf16.mxu0 0
      %386 = vmatmul.mubr.bf16.gmra.mxu0 %v293
      %v387 = vpop.f32.mrf.mxu0
      %v388 = vadd.f32 %v206, %v387
      %v389 = vpop.f32.mrf.mxu0
      %v390 = vpop.f32.mrf.mxu0
      %v391 = vadd.f32 %v206, %v390
      %v392 = vpop.f32.mrf.mxu0
      %393 = vmatprep.mubr.bf16.mxu0 0
      %394 = vmatmul.mubr.bf16.gmra.mxu0 %v296
      %v395 = vpop.f32.mrf.mxu0
      %v396 = vadd.f32 %v206, %v395
      %v397 = vpop.f32.mrf.mxu0
      %v398 = vpop.f32.mrf.mxu0
      %v399 = vadd.f32 %v206, %v398
      %v400 = vpop.f32.mrf.mxu0
      %401 = vmatprep.mubr.bf16.mxu0 0
      %402 = vmatmul.mubr.bf16.gmra.mxu0 %v299
      %v403 = vpop.f32.mrf.mxu0
      %v404 = vadd.f32 %v206, %v403
      %v405 = vpop.f32.mrf.mxu0
      %v406 = vpop.f32.mrf.mxu0
      %v407 = vadd.f32 %v206, %v406
      %v408 = vpop.f32.mrf.mxu0
      %409 = vmatprep.mubr.bf16.mxu0 0
      %410 = vmatmul.mubr.bf16.gmra.mxu0 %v302
      %v411 = vpop.f32.mrf.mxu0
      %v412 = vadd.f32 %v206, %v411
      %v413 = vpop.f32.mrf.mxu0
      %v414 = vpop.f32.mrf.mxu0
      %v415 = vadd.f32 %v206, %v414
      %v416 = vpop.f32.mrf.mxu0
      %417 = vmatprep.mubr.bf16.mxu0 0
      %418 = vmatmul.mubr.bf16.gmra.mxu0 %v305
      %v419 = vpop.f32.mrf.mxu0
      %v420 = vadd.f32 %v206, %v419
      %v421 = vpop.f32.mrf.mxu0
      %v422 = vpop.f32.mrf.mxu0
      %v423 = vadd.f32 %v206, %v422
      %v424 = vpop.f32.mrf.mxu0
      %425 = vmatprep.mubr.bf16.mxu0 0
      %426 = vmatmul.mubr.bf16.gmra.mxu0 %v308
      %v427 = vpop.f32.mrf.mxu0
      %v428 = vadd.f32 %v206, %v427
      %v429 = vpop.f32.mrf.mxu0
      %v430 = vpop.f32.mrf.mxu0
      %v431 = vadd.f32 %v206, %v430
      %v432 = vpop.f32.mrf.mxu0
      %433 = vmatprep.mubr.bf16.mxu0 0
      %434 = vmatmul.mubr.bf16.gmra.mxu0 %v311
      %v435 = vpop.f32.mrf.mxu0
      %v436 = vadd.f32 %v206, %v435
      %v437 = vpop.f32.mrf.mxu0
      %v438 = vpop.f32.mrf.mxu0
      %v439 = vadd.f32 %v206, %v438
      %v440 = vpop.f32.mrf.mxu0
      %441 = vmatprep.mubr.bf16.mxu0 0
      %442 = vmatmul.mubr.bf16.gmra.mxu0 %v314
      %v443 = vpop.f32.mrf.mxu0
      %v444 = vadd.f32 %v206, %v443
      %v445 = vpop.f32.mrf.mxu0
      %v446 = vpop.f32.mrf.mxu0
      %v447 = vadd.f32 %v206, %v446
      %v448 = vpop.f32.mrf.mxu0
      %449 = vmatprep.mubr.bf16.mxu0 0
      %450 = vmatmul.mubr.bf16.gmra.mxu0 %v317
      %v451 = vpop.f32.mrf.mxu0
      %v452 = vadd.f32 %v206, %v451
      %v453 = vpop.f32.mrf.mxu0
      %v454 = vpop.f32.mrf.mxu0
      %v455 = vadd.f32 %v206, %v454
      %v456 = vpop.f32.mrf.mxu0
      %457 = vmatprep.mubr.bf16.mxu0 0
      %458 = vmatmul.mubr.bf16.gmra.mxu0 %v320
      %v459 = vpop.f32.mrf.mxu0
      %v460 = vadd.f32 %v206, %v459
      %v461 = vpop.f32.mrf.mxu0
      %v462 = vpop.f32.mrf.mxu0
      %v463 = vpop.f32.mrf.mxu0
      %464 = vdwg.mxu0
      %v465 = vmax.f32 %v364, 0.0
      %v466 = vmax.f32 %v367, 0.0
      %v467 = vmax.f32 %v372, 0.0
      %v468 = vmax.f32 %v375, 0.0
      %v469 = vmax.f32 %v380, 0.0
      %v470 = vmax.f32 %v383, 0.0
      %v471 = vmax.f32 %v388, 0.0
      %v472 = vmax.f32 %v391, 0.0
      %v473 = vmax.f32 %v396, 0.0
      %v474 = vmax.f32 %v399, 0.0
      %v475 = vmax.f32 %v404, 0.0
      %v476 = vmax.f32 %v407, 0.0
      %v477 = vmax.f32 %v412, 0.0
      %v478 = vmax.f32 %v415, 0.0
      %v479 = vmax.f32 %v420, 0.0
      %v480 = vmax.f32 %v423, 0.0
      %v481 = vmax.f32 %v428, 0.0
      %v482 = vmax.f32 %v431, 0.0
      %v483 = vmax.f32 %v436, 0.0
      %v484 = vmax.f32 %v439, 0.0
      %v485 = vmax.f32 %v444, 0.0
      %v486 = vmax.f32 %v447, 0.0
      %v487 = vmax.f32 %v452, 0.0
      %v488 = vmax.f32 %v455, 0.0
      %v489 = vmax.f32 %v460, 0.0
      %s490 = scalar_lea.vmem %s165, 100
      %v491 = vld [vmem:[%s490] sm:$0xf]
      %v492 = vld [vmem:[%s490 + $0x4] sm:$0xf]
      %v493 = vld [vmem:[%s490 + $0x8] sm:$0xf]
      %v494 = vld [vmem:[%s490 + $0xc] sm:$0xf]
      %v495 = vld [vmem:[%s490 + $0x10] sm:$0xf]
      %v496 = vld [vmem:[%s490 + $0x14] sm:$0xf]
      %v497 = vld [vmem:[%s490 + $0x18] sm:$0xf]
      %v498 = vld [vmem:[%s490 + $0x1c] sm:$0xf]
      %v499 = vld [vmem:[%s490 + $0x20] sm:$0xf]
      %v500 = vld [vmem:[%s490 + $0x24] sm:$0xf]
      %v501 = vld [vmem:[%s490 + $0x28] sm:$0xf]
      %v502 = vld [vmem:[%s490 + $0x2c] sm:$0xf]
      %v503 = vld [vmem:[%s490 + $0x30] sm:$0xf]
      %v504 = vld [vmem:[%s490 + $0x34] sm:$0xf]
      %v505 = vld [vmem:[%s490 + $0x38] sm:$0xf]
      %v506 = vld [vmem:[%s490 + $0x3c] sm:$0xf]
      %v507 = vld [vmem:[%s490 + $0x40] sm:$0xf]
      %v508 = vld [vmem:[%s490 + $0x44] sm:$0xf]
      %v509 = vld [vmem:[%s490 + $0x48] sm:$0xf]
      %v510 = vld [vmem:[%s490 + $0x4c] sm:$0xf]
      %v511 = vld [vmem:[%s490 + $0x50] sm:$0xf]
      %v512 = vld [vmem:[%s490 + $0x54] sm:$0xf]
      %v513 = vld [vmem:[%s490 + $0x58] sm:$0xf]
      %v514 = vld [vmem:[%s490 + $0x5c] sm:$0xf]
      %v515 = vld [vmem:[%s490 + $0x60] sm:$0x3]
      %v541 = vunpack.c.l.b16 %v491
      %v542 = vunpack.c.l.b16 %v492
      %v543 = vunpack.c.l.b16 %v493
      %v544 = vunpack.c.l.b16 %v494
      %v545 = vunpack.c.l.b16 %v495
      %v546 = vunpack.c.l.b16 %v496
      %v547 = vunpack.c.l.b16 %v497
      %v548 = vunpack.c.l.b16 %v498
      %v549 = vunpack.c.l.b16 %v499
      %v550 = vunpack.c.l.b16 %v500
      %v551 = vunpack.c.l.b16 %v501
      %v552 = vunpack.c.l.b16 %v502
      %v553 = vunpack.c.l.b16 %v503
      %v554 = vunpack.c.l.b16 %v504
      %v555 = vunpack.c.l.b16 %v505
      %v556 = vunpack.c.l.b16 %v506
      %v557 = vunpack.c.l.b16 %v507
      %v558 = vunpack.c.l.b16 %v508
      %v559 = vunpack.c.l.b16 %v509
      %v560 = vunpack.c.l.b16 %v510
      %v561 = vunpack.c.l.b16 %v511
      %v562 = vunpack.c.l.b16 %v512
      %v563 = vunpack.c.l.b16 %v513
      %v564 = vunpack.c.l.b16 %v514
      %v565 = vunpack.c.l.b16 %v515
      %v566 = vpack.c.b16 %v542, %v541
      %v567 = vpack.c.b16 %v544, %v543
      %v568 = vpack.c.b16 %v546, %v545
      %v569 = vpack.c.b16 %v548, %v547
      %v570 = vpack.c.b16 %v550, %v549
      %v571 = vpack.c.b16 %v552, %v551
      %v572 = vpack.c.b16 %v554, %v553
      %v573 = vpack.c.b16 %v556, %v555
      %v574 = vpack.c.b16 %v558, %v557
      %v575 = vpack.c.b16 %v560, %v559
      %v576 = vpack.c.b16 %v562, %v561
      %v577 = vpack.c.b16 %v564, %v563
      %v578 = vpack.c.b16 %v565, %v565
      %v580 = vsel %vm282, %v566, 0
      %v583 = vsel %vm282, %v567, 0
      %v586 = vsel %vm282, %v568, 0
      %v589 = vsel %vm282, %v569, 0
      %v592 = vsel %vm282, %v570, 0
      %v595 = vsel %vm282, %v571, 0
      %v598 = vsel %vm282, %v572, 0
      %v601 = vsel %vm282, %v573, 0
      %v604 = vsel %vm282, %v574, 0
      %v607 = vsel %vm282, %v575, 0
      %v610 = vsel %vm282, %v576, 0
      %v613 = vsel %vm282, %v577, 0
      %v616 = vsel %vm282, %v578, 0
      %618 = vmatprep.subr.bf16.mxu0 0
      %619 = vmatpush1.bf16.msra.mxu0 0
      %620 = vmatprep.subr.bf16.mxu0 0
      %621 = vmatpush1.bf16.msra.mxu0 0
      %622 = vmatprep.subr.bf16.mxu0 0
      %623 = vmatpush1.bf16.msra.mxu0 0
      %624 = vmatprep.subr.bf16.mxu0 0
      %625 = vmatpush1.bf16.msra.mxu0 0
      %626 = vmatprep.subr.bf16.mxu0 0
      %627 = vmatpush1.bf16.msra.mxu0 0
      %628 = vmatprep.subr.bf16.mxu0 0
      %629 = vmatpush1.bf16.msra.mxu0 0
      %630 = vmatprep.subr.bf16.mxu0 0
      %631 = vmatpush1.bf16.msra.mxu0 %v327
      %632 = vmatprep.subr.bf16.mxu0 0
      %633 = vmatpush1.bf16.msra.mxu0 %v279
      %634 = vmatprep.subr.bf16.mxu0 0
      %635 = vmatpush2.bf16.msra.mxu0 0
      %636 = vmatprep.subr.bf16.mxu0 0
      %637 = vmatpush2.bf16.msra.mxu0 0
      %638 = vmatprep.subr.bf16.mxu0 0
      %639 = vmatpush2.bf16.msra.mxu0 0
      %640 = vmatprep.subr.bf16.mxu0 0
      %641 = vmatpush2.bf16.msra.mxu0 0
      %642 = vmatprep.subr.bf16.mxu0 0
      %643 = vmatpush2.bf16.msra.mxu0 0
      %644 = vmatprep.subr.bf16.mxu0 0
      %645 = vmatpush2.bf16.msra.mxu0 0
      %646 = vmatprep.subr.bf16.mxu0 0
      %647 = vmatpush2.bf16.msra.mxu0 0
      %648 = vmatprep.subr.bf16.mxu0 0
      %649 = vmatpush2.bf16.msra.mxu0 0
      %650 = vmatprep.mubr.bf16.mxu0 0
      %651 = vmatmul.mubr.bf16.gmra.mxu0 %v580
      %v652 = vpop.f32.mrf.mxu0
      %v653 = vadd.f32 %v206, %v652
      %v654 = vpop.f32.mrf.mxu0
      %v655 = vpop.f32.mrf.mxu0
      %v656 = vadd.f32 %v206, %v655
      %v657 = vpop.f32.mrf.mxu0
      %658 = vmatprep.mubr.bf16.mxu0 0
      %659 = vmatmul.mubr.bf16.gmra.mxu0 %v583
      %v660 = vpop.f32.mrf.mxu0
      %v661 = vadd.f32 %v206, %v660
      %v662 = vpop.f32.mrf.mxu0
      %v663 = vpop.f32.mrf.mxu0
      %v664 = vadd.f32 %v206, %v663
      %v665 = vpop.f32.mrf.mxu0
      %666 = vmatprep.mubr.bf16.mxu0 0
      %667 = vmatmul.mubr.bf16.gmra.mxu0 %v586
      %v668 = vpop.f32.mrf.mxu0
      %v669 = vadd.f32 %v206, %v668
      %v670 = vpop.f32.mrf.mxu0
      %v671 = vpop.f32.mrf.mxu0
      %v672 = vadd.f32 %v206, %v671
      %v673 = vpop.f32.mrf.mxu0
      %674 = vmatprep.mubr.bf16.mxu0 0
      %675 = vmatmul.mubr.bf16.gmra.mxu0 %v589
      %v676 = vpop.f32.mrf.mxu0
      %v677 = vadd.f32 %v206, %v676
      %v678 = vpop.f32.mrf.mxu0
      %v679 = vpop.f32.mrf.mxu0
      %v680 = vadd.f32 %v206, %v679
      %v681 = vpop.f32.mrf.mxu0
      %682 = vmatprep.mubr.bf16.mxu0 0
      %683 = vmatmul.mubr.bf16.gmra.mxu0 %v592
      %v684 = vpop.f32.mrf.mxu0
      %v685 = vadd.f32 %v206, %v684
      %v686 = vpop.f32.mrf.mxu0
      %v687 = vpop.f32.mrf.mxu0
      %v688 = vadd.f32 %v206, %v687
      %v689 = vpop.f32.mrf.mxu0
      %690 = vmatprep.mubr.bf16.mxu0 0
      %691 = vmatmul.mubr.bf16.gmra.mxu0 %v595
      %v692 = vpop.f32.mrf.mxu0
      %v693 = vadd.f32 %v206, %v692
      %v694 = vpop.f32.mrf.mxu0
      %v695 = vpop.f32.mrf.mxu0
      %v696 = vadd.f32 %v206, %v695
      %v697 = vpop.f32.mrf.mxu0
      %698 = vmatprep.mubr.bf16.mxu0 0
      %699 = vmatmul.mubr.bf16.gmra.mxu0 %v598
      %v700 = vpop.f32.mrf.mxu0
      %v701 = vadd.f32 %v206, %v700
      %v702 = vpop.f32.mrf.mxu0
      %v703 = vpop.f32.mrf.mxu0
      %v704 = vadd.f32 %v206, %v703
      %v705 = vpop.f32.mrf.mxu0
      %706 = vmatprep.mubr.bf16.mxu0 0
      %707 = vmatmul.mubr.bf16.gmra.mxu0 %v601
      %v708 = vpop.f32.mrf.mxu0
      %v709 = vadd.f32 %v206, %v708
      %v710 = vpop.f32.mrf.mxu0
      %v711 = vpop.f32.mrf.mxu0
      %v712 = vadd.f32 %v206, %v711
      %v713 = vpop.f32.mrf.mxu0
      %714 = vmatprep.mubr.bf16.mxu0 0
      %715 = vmatmul.mubr.bf16.gmra.mxu0 %v604
      %v716 = vpop.f32.mrf.mxu0
      %v717 = vadd.f32 %v206, %v716
      %v718 = vpop.f32.mrf.mxu0
      %v719 = vpop.f32.mrf.mxu0
      %v720 = vadd.f32 %v206, %v719
      %v721 = vpop.f32.mrf.mxu0
      %722 = vmatprep.mubr.bf16.mxu0 0
      %723 = vmatmul.mubr.bf16.gmra.mxu0 %v607
      %v724 = vpop.f32.mrf.mxu0
      %v725 = vadd.f32 %v206, %v724
      %v726 = vpop.f32.mrf.mxu0
      %v727 = vpop.f32.mrf.mxu0
      %v728 = vadd.f32 %v206, %v727
      %v729 = vpop.f32.mrf.mxu0
      %730 = vmatprep.mubr.bf16.mxu0 0
      %731 = vmatmul.mubr.bf16.gmra.mxu0 %v610
      %v732 = vpop.f32.mrf.mxu0
      %v733 = vadd.f32 %v206, %v732
      %v734 = vpop.f32.mrf.mxu0
      %v735 = vpop.f32.mrf.mxu0
      %v736 = vadd.f32 %v206, %v735
      %v737 = vpop.f32.mrf.mxu0
      %738 = vmatprep.mubr.bf16.mxu0 0
      %739 = vmatmul.mubr.bf16.gmra.mxu0 %v613
      %v740 = vpop.f32.mrf.mxu0
      %v741 = vadd.f32 %v206, %v740
      %v742 = vpop.f32.mrf.mxu0
      %v743 = vpop.f32.mrf.mxu0
      %v744 = vadd.f32 %v206, %v743
      %v745 = vpop.f32.mrf.mxu0
      %746 = vmatprep.mubr.bf16.mxu0 0
      %747 = vmatmul.mubr.bf16.gmra.mxu0 %v616
      %v748 = vpop.f32.mrf.mxu0
      %v749 = vadd.f32 %v206, %v748
      %v750 = vpop.f32.mrf.mxu0
      %v751 = vpop.f32.mrf.mxu0
      %v752 = vpop.f32.mrf.mxu0
      %753 = vdwg.mxu0
      %v754 = vmax.f32 %v653, 0.0
      %v755 = vmax.f32 %v656, 0.0
      %v756 = vmax.f32 %v661, 0.0
      %v757 = vmax.f32 %v664, 0.0
      %v758 = vmax.f32 %v669, 0.0
      %v759 = vmax.f32 %v672, 0.0
      %v760 = vmax.f32 %v677, 0.0
      %v761 = vmax.f32 %v680, 0.0
      %v762 = vmax.f32 %v685, 0.0
      %v763 = vmax.f32 %v688, 0.0
      %v764 = vmax.f32 %v693, 0.0
      %v765 = vmax.f32 %v696, 0.0
      %v766 = vmax.f32 %v701, 0.0
      %v767 = vmax.f32 %v704, 0.0
      %v768 = vmax.f32 %v709, 0.0
      %v769 = vmax.f32 %v712, 0.0
      %v770 = vmax.f32 %v717, 0.0
      %v771 = vmax.f32 %v720, 0.0
      %v772 = vmax.f32 %v725, 0.0
      %v773 = vmax.f32 %v728, 0.0
      %v774 = vmax.f32 %v733, 0.0
      %v775 = vmax.f32 %v736, 0.0
      %v776 = vmax.f32 %v741, 0.0
      %v777 = vmax.f32 %v744, 0.0
      %v778 = vmax.f32 %v749, 0.0
      %v779 = vmax.f32 %v465, %v754
      %v780 = vmax.f32 %v466, %v755
      %v781 = vmax.f32 %v467, %v756
      %v782 = vmax.f32 %v468, %v757
      %v783 = vmax.f32 %v469, %v758
      %v784 = vmax.f32 %v470, %v759
      %v785 = vmax.f32 %v471, %v760
      %v786 = vmax.f32 %v472, %v761
      %v787 = vmax.f32 %v473, %v762
      %v788 = vmax.f32 %v474, %v763
      %v789 = vmax.f32 %v475, %v764
      %v790 = vmax.f32 %v476, %v765
      %v791 = vmax.f32 %v477, %v766
      %v792 = vmax.f32 %v478, %v767
      %v793 = vmax.f32 %v479, %v768
      %v794 = vmax.f32 %v480, %v769
      %v795 = vmax.f32 %v481, %v770
      %v796 = vmax.f32 %v482, %v771
      %v797 = vmax.f32 %v483, %v772
      %v798 = vmax.f32 %v484, %v773
      %v799 = vmax.f32 %v485, %v774
      %v800 = vmax.f32 %v486, %v775
      %v801 = vmax.f32 %v487, %v776
      %v802 = vmax.f32 %v488, %v777
      %v803 = vmax.f32 %v489, %v778
      %s804 = scalar_lea.vmem %s165, 200
      %v805 = vld [vmem:[%s804] sm:$0xf]
      %v806 = vld [vmem:[%s804 + $0x4] sm:$0xf]
      %v807 = vld [vmem:[%s804 + $0x8] sm:$0xf]
      %v808 = vld [vmem:[%s804 + $0xc] sm:$0xf]
      %v809 = vld [vmem:[%s804 + $0x10] sm:$0xf]
      %v810 = vld [vmem:[%s804 + $0x14] sm:$0xf]
      %v811 = vld [vmem:[%s804 + $0x18] sm:$0xf]
      %v812 = vld [vmem:[%s804 + $0x1c] sm:$0xf]
      %v813 = vld [vmem:[%s804 + $0x20] sm:$0xf]
      %v814 = vld [vmem:[%s804 + $0x24] sm:$0xf]
      %v815 = vld [vmem:[%s804 + $0x28] sm:$0xf]
      %v816 = vld [vmem:[%s804 + $0x2c] sm:$0xf]
      %v817 = vld [vmem:[%s804 + $0x30] sm:$0xf]
      %v818 = vld [vmem:[%s804 + $0x34] sm:$0xf]
      %v819 = vld [vmem:[%s804 + $0x38] sm:$0xf]
      %v820 = vld [vmem:[%s804 + $0x3c] sm:$0xf]
      %v821 = vld [vmem:[%s804 + $0x40] sm:$0xf]
      %v822 = vld [vmem:[%s804 + $0x44] sm:$0xf]
      %v823 = vld [vmem:[%s804 + $0x48] sm:$0xf]
      %v824 = vld [vmem:[%s804 + $0x4c] sm:$0xf]
      %v825 = vld [vmem:[%s804 + $0x50] sm:$0xf]
      %v826 = vld [vmem:[%s804 + $0x54] sm:$0xf]
      %v827 = vld [vmem:[%s804 + $0x58] sm:$0xf]
      %v828 = vld [vmem:[%s804 + $0x5c] sm:$0xf]
      %v829 = vld [vmem:[%s804 + $0x60] sm:$0x3]
      %v855 = vunpack.c.l.b16 %v805
      %v856 = vunpack.c.l.b16 %v806
      %v857 = vunpack.c.l.b16 %v807
      %v858 = vunpack.c.l.b16 %v808
      %v859 = vunpack.c.l.b16 %v809
      %v860 = vunpack.c.l.b16 %v810
      %v861 = vunpack.c.l.b16 %v811
      %v862 = vunpack.c.l.b16 %v812
      %v863 = vunpack.c.l.b16 %v813
      %v864 = vunpack.c.l.b16 %v814
      %v865 = vunpack.c.l.b16 %v815
      %v866 = vunpack.c.l.b16 %v816
      %v867 = vunpack.c.l.b16 %v817
      %v868 = vunpack.c.l.b16 %v818
      %v869 = vunpack.c.l.b16 %v819
      %v870 = vunpack.c.l.b16 %v820
      %v871 = vunpack.c.l.b16 %v821
      %v872 = vunpack.c.l.b16 %v822
      %v873 = vunpack.c.l.b16 %v823
      %v874 = vunpack.c.l.b16 %v824
      %v875 = vunpack.c.l.b16 %v825
      %v876 = vunpack.c.l.b16 %v826
      %v877 = vunpack.c.l.b16 %v827
      %v878 = vunpack.c.l.b16 %v828
      %v879 = vunpack.c.l.b16 %v829
      %v880 = vpack.c.b16 %v856, %v855
      %v881 = vpack.c.b16 %v858, %v857
      %v882 = vpack.c.b16 %v860, %v859
      %v883 = vpack.c.b16 %v862, %v861
      %v884 = vpack.c.b16 %v864, %v863
      %v885 = vpack.c.b16 %v866, %v865
      %v886 = vpack.c.b16 %v868, %v867
      %v887 = vpack.c.b16 %v870, %v869
      %v888 = vpack.c.b16 %v872, %v871
      %v889 = vpack.c.b16 %v874, %v873
      %v890 = vpack.c.b16 %v876, %v875
      %v891 = vpack.c.b16 %v878, %v877
      %v892 = vpack.c.b16 %v879, %v879
      %v894 = vsel %vm282, %v880, 0
      %v897 = vsel %vm282, %v881, 0
      %v900 = vsel %vm282, %v882, 0
      %v903 = vsel %vm282, %v883, 0
      %v906 = vsel %vm282, %v884, 0
      %v909 = vsel %vm282, %v885, 0
      %v912 = vsel %vm282, %v886, 0
      %v915 = vsel %vm282, %v887, 0
      %v918 = vsel %vm282, %v888, 0
      %v921 = vsel %vm282, %v889, 0
      %v924 = vsel %vm282, %v890, 0
      %v927 = vsel %vm282, %v891, 0
      %v930 = vsel %vm282, %v892, 0
      %932 = vmatprep.subr.bf16.mxu0 0
      %933 = vmatpush1.bf16.msra.mxu0 0
      %934 = vmatprep.subr.bf16.mxu0 0
      %935 = vmatpush1.bf16.msra.mxu0 0
      %936 = vmatprep.subr.bf16.mxu0 0
      %937 = vmatpush1.bf16.msra.mxu0 0
      %938 = vmatprep.subr.bf16.mxu0 0
      %939 = vmatpush1.bf16.msra.mxu0 0
      %940 = vmatprep.subr.bf16.mxu0 0
      %941 = vmatpush1.bf16.msra.mxu0 0
      %942 = vmatprep.subr.bf16.mxu0 0
      %943 = vmatpush1.bf16.msra.mxu0 0
      %944 = vmatprep.subr.bf16.mxu0 0
      %945 = vmatpush1.bf16.msra.mxu0 %v327
      %946 = vmatprep.subr.bf16.mxu0 0
      %947 = vmatpush1.bf16.msra.mxu0 %v279
      %948 = vmatprep.subr.bf16.mxu0 0
      %949 = vmatpush2.bf16.msra.mxu0 0
      %950 = vmatprep.subr.bf16.mxu0 0
      %951 = vmatpush2.bf16.msra.mxu0 0
      %952 = vmatprep.subr.bf16.mxu0 0
      %953 = vmatpush2.bf16.msra.mxu0 0
      %954 = vmatprep.subr.bf16.mxu0 0
      %955 = vmatpush2.bf16.msra.mxu0 0
      %956 = vmatprep.subr.bf16.mxu0 0
      %957 = vmatpush2.bf16.msra.mxu0 0
      %958 = vmatprep.subr.bf16.mxu0 0
      %959 = vmatpush2.bf16.msra.mxu0 0
      %960 = vmatprep.subr.bf16.mxu0 0
      %961 = vmatpush2.bf16.msra.mxu0 0
      %962 = vmatprep.subr.bf16.mxu0 0
      %963 = vmatpush2.bf16.msra.mxu0 0
      %964 = vmatprep.mubr.bf16.mxu0 0
      %965 = vmatmul.mubr.bf16.gmra.mxu0 %v894
      %v966 = vpop.f32.mrf.mxu0
      %v967 = vadd.f32 %v206, %v966
      %v968 = vpop.f32.mrf.mxu0
      %v969 = vpop.f32.mrf.mxu0
      %v970 = vadd.f32 %v206, %v969
      %v971 = vpop.f32.mrf.mxu0
      %972 = vmatprep.mubr.bf16.mxu0 0
      %973 = vmatmul.mubr.bf16.gmra.mxu0 %v897
      %v974 = vpop.f32.mrf.mxu0
      %v975 = vadd.f32 %v206, %v974
      %v976 = vpop.f32.mrf.mxu0
      %v977 = vpop.f32.mrf.mxu0
      %v978 = vadd.f32 %v206, %v977
      %v979 = vpop.f32.mrf.mxu0
      %980 = vmatprep.mubr.bf16.mxu0 0
      %981 = vmatmul.mubr.bf16.gmra.mxu0 %v900
      %v982 = vpop.f32.mrf.mxu0
      %v983 = vadd.f32 %v206, %v982
      %v984 = vpop.f32.mrf.mxu0
      %v985 = vpop.f32.mrf.mxu0
      %v986 = vadd.f32 %v206, %v985
      %v987 = vpop.f32.mrf.mxu0
      %988 = vmatprep.mubr.bf16.mxu0 0
      %989 = vmatmul.mubr.bf16.gmra.mxu0 %v903
      %v990 = vpop.f32.mrf.mxu0
      %v991 = vadd.f32 %v206, %v990
      %v992 = vpop.f32.mrf.mxu0
      %v993 = vpop.f32.mrf.mxu0
      %v994 = vadd.f32 %v206, %v993
      %v995 = vpop.f32.mrf.mxu0
      %996 = vmatprep.mubr.bf16.mxu0 0
      %997 = vmatmul.mubr.bf16.gmra.mxu0 %v906
      %v998 = vpop.f32.mrf.mxu0
      %v999 = vadd.f32 %v206, %v998
      %v1000 = vpop.f32.mrf.mxu0
      %v1001 = vpop.f32.mrf.mxu0
      %v1002 = vadd.f32 %v206, %v1001
      %v1003 = vpop.f32.mrf.mxu0
      %1004 = vmatprep.mubr.bf16.mxu0 0
      %1005 = vmatmul.mubr.bf16.gmra.mxu0 %v909
      %v1006 = vpop.f32.mrf.mxu0
      %v1007 = vadd.f32 %v206, %v1006
      %v1008 = vpop.f32.mrf.mxu0
      %v1009 = vpop.f32.mrf.mxu0
      %v1010 = vadd.f32 %v206, %v1009
      %v1011 = vpop.f32.mrf.mxu0
      %1012 = vmatprep.mubr.bf16.mxu0 0
      %1013 = vmatmul.mubr.bf16.gmra.mxu0 %v912
      %v1014 = vpop.f32.mrf.mxu0
      %v1015 = vadd.f32 %v206, %v1014
      %v1016 = vpop.f32.mrf.mxu0
      %v1017 = vpop.f32.mrf.mxu0
      %v1018 = vadd.f32 %v206, %v1017
      %v1019 = vpop.f32.mrf.mxu0
      %1020 = vmatprep.mubr.bf16.mxu0 0
      %1021 = vmatmul.mubr.bf16.gmra.mxu0 %v915
      %v1022 = vpop.f32.mrf.mxu0
      %v1023 = vadd.f32 %v206, %v1022
      %v1024 = vpop.f32.mrf.mxu0
      %v1025 = vpop.f32.mrf.mxu0
      %v1026 = vadd.f32 %v206, %v1025
      %v1027 = vpop.f32.mrf.mxu0
      %1028 = vmatprep.mubr.bf16.mxu0 0
      %1029 = vmatmul.mubr.bf16.gmra.mxu0 %v918
      %v1030 = vpop.f32.mrf.mxu0
      %v1031 = vadd.f32 %v206, %v1030
      %v1032 = vpop.f32.mrf.mxu0
      %v1033 = vpop.f32.mrf.mxu0
      %v1034 = vadd.f32 %v206, %v1033
      %v1035 = vpop.f32.mrf.mxu0
      %1036 = vmatprep.mubr.bf16.mxu0 0
      %1037 = vmatmul.mubr.bf16.gmra.mxu0 %v921
      %v1038 = vpop.f32.mrf.mxu0
      %v1039 = vadd.f32 %v206, %v1038
      %v1040 = vpop.f32.mrf.mxu0
      %v1041 = vpop.f32.mrf.mxu0
      %v1042 = vadd.f32 %v206, %v1041
      %v1043 = vpop.f32.mrf.mxu0
      %1044 = vmatprep.mubr.bf16.mxu0 0
      %1045 = vmatmul.mubr.bf16.gmra.mxu0 %v924
      %v1046 = vpop.f32.mrf.mxu0
      %v1047 = vadd.f32 %v206, %v1046
      %v1048 = vpop.f32.mrf.mxu0
      %v1049 = vpop.f32.mrf.mxu0
      %v1050 = vadd.f32 %v206, %v1049
      %v1051 = vpop.f32.mrf.mxu0
      %1052 = vmatprep.mubr.bf16.mxu0 0
      %1053 = vmatmul.mubr.bf16.gmra.mxu0 %v927
      %v1054 = vpop.f32.mrf.mxu0
      %v1055 = vadd.f32 %v206, %v1054
      %v1056 = vpop.f32.mrf.mxu0
      %v1057 = vpop.f32.mrf.mxu0
      %v1058 = vadd.f32 %v206, %v1057
      %v1059 = vpop.f32.mrf.mxu0
      %1060 = vmatprep.mubr.bf16.mxu0 0
      %1061 = vmatmul.mubr.bf16.gmra.mxu0 %v930
      %v1062 = vpop.f32.mrf.mxu0
      %v1063 = vadd.f32 %v206, %v1062
      %v1064 = vpop.f32.mrf.mxu0
      %v1065 = vpop.f32.mrf.mxu0
      %v1066 = vpop.f32.mrf.mxu0
      %1067 = vdwg.mxu0
      %v1068 = vmax.f32 %v967, 0.0
      %v1069 = vmax.f32 %v970, 0.0
      %v1070 = vmax.f32 %v975, 0.0
      %v1071 = vmax.f32 %v978, 0.0
      %v1072 = vmax.f32 %v983, 0.0
      %v1073 = vmax.f32 %v986, 0.0
      %v1074 = vmax.f32 %v991, 0.0
      %v1075 = vmax.f32 %v994, 0.0
      %v1076 = vmax.f32 %v999, 0.0
      %v1077 = vmax.f32 %v1002, 0.0
      %v1078 = vmax.f32 %v1007, 0.0
      %v1079 = vmax.f32 %v1010, 0.0
      %v1080 = vmax.f32 %v1015, 0.0
      %v1081 = vmax.f32 %v1018, 0.0
      %v1082 = vmax.f32 %v1023, 0.0
      %v1083 = vmax.f32 %v1026, 0.0
      %v1084 = vmax.f32 %v1031, 0.0
      %v1085 = vmax.f32 %v1034, 0.0
      %v1086 = vmax.f32 %v1039, 0.0
      %v1087 = vmax.f32 %v1042, 0.0
      %v1088 = vmax.f32 %v1047, 0.0
      %v1089 = vmax.f32 %v1050, 0.0
      %v1090 = vmax.f32 %v1055, 0.0
      %v1091 = vmax.f32 %v1058, 0.0
      %v1092 = vmax.f32 %v1063, 0.0
      %s1093 = scalar_lea.vmem %s165, 300
      %v1094 = vld [vmem:[%s1093] sm:$0xf]
      %v1095 = vld [vmem:[%s1093 + $0x4] sm:$0xf]
      %v1096 = vld [vmem:[%s1093 + $0x8] sm:$0xf]
      %v1097 = vld [vmem:[%s1093 + $0xc] sm:$0xf]
      %v1098 = vld [vmem:[%s1093 + $0x10] sm:$0xf]
      %v1099 = vld [vmem:[%s1093 + $0x14] sm:$0xf]
      %v1100 = vld [vmem:[%s1093 + $0x18] sm:$0xf]
      %v1101 = vld [vmem:[%s1093 + $0x1c] sm:$0xf]
      %v1102 = vld [vmem:[%s1093 + $0x20] sm:$0xf]
      %v1103 = vld [vmem:[%s1093 + $0x24] sm:$0xf]
      %v1104 = vld [vmem:[%s1093 + $0x28] sm:$0xf]
      %v1105 = vld [vmem:[%s1093 + $0x2c] sm:$0xf]
      %v1106 = vld [vmem:[%s1093 + $0x30] sm:$0xf]
      %v1107 = vld [vmem:[%s1093 + $0x34] sm:$0xf]
      %v1108 = vld [vmem:[%s1093 + $0x38] sm:$0xf]
      %v1109 = vld [vmem:[%s1093 + $0x3c] sm:$0xf]
      %v1110 = vld [vmem:[%s1093 + $0x40] sm:$0xf]
      %v1111 = vld [vmem:[%s1093 + $0x44] sm:$0xf]
      %v1112 = vld [vmem:[%s1093 + $0x48] sm:$0xf]
      %v1113 = vld [vmem:[%s1093 + $0x4c] sm:$0xf]
      %v1114 = vld [vmem:[%s1093 + $0x50] sm:$0xf]
      %v1115 = vld [vmem:[%s1093 + $0x54] sm:$0xf]
      %v1116 = vld [vmem:[%s1093 + $0x58] sm:$0xf]
      %v1117 = vld [vmem:[%s1093 + $0x5c] sm:$0xf]
      %v1118 = vld [vmem:[%s1093 + $0x60] sm:$0x3]
      %v1144 = vunpack.c.l.b16 %v1094
      %v1145 = vunpack.c.l.b16 %v1095
      %v1146 = vunpack.c.l.b16 %v1096
      %v1147 = vunpack.c.l.b16 %v1097
      %v1148 = vunpack.c.l.b16 %v1098
      %v1149 = vunpack.c.l.b16 %v1099
      %v1150 = vunpack.c.l.b16 %v1100
      %v1151 = vunpack.c.l.b16 %v1101
      %v1152 = vunpack.c.l.b16 %v1102
      %v1153 = vunpack.c.l.b16 %v1103
      %v1154 = vunpack.c.l.b16 %v1104
      %v1155 = vunpack.c.l.b16 %v1105
      %v1156 = vunpack.c.l.b16 %v1106
      %v1157 = vunpack.c.l.b16 %v1107
      %v1158 = vunpack.c.l.b16 %v1108
      %v1159 = vunpack.c.l.b16 %v1109
      %v1160 = vunpack.c.l.b16 %v1110
      %v1161 = vunpack.c.l.b16 %v1111
      %v1162 = vunpack.c.l.b16 %v1112
      %v1163 = vunpack.c.l.b16 %v1113
      %v1164 = vunpack.c.l.b16 %v1114
      %v1165 = vunpack.c.l.b16 %v1115
      %v1166 = vunpack.c.l.b16 %v1116
      %v1167 = vunpack.c.l.b16 %v1117
      %v1168 = vunpack.c.l.b16 %v1118
      %v1169 = vpack.c.b16 %v1145, %v1144
      %v1170 = vpack.c.b16 %v1147, %v1146
      %v1171 = vpack.c.b16 %v1149, %v1148
      %v1172 = vpack.c.b16 %v1151, %v1150
      %v1173 = vpack.c.b16 %v1153, %v1152
      %v1174 = vpack.c.b16 %v1155, %v1154
      %v1175 = vpack.c.b16 %v1157, %v1156
      %v1176 = vpack.c.b16 %v1159, %v1158
      %v1177 = vpack.c.b16 %v1161, %v1160
      %v1178 = vpack.c.b16 %v1163, %v1162
      %v1179 = vpack.c.b16 %v1165, %v1164
      %v1180 = vpack.c.b16 %v1167, %v1166
      %v1181 = vpack.c.b16 %v1168, %v1168
      %v1183 = vsel %vm282, %v1169, 0
      %v1186 = vsel %vm282, %v1170, 0
      %v1189 = vsel %vm282, %v1171, 0
      %v1192 = vsel %vm282, %v1172, 0
      %v1195 = vsel %vm282, %v1173, 0
      %v1198 = vsel %vm282, %v1174, 0
      %v1201 = vsel %vm282, %v1175, 0
      %v1204 = vsel %vm282, %v1176, 0
      %v1207 = vsel %vm282, %v1177, 0
      %v1210 = vsel %vm282, %v1178, 0
      %v1213 = vsel %vm282, %v1179, 0
      %v1216 = vsel %vm282, %v1180, 0
      %v1219 = vsel %vm282, %v1181, 0
      %1221 = vmatprep.subr.bf16.mxu0 0
      %1222 = vmatpush1.bf16.msra.mxu0 0
      %1223 = vmatprep.subr.bf16.mxu0 0
      %1224 = vmatpush1.bf16.msra.mxu0 0
      %1225 = vmatprep.subr.bf16.mxu0 0
      %1226 = vmatpush1.bf16.msra.mxu0 0
      %1227 = vmatprep.subr.bf16.mxu0 0
      %1228 = vmatpush1.bf16.msra.mxu0 0
      %1229 = vmatprep.subr.bf16.mxu0 0
      %1230 = vmatpush1.bf16.msra.mxu0 0
      %1231 = vmatprep.subr.bf16.mxu0 0
      %1232 = vmatpush1.bf16.msra.mxu0 0
      %1233 = vmatprep.subr.bf16.mxu0 0
      %1234 = vmatpush1.bf16.msra.mxu0 %v327
      %1235 = vmatprep.subr.bf16.mxu0 0
      %1236 = vmatpush1.bf16.msra.mxu0 %v279
      %1237 = vmatprep.subr.bf16.mxu0 0
      %1238 = vmatpush2.bf16.msra.mxu0 0
      %1239 = vmatprep.subr.bf16.mxu0 0
      %1240 = vmatpush2.bf16.msra.mxu0 0
      %1241 = vmatprep.subr.bf16.mxu0 0
      %1242 = vmatpush2.bf16.msra.mxu0 0
      %1243 = vmatprep.subr.bf16.mxu0 0
      %1244 = vmatpush2.bf16.msra.mxu0 0
      %1245 = vmatprep.subr.bf16.mxu0 0
      %1246 = vmatpush2.bf16.msra.mxu0 0
      %1247 = vmatprep.subr.bf16.mxu0 0
      %1248 = vmatpush2.bf16.msra.mxu0 0
      %1249 = vmatprep.subr.bf16.mxu0 0
      %1250 = vmatpush2.bf16.msra.mxu0 0
      %1251 = vmatprep.subr.bf16.mxu0 0
      %1252 = vmatpush2.bf16.msra.mxu0 0
      %1253 = vmatprep.mubr.bf16.mxu0 0
      %1254 = vmatmul.mubr.bf16.gmra.mxu0 %v1183
      %v1255 = vpop.f32.mrf.mxu0
      %v1256 = vadd.f32 %v206, %v1255
      %v1257 = vpop.f32.mrf.mxu0
      %v1258 = vpop.f32.mrf.mxu0
      %v1259 = vadd.f32 %v206, %v1258
      %v1260 = vpop.f32.mrf.mxu0
      %1261 = vmatprep.mubr.bf16.mxu0 0
      %1262 = vmatmul.mubr.bf16.gmra.mxu0 %v1186
      %v1263 = vpop.f32.mrf.mxu0
      %v1264 = vadd.f32 %v206, %v1263
      %v1265 = vpop.f32.mrf.mxu0
      %v1266 = vpop.f32.mrf.mxu0
      %v1267 = vadd.f32 %v206, %v1266
      %v1268 = vpop.f32.mrf.mxu0
      %1269 = vmatprep.mubr.bf16.mxu0 0
      %1270 = vmatmul.mubr.bf16.gmra.mxu0 %v1189
      %v1271 = vpop.f32.mrf.mxu0
      %v1272 = vadd.f32 %v206, %v1271
      %v1273 = vpop.f32.mrf.mxu0
      %v1274 = vpop.f32.mrf.mxu0
      %v1275 = vadd.f32 %v206, %v1274
      %v1276 = vpop.f32.mrf.mxu0
      %1277 = vmatprep.mubr.bf16.mxu0 0
      %1278 = vmatmul.mubr.bf16.gmra.mxu0 %v1192
      %v1279 = vpop.f32.mrf.mxu0
      %v1280 = vadd.f32 %v206, %v1279
      %v1281 = vpop.f32.mrf.mxu0
      %v1282 = vpop.f32.mrf.mxu0
      %v1283 = vadd.f32 %v206, %v1282
      %v1284 = vpop.f32.mrf.mxu0
      %1285 = vmatprep.mubr.bf16.mxu0 0
      %1286 = vmatmul.mubr.bf16.gmra.mxu0 %v1195
      %v1287 = vpop.f32.mrf.mxu0
      %v1288 = vadd.f32 %v206, %v1287
      %v1289 = vpop.f32.mrf.mxu0
      %v1290 = vpop.f32.mrf.mxu0
      %v1291 = vadd.f32 %v206, %v1290
      %v1292 = vpop.f32.mrf.mxu0
      %1293 = vmatprep.mubr.bf16.mxu0 0
      %1294 = vmatmul.mubr.bf16.gmra.mxu0 %v1198
      %v1295 = vpop.f32.mrf.mxu0
      %v1296 = vadd.f32 %v206, %v1295
      %v1297 = vpop.f32.mrf.mxu0
      %v1298 = vpop.f32.mrf.mxu0
      %v1299 = vadd.f32 %v206, %v1298
      %v1300 = vpop.f32.mrf.mxu0
      %1301 = vmatprep.mubr.bf16.mxu0 0
      %1302 = vmatmul.mubr.bf16.gmra.mxu0 %v1201
      %v1303 = vpop.f32.mrf.mxu0
      %v1304 = vadd.f32 %v206, %v1303
      %v1305 = vpop.f32.mrf.mxu0
      %v1306 = vpop.f32.mrf.mxu0
      %v1307 = vadd.f32 %v206, %v1306
      %v1308 = vpop.f32.mrf.mxu0
      %1309 = vmatprep.mubr.bf16.mxu0 0
      %1310 = vmatmul.mubr.bf16.gmra.mxu0 %v1204
      %v1311 = vpop.f32.mrf.mxu0
      %v1312 = vadd.f32 %v206, %v1311
      %v1313 = vpop.f32.mrf.mxu0
      %v1314 = vpop.f32.mrf.mxu0
      %v1315 = vadd.f32 %v206, %v1314
      %v1316 = vpop.f32.mrf.mxu0
      %1317 = vmatprep.mubr.bf16.mxu0 0
      %1318 = vmatmul.mubr.bf16.gmra.mxu0 %v1207
      %v1319 = vpop.f32.mrf.mxu0
      %v1320 = vadd.f32 %v206, %v1319
      %v1321 = vpop.f32.mrf.mxu0
      %v1322 = vpop.f32.mrf.mxu0
      %v1323 = vadd.f32 %v206, %v1322
      %v1324 = vpop.f32.mrf.mxu0
      %1325 = vmatprep.mubr.bf16.mxu0 0
      %1326 = vmatmul.mubr.bf16.gmra.mxu0 %v1210
      %v1327 = vpop.f32.mrf.mxu0
      %v1328 = vadd.f32 %v206, %v1327
      %v1329 = vpop.f32.mrf.mxu0
      %v1330 = vpop.f32.mrf.mxu0
      %v1331 = vadd.f32 %v206, %v1330
      %v1332 = vpop.f32.mrf.mxu0
      %1333 = vmatprep.mubr.bf16.mxu0 0
      %1334 = vmatmul.mubr.bf16.gmra.mxu0 %v1213
      %v1335 = vpop.f32.mrf.mxu0
      %v1336 = vadd.f32 %v206, %v1335
      %v1337 = vpop.f32.mrf.mxu0
      %v1338 = vpop.f32.mrf.mxu0
      %v1339 = vadd.f32 %v206, %v1338
      %v1340 = vpop.f32.mrf.mxu0
      %1341 = vmatprep.mubr.bf16.mxu0 0
      %1342 = vmatmul.mubr.bf16.gmra.mxu0 %v1216
      %v1343 = vpop.f32.mrf.mxu0
      %v1344 = vadd.f32 %v206, %v1343
      %v1345 = vpop.f32.mrf.mxu0
      %v1346 = vpop.f32.mrf.mxu0
      %v1347 = vadd.f32 %v206, %v1346
      %v1348 = vpop.f32.mrf.mxu0
      %1349 = vmatprep.mubr.bf16.mxu0 0
      %1350 = vmatmul.mubr.bf16.gmra.mxu0 %v1219
      %v1351 = vpop.f32.mrf.mxu0
      %v1352 = vadd.f32 %v206, %v1351
      %v1353 = vpop.f32.mrf.mxu0
      %v1354 = vpop.f32.mrf.mxu0
      %v1355 = vpop.f32.mrf.mxu0
      %1356 = vdwg.mxu0
      %v1357 = vmax.f32 %v1256, 0.0
      %v1358 = vmax.f32 %v1259, 0.0
      %v1359 = vmax.f32 %v1264, 0.0
      %v1360 = vmax.f32 %v1267, 0.0
      %v1361 = vmax.f32 %v1272, 0.0
      %v1362 = vmax.f32 %v1275, 0.0
      %v1363 = vmax.f32 %v1280, 0.0
      %v1364 = vmax.f32 %v1283, 0.0
      %v1365 = vmax.f32 %v1288, 0.0
      %v1366 = vmax.f32 %v1291, 0.0
      %v1367 = vmax.f32 %v1296, 0.0
      %v1368 = vmax.f32 %v1299, 0.0
      %v1369 = vmax.f32 %v1304, 0.0
      %v1370 = vmax.f32 %v1307, 0.0
      %v1371 = vmax.f32 %v1312, 0.0
      %v1372 = vmax.f32 %v1315, 0.0
      %v1373 = vmax.f32 %v1320, 0.0
      %v1374 = vmax.f32 %v1323, 0.0
      %v1375 = vmax.f32 %v1328, 0.0
      %v1376 = vmax.f32 %v1331, 0.0
      %v1377 = vmax.f32 %v1336, 0.0
      %v1378 = vmax.f32 %v1339, 0.0
      %v1379 = vmax.f32 %v1344, 0.0
      %v1380 = vmax.f32 %v1347, 0.0
      %v1381 = vmax.f32 %v1352, 0.0
      %v1382 = vmax.f32 %v1068, %v1357
      %v1383 = vmax.f32 %v1069, %v1358
      %v1384 = vmax.f32 %v1070, %v1359
      %v1385 = vmax.f32 %v1071, %v1360
      %v1386 = vmax.f32 %v1072, %v1361
      %v1387 = vmax.f32 %v1073, %v1362
      %v1388 = vmax.f32 %v1074, %v1363
      %v1389 = vmax.f32 %v1075, %v1364
      %v1390 = vmax.f32 %v1076, %v1365
      %v1391 = vmax.f32 %v1077, %v1366
      %v1392 = vmax.f32 %v1078, %v1367
      %v1393 = vmax.f32 %v1079, %v1368
      %v1394 = vmax.f32 %v1080, %v1369
      %v1395 = vmax.f32 %v1081, %v1370
      %v1396 = vmax.f32 %v1082, %v1371
      %v1397 = vmax.f32 %v1083, %v1372
      %v1398 = vmax.f32 %v1084, %v1373
      %v1399 = vmax.f32 %v1085, %v1374
      %v1400 = vmax.f32 %v1086, %v1375
      %v1401 = vmax.f32 %v1087, %v1376
      %v1402 = vmax.f32 %v1088, %v1377
      %v1403 = vmax.f32 %v1089, %v1378
      %v1404 = vmax.f32 %v1090, %v1379
      %v1405 = vmax.f32 %v1091, %v1380
      %v1406 = vmax.f32 %v1092, %v1381
      %v1407 = vmax.f32 %v779, %v1382
      %v1408 = vmax.f32 %v780, %v1383
      %v1409 = vmax.f32 %v781, %v1384
      %v1410 = vmax.f32 %v782, %v1385
      %v1411 = vmax.f32 %v783, %v1386
      %v1412 = vmax.f32 %v784, %v1387
      %v1413 = vmax.f32 %v785, %v1388
      %v1414 = vmax.f32 %v786, %v1389
      %v1415 = vmax.f32 %v787, %v1390
      %v1416 = vmax.f32 %v788, %v1391
      %v1417 = vmax.f32 %v789, %v1392
      %v1418 = vmax.f32 %v790, %v1393
      %v1419 = vmax.f32 %v791, %v1394
      %v1420 = vmax.f32 %v792, %v1395
      %v1421 = vmax.f32 %v793, %v1396
      %v1422 = vmax.f32 %v794, %v1397
      %v1423 = vmax.f32 %v795, %v1398
      %v1424 = vmax.f32 %v796, %v1399
      %v1425 = vmax.f32 %v797, %v1400
      %v1426 = vmax.f32 %v798, %v1401
      %v1427 = vmax.f32 %v799, %v1402
      %v1428 = vmax.f32 %v800, %v1403
      %v1429 = vmax.f32 %v801, %v1404
      %v1430 = vmax.f32 %v802, %v1405
      %v1431 = vmax.f32 %v803, %v1406
      %vm1432 = vcmask 523264
      %1433 = vst.msk [vmem:[%s170] sm:$0xff] %vm1432, %v1407
      %1434 = vst.msk [vmem:[%s170 + $0x8] sm:$0xff] %vm1432, %v1408
      %1435 = vst.msk [vmem:[%s170 + $0x10] sm:$0xff] %vm1432, %v1409
      %1436 = vst.msk [vmem:[%s170 + $0x18] sm:$0xff] %vm1432, %v1410
      %1437 = vst.msk [vmem:[%s170 + $0x20] sm:$0xff] %vm1432, %v1411
      %1438 = vst.msk [vmem:[%s170 + $0x28] sm:$0xff] %vm1432, %v1412
      %1439 = vst.msk [vmem:[%s170 + $0x30] sm:$0xff] %vm1432, %v1413
      %1440 = vst.msk [vmem:[%s170 + $0x38] sm:$0xff] %vm1432, %v1414
      %1441 = vst.msk [vmem:[%s170 + $0x40] sm:$0xff] %vm1432, %v1415
      %1442 = vst.msk [vmem:[%s170 + $0x48] sm:$0xff] %vm1432, %v1416
      %1443 = vst.msk [vmem:[%s170 + $0x50] sm:$0xff] %vm1432, %v1417
      %1444 = vst.msk [vmem:[%s170 + $0x58] sm:$0xff] %vm1432, %v1418
      %1445 = vst.msk [vmem:[%s170 + $0x60] sm:$0xff] %vm1432, %v1419
      %1446 = vst.msk [vmem:[%s170 + $0x68] sm:$0xff] %vm1432, %v1420
      %1447 = vst.msk [vmem:[%s170 + $0x70] sm:$0xff] %vm1432, %v1421
      %1448 = vst.msk [vmem:[%s170 + $0x78] sm:$0xff] %vm1432, %v1422
      %1449 = vst.msk [vmem:[%s170 + $0x80] sm:$0xff] %vm1432, %v1423
      %1450 = vst.msk [vmem:[%s170 + $0x88] sm:$0xff] %vm1432, %v1424
      %1451 = vst.msk [vmem:[%s170 + $0x90] sm:$0xff] %vm1432, %v1425
      %1452 = vst.msk [vmem:[%s170 + $0x98] sm:$0xff] %vm1432, %v1426
      %1453 = vst.msk [vmem:[%s170 + $0xa0] sm:$0xff] %vm1432, %v1427
      %1454 = vst.msk [vmem:[%s170 + $0xa8] sm:$0xff] %vm1432, %v1428
      %1455 = vst.msk [vmem:[%s170 + $0xb0] sm:$0xff] %vm1432, %v1429
      %1456 = vst.msk [vmem:[%s170 + $0xb8] sm:$0xff] %vm1432, %v1430
      %vm1457 = vcmask 519168
      %1458 = vst.msk [vmem:[%s170 + $0xc0] sm:$0xf] %vm1457, %v1431
      %p1459 = scmp.lt.s32.totalorder %s14, 1
      %s1460 = scalar_select %p1459, %s14, 1
      %s1461 = smul.addr %s1460, 25
      %s1462 = smul.addr %s1461, 8
      %s1463 = scalar_lea.vmem %s3, %s1462
      // Predicated region
      $region33: #{sdr_cnn_forward.3} parent=31 // pred_check
        %p1464 = pneg %p100
      $region34: #{sdr_cnn_forward.3} parent=31 // pred_check_branch
        %1466 = sbr.rel (%p1464) target = $region36
      $region35: #{sdr_cnn_forward.3} parent=31 // pred_region
        _
      $region36: #{sdr_cnn_forward.3} parent=31 // pred_fallthru
        _
    $region32: #{sdr_cnn_forward.3} parent=5 // pred_fallthru
      _
    %p1467 = scmp.le.s32.totalorder 2, %s9
    // Predicated region
    $region37: #{sdr_cnn_forward.3} parent=5 // pred_check
      %p1468 = pneg %p1467
    $region38: #{sdr_cnn_forward.3} parent=5 // pred_check_branch
      %1470 = sbr.rel (%p1468) target = $region40
    $region39: #{sdr_cnn_forward.3} parent=5 // pred_region
      %s1471 = ssub.s32 %s9, 2
      // Predicated region
      $region41: #{sdr_cnn_forward.3} parent=39 // pred_check
        %p1472 = pneg %p106
      $region42: #{sdr_cnn_forward.3} parent=39 // pred_check_branch
        %1474 = sbr.rel (%p1472) target = $region44
      $region43: #{sdr_cnn_forward.3} parent=39 // pred_region
        %p1475 = scmp.lt.s32.totalorder %s15, 1
        %s1476 = scalar_select %p1475, %s15, 1
        %s1477 = smul.addr %s1476, 25
        %s1478 = smul.addr %s1477, 8
        %s1479 = scalar_lea.vmem %s3, %s1478
      $region44: #{sdr_cnn_forward.3} parent=39 // pred_fallthru
        _
    $region40: #{sdr_cnn_forward.3} parent=5 // pred_fallthru
      _
  $region6: #{sdr_cnn_forward.3} parent=0 // loop_footer
    %s13 = sadd.s32 1, %s9
  $region7: #{sdr_cnn_forward.3} parent=0 // loop_footer_branch
    %8 = sbr.rel target = $region3
  $region8: #{sdr_cnn_forward.3} parent=0 // loop_exit
    _

// kernel: sdr_cnn_forward.4
$region0: #{sdr_cnn_forward.4}
  #allocation0 [shape = 'u32[]', space=smem, size = 0x4, offset = 0x4, fixed_abs, tag = 'smem constant byte address 0x4 - core index']
  #allocation1 [shape = 'u32[144,128]{1,0:T(1,128)}', space=vmem, size = 0x12000, scoped, tag = 'internal scratch']
  %s0 = inlined_call_operand.vmem [shape: bf16[2,4,25,1600], index: 0, kind: input, shape index: {}]
  %s1 = inlined_call_operand.vmem [shape: bf16[1600,128], index: 1, kind: input, shape index: {}]
  %s2 = inlined_call_operand.vmem [shape: f32[1,128], index: 2, kind: input, shape index: {}]
  %s3 = inlined_call_operand.vmem [shape: f32[2,25,128], index: 3, kind: output, shape index: {}]
  %s4 = sld [smem:[#allocation0]]
  $region45: #{sdr_cnn_forward.4} parent=0
    _
  %s6 = ssub.s32 1, %s4
  %s7 = scalar_select 0, %s6, %s4
  loop: start=0, step=1, limit=4
  $region2: #{sdr_cnn_forward.4} parent=0 // loop_pre_header
    _
  $region3: #{sdr_cnn_forward.4} parent=0 // loop_header
    %s9 = sphi 0, %s13
    %p10 = scmp.ge.s32.totalorder %s9, 4
    %s19 = sphi 0, %s21
    %s22 = sphi 0, %s19
    %s23 = sphi 0, %s22
    %s39 = sphi 0, %s23
    %s43 = sphi 0, %s43
    %s45 = sphi 0, %s43
    %s46 = sphi 0, %s45
    %s60 = sphi 0, %s46
    %s64 = sphi 0, %s64
    %s66 = sphi 0, %s64
    %s67 = sphi 0, %s66
    %s81 = sphi 0, %s67
    %s87 = sphi 0, %s89
    %s90 = sphi 0, %s87
    %s91 = sphi 0, %s90
    %s107 = sphi 0, %s91
  $region4: #{sdr_cnn_forward.4} parent=0 // loop_header_branch
    %12 = sbr.rel (%p10) target = $region8
  $region5: #{sdr_cnn_forward.4} parent=0 // loop_body
    %s14 = ssub.s32 %s9, 1
    %s15 = ssub.s32 %s9, 2
    %s16 = sadd.s32 %s9, 1
    %s17 = ssub.s32 %s9, %s16
    %p18 = scmp.eq.s32.totalorder %s17, 0
    %s20 = sadd.s32 %s19, 1
    %s21 = scalar_select %p18, %s19, %s20
    %p24 = pneg %p18
    %p25 = scmp.eq.s32.totalorder %s9, 1
    %p26 = por %p24, %p25
    %p27 = scmp.ne.s32.totalorder %s19, %s22
    %p28 = scmp.eq.s32.totalorder %s9, 0
    %p29 = por %p27, %p28
    %p30 = scmp.ne.s32.totalorder %s19, %s22
    %p31 = scmp.eq.s32.totalorder %s14, 1
    %p32 = por %p30, %p31
    %p33 = scmp.ne.s32.totalorder %s22, %s23
    %p34 = scmp.eq.s32.totalorder %s14, 0
    %p35 = por %p33, %p34
    %p36 = scmp.ne.s32.totalorder %s22, %s23
    %p37 = scmp.eq.s32.totalorder %s15, 1
    %p38 = por %p36, %p37
    %p40 = scmp.ne.s32.totalorder %s23, %s39
    %p41 = scmp.eq.s32.totalorder %s15, 0
    %p42 = por %p40, %p41
    %s44 = sadd.s32 %s43, 1
    %p47 = scmp.eq.s32.totalorder %s9, 1
    %p48 = scmp.ne.s32.totalorder %s43, %s45
    %p49 = scmp.eq.s32.totalorder %s9, 0
    %p50 = por %p48, %p49
    %p51 = scmp.ne.s32.totalorder %s43, %s45
    %p52 = scmp.eq.s32.totalorder %s14, 1
    %p53 = por %p51, %p52
    %p54 = scmp.ne.s32.totalorder %s45, %s46
    %p55 = scmp.eq.s32.totalorder %s14, 0
    %p56 = por %p54, %p55
    %p57 = scmp.ne.s32.totalorder %s45, %s46
    %p58 = scmp.eq.s32.totalorder %s15, 1
    %p59 = por %p57, %p58
    %p61 = scmp.ne.s32.totalorder %s46, %s60
    %p62 = scmp.eq.s32.totalorder %s15, 0
    %p63 = por %p61, %p62
    %s65 = sadd.s32 %s64, 1
    %p68 = scmp.eq.s32.totalorder %s9, 1
    %p69 = scmp.ne.s32.totalorder %s64, %s66
    %p70 = scmp.eq.s32.totalorder %s9, 0
    %p71 = por %p69, %p70
    %p72 = scmp.ne.s32.totalorder %s64, %s66
    %p73 = scmp.eq.s32.totalorder %s14, 1
    %p74 = por %p72, %p73
    %p75 = scmp.ne.s32.totalorder %s66, %s67
    %p76 = scmp.eq.s32.totalorder %s14, 0
    %p77 = por %p75, %p76
    %p78 = scmp.ne.s32.totalorder %s66, %s67
    %p79 = scmp.eq.s32.totalorder %s15, 1
    %p80 = por %p78, %p79
    %p82 = scmp.ne.s32.totalorder %s67, %s81
    %p83 = scmp.eq.s32.totalorder %s15, 0
    %p84 = por %p82, %p83
    %s85 = ssub.s32 %s9, %s16
    %p86 = scmp.eq.s32.totalorder %s85, 0
    %s88 = sadd.s32 %s87, 1
    %s89 = scalar_select %p86, %s87, %s88
    %p92 = pneg %p86
    %p93 = scmp.eq.s32.totalorder %s9, 1
    %p94 = por %p92, %p93
    %p95 = scmp.ne.s32.totalorder %s87, %s90
    %p96 = scmp.eq.s32.totalorder %s9, 0
    %p97 = por %p95, %p96
    %p98 = scmp.ne.s32.totalorder %s87, %s90
    %p99 = scmp.eq.s32.totalorder %s14, 1
    %p100 = por %p98, %p99
    %p101 = scmp.ne.s32.totalorder %s90, %s91
    %p102 = scmp.eq.s32.totalorder %s14, 0
    %p103 = por %p101, %p102
    %p104 = scmp.ne.s32.totalorder %s90, %s91
    %p105 = scmp.eq.s32.totalorder %s15, 1
    %p106 = por %p104, %p105
    %p108 = scmp.ne.s32.totalorder %s91, %s107
    %p109 = scmp.eq.s32.totalorder %s15, 0
    %p110 = por %p108, %p109
    %p111 = scmp.le.s32.totalorder 1, %s9
    %p112 = scmp.lt.s32.totalorder %s9, 3
    %p113 = pnand %p111, %p112
    %p114 = pneg %p113
    // Predicated region
    $region9: #{sdr_cnn_forward.4} parent=5 // pred_check
      _
    $region10: #{sdr_cnn_forward.4} parent=5 // pred_check_branch
      %116 = sbr.rel (%p113) target = $region12
    $region11: #{sdr_cnn_forward.4} parent=5 // pred_region
      %s117 = ssub.s32 %s9, 1
      // Predicated region
      $region13: #{sdr_cnn_forward.4} parent=11 // pred_check
        %p118 = pneg %p56
      $region14: #{sdr_cnn_forward.4} parent=11 // pred_check_branch
        %120 = sbr.rel (%p118) target = $region16
      $region15: #{sdr_cnn_forward.4} parent=11 // pred_region
        _
      $region16: #{sdr_cnn_forward.4} parent=11 // pred_fallthru
        _
      // Predicated region
      $region17: #{sdr_cnn_forward.4} parent=11 // pred_check
        %p121 = pneg %p77
      $region18: #{sdr_cnn_forward.4} parent=11 // pred_check_branch
        %123 = sbr.rel (%p121) target = $region20
      $region19: #{sdr_cnn_forward.4} parent=11 // pred_region
        _
      $region20: #{sdr_cnn_forward.4} parent=11 // pred_fallthru
        _
    $region12: #{sdr_cnn_forward.4} parent=5 // pred_fallthru
      _
    %p124 = scmp.lt.s32.totalorder %s9, 2
    // Predicated region
    $region21: #{sdr_cnn_forward.4} parent=5 // pred_check
      %p125 = pneg %p124
    $region22: #{sdr_cnn_forward.4} parent=5 // pred_check_branch
      %127 = sbr.rel (%p125) target = $region24
    $region23: #{sdr_cnn_forward.4} parent=5 // pred_region
      // Predicated region
      $region25: #{sdr_cnn_forward.4} parent=23 // pred_check
        %p128 = pneg %p29
      $region26: #{sdr_cnn_forward.4} parent=23 // pred_check_branch
        %130 = sbr.rel (%p128) target = $region28
      $region27: #{sdr_cnn_forward.4} parent=23 // pred_region
        %p131 = scmp.lt.s32.totalorder %s9, 1
        %s132 = scalar_select %p131, %s9, 1
        %s133 = smul.addr %s132, 208
        %s134 = smul.addr %s133, 4
        %s135 = scalar_lea.vmem %s0, %s134
      $region28: #{sdr_cnn_forward.4} parent=23 // pred_fallthru
        _
    $region24: #{sdr_cnn_forward.4} parent=5 // pred_fallthru
      _
    %p136 = scmp.le.s32.totalorder 1, %s9
    %p137 = scmp.lt.s32.totalorder %s9, 3
    %p138 = pnand %p136, %p137
    %p139 = pneg %p138
    // Predicated region
    $region29: #{sdr_cnn_forward.4} parent=5 // pred_check
      _
    $region30: #{sdr_cnn_forward.4} parent=5 // pred_check_branch
      %141 = sbr.rel (%p138) target = $region32
    $region31: #{sdr_cnn_forward.4} parent=5 // pred_region
      %s142 = ssub.s32 %s9, 1
      %p143 = scmp.lt.s32.totalorder %s14, 1
      %s144 = scalar_select %p143, %s14, 1
      %s145 = smul.addr %s144, 208
      %s146 = smul.addr %s145, 4
      %s147 = scalar_lea.vmem %s0, %s146
      %p148 = pneg %p35
      %p149 = pneg %p32
      %p150 = pneg %p56
      %p151 = pneg %p53
      %p152 = pneg %p77
      %p153 = pneg %p74
      %p154 = pneg %p103
      %p155 = pneg %p100
      %p156 = scmp.lt.s32.totalorder %s14, 1
      %s157 = scalar_select %p156, %s14, 1
      %s158 = smul.addr %s157, 4
      %s159 = smul.addr %s158, 8
      %s160 = scalar_lea.vmem %s3, %s159
      %p161 = scmp.lt.s32.totalorder %s14, 1
      %s162 = scalar_select %p161, %s14, 1
      %s163 = smul.addr %s162, 208
      %s164 = smul.addr %s163, 4
      %s165 = scalar_lea.vmem %s0, %s164
      %p166 = scmp.lt.s32.totalorder %s14, 1
      %s167 = scalar_select %p166, %s14, 1
      %s168 = smul.addr %s167, 4
      %s169 = smul.addr %s168, 8
      %s170 = scalar_lea.vmem %s3, %s169
      %v172 = vld [vmem:[%s1] sm:$0xf]
      %v173 = vld [vmem:[%s1 + $0x4] sm:$0xf]
      %v174 = vld [vmem:[%s1 + $0x8] sm:$0xf]
      %v175 = vld [vmem:[%s1 + $0xc] sm:$0xf]
      %v176 = vld [vmem:[%s1 + $0x10] sm:$0xf]
      %v177 = vld [vmem:[%s1 + $0x14] sm:$0xf]
      %v178 = vld [vmem:[%s1 + $0x18] sm:$0xf]
      %v179 = vld [vmem:[%s1 + $0x1c] sm:$0xf]
      %v180 = vld [vmem:[%s1 + $0x20] sm:$0xf]
      %v181 = vld [vmem:[%s1 + $0x24] sm:$0xf]
      %v182 = vld [vmem:[%s1 + $0x28] sm:$0xf]
      %v183 = vld [vmem:[%s1 + $0x2c] sm:$0xf]
      %v184 = vld [vmem:[%s1 + $0x30] sm:$0xf]
      %v185 = vld [vmem:[%s1 + $0x34] sm:$0xf]
      %v186 = vld [vmem:[%s1 + $0x38] sm:$0xf]
      %v187 = vld [vmem:[%s1 + $0x3c] sm:$0xf]
      %v188 = vld [vmem:[%s1 + $0x40] sm:$0xf]
      %v189 = vld [vmem:[%s1 + $0x44] sm:$0xf]
      %v190 = vld [vmem:[%s1 + $0x48] sm:$0xf]
      %v191 = vld [vmem:[%s1 + $0x4c] sm:$0xf]
      %v192 = vld [vmem:[%s1 + $0x50] sm:$0xf]
      %v193 = vld [vmem:[%s1 + $0x54] sm:$0xf]
      %v194 = vld [vmem:[%s1 + $0x58] sm:$0xf]
      %v195 = vld [vmem:[%s1 + $0x5c] sm:$0xf]
      %v196 = vld [vmem:[%s1 + $0x60] sm:$0xf]
      %v197 = vld [vmem:[%s1 + $0x64] sm:$0xf]
      %v198 = vld [vmem:[%s1 + $0x68] sm:$0xf]
      %v199 = vld [vmem:[%s1 + $0x6c] sm:$0xf]
      %v200 = vld [vmem:[%s1 + $0x70] sm:$0xf]
      %v201 = vld [vmem:[%s1 + $0x74] sm:$0xf]
      %v202 = vld [vmem:[%s1 + $0x78] sm:$0xf]
      %v203 = vld [vmem:[%s1 + $0x7c] sm:$0xf]
      %v204 = vld [vmem:[%s1 + $0x80] sm:$0xf]
      %v205 = vld [vmem:[%s1 + $0x84] sm:$0xf]
      %v206 = vld [vmem:[%s1 + $0x88] sm:$0xf]
      %v207 = vld [vmem:[%s1 + $0x8c] sm:$0xf]
      %v208 = vld [vmem:[%s1 + $0x90] sm:$0xf]
      %v209 = vld [vmem:[%s1 + $0x94] sm:$0xf]
      %v210 = vld [vmem:[%s1 + $0x98] sm:$0xf]
      %v211 = vld [vmem:[%s1 + $0x9c] sm:$0xf]
      %v212 = vld [vmem:[%s1 + $0xa0] sm:$0xf]
      %v213 = vld [vmem:[%s1 + $0xa4] sm:$0xf]
      %v214 = vld [vmem:[%s1 + $0xa8] sm:$0xf]
      %v215 = vld [vmem:[%s1 + $0xac] sm:$0xf]
      %v216 = vld [vmem:[%s1 + $0xb0] sm:$0xf]
      %v217 = vld [vmem:[%s1 + $0xb4] sm:$0xf]
      %v218 = vld [vmem:[%s1 + $0xb8] sm:$0xf]
      %v219 = vld [vmem:[%s1 + $0xbc] sm:$0xf]
      %v220 = vld [vmem:[%s1 + $0xc0] sm:$0xf]
      %v221 = vld [vmem:[%s1 + $0xc4] sm:$0xf]
      %v222 = vld [vmem:[%s1 + $0xc8] sm:$0xf]
      %v223 = vld [vmem:[%s1 + $0xcc] sm:$0xf]
      %v224 = vld [vmem:[%s1 + $0xd0] sm:$0xf]
      %v225 = vld [vmem:[%s1 + $0xd4] sm:$0xf]
      %v226 = vld [vmem:[%s1 + $0xd8] sm:$0xf]
      %v227 = vld [vmem:[%s1 + $0xdc] sm:$0xf]
      %v228 = vld [vmem:[%s1 + $0xe0] sm:$0xf]
      %v229 = vld [vmem:[%s1 + $0xe4] sm:$0xf]
      %v230 = vld [vmem:[%s1 + $0xe8] sm:$0xf]
      %v231 = vld [vmem:[%s1 + $0xec] sm:$0xf]
      %v232 = vld [vmem:[%s1 + $0xf0] sm:$0xf]
      %v233 = vld [vmem:[%s1 + $0xf4] sm:$0xf]
      %v234 = vld [vmem:[%s1 + $0xf8] sm:$0xf]
      %v235 = vld [vmem:[%s1 + $0xfc] sm:$0xf]
      %v236 = vld [vmem:[%s1 + $0x100] sm:$0xf]
      %v237 = vld [vmem:[%s1 + $0x104] sm:$0xf]
      %v238 = vld [vmem:[%s1 + $0x108] sm:$0xf]
      %v239 = vld [vmem:[%s1 + $0x10c] sm:$0xf]
      %v240 = vld [vmem:[%s1 + $0x110] sm:$0xf]
      %v241 = vld [vmem:[%s1 + $0x114] sm:$0xf]
      %v242 = vld [vmem:[%s1 + $0x118] sm:$0xf]
      %v243 = vld [vmem:[%s1 + $0x11c] sm:$0xf]
      %v244 = vld [vmem:[%s1 + $0x120] sm:$0xf]
      %v245 = vld [vmem:[%s1 + $0x124] sm:$0xf]
      %v246 = vld [vmem:[%s1 + $0x128] sm:$0xf]
      %v247 = vld [vmem:[%s1 + $0x12c] sm:$0xf]
      %v248 = vld [vmem:[%s1 + $0x130] sm:$0xf]
      %v249 = vld [vmem:[%s1 + $0x134] sm:$0xf]
      %v250 = vld [vmem:[%s1 + $0x138] sm:$0xf]
      %v251 = vld [vmem:[%s1 + $0x13c] sm:$0xf]
      %v252 = vld [vmem:[%s1 + $0x140] sm:$0xf]
      %v253 = vld [vmem:[%s1 + $0x144] sm:$0xf]
      %v254 = vld [vmem:[%s1 + $0x148] sm:$0xf]
      %v255 = vld [vmem:[%s1 + $0x14c] sm:$0xf]
      %v256 = vld [vmem:[%s1 + $0x150] sm:$0xf]
      %v257 = vld [vmem:[%s1 + $0x154] sm:$0xf]
      %v258 = vld [vmem:[%s1 + $0x158] sm:$0xf]
      %v259 = vld [vmem:[%s1 + $0x15c] sm:$0xf]
      %v260 = vld [vmem:[%s1 + $0x160] sm:$0xf]
      %v261 = vld [vmem:[%s1 + $0x164] sm:$0xf]
      %v262 = vld [vmem:[%s1 + $0x168] sm:$0xf]
      %v263 = vld [vmem:[%s1 + $0x16c] sm:$0xf]
      %v264 = vld [vmem:[%s1 + $0x170] sm:$0xf]
      %v265 = vld [vmem:[%s1 + $0x174] sm:$0xf]
      %v266 = vld [vmem:[%s1 + $0x178] sm:$0xf]
      %v267 = vld [vmem:[%s1 + $0x17c] sm:$0xf]
      %v268 = vld [vmem:[%s1 + $0x180] sm:$0xf]
      %v269 = vld [vmem:[%s1 + $0x184] sm:$0xf]
      %v270 = vld [vmem:[%s1 + $0x188] sm:$0xf]
      %v271 = vld [vmem:[%s1 + $0x18c] sm:$0xf]
      %v272 = vld [vmem:[%s1 + $0x190] sm:$0xf]
      %v273 = vld [vmem:[%s1 + $0x194] sm:$0xf]
      %v274 = vld [vmem:[%s1 + $0x198] sm:$0xf]
      %v275 = vld [vmem:[%s1 + $0x19c] sm:$0xf]
      %v276 = vld [vmem:[%s1 + $0x1a0] sm:$0xf]
      %v277 = vld [vmem:[%s1 + $0x1a4] sm:$0xf]
      %v278 = vld [vmem:[%s1 + $0x1a8] sm:$0xf]
      %v279 = vld [vmem:[%s1 + $0x1ac] sm:$0xf]
      %v280 = vld [vmem:[%s1 + $0x1b0] sm:$0xf]
      %v281 = vld [vmem:[%s1 + $0x1b4] sm:$0xf]
      %v282 = vld [vmem:[%s1 + $0x1b8] sm:$0xf]
      %v283 = vld [vmem:[%s1 + $0x1bc] sm:$0xf]
      %v284 = vld [vmem:[%s1 + $0x1c0] sm:$0xf]
      %v285 = vld [vmem:[%s1 + $0x1c4] sm:$0xf]
      %v286 = vld [vmem:[%s1 + $0x1c8] sm:$0xf]
      %v287 = vld [vmem:[%s1 + $0x1cc] sm:$0xf]
      %v288 = vld [vmem:[%s1 + $0x1d0] sm:$0xf]
      %v289 = vld [vmem:[%s1 + $0x1d4] sm:$0xf]
      %v290 = vld [vmem:[%s1 + $0x1d8] sm:$0xf]
      %v291 = vld [vmem:[%s1 + $0x1dc] sm:$0xf]
      %v292 = vld [vmem:[%s1 + $0x1e0] sm:$0xf]
      %v293 = vld [vmem:[%s1 + $0x1e4] sm:$0xf]
      %v294 = vld [vmem:[%s1 + $0x1e8] sm:$0xf]
      %v295 = vld [vmem:[%s1 + $0x1ec] sm:$0xf]
      %v296 = vld [vmem:[%s1 + $0x1f0] sm:$0xf]
      %v297 = vld [vmem:[%s1 + $0x1f4] sm:$0xf]
      %v298 = vld [vmem:[%s1 + $0x1f8] sm:$0xf]
      %v299 = vld [vmem:[%s1 + $0x1fc] sm:$0xf]
      %v300 = vld [vmem:[%s1 + $0x200] sm:$0xf]
      %v301 = vld [vmem:[%s1 + $0x204] sm:$0xf]
      %v302 = vld [vmem:[%s1 + $0x208] sm:$0xf]
      %v303 = vld [vmem:[%s1 + $0x20c] sm:$0xf]
      %v304 = vld [vmem:[%s1 + $0x210] sm:$0xf]
      %v305 = vld [vmem:[%s1 + $0x214] sm:$0xf]
      %v306 = vld [vmem:[%s1 + $0x218] sm:$0xf]
      %v307 = vld [vmem:[%s1 + $0x21c] sm:$0xf]
      %v308 = vld [vmem:[%s1 + $0x220] sm:$0xf]
      %v309 = vld [vmem:[%s1 + $0x224] sm:$0xf]
      %v310 = vld [vmem:[%s1 + $0x228] sm:$0xf]
      %v311 = vld [vmem:[%s1 + $0x22c] sm:$0xf]
      %v312 = vld [vmem:[%s1 + $0x230] sm:$0xf]
      %v313 = vld [vmem:[%s1 + $0x234] sm:$0xf]
      %v314 = vld [vmem:[%s1 + $0x238] sm:$0xf]
      %v315 = vld [vmem:[%s1 + $0x23c] sm:$0xf]
      %v316 = vld [vmem:[%s1 + $0x240] sm:$0xf]
      %v317 = vld [vmem:[%s1 + $0x244] sm:$0xf]
      %v318 = vld [vmem:[%s1 + $0x248] sm:$0xf]
      %v319 = vld [vmem:[%s1 + $0x24c] sm:$0xf]
      %v320 = vld [vmem:[%s1 + $0x250] sm:$0xf]
      %v321 = vld [vmem:[%s1 + $0x254] sm:$0xf]
      %v322 = vld [vmem:[%s1 + $0x258] sm:$0xf]
      %v323 = vld [vmem:[%s1 + $0x25c] sm:$0xf]
      %v324 = vld [vmem:[%s1 + $0x260] sm:$0xf]
      %v325 = vld [vmem:[%s1 + $0x264] sm:$0xf]
      %v326 = vld [vmem:[%s1 + $0x268] sm:$0xf]
      %v327 = vld [vmem:[%s1 + $0x26c] sm:$0xf]
      %v328 = vld [vmem:[%s1 + $0x270] sm:$0xf]
      %v329 = vld [vmem:[%s1 + $0x274] sm:$0xf]
      %v330 = vld [vmem:[%s1 + $0x278] sm:$0xf]
      %v331 = vld [vmem:[%s1 + $0x27c] sm:$0xf]
      %v332 = vld [vmem:[%s1 + $0x280] sm:$0xf]
      %v333 = vld [vmem:[%s1 + $0x284] sm:$0xf]
      %v334 = vld [vmem:[%s1 + $0x288] sm:$0xf]
      %v335 = vld [vmem:[%s1 + $0x28c] sm:$0xf]
      %v336 = vld [vmem:[%s1 + $0x290] sm:$0xf]
      %v337 = vld [vmem:[%s1 + $0x294] sm:$0xf]
      %v338 = vld [vmem:[%s1 + $0x298] sm:$0xf]
      %v339 = vld [vmem:[%s1 + $0x29c] sm:$0xf]
      %v340 = vld [vmem:[%s1 + $0x2a0] sm:$0xf]
      %v341 = vld [vmem:[%s1 + $0x2a4] sm:$0xf]
      %v342 = vld [vmem:[%s1 + $0x2a8] sm:$0xf]
      %v343 = vld [vmem:[%s1 + $0x2ac] sm:$0xf]
      %v344 = vld [vmem:[%s1 + $0x2b0] sm:$0xf]
      %v345 = vld [vmem:[%s1 + $0x2b4] sm:$0xf]
      %v346 = vld [vmem:[%s1 + $0x2b8] sm:$0xf]
      %v347 = vld [vmem:[%s1 + $0x2bc] sm:$0xf]
      %v348 = vld [vmem:[%s1 + $0x2c0] sm:$0xf]
      %v349 = vld [vmem:[%s1 + $0x2c4] sm:$0xf]
      %v350 = vld [vmem:[%s1 + $0x2c8] sm:$0xf]
      %v351 = vld [vmem:[%s1 + $0x2cc] sm:$0xf]
      %v352 = vld [vmem:[%s1 + $0x2d0] sm:$0xf]
      %v353 = vld [vmem:[%s1 + $0x2d4] sm:$0xf]
      %v354 = vld [vmem:[%s1 + $0x2d8] sm:$0xf]
      %v355 = vld [vmem:[%s1 + $0x2dc] sm:$0xf]
      %v356 = vld [vmem:[%s1 + $0x2e0] sm:$0xf]
      %v357 = vld [vmem:[%s1 + $0x2e4] sm:$0xf]
      %v358 = vld [vmem:[%s1 + $0x2e8] sm:$0xf]
      %v359 = vld [vmem:[%s1 + $0x2ec] sm:$0xf]
      %v360 = vld [vmem:[%s1 + $0x2f0] sm:$0xf]
      %v361 = vld [vmem:[%s1 + $0x2f4] sm:$0xf]
      %v362 = vld [vmem:[%s1 + $0x2f8] sm:$0xf]
      %v363 = vld [vmem:[%s1 + $0x2fc] sm:$0xf]
      %v364 = vld [vmem:[%s1 + $0x300] sm:$0xf]
      %v365 = vld [vmem:[%s1 + $0x304] sm:$0xf]
      %v366 = vld [vmem:[%s1 + $0x308] sm:$0xf]
      %v367 = vld [vmem:[%s1 + $0x30c] sm:$0xf]
      %v368 = vld [vmem:[%s1 + $0x310] sm:$0xf]
      %v369 = vld [vmem:[%s1 + $0x314] sm:$0xf]
      %v370 = vld [vmem:[%s1 + $0x318] sm:$0xf]
      %v371 = vld [vmem:[%s1 + $0x31c] sm:$0xf]
      %v372 = vld [vmem:[%s2] sm:$0x1]
      %v373 = vld [vmem:[%s165] sm:$0xff]
      %v374 = vld [vmem:[%s165 + $0x8] sm:$0xff]
      %v375 = vld [vmem:[%s165 + $0x10] sm:$0xff]
      %v376 = vld [vmem:[%s165 + $0x18] sm:$0xff]
      %v377 = vld [vmem:[%s165 + $0x20] sm:$0xff]
      %v378 = vld [vmem:[%s165 + $0x28] sm:$0xff]
      %v379 = vld [vmem:[%s165 + $0x30] sm:$0xf]
      %v380 = vld [vmem:[%s165 + $0x34] sm:$0xff]
      %v381 = vld [vmem:[%s165 + $0x3c] sm:$0xff]
      %v382 = vld [vmem:[%s165 + $0x44] sm:$0xff]
      %v383 = vld [vmem:[%s165 + $0x4c] sm:$0xff]
      %v384 = vld [vmem:[%s165 + $0x54] sm:$0xff]
      %v385 = vld [vmem:[%s165 + $0x5c] sm:$0xff]
      %v386 = vld [vmem:[%s165 + $0x64] sm:$0xf]
      %v387 = vld [vmem:[%s165 + $0x68] sm:$0xff]
      %v388 = vld [vmem:[%s165 + $0x70] sm:$0xff]
      %v389 = vld [vmem:[%s165 + $0x78] sm:$0xff]
      %v390 = vld [vmem:[%s165 + $0x80] sm:$0xff]
      %v391 = vld [vmem:[%s165 + $0x88] sm:$0xff]
      %v392 = vld [vmem:[%s165 + $0x90] sm:$0xff]
      %v393 = vld [vmem:[%s165 + $0x98] sm:$0xf]
      %v394 = vld [vmem:[%s165 + $0x9c] sm:$0x11]
      %v395 = vld [vmem:[%s165 + $0xa4] sm:$0x11]
      %v396 = vld [vmem:[%s165 + $0xac] sm:$0x11]
      %v397 = vld [vmem:[%s165 + $0xb4] sm:$0x11]
      %v398 = vld [vmem:[%s165 + $0xbc] sm:$0x11]
      %v399 = vld [vmem:[%s165 + $0xc4] sm:$0x11]
      %v400 = vld [vmem:[%s165 + $0xcc] sm:$0x1]
      %v402 = vlaneseq
      %v403 = vshrl.u32 %v402, 7
      %v404 = vsub.s32 0, %v403
      %v405 = vrot.slane %v372, %v404
      %v435 = vunpack.c.l.b16 %v373
      %v436 = vunpack.c.h.b16 %v373
      %v437 = vunpack.c.l.b16 %v374
      %v438 = vunpack.c.h.b16 %v374
      %v439 = vunpack.c.l.b16 %v375
      %v440 = vunpack.c.h.b16 %v375
      %v441 = vunpack.c.l.b16 %v376
      %v442 = vunpack.c.h.b16 %v376
      %v443 = vunpack.c.l.b16 %v377
      %v444 = vunpack.c.h.b16 %v377
      %v445 = vunpack.c.l.b16 %v378
      %v446 = vunpack.c.h.b16 %v378
      %v447 = vunpack.c.l.b16 %v379
      %v448 = vunpack.c.l.b16 %v380
      %v449 = vunpack.c.h.b16 %v380
      %v450 = vunpack.c.l.b16 %v381
      %v451 = vunpack.c.h.b16 %v381
      %v452 = vunpack.c.l.b16 %v382
      %v453 = vunpack.c.h.b16 %v382
      %v454 = vunpack.c.l.b16 %v383
      %v455 = vunpack.c.h.b16 %v383
      %v456 = vunpack.c.l.b16 %v384
      %v457 = vunpack.c.h.b16 %v384
      %v458 = vunpack.c.l.b16 %v385
      %v459 = vunpack.c.h.b16 %v385
      %v460 = vunpack.c.l.b16 %v386
      %v461 = vunpack.c.l.b16 %v387
      %v462 = vunpack.c.h.b16 %v387
      %v463 = vunpack.c.l.b16 %v388
      %v464 = vunpack.c.h.b16 %v388
      %v465 = vunpack.c.l.b16 %v389
      %v466 = vunpack.c.h.b16 %v389
      %v467 = vunpack.c.l.b16 %v390
      %v468 = vunpack.c.h.b16 %v390
      %v469 = vunpack.c.l.b16 %v391
      %v470 = vunpack.c.h.b16 %v391
      %v471 = vunpack.c.l.b16 %v392
      %v472 = vunpack.c.h.b16 %v392
      %v473 = vunpack.c.l.b16 %v393
      %v474 = vunpack.c.l.b16 %v394
      %v475 = vunpack.c.h.b16 %v394
      %v476 = vunpack.c.l.b16 %v395
      %v477 = vunpack.c.h.b16 %v395
      %v478 = vunpack.c.l.b16 %v396
      %v479 = vunpack.c.h.b16 %v396
      %v480 = vunpack.c.l.b16 %v397
      %v481 = vunpack.c.h.b16 %v397
      %v482 = vunpack.c.l.b16 %v398
      %v483 = vunpack.c.h.b16 %v398
      %v484 = vunpack.c.l.b16 %v399
      %v485 = vunpack.c.h.b16 %v399
      %v486 = vunpack.c.l.b16 %v400
      %v487 = vpack.c.b16 %v448, %v435
      %v488 = vpack.c.b16 %v449, %v436
      %v489 = vpack.c.b16 %v450, %v437
      %v490 = vpack.c.b16 %v451, %v438
      %v491 = vpack.c.b16 %v452, %v439
      %v492 = vpack.c.b16 %v453, %v440
      %v493 = vpack.c.b16 %v454, %v441
      %v494 = vpack.c.b16 %v455, %v442
      %v495 = vpack.c.b16 %v456, %v443
      %v496 = vpack.c.b16 %v457, %v444
      %v497 = vpack.c.b16 %v458, %v445
      %v498 = vpack.c.b16 %v459, %v446
      %v499 = vpack.c.b16 %v460, %v447
      %v500 = vpack.c.b16 %v474, %v461
      %v501 = vpack.c.b16 %v475, %v462
      %v502 = vpack.c.b16 %v476, %v463
      %v503 = vpack.c.b16 %v477, %v464
      %v504 = vpack.c.b16 %v478, %v465
      %v505 = vpack.c.b16 %v479, %v466
      %v506 = vpack.c.b16 %v480, %v467
      %v507 = vpack.c.b16 %v481, %v468
      %v508 = vpack.c.b16 %v482, %v469
      %v509 = vpack.c.b16 %v483, %v470
      %v510 = vpack.c.b16 %v484, %v471
      %v511 = vpack.c.b16 %v485, %v472
      %v512 = vpack.c.b16 %v486, %v473
      %v737 = vunpack.c.l.b16 %v172
      %v738 = vunpack.c.l.b16 %v173
      %v739 = vunpack.c.l.b16 %v174
      %v740 = vunpack.c.l.b16 %v175
      %v741 = vunpack.c.l.b16 %v176
      %v742 = vunpack.c.l.b16 %v177
      %v743 = vunpack.c.l.b16 %v178
      %v744 = vunpack.c.l.b16 %v179
      %v745 = vunpack.c.l.b16 %v180
      %v746 = vunpack.c.l.b16 %v181
      %v747 = vunpack.c.l.b16 %v182
      %v748 = vunpack.c.l.b16 %v183
      %v749 = vunpack.c.l.b16 %v184
      %v750 = vunpack.c.l.b16 %v185
      %v751 = vunpack.c.l.b16 %v186
      %v752 = vunpack.c.l.b16 %v187
      %v753 = vunpack.c.l.b16 %v188
      %v754 = vunpack.c.l.b16 %v189
      %v755 = vunpack.c.l.b16 %v190
      %v756 = vunpack.c.l.b16 %v191
      %v757 = vunpack.c.l.b16 %v192
      %v758 = vunpack.c.l.b16 %v193
      %v759 = vunpack.c.l.b16 %v194
      %v760 = vunpack.c.l.b16 %v195
      %v761 = vunpack.c.l.b16 %v196
      %v762 = vunpack.c.l.b16 %v197
      %v763 = vunpack.c.l.b16 %v198
      %v764 = vunpack.c.l.b16 %v199
      %v765 = vunpack.c.l.b16 %v200
      %v766 = vunpack.c.l.b16 %v201
      %v767 = vunpack.c.l.b16 %v202
      %v768 = vunpack.c.l.b16 %v203
      %v769 = vunpack.c.l.b16 %v204
      %v770 = vunpack.c.l.b16 %v205
      %v771 = vunpack.c.l.b16 %v206
      %v772 = vunpack.c.l.b16 %v207
      %v773 = vunpack.c.l.b16 %v208
      %v774 = vunpack.c.l.b16 %v209
      %v775 = vunpack.c.l.b16 %v210
      %v776 = vunpack.c.l.b16 %v211
      %v777 = vunpack.c.l.b16 %v212
      %v778 = vunpack.c.l.b16 %v213
      %v779 = vunpack.c.l.b16 %v214
      %v780 = vunpack.c.l.b16 %v215
      %v781 = vunpack.c.l.b16 %v216
      %v782 = vunpack.c.l.b16 %v217
      %v783 = vunpack.c.l.b16 %v218
      %v784 = vunpack.c.l.b16 %v219
      %v785 = vunpack.c.l.b16 %v220
      %v786 = vunpack.c.l.b16 %v221
      %v787 = vunpack.c.l.b16 %v222
      %v788 = vunpack.c.l.b16 %v223
      %v789 = vunpack.c.l.b16 %v224
      %v790 = vunpack.c.l.b16 %v225
      %v791 = vunpack.c.l.b16 %v226
      %v792 = vunpack.c.l.b16 %v227
      %v793 = vunpack.c.l.b16 %v228
      %v794 = vunpack.c.l.b16 %v229
      %v795 = vunpack.c.l.b16 %v230
      %v796 = vunpack.c.l.b16 %v231
      %v797 = vunpack.c.l.b16 %v232
      %v798 = vunpack.c.l.b16 %v233
      %v799 = vunpack.c.l.b16 %v234
      %v800 = vunpack.c.l.b16 %v235
      %v801 = vunpack.c.l.b16 %v236
      %v802 = vunpack.c.l.b16 %v237
      %v803 = vunpack.c.l.b16 %v238
      %v804 = vunpack.c.l.b16 %v239
      %v805 = vunpack.c.l.b16 %v240
      %v806 = vunpack.c.l.b16 %v241
      %v807 = vunpack.c.l.b16 %v242
      %v808 = vunpack.c.l.b16 %v243
      %v809 = vunpack.c.l.b16 %v244
      %v810 = vunpack.c.l.b16 %v245
      %v811 = vunpack.c.l.b16 %v246
      %v812 = vunpack.c.l.b16 %v247
      %v813 = vunpack.c.l.b16 %v248
      %v814 = vunpack.c.l.b16 %v249
      %v815 = vunpack.c.l.b16 %v250
      %v816 = vunpack.c.l.b16 %v251
      %v817 = vunpack.c.l.b16 %v252
      %v818 = vunpack.c.l.b16 %v253
      %v819 = vunpack.c.l.b16 %v254
      %v820 = vunpack.c.l.b16 %v255
      %v821 = vunpack.c.l.b16 %v256
      %v822 = vunpack.c.l.b16 %v257
      %v823 = vunpack.c.l.b16 %v258
      %v824 = vunpack.c.l.b16 %v259
      %v825 = vunpack.c.l.b16 %v260
      %v826 = vunpack.c.l.b16 %v261
      %v827 = vunpack.c.l.b16 %v262
      %v828 = vunpack.c.l.b16 %v263
      %v829 = vunpack.c.l.b16 %v264
      %v830 = vunpack.c.l.b16 %v265
      %v831 = vunpack.c.l.b16 %v266
      %v832 = vunpack.c.l.b16 %v267
      %v833 = vunpack.c.l.b16 %v268
      %v834 = vunpack.c.l.b16 %v269
      %v835 = vunpack.c.l.b16 %v270
      %v836 = vunpack.c.l.b16 %v271
      %v837 = vunpack.c.l.b16 %v272
      %v838 = vunpack.c.l.b16 %v273
      %v839 = vunpack.c.l.b16 %v274
      %v840 = vunpack.c.l.b16 %v275
      %v841 = vunpack.c.l.b16 %v276
      %v842 = vunpack.c.l.b16 %v277
      %v843 = vunpack.c.l.b16 %v278
      %v844 = vunpack.c.l.b16 %v279
      %v845 = vunpack.c.l.b16 %v280
      %v846 = vunpack.c.l.b16 %v281
      %v847 = vunpack.c.l.b16 %v282
      %v848 = vunpack.c.l.b16 %v283
      %v849 = vunpack.c.l.b16 %v284
      %v850 = vunpack.c.l.b16 %v285
      %v851 = vunpack.c.l.b16 %v286
      %v852 = vunpack.c.l.b16 %v287
      %v853 = vunpack.c.l.b16 %v288
      %v854 = vunpack.c.l.b16 %v289
      %v855 = vunpack.c.l.b16 %v290
      %v856 = vunpack.c.l.b16 %v291
      %v857 = vunpack.c.l.b16 %v292
      %v858 = vunpack.c.l.b16 %v293
      %v859 = vunpack.c.l.b16 %v294
      %v860 = vunpack.c.l.b16 %v295
      %v861 = vunpack.c.l.b16 %v296
      %v862 = vunpack.c.l.b16 %v297
      %v863 = vunpack.c.l.b16 %v298
      %v864 = vunpack.c.l.b16 %v299
      %v865 = vunpack.c.l.b16 %v300
      %v866 = vunpack.c.l.b16 %v301
      %v867 = vunpack.c.l.b16 %v302
      %v868 = vunpack.c.l.b16 %v303
      %v869 = vunpack.c.l.b16 %v304
      %v870 = vunpack.c.l.b16 %v305
      %v871 = vunpack.c.l.b16 %v306
      %v872 = vunpack.c.l.b16 %v307
      %v873 = vunpack.c.l.b16 %v308
      %v874 = vunpack.c.l.b16 %v309
      %v875 = vunpack.c.l.b16 %v310
      %v876 = vunpack.c.l.b16 %v311
      %v877 = vunpack.c.l.b16 %v312
      %v878 = vunpack.c.l.b16 %v313
      %v879 = vunpack.c.l.b16 %v314
      %v880 = vunpack.c.l.b16 %v315
      %v881 = vunpack.c.l.b16 %v316
      %v882 = vunpack.c.l.b16 %v317
      %v883 = vunpack.c.l.b16 %v318
      %v884 = vunpack.c.l.b16 %v319
      %v885 = vunpack.c.l.b16 %v320
      %v886 = vunpack.c.l.b16 %v321
      %v887 = vunpack.c.l.b16 %v322
      %v888 = vunpack.c.l.b16 %v323
      %v889 = vunpack.c.l.b16 %v324
      %v890 = vunpack.c.l.b16 %v325
      %v891 = vunpack.c.l.b16 %v326
      %v892 = vunpack.c.l.b16 %v327
      %v893 = vunpack.c.l.b16 %v328
      %v894 = vunpack.c.l.b16 %v329
      %v895 = vunpack.c.l.b16 %v330
      %v896 = vunpack.c.l.b16 %v331
      %v897 = vunpack.c.l.b16 %v332
      %v898 = vunpack.c.l.b16 %v333
      %v899 = vunpack.c.l.b16 %v334
      %v900 = vunpack.c.l.b16 %v335
      %v901 = vunpack.c.l.b16 %v336
      %v902 = vunpack.c.l.b16 %v337
      %v903 = vunpack.c.l.b16 %v338
      %v904 = vunpack.c.l.b16 %v339
      %v905 = vunpack.c.l.b16 %v340
      %v906 = vunpack.c.l.b16 %v341
      %v907 = vunpack.c.l.b16 %v342
      %v908 = vunpack.c.l.b16 %v343
      %v909 = vunpack.c.l.b16 %v344
      %v910 = vunpack.c.l.b16 %v345
      %v911 = vunpack.c.l.b16 %v346
      %v912 = vunpack.c.l.b16 %v347
      %v913 = vunpack.c.l.b16 %v348
      %v914 = vunpack.c.l.b16 %v349
      %v915 = vunpack.c.l.b16 %v350
      %v916 = vunpack.c.l.b16 %v351
      %v917 = vunpack.c.l.b16 %v352
      %v918 = vunpack.c.l.b16 %v353
      %v919 = vunpack.c.l.b16 %v354
      %v920 = vunpack.c.l.b16 %v355
      %v921 = vunpack.c.l.b16 %v356
      %v922 = vunpack.c.l.b16 %v357
      %v923 = vunpack.c.l.b16 %v358
      %v924 = vunpack.c.l.b16 %v359
      %v925 = vunpack.c.l.b16 %v360
      %v926 = vunpack.c.l.b16 %v361
      %v927 = vunpack.c.l.b16 %v362
      %v928 = vunpack.c.l.b16 %v363
      %v929 = vunpack.c.l.b16 %v364
      %v930 = vunpack.c.l.b16 %v365
      %v931 = vunpack.c.l.b16 %v366
      %v932 = vunpack.c.l.b16 %v367
      %v933 = vunpack.c.l.b16 %v368
      %v934 = vunpack.c.l.b16 %v369
      %v935 = vunpack.c.l.b16 %v370
      %v936 = vunpack.c.l.b16 %v371
      %v937 = vpack.c.b16 %v738, %v737
      %v938 = vpack.c.b16 %v740, %v739
      %v939 = vpack.c.b16 %v742, %v741
      %v940 = vpack.c.b16 %v744, %v743
      %v941 = vpack.c.b16 %v746, %v745
      %v942 = vpack.c.b16 %v748, %v747
      %v943 = vpack.c.b16 %v750, %v749
      %v944 = vpack.c.b16 %v752, %v751
      %v945 = vpack.c.b16 %v754, %v753
      %v946 = vpack.c.b16 %v756, %v755
      %v947 = vpack.c.b16 %v758, %v757
      %v948 = vpack.c.b16 %v760, %v759
      %v949 = vpack.c.b16 %v762, %v761
      %v950 = vpack.c.b16 %v764, %v763
      %v951 = vpack.c.b16 %v766, %v765
      %v952 = vpack.c.b16 %v768, %v767
      %v953 = vpack.c.b16 %v770, %v769
      %v954 = vpack.c.b16 %v772, %v771
      %v955 = vpack.c.b16 %v774, %v773
      %v956 = vpack.c.b16 %v776, %v775
      %v957 = vpack.c.b16 %v778, %v777
      %v958 = vpack.c.b16 %v780, %v779
      %v959 = vpack.c.b16 %v782, %v781
      %v960 = vpack.c.b16 %v784, %v783
      %v961 = vpack.c.b16 %v786, %v785
      %v962 = vpack.c.b16 %v788, %v787
      %v963 = vpack.c.b16 %v790, %v789
      %v964 = vpack.c.b16 %v792, %v791
      %v965 = vpack.c.b16 %v794, %v793
      %v966 = vpack.c.b16 %v796, %v795
      %v967 = vpack.c.b16 %v798, %v797
      %v968 = vpack.c.b16 %v800, %v799
      %v969 = vpack.c.b16 %v802, %v801
      %v970 = vpack.c.b16 %v804, %v803
      %v971 = vpack.c.b16 %v806, %v805
      %v972 = vpack.c.b16 %v808, %v807
      %v973 = vpack.c.b16 %v810, %v809
      %v974 = vpack.c.b16 %v812, %v811
      %v975 = vpack.c.b16 %v814, %v813
      %v976 = vpack.c.b16 %v816, %v815
      %v977 = vpack.c.b16 %v818, %v817
      %v978 = vpack.c.b16 %v820, %v819
      %v979 = vpack.c.b16 %v822, %v821
      %v980 = vpack.c.b16 %v824, %v823
      %v981 = vpack.c.b16 %v826, %v825
      %v982 = vpack.c.b16 %v828, %v827
      %v983 = vpack.c.b16 %v830, %v829
      %v984 = vpack.c.b16 %v832, %v831
      %v985 = vpack.c.b16 %v834, %v833
      %v986 = vpack.c.b16 %v836, %v835
      %v987 = vpack.c.b16 %v838, %v837
      %v988 = vpack.c.b16 %v840, %v839
      %v989 = vpack.c.b16 %v842, %v841
      %v990 = vpack.c.b16 %v844, %v843
      %v991 = vpack.c.b16 %v846, %v845
      %v992 = vpack.c.b16 %v848, %v847
      %v993 = vpack.c.b16 %v850, %v849
      %v994 = vpack.c.b16 %v852, %v851
      %v995 = vpack.c.b16 %v854, %v853
      %v996 = vpack.c.b16 %v856, %v855
      %v997 = vpack.c.b16 %v858, %v857
      %v998 = vpack.c.b16 %v860, %v859
      %v999 = vpack.c.b16 %v862, %v861
      %v1000 = vpack.c.b16 %v864, %v863
      %v1001 = vpack.c.b16 %v866, %v865
      %v1002 = vpack.c.b16 %v868, %v867
      %v1003 = vpack.c.b16 %v870, %v869
      %v1004 = vpack.c.b16 %v872, %v871
      %v1005 = vpack.c.b16 %v874, %v873
      %v1006 = vpack.c.b16 %v876, %v875
      %v1007 = vpack.c.b16 %v878, %v877
      %v1008 = vpack.c.b16 %v880, %v879
      %v1009 = vpack.c.b16 %v882, %v881
      %v1010 = vpack.c.b16 %v884, %v883
      %v1011 = vpack.c.b16 %v886, %v885
      %v1012 = vpack.c.b16 %v888, %v887
      %v1013 = vpack.c.b16 %v890, %v889
      %v1014 = vpack.c.b16 %v892, %v891
      %v1015 = vpack.c.b16 %v894, %v893
      %v1016 = vpack.c.b16 %v896, %v895
      %v1017 = vpack.c.b16 %v898, %v897
      %v1018 = vpack.c.b16 %v900, %v899
      %v1019 = vpack.c.b16 %v902, %v901
      %v1020 = vpack.c.b16 %v904, %v903
      %v1021 = vpack.c.b16 %v906, %v905
      %v1022 = vpack.c.b16 %v908, %v907
      %v1023 = vpack.c.b16 %v910, %v909
      %v1024 = vpack.c.b16 %v912, %v911
      %v1025 = vpack.c.b16 %v914, %v913
      %v1026 = vpack.c.b16 %v916, %v915
      %v1027 = vpack.c.b16 %v918, %v917
      %v1028 = vpack.c.b16 %v920, %v919
      %v1029 = vpack.c.b16 %v922, %v921
      %v1030 = vpack.c.b16 %v924, %v923
      %v1031 = vpack.c.b16 %v926, %v925
      %v1032 = vpack.c.b16 %v928, %v927
      %v1033 = vpack.c.b16 %v930, %v929
      %v1034 = vpack.c.b16 %v932, %v931
      %v1035 = vpack.c.b16 %v934, %v933
      %v1036 = vpack.c.b16 %v936, %v935
      %vm1137 = vcmask 523264
      %v1139 = vsel %vm1137, %v499, 0
      %v1142 = vsel %vm1137, %v512, 0
      %1144 = vmatprep.subr.bf16.mxu0 0
      %1145 = vmatpush1.bf16.msra.mxu0 %v944
      %1146 = vmatprep.subr.bf16.mxu0 0
      %1147 = vmatpush1.bf16.msra.mxu0 %v943
      %1148 = vmatprep.subr.bf16.mxu0 0
      %1149 = vmatpush1.bf16.msra.mxu0 %v942
      %1150 = vmatprep.subr.bf16.mxu0 0
      %1151 = vmatpush1.bf16.msra.mxu0 %v941
      %1152 = vmatprep.subr.bf16.mxu0 0
      %1153 = vmatpush1.bf16.msra.mxu0 %v940
      %1154 = vmatprep.subr.bf16.mxu0 0
      %1155 = vmatpush1.bf16.msra.mxu0 %v939
      %1156 = vmatprep.subr.bf16.mxu0 0
      %1157 = vmatpush1.bf16.msra.mxu0 %v938
      %1158 = vmatprep.subr.bf16.mxu0 0
      %1159 = vmatpush1.bf16.msra.mxu0 %v937
      %1160 = vmatprep.subr.bf16.mxu0 0
      %1161 = vmatpush2.bf16.msra.mxu0 %v952
      %1162 = vmatprep.subr.bf16.mxu0 0
      %1163 = vmatpush2.bf16.msra.mxu0 %v951
      %1164 = vmatprep.subr.bf16.mxu0 0
      %1165 = vmatpush2.bf16.msra.mxu0 %v950
      %1166 = vmatprep.subr.bf16.mxu0 0
      %1167 = vmatpush2.bf16.msra.mxu0 %v949
      %1168 = vmatprep.subr.bf16.mxu0 0
      %1169 = vmatpush2.bf16.msra.mxu0 %v948
      %1170 = vmatprep.subr.bf16.mxu0 0
      %1171 = vmatpush2.bf16.msra.mxu0 %v947
      %1172 = vmatprep.subr.bf16.mxu0 0
      %1173 = vmatpush2.bf16.msra.mxu0 %v946
      %1174 = vmatprep.subr.bf16.mxu0 0
      %1175 = vmatpush2.bf16.msra.mxu0 %v945
      %1176 = vmatprep.mubr.bf16.mxu0 %v488
      %1177 = vmatmul.mubr.bf16.gmra.mxu0 %v487
      %v1178 = vpop.f32.mrf.mxu0
      %v1179 = vadd.f32 %v405, %v1178
      %v1180 = vpop.f32.mrf.mxu0
      %v1181 = vpop.f32.mrf.mxu0
      %v1182 = vadd.f32 %v405, %v1181
      %v1183 = vpop.f32.mrf.mxu0
      %1184 = vmatprep.mubr.bf16.mxu0 %v501
      %1185 = vmatmul.mubr.bf16.gmra.mxu0 %v500
      %v1186 = vpop.f32.mrf.mxu0
      %v1187 = vadd.f32 %v405, %v1186
      %v1188 = vpop.f32.mrf.mxu0
      %v1189 = vpop.f32.mrf.mxu0
      %v1190 = vadd.f32 %v405, %v1189
      %v1191 = vpop.f32.mrf.mxu0
      %1192 = vdwg.mxu0
      %1193 = vmatprep.subr.bf16.mxu0 0
      %1194 = vmatpush1.bf16.msra.mxu0 %v960
      %1195 = vmatprep.subr.bf16.mxu0 0
      %1196 = vmatpush1.bf16.msra.mxu0 %v959
      %1197 = vmatprep.subr.bf16.mxu0 0
      %1198 = vmatpush1.bf16.msra.mxu0 %v958
      %1199 = vmatprep.subr.bf16.mxu0 0
      %1200 = vmatpush1.bf16.msra.mxu0 %v957
      %1201 = vmatprep.subr.bf16.mxu0 0
      %1202 = vmatpush1.bf16.msra.mxu0 %v956
      %1203 = vmatprep.subr.bf16.mxu0 0
      %1204 = vmatpush1.bf16.msra.mxu0 %v955
      %1205 = vmatprep.subr.bf16.mxu0 0
      %1206 = vmatpush1.bf16.msra.mxu0 %v954
      %1207 = vmatprep.subr.bf16.mxu0 0
      %1208 = vmatpush1.bf16.msra.mxu0 %v953
      %1209 = vmatprep.subr.bf16.mxu0 0
      %1210 = vmatpush2.bf16.msra.mxu0 %v968
      %1211 = vmatprep.subr.bf16.mxu0 0
      %1212 = vmatpush2.bf16.msra.mxu0 %v967
      %1213 = vmatprep.subr.bf16.mxu0 0
      %1214 = vmatpush2.bf16.msra.mxu0 %v966
      %1215 = vmatprep.subr.bf16.mxu0 0
      %1216 = vmatpush2.bf16.msra.mxu0 %v965
      %1217 = vmatprep.subr.bf16.mxu0 0
      %1218 = vmatpush2.bf16.msra.mxu0 %v964
      %1219 = vmatprep.subr.bf16.mxu0 0
      %1220 = vmatpush2.bf16.msra.mxu0 %v963
      %1221 = vmatprep.subr.bf16.mxu0 0
      %1222 = vmatpush2.bf16.msra.mxu0 %v962
      %1223 = vmatprep.subr.bf16.mxu0 0
      %1224 = vmatpush2.bf16.msra.mxu0 %v961
      %1225 = vmatprep.mubr.bf16.mxu0 %v490
      %1226 = vmatmul.mubr.bf16.gmra.mxu0 %v489
      %v1227 = vpop.f32.mrf.mxu0
      %v1228 = vadd.f32 %v1179, %v1227
      %v1229 = vpop.f32.mrf.mxu0
      %v1230 = vpop.f32.mrf.mxu0
      %v1231 = vadd.f32 %v1182, %v1230
      %v1232 = vpop.f32.mrf.mxu0
      %1233 = vmatprep.mubr.bf16.mxu0 %v503
      %1234 = vmatmul.mubr.bf16.gmra.mxu0 %v502
      %v1235 = vpop.f32.mrf.mxu0
      %v1236 = vadd.f32 %v1187, %v1235
      %v1237 = vpop.f32.mrf.mxu0
      %v1238 = vpop.f32.mrf.mxu0
      %v1239 = vadd.f32 %v1190, %v1238
      %v1240 = vpop.f32.mrf.mxu0
      %1241 = vdwg.mxu0
      %1242 = vmatprep.subr.bf16.mxu0 0
      %1243 = vmatpush1.bf16.msra.mxu0 %v976
      %1244 = vmatprep.subr.bf16.mxu0 0
      %1245 = vmatpush1.bf16.msra.mxu0 %v975
      %1246 = vmatprep.subr.bf16.mxu0 0
      %1247 = vmatpush1.bf16.msra.mxu0 %v974
      %1248 = vmatprep.subr.bf16.mxu0 0
      %1249 = vmatpush1.bf16.msra.mxu0 %v973
      %1250 = vmatprep.subr.bf16.mxu0 0
      %1251 = vmatpush1.bf16.msra.mxu0 %v972
      %1252 = vmatprep.subr.bf16.mxu0 0
      %1253 = vmatpush1.bf16.msra.mxu0 %v971
      %1254 = vmatprep.subr.bf16.mxu0 0
      %1255 = vmatpush1.bf16.msra.mxu0 %v970
      %1256 = vmatprep.subr.bf16.mxu0 0
      %1257 = vmatpush1.bf16.msra.mxu0 %v969
      %1258 = vmatprep.subr.bf16.mxu0 0
      %1259 = vmatpush2.bf16.msra.mxu0 %v984
      %1260 = vmatprep.subr.bf16.mxu0 0
      %1261 = vmatpush2.bf16.msra.mxu0 %v983
      %1262 = vmatprep.subr.bf16.mxu0 0
      %1263 = vmatpush2.bf16.msra.mxu0 %v982
      %1264 = vmatprep.subr.bf16.mxu0 0
      %1265 = vmatpush2.bf16.msra.mxu0 %v981
      %1266 = vmatprep.subr.bf16.mxu0 0
      %1267 = vmatpush2.bf16.msra.mxu0 %v980
      %1268 = vmatprep.subr.bf16.mxu0 0
      %1269 = vmatpush2.bf16.msra.mxu0 %v979
      %1270 = vmatprep.subr.bf16.mxu0 0
      %1271 = vmatpush2.bf16.msra.mxu0 %v978
      %1272 = vmatprep.subr.bf16.mxu0 0
      %1273 = vmatpush2.bf16.msra.mxu0 %v977
      %1274 = vmatprep.mubr.bf16.mxu0 %v492
      %1275 = vmatmul.mubr.bf16.gmra.mxu0 %v491
      %v1276 = vpop.f32.mrf.mxu0
      %v1277 = vadd.f32 %v1228, %v1276
      %v1278 = vpop.f32.mrf.mxu0
      %v1279 = vpop.f32.mrf.mxu0
      %v1280 = vadd.f32 %v1231, %v1279
      %v1281 = vpop.f32.mrf.mxu0
      %1282 = vmatprep.mubr.bf16.mxu0 %v505
      %1283 = vmatmul.mubr.bf16.gmra.mxu0 %v504
      %v1284 = vpop.f32.mrf.mxu0
      %v1285 = vadd.f32 %v1236, %v1284
      %v1286 = vpop.f32.mrf.mxu0
      %v1287 = vpop.f32.mrf.mxu0
      %v1288 = vadd.f32 %v1239, %v1287
      %v1289 = vpop.f32.mrf.mxu0
      %1290 = vdwg.mxu0
      %1291 = vmatprep.subr.bf16.mxu0 0
      %1292 = vmatpush1.bf16.msra.mxu0 %v992
      %1293 = vmatprep.subr.bf16.mxu0 0
      %1294 = vmatpush1.bf16.msra.mxu0 %v991
      %1295 = vmatprep.subr.bf16.mxu0 0
      %1296 = vmatpush1.bf16.msra.mxu0 %v990
      %1297 = vmatprep.subr.bf16.mxu0 0
      %1298 = vmatpush1.bf16.msra.mxu0 %v989
      %1299 = vmatprep.subr.bf16.mxu0 0
      %1300 = vmatpush1.bf16.msra.mxu0 %v988
      %1301 = vmatprep.subr.bf16.mxu0 0
      %1302 = vmatpush1.bf16.msra.mxu0 %v987
      %1303 = vmatprep.subr.bf16.mxu0 0
      %1304 = vmatpush1.bf16.msra.mxu0 %v986
      %1305 = vmatprep.subr.bf16.mxu0 0
      %1306 = vmatpush1.bf16.msra.mxu0 %v985
      %1307 = vmatprep.subr.bf16.mxu0 0
      %1308 = vmatpush2.bf16.msra.mxu0 %v1000
      %1309 = vmatprep.subr.bf16.mxu0 0
      %1310 = vmatpush2.bf16.msra.mxu0 %v999
      %1311 = vmatprep.subr.bf16.mxu0 0
      %1312 = vmatpush2.bf16.msra.mxu0 %v998
      %1313 = vmatprep.subr.bf16.mxu0 0
      %1314 = vmatpush2.bf16.msra.mxu0 %v997
      %1315 = vmatprep.subr.bf16.mxu0 0
      %1316 = vmatpush2.bf16.msra.mxu0 %v996
      %1317 = vmatprep.subr.bf16.mxu0 0
      %1318 = vmatpush2.bf16.msra.mxu0 %v995
      %1319 = vmatprep.subr.bf16.mxu0 0
      %1320 = vmatpush2.bf16.msra.mxu0 %v994
      %1321 = vmatprep.subr.bf16.mxu0 0
      %1322 = vmatpush2.bf16.msra.mxu0 %v993
      %1323 = vmatprep.mubr.bf16.mxu0 %v494
      %1324 = vmatmul.mubr.bf16.gmra.mxu0 %v493
      %v1325 = vpop.f32.mrf.mxu0
      %v1326 = vadd.f32 %v1277, %v1325
      %v1327 = vpop.f32.mrf.mxu0
      %v1328 = vpop.f32.mrf.mxu0
      %v1329 = vadd.f32 %v1280, %v1328
      %v1330 = vpop.f32.mrf.mxu0
      %1331 = vmatprep.mubr.bf16.mxu0 %v507
      %1332 = vmatmul.mubr.bf16.gmra.mxu0 %v506
      %v1333 = vpop.f32.mrf.mxu0
      %v1334 = vadd.f32 %v1285, %v1333
      %v1335 = vpop.f32.mrf.mxu0
      %v1336 = vpop.f32.mrf.mxu0
      %v1337 = vadd.f32 %v1288, %v1336
      %v1338 = vpop.f32.mrf.mxu0
      %1339 = vdwg.mxu0
      %1340 = vmatprep.subr.bf16.mxu0 0
      %1341 = vmatpush1.bf16.msra.mxu0 %v1008
      %1342 = vmatprep.subr.bf16.mxu0 0
      %1343 = vmatpush1.bf16.msra.mxu0 %v1007
      %1344 = vmatprep.subr.bf16.mxu0 0
      %1345 = vmatpush1.bf16.msra.mxu0 %v1006
      %1346 = vmatprep.subr.bf16.mxu0 0
      %1347 = vmatpush1.bf16.msra.mxu0 %v1005
      %1348 = vmatprep.subr.bf16.mxu0 0
      %1349 = vmatpush1.bf16.msra.mxu0 %v1004
      %1350 = vmatprep.subr.bf16.mxu0 0
      %1351 = vmatpush1.bf16.msra.mxu0 %v1003
      %1352 = vmatprep.subr.bf16.mxu0 0
      %1353 = vmatpush1.bf16.msra.mxu0 %v1002
      %1354 = vmatprep.subr.bf16.mxu0 0
      %1355 = vmatpush1.bf16.msra.mxu0 %v1001
      %1356 = vmatprep.subr.bf16.mxu0 0
      %1357 = vmatpush2.bf16.msra.mxu0 %v1016
      %1358 = vmatprep.subr.bf16.mxu0 0
      %1359 = vmatpush2.bf16.msra.mxu0 %v1015
      %1360 = vmatprep.subr.bf16.mxu0 0
      %1361 = vmatpush2.bf16.msra.mxu0 %v1014
      %1362 = vmatprep.subr.bf16.mxu0 0
      %1363 = vmatpush2.bf16.msra.mxu0 %v1013
      %1364 = vmatprep.subr.bf16.mxu0 0
      %1365 = vmatpush2.bf16.msra.mxu0 %v1012
      %1366 = vmatprep.subr.bf16.mxu0 0
      %1367 = vmatpush2.bf16.msra.mxu0 %v1011
      %1368 = vmatprep.subr.bf16.mxu0 0
      %1369 = vmatpush2.bf16.msra.mxu0 %v1010
      %1370 = vmatprep.subr.bf16.mxu0 0
      %1371 = vmatpush2.bf16.msra.mxu0 %v1009
      %1372 = vmatprep.mubr.bf16.mxu0 %v496
      %1373 = vmatmul.mubr.bf16.gmra.mxu0 %v495
      %v1374 = vpop.f32.mrf.mxu0
      %v1375 = vadd.f32 %v1326, %v1374
      %v1376 = vpop.f32.mrf.mxu0
      %v1377 = vpop.f32.mrf.mxu0
      %v1378 = vadd.f32 %v1329, %v1377
      %v1379 = vpop.f32.mrf.mxu0
      %1380 = vmatprep.mubr.bf16.mxu0 %v509
      %1381 = vmatmul.mubr.bf16.gmra.mxu0 %v508
      %v1382 = vpop.f32.mrf.mxu0
      %v1383 = vadd.f32 %v1334, %v1382
      %v1384 = vpop.f32.mrf.mxu0
      %v1385 = vpop.f32.mrf.mxu0
      %v1386 = vadd.f32 %v1337, %v1385
      %v1387 = vpop.f32.mrf.mxu0
      %1388 = vdwg.mxu0
      %1389 = vmatprep.subr.bf16.mxu0 0
      %1390 = vmatpush1.bf16.msra.mxu0 %v1024
      %1391 = vmatprep.subr.bf16.mxu0 0
      %1392 = vmatpush1.bf16.msra.mxu0 %v1023
      %1393 = vmatprep.subr.bf16.mxu0 0
      %1394 = vmatpush1.bf16.msra.mxu0 %v1022
      %1395 = vmatprep.subr.bf16.mxu0 0
      %1396 = vmatpush1.bf16.msra.mxu0 %v1021
      %1397 = vmatprep.subr.bf16.mxu0 0
      %1398 = vmatpush1.bf16.msra.mxu0 %v1020
      %1399 = vmatprep.subr.bf16.mxu0 0
      %1400 = vmatpush1.bf16.msra.mxu0 %v1019
      %1401 = vmatprep.subr.bf16.mxu0 0
      %1402 = vmatpush1.bf16.msra.mxu0 %v1018
      %1403 = vmatprep.subr.bf16.mxu0 0
      %1404 = vmatpush1.bf16.msra.mxu0 %v1017
      %1405 = vmatprep.subr.bf16.mxu0 0
      %1406 = vmatpush2.bf16.msra.mxu0 %v1032
      %1407 = vmatprep.subr.bf16.mxu0 0
      %1408 = vmatpush2.bf16.msra.mxu0 %v1031
      %1409 = vmatprep.subr.bf16.mxu0 0
      %1410 = vmatpush2.bf16.msra.mxu0 %v1030
      %1411 = vmatprep.subr.bf16.mxu0 0
      %1412 = vmatpush2.bf16.msra.mxu0 %v1029
      %1413 = vmatprep.subr.bf16.mxu0 0
      %1414 = vmatpush2.bf16.msra.mxu0 %v1028
      %1415 = vmatprep.subr.bf16.mxu0 0
      %1416 = vmatpush2.bf16.msra.mxu0 %v1027
      %1417 = vmatprep.subr.bf16.mxu0 0
      %1418 = vmatpush2.bf16.msra.mxu0 %v1026
      %1419 = vmatprep.subr.bf16.mxu0 0
      %1420 = vmatpush2.bf16.msra.mxu0 %v1025
      %1421 = vmatprep.mubr.bf16.mxu0 %v498
      %1422 = vmatmul.mubr.bf16.gmra.mxu0 %v497
      %v1423 = vpop.f32.mrf.mxu0
      %v1424 = vadd.f32 %v1375, %v1423
      %v1425 = vpop.f32.mrf.mxu0
      %v1426 = vpop.f32.mrf.mxu0
      %v1427 = vadd.f32 %v1378, %v1426
      %v1428 = vpop.f32.mrf.mxu0
      %1429 = vmatprep.mubr.bf16.mxu0 %v511
      %1430 = vmatmul.mubr.bf16.gmra.mxu0 %v510
      %v1431 = vpop.f32.mrf.mxu0
      %v1432 = vadd.f32 %v1383, %v1431
      %v1433 = vpop.f32.mrf.mxu0
      %v1434 = vpop.f32.mrf.mxu0
      %v1435 = vadd.f32 %v1386, %v1434
      %v1436 = vpop.f32.mrf.mxu0
      %1437 = vdwg.mxu0
      %1438 = vmatprep.subr.bf16.mxu0 0
      %1439 = vmatpush1.bf16.msra.mxu0 0
      %1440 = vmatprep.subr.bf16.mxu0 0
      %1441 = vmatpush1.bf16.msra.mxu0 0
      %1442 = vmatprep.subr.bf16.mxu0 0
      %1443 = vmatpush1.bf16.msra.mxu0 0
      %1444 = vmatprep.subr.bf16.mxu0 0
      %1445 = vmatpush1.bf16.msra.mxu0 0
      %1446 = vmatprep.subr.bf16.mxu0 0
      %1447 = vmatpush1.bf16.msra.mxu0 %v1036
      %1448 = vmatprep.subr.bf16.mxu0 0
      %1449 = vmatpush1.bf16.msra.mxu0 %v1035
      %1450 = vmatprep.subr.bf16.mxu0 0
      %1451 = vmatpush1.bf16.msra.mxu0 %v1034
      %1452 = vmatprep.subr.bf16.mxu0 0
      %1453 = vmatpush1.bf16.msra.mxu0 %v1033
      %1454 = vmatprep.subr.bf16.mxu0 0
      %1455 = vmatpush2.bf16.msra.mxu0 0
      %1456 = vmatprep.subr.bf16.mxu0 0
      %1457 = vmatpush2.bf16.msra.mxu0 0
      %1458 = vmatprep.subr.bf16.mxu0 0
      %1459 = vmatpush2.bf16.msra.mxu0 0
      %1460 = vmatprep.subr.bf16.mxu0 0
      %1461 = vmatpush2.bf16.msra.mxu0 0
      %1462 = vmatprep.subr.bf16.mxu0 0
      %1463 = vmatpush2.bf16.msra.mxu0 0
      %1464 = vmatprep.subr.bf16.mxu0 0
      %1465 = vmatpush2.bf16.msra.mxu0 0
      %1466 = vmatprep.subr.bf16.mxu0 0
      %1467 = vmatpush2.bf16.msra.mxu0 0
      %1468 = vmatprep.subr.bf16.mxu0 0
      %1469 = vmatpush2.bf16.msra.mxu0 0
      %1470 = vmatprep.mubr.bf16.mxu0 0
      %1471 = vmatmul.mubr.bf16.gmra.mxu0 %v1139
      %v1472 = vpop.f32.mrf.mxu0
      %v1473 = vadd.f32 %v1424, %v1472
      %v1474 = vpop.f32.mrf.mxu0
      %v1475 = vpop.f32.mrf.mxu0
      %v1476 = vadd.f32 %v1427, %v1475
      %v1477 = vpop.f32.mrf.mxu0
      %1478 = vmatprep.mubr.bf16.mxu0 0
      %1479 = vmatmul.mubr.bf16.gmra.mxu0 %v1142
      %v1480 = vpop.f32.mrf.mxu0
      %v1481 = vadd.f32 %v1432, %v1480
      %v1482 = vpop.f32.mrf.mxu0
      %v1483 = vpop.f32.mrf.mxu0
      %v1484 = vadd.f32 %v1435, %v1483
      %v1485 = vpop.f32.mrf.mxu0
      %1486 = vdwg.mxu0
      %v1487 = vmax.f32 %v1473, 0.0
      %v1488 = vmax.f32 %v1476, 0.0
      %v1489 = vmax.f32 %v1481, 0.0
      %v1490 = vmax.f32 %v1484, 0.0
      %s1491 = scalar_lea.vmem %s165, 208
      %v1492 = vld [vmem:[%s1491] sm:$0xff]
      %v1493 = vld [vmem:[%s1491 + $0x8] sm:$0xff]
      %v1494 = vld [vmem:[%s1491 + $0x10] sm:$0xff]
      %v1495 = vld [vmem:[%s1491 + $0x18] sm:$0xff]
      %v1496 = vld [vmem:[%s1491 + $0x20] sm:$0xff]
      %v1497 = vld [vmem:[%s1491 + $0x28] sm:$0xff]
      %v1498 = vld [vmem:[%s1491 + $0x30] sm:$0xf]
      %v1499 = vld [vmem:[%s1491 + $0x34] sm:$0xff]
      %v1500 = vld [vmem:[%s1491 + $0x3c] sm:$0xff]
      %v1501 = vld [vmem:[%s1491 + $0x44] sm:$0xff]
      %v1502 = vld [vmem:[%s1491 + $0x4c] sm:$0xff]
      %v1503 = vld [vmem:[%s1491 + $0x54] sm:$0xff]
      %v1504 = vld [vmem:[%s1491 + $0x5c] sm:$0xff]
      %v1505 = vld [vmem:[%s1491 + $0x64] sm:$0xf]
      %v1506 = vld [vmem:[%s1491 + $0x68] sm:$0xff]
      %v1507 = vld [vmem:[%s1491 + $0x70] sm:$0xff]
      %v1508 = vld [vmem:[%s1491 + $0x78] sm:$0xff]
      %v1509 = vld [vmem:[%s1491 + $0x80] sm:$0xff]
      %v1510 = vld [vmem:[%s1491 + $0x88] sm:$0xff]
      %v1511 = vld [vmem:[%s1491 + $0x90] sm:$0xff]
      %v1512 = vld [vmem:[%s1491 + $0x98] sm:$0xf]
      %v1513 = vld [vmem:[%s1491 + $0x9c] sm:$0x11]
      %v1514 = vld [vmem:[%s1491 + $0xa4] sm:$0x11]
      %v1515 = vld [vmem:[%s1491 + $0xac] sm:$0x11]
      %v1516 = vld [vmem:[%s1491 + $0xb4] sm:$0x11]
      %v1517 = vld [vmem:[%s1491 + $0xbc] sm:$0x11]
      %v1518 = vld [vmem:[%s1491 + $0xc4] sm:$0x11]
      %v1519 = vld [vmem:[%s1491 + $0xcc] sm:$0x1]
      %v1548 = vunpack.c.l.b16 %v1492
      %v1549 = vunpack.c.h.b16 %v1492
      %v1550 = vunpack.c.l.b16 %v1493
      %v1551 = vunpack.c.h.b16 %v1493
      %v1552 = vunpack.c.l.b16 %v1494
      %v1553 = vunpack.c.h.b16 %v1494
      %v1554 = vunpack.c.l.b16 %v1495
      %v1555 = vunpack.c.h.b16 %v1495
      %v1556 = vunpack.c.l.b16 %v1496
      %v1557 = vunpack.c.h.b16 %v1496
      %v1558 = vunpack.c.l.b16 %v1497
      %v1559 = vunpack.c.h.b16 %v1497
      %v1560 = vunpack.c.l.b16 %v1498
      %v1561 = vunpack.c.l.b16 %v1499
      %v1562 = vunpack.c.h.b16 %v1499
      %v1563 = vunpack.c.l.b16 %v1500
      %v1564 = vunpack.c.h.b16 %v1500
      %v1565 = vunpack.c.l.b16 %v1501
      %v1566 = vunpack.c.h.b16 %v1501
      %v1567 = vunpack.c.l.b16 %v1502
      %v1568 = vunpack.c.h.b16 %v1502
      %v1569 = vunpack.c.l.b16 %v1503
      %v1570 = vunpack.c.h.b16 %v1503
      %v1571 = vunpack.c.l.b16 %v1504
      %v1572 = vunpack.c.h.b16 %v1504
      %v1573 = vunpack.c.l.b16 %v1505
      %v1574 = vunpack.c.l.b16 %v1506
      %v1575 = vunpack.c.h.b16 %v1506
      %v1576 = vunpack.c.l.b16 %v1507
      %v1577 = vunpack.c.h.b16 %v1507
      %v1578 = vunpack.c.l.b16 %v1508
      %v1579 = vunpack.c.h.b16 %v1508
      %v1580 = vunpack.c.l.b16 %v1509
      %v1581 = vunpack.c.h.b16 %v1509
      %v1582 = vunpack.c.l.b16 %v1510
      %v1583 = vunpack.c.h.b16 %v1510
      %v1584 = vunpack.c.l.b16 %v1511
      %v1585 = vunpack.c.h.b16 %v1511
      %v1586 = vunpack.c.l.b16 %v1512
      %v1587 = vunpack.c.l.b16 %v1513
      %v1588 = vunpack.c.h.b16 %v1513
      %v1589 = vunpack.c.l.b16 %v1514
      %v1590 = vunpack.c.h.b16 %v1514
      %v1591 = vunpack.c.l.b16 %v1515
      %v1592 = vunpack.c.h.b16 %v1515
      %v1593 = vunpack.c.l.b16 %v1516
      %v1594 = vunpack.c.h.b16 %v1516
      %v1595 = vunpack.c.l.b16 %v1517
      %v1596 = vunpack.c.h.b16 %v1517
      %v1597 = vunpack.c.l.b16 %v1518
      %v1598 = vunpack.c.h.b16 %v1518
      %v1599 = vunpack.c.l.b16 %v1519
      %v1600 = vpack.c.b16 %v1561, %v1548
      %v1601 = vpack.c.b16 %v1562, %v1549
      %v1602 = vpack.c.b16 %v1563, %v1550
      %v1603 = vpack.c.b16 %v1564, %v1551
      %v1604 = vpack.c.b16 %v1565, %v1552
      %v1605 = vpack.c.b16 %v1566, %v1553
      %v1606 = vpack.c.b16 %v1567, %v1554
      %v1607 = vpack.c.b16 %v1568, %v1555
      %v1608 = vpack.c.b16 %v1569, %v1556
      %v1609 = vpack.c.b16 %v1570, %v1557
      %v1610 = vpack.c.b16 %v1571, %v1558
      %v1611 = vpack.c.b16 %v1572, %v1559
      %v1612 = vpack.c.b16 %v1573, %v1560
      %v1613 = vpack.c.b16 %v1587, %v1574
      %v1614 = vpack.c.b16 %v1588, %v1575
      %v1615 = vpack.c.b16 %v1589, %v1576
      %v1616 = vpack.c.b16 %v1590, %v1577
      %v1617 = vpack.c.b16 %v1591, %v1578
      %v1618 = vpack.c.b16 %v1592, %v1579
      %v1619 = vpack.c.b16 %v1593, %v1580
      %v1620 = vpack.c.b16 %v1594, %v1581
      %v1621 = vpack.c.b16 %v1595, %v1582
      %v1622 = vpack.c.b16 %v1596, %v1583
      %v1623 = vpack.c.b16 %v1597, %v1584
      %v1624 = vpack.c.b16 %v1598, %v1585
      %v1625 = vpack.c.b16 %v1599, %v1586
      %v1651 = vsel %vm1137, %v1612, 0
      %v1654 = vsel %vm1137, %v1625, 0
      %1656 = vmatprep.subr.bf16.mxu0 0
      %1657 = vmatpush1.bf16.msra.mxu0 %v944
      %1658 = vmatprep.subr.bf16.mxu0 0
      %1659 = vmatpush1.bf16.msra.mxu0 %v943
      %1660 = vmatprep.subr.bf16.mxu0 0
      %1661 = vmatpush1.bf16.msra.mxu0 %v942
      %1662 = vmatprep.subr.bf16.mxu0 0
      %1663 = vmatpush1.bf16.msra.mxu0 %v941
      %1664 = vmatprep.subr.bf16.mxu0 0
      %1665 = vmatpush1.bf16.msra.mxu0 %v940
      %1666 = vmatprep.subr.bf16.mxu0 0
      %1667 = vmatpush1.bf16.msra.mxu0 %v939
      %1668 = vmatprep.subr.bf16.mxu0 0
      %1669 = vmatpush1.bf16.msra.mxu0 %v938
      %1670 = vmatprep.subr.bf16.mxu0 0
      %1671 = vmatpush1.bf16.msra.mxu0 %v937
      %1672 = vmatprep.subr.bf16.mxu0 0
      %1673 = vmatpush2.bf16.msra.mxu0 %v952
      %1674 = vmatprep.subr.bf16.mxu0 0
      %1675 = vmatpush2.bf16.msra.mxu0 %v951
      %1676 = vmatprep.subr.bf16.mxu0 0
      %1677 = vmatpush2.bf16.msra.mxu0 %v950
      %1678 = vmatprep.subr.bf16.mxu0 0
      %1679 = vmatpush2.bf16.msra.mxu0 %v949
      %1680 = vmatprep.subr.bf16.mxu0 0
      %1681 = vmatpush2.bf16.msra.mxu0 %v948
      %1682 = vmatprep.subr.bf16.mxu0 0
      %1683 = vmatpush2.bf16.msra.mxu0 %v947
      %1684 = vmatprep.subr.bf16.mxu0 0
      %1685 = vmatpush2.bf16.msra.mxu0 %v946
      %1686 = vmatprep.subr.bf16.mxu0 0
      %1687 = vmatpush2.bf16.msra.mxu0 %v945
      %1688 = vmatprep.mubr.bf16.mxu0 %v1601
      %1689 = vmatmul.mubr.bf16.gmra.mxu0 %v1600
      %v1690 = vpop.f32.mrf.mxu0
      %v1691 = vadd.f32 %v405, %v1690
      %v1692 = vpop.f32.mrf.mxu0
      %v1693 = vpop.f32.mrf.mxu0
      %v1694 = vadd.f32 %v405, %v1693
      %v1695 = vpop.f32.mrf.mxu0
      %1696 = vmatprep.mubr.bf16.mxu0 %v1614
      %1697 = vmatmul.mubr.bf16.gmra.mxu0 %v1613
      %v1698 = vpop.f32.mrf.mxu0
      %v1699 = vadd.f32 %v405, %v1698
      %v1700 = vpop.f32.mrf.mxu0
      %v1701 = vpop.f32.mrf.mxu0
      %v1702 = vadd.f32 %v405, %v1701
      %v1703 = vpop.f32.mrf.mxu0
      %1704 = vdwg.mxu0
      %1705 = vmatprep.subr.bf16.mxu0 0
      %1706 = vmatpush1.bf16.msra.mxu0 %v960
      %1707 = vmatprep.subr.bf16.mxu0 0
      %1708 = vmatpush1.bf16.msra.mxu0 %v959
      %1709 = vmatprep.subr.bf16.mxu0 0
      %1710 = vmatpush1.bf16.msra.mxu0 %v958
      %1711 = vmatprep.subr.bf16.mxu0 0
      %1712 = vmatpush1.bf16.msra.mxu0 %v957
      %1713 = vmatprep.subr.bf16.mxu0 0
      %1714 = vmatpush1.bf16.msra.mxu0 %v956
      %1715 = vmatprep.subr.bf16.mxu0 0
      %1716 = vmatpush1.bf16.msra.mxu0 %v955
      %1717 = vmatprep.subr.bf16.mxu0 0
      %1718 = vmatpush1.bf16.msra.mxu0 %v954
      %1719 = vmatprep.subr.bf16.mxu0 0
      %1720 = vmatpush1.bf16.msra.mxu0 %v953
      %1721 = vmatprep.subr.bf16.mxu0 0
      %1722 = vmatpush2.bf16.msra.mxu0 %v968
      %1723 = vmatprep.subr.bf16.mxu0 0
      %1724 = vmatpush2.bf16.msra.mxu0 %v967
      %1725 = vmatprep.subr.bf16.mxu0 0
      %1726 = vmatpush2.bf16.msra.mxu0 %v966
      %1727 = vmatprep.subr.bf16.mxu0 0
      %1728 = vmatpush2.bf16.msra.mxu0 %v965
      %1729 = vmatprep.subr.bf16.mxu0 0
      %1730 = vmatpush2.bf16.msra.mxu0 %v964
      %1731 = vmatprep.subr.bf16.mxu0 0
      %1732 = vmatpush2.bf16.msra.mxu0 %v963
      %1733 = vmatprep.subr.bf16.mxu0 0
      %1734 = vmatpush2.bf16.msra.mxu0 %v962
      %1735 = vmatprep.subr.bf16.mxu0 0
      %1736 = vmatpush2.bf16.msra.mxu0 %v961
      %1737 = vmatprep.mubr.bf16.mxu0 %v1603
      %1738 = vmatmul.mubr.bf16.gmra.mxu0 %v1602
      %v1739 = vpop.f32.mrf.mxu0
      %v1740 = vadd.f32 %v1691, %v1739
      %v1741 = vpop.f32.mrf.mxu0
      %v1742 = vpop.f32.mrf.mxu0
      %v1743 = vadd.f32 %v1694, %v1742
      %v1744 = vpop.f32.mrf.mxu0
      %1745 = vmatprep.mubr.bf16.mxu0 %v1616
      %1746 = vmatmul.mubr.bf16.gmra.mxu0 %v1615
      %v1747 = vpop.f32.mrf.mxu0
      %v1748 = vadd.f32 %v1699, %v1747
      %v1749 = vpop.f32.mrf.mxu0
      %v1750 = vpop.f32.mrf.mxu0
      %v1751 = vadd.f32 %v1702, %v1750
      %v1752 = vpop.f32.mrf.mxu0
      %1753 = vdwg.mxu0
      %1754 = vmatprep.subr.bf16.mxu0 0
      %1755 = vmatpush1.bf16.msra.mxu0 %v976
      %1756 = vmatprep.subr.bf16.mxu0 0
      %1757 = vmatpush1.bf16.msra.mxu0 %v975
      %1758 = vmatprep.subr.bf16.mxu0 0
      %1759 = vmatpush1.bf16.msra.mxu0 %v974
      %1760 = vmatprep.subr.bf16.mxu0 0
      %1761 = vmatpush1.bf16.msra.mxu0 %v973
      %1762 = vmatprep.subr.bf16.mxu0 0
      %1763 = vmatpush1.bf16.msra.mxu0 %v972
      %1764 = vmatprep.subr.bf16.mxu0 0
      %1765 = vmatpush1.bf16.msra.mxu0 %v971
      %1766 = vmatprep.subr.bf16.mxu0 0
      %1767 = vmatpush1.bf16.msra.mxu0 %v970
      %1768 = vmatprep.subr.bf16.mxu0 0
      %1769 = vmatpush1.bf16.msra.mxu0 %v969
      %1770 = vmatprep.subr.bf16.mxu0 0
      %1771 = vmatpush2.bf16.msra.mxu0 %v984
      %1772 = vmatprep.subr.bf16.mxu0 0
      %1773 = vmatpush2.bf16.msra.mxu0 %v983
      %1774 = vmatprep.subr.bf16.mxu0 0
      %1775 = vmatpush2.bf16.msra.mxu0 %v982
      %1776 = vmatprep.subr.bf16.mxu0 0
      %1777 = vmatpush2.bf16.msra.mxu0 %v981
      %1778 = vmatprep.subr.bf16.mxu0 0
      %1779 = vmatpush2.bf16.msra.mxu0 %v980
      %1780 = vmatprep.subr.bf16.mxu0 0
      %1781 = vmatpush2.bf16.msra.mxu0 %v979
      %1782 = vmatprep.subr.bf16.mxu0 0
      %1783 = vmatpush2.bf16.msra.mxu0 %v978
      %1784 = vmatprep.subr.bf16.mxu0 0
      %1785 = vmatpush2.bf16.msra.mxu0 %v977
      %1786 = vmatprep.mubr.bf16.mxu0 %v1605
      %1787 = vmatmul.mubr.bf16.gmra.mxu0 %v1604
      %v1788 = vpop.f32.mrf.mxu0
      %v1789 = vadd.f32 %v1740, %v1788
      %v1790 = vpop.f32.mrf.mxu0
      %v1791 = vpop.f32.mrf.mxu0
      %v1792 = vadd.f32 %v1743, %v1791
      %v1793 = vpop.f32.mrf.mxu0
      %1794 = vmatprep.mubr.bf16.mxu0 %v1618
      %1795 = vmatmul.mubr.bf16.gmra.mxu0 %v1617
      %v1796 = vpop.f32.mrf.mxu0
      %v1797 = vadd.f32 %v1748, %v1796
      %v1798 = vpop.f32.mrf.mxu0
      %v1799 = vpop.f32.mrf.mxu0
      %v1800 = vadd.f32 %v1751, %v1799
      %v1801 = vpop.f32.mrf.mxu0
      %1802 = vdwg.mxu0
      %1803 = vmatprep.subr.bf16.mxu0 0
      %1804 = vmatpush1.bf16.msra.mxu0 %v992
      %1805 = vmatprep.subr.bf16.mxu0 0
      %1806 = vmatpush1.bf16.msra.mxu0 %v991
      %1807 = vmatprep.subr.bf16.mxu0 0
      %1808 = vmatpush1.bf16.msra.mxu0 %v990
      %1809 = vmatprep.subr.bf16.mxu0 0
      %1810 = vmatpush1.bf16.msra.mxu0 %v989
      %1811 = vmatprep.subr.bf16.mxu0 0
      %1812 = vmatpush1.bf16.msra.mxu0 %v988
      %1813 = vmatprep.subr.bf16.mxu0 0
      %1814 = vmatpush1.bf16.msra.mxu0 %v987
      %1815 = vmatprep.subr.bf16.mxu0 0
      %1816 = vmatpush1.bf16.msra.mxu0 %v986
      %1817 = vmatprep.subr.bf16.mxu0 0
      %1818 = vmatpush1.bf16.msra.mxu0 %v985
      %1819 = vmatprep.subr.bf16.mxu0 0
      %1820 = vmatpush2.bf16.msra.mxu0 %v1000
      %1821 = vmatprep.subr.bf16.mxu0 0
      %1822 = vmatpush2.bf16.msra.mxu0 %v999
      %1823 = vmatprep.subr.bf16.mxu0 0
      %1824 = vmatpush2.bf16.msra.mxu0 %v998
      %1825 = vmatprep.subr.bf16.mxu0 0
      %1826 = vmatpush2.bf16.msra.mxu0 %v997
      %1827 = vmatprep.subr.bf16.mxu0 0
      %1828 = vmatpush2.bf16.msra.mxu0 %v996
      %1829 = vmatprep.subr.bf16.mxu0 0
      %1830 = vmatpush2.bf16.msra.mxu0 %v995
      %1831 = vmatprep.subr.bf16.mxu0 0
      %1832 = vmatpush2.bf16.msra.mxu0 %v994
      %1833 = vmatprep.subr.bf16.mxu0 0
      %1834 = vmatpush2.bf16.msra.mxu0 %v993
      %1835 = vmatprep.mubr.bf16.mxu0 %v1607
      %1836 = vmatmul.mubr.bf16.gmra.mxu0 %v1606
      %v1837 = vpop.f32.mrf.mxu0
      %v1838 = vadd.f32 %v1789, %v1837
      %v1839 = vpop.f32.mrf.mxu0
      %v1840 = vpop.f32.mrf.mxu0
      %v1841 = vadd.f32 %v1792, %v1840
      %v1842 = vpop.f32.mrf.mxu0
      %1843 = vmatprep.mubr.bf16.mxu0 %v1620
      %1844 = vmatmul.mubr.bf16.gmra.mxu0 %v1619
      %v1845 = vpop.f32.mrf.mxu0
      %v1846 = vadd.f32 %v1797, %v1845
      %v1847 = vpop.f32.mrf.mxu0
      %v1848 = vpop.f32.mrf.mxu0
      %v1849 = vadd.f32 %v1800, %v1848
      %v1850 = vpop.f32.mrf.mxu0
      %1851 = vdwg.mxu0
      %1852 = vmatprep.subr.bf16.mxu0 0
      %1853 = vmatpush1.bf16.msra.mxu0 %v1008
      %1854 = vmatprep.subr.bf16.mxu0 0
      %1855 = vmatpush1.bf16.msra.mxu0 %v1007
      %1856 = vmatprep.subr.bf16.mxu0 0
      %1857 = vmatpush1.bf16.msra.mxu0 %v1006
      %1858 = vmatprep.subr.bf16.mxu0 0
      %1859 = vmatpush1.bf16.msra.mxu0 %v1005
      %1860 = vmatprep.subr.bf16.mxu0 0
      %1861 = vmatpush1.bf16.msra.mxu0 %v1004
      %1862 = vmatprep.subr.bf16.mxu0 0
      %1863 = vmatpush1.bf16.msra.mxu0 %v1003
      %1864 = vmatprep.subr.bf16.mxu0 0
      %1865 = vmatpush1.bf16.msra.mxu0 %v1002
      %1866 = vmatprep.subr.bf16.mxu0 0
      %1867 = vmatpush1.bf16.msra.mxu0 %v1001
      %1868 = vmatprep.subr.bf16.mxu0 0
      %1869 = vmatpush2.bf16.msra.mxu0 %v1016
      %1870 = vmatprep.subr.bf16.mxu0 0
      %1871 = vmatpush2.bf16.msra.mxu0 %v1015
      %1872 = vmatprep.subr.bf16.mxu0 0
      %1873 = vmatpush2.bf16.msra.mxu0 %v1014
      %1874 = vmatprep.subr.bf16.mxu0 0
      %1875 = vmatpush2.bf16.msra.mxu0 %v1013
      %1876 = vmatprep.subr.bf16.mxu0 0
      %1877 = vmatpush2.bf16.msra.mxu0 %v1012
      %1878 = vmatprep.subr.bf16.mxu0 0
      %1879 = vmatpush2.bf16.msra.mxu0 %v1011
      %1880 = vmatprep.subr.bf16.mxu0 0
      %1881 = vmatpush2.bf16.msra.mxu0 %v1010
      %1882 = vmatprep.subr.bf16.mxu0 0
      %1883 = vmatpush2.bf16.msra.mxu0 %v1009
      %1884 = vmatprep.mubr.bf16.mxu0 %v1609
      %1885 = vmatmul.mubr.bf16.gmra.mxu0 %v1608
      %v1886 = vpop.f32.mrf.mxu0
      %v1887 = vadd.f32 %v1838, %v1886
      %v1888 = vpop.f32.mrf.mxu0
      %v1889 = vpop.f32.mrf.mxu0
      %v1890 = vadd.f32 %v1841, %v1889
      %v1891 = vpop.f32.mrf.mxu0
      %1892 = vmatprep.mubr.bf16.mxu0 %v1622
      %1893 = vmatmul.mubr.bf16.gmra.mxu0 %v1621
      %v1894 = vpop.f32.mrf.mxu0
      %v1895 = vadd.f32 %v1846, %v1894
      %v1896 = vpop.f32.mrf.mxu0
      %v1897 = vpop.f32.mrf.mxu0
      %v1898 = vadd.f32 %v1849, %v1897
      %v1899 = vpop.f32.mrf.mxu0
      %1900 = vdwg.mxu0
      %1901 = vmatprep.subr.bf16.mxu0 0
      %1902 = vmatpush1.bf16.msra.mxu0 %v1024
      %1903 = vmatprep.subr.bf16.mxu0 0
      %1904 = vmatpush1.bf16.msra.mxu0 %v1023
      %1905 = vmatprep.subr.bf16.mxu0 0
      %1906 = vmatpush1.bf16.msra.mxu0 %v1022
      %1907 = vmatprep.subr.bf16.mxu0 0
      %1908 = vmatpush1.bf16.msra.mxu0 %v1021
      %1909 = vmatprep.subr.bf16.mxu0 0
      %1910 = vmatpush1.bf16.msra.mxu0 %v1020
      %1911 = vmatprep.subr.bf16.mxu0 0
      %1912 = vmatpush1.bf16.msra.mxu0 %v1019
      %1913 = vmatprep.subr.bf16.mxu0 0
      %1914 = vmatpush1.bf16.msra.mxu0 %v1018
      %1915 = vmatprep.subr.bf16.mxu0 0
      %1916 = vmatpush1.bf16.msra.mxu0 %v1017
      %1917 = vmatprep.subr.bf16.mxu0 0
      %1918 = vmatpush2.bf16.msra.mxu0 %v1032
      %1919 = vmatprep.subr.bf16.mxu0 0
      %1920 = vmatpush2.bf16.msra.mxu0 %v1031
      %1921 = vmatprep.subr.bf16.mxu0 0
      %1922 = vmatpush2.bf16.msra.mxu0 %v1030
      %1923 = vmatprep.subr.bf16.mxu0 0
      %1924 = vmatpush2.bf16.msra.mxu0 %v1029
      %1925 = vmatprep.subr.bf16.mxu0 0
      %1926 = vmatpush2.bf16.msra.mxu0 %v1028
      %1927 = vmatprep.subr.bf16.mxu0 0
      %1928 = vmatpush2.bf16.msra.mxu0 %v1027
      %1929 = vmatprep.subr.bf16.mxu0 0
      %1930 = vmatpush2.bf16.msra.mxu0 %v1026
      %1931 = vmatprep.subr.bf16.mxu0 0
      %1932 = vmatpush2.bf16.msra.mxu0 %v1025
      %1933 = vmatprep.mubr.bf16.mxu0 %v1611
      %1934 = vmatmul.mubr.bf16.gmra.mxu0 %v1610
      %v1935 = vpop.f32.mrf.mxu0
      %v1936 = vadd.f32 %v1887, %v1935
      %v1937 = vpop.f32.mrf.mxu0
      %v1938 = vpop.f32.mrf.mxu0
      %v1939 = vadd.f32 %v1890, %v1938
      %v1940 = vpop.f32.mrf.mxu0
      %1941 = vmatprep.mubr.bf16.mxu0 %v1624
      %1942 = vmatmul.mubr.bf16.gmra.mxu0 %v1623
      %v1943 = vpop.f32.mrf.mxu0
      %v1944 = vadd.f32 %v1895, %v1943
      %v1945 = vpop.f32.mrf.mxu0
      %v1946 = vpop.f32.mrf.mxu0
      %v1947 = vadd.f32 %v1898, %v1946
      %v1948 = vpop.f32.mrf.mxu0
      %1949 = vdwg.mxu0
      %1950 = vmatprep.subr.bf16.mxu0 0
      %1951 = vmatpush1.bf16.msra.mxu0 0
      %1952 = vmatprep.subr.bf16.mxu0 0
      %1953 = vmatpush1.bf16.msra.mxu0 0
      %1954 = vmatprep.subr.bf16.mxu0 0
      %1955 = vmatpush1.bf16.msra.mxu0 0
      %1956 = vmatprep.subr.bf16.mxu0 0
      %1957 = vmatpush1.bf16.msra.mxu0 0
      %1958 = vmatprep.subr.bf16.mxu0 0
      %1959 = vmatpush1.bf16.msra.mxu0 %v1036
      %1960 = vmatprep.subr.bf16.mxu0 0
      %1961 = vmatpush1.bf16.msra.mxu0 %v1035
      %1962 = vmatprep.subr.bf16.mxu0 0
      %1963 = vmatpush1.bf16.msra.mxu0 %v1034
      %1964 = vmatprep.subr.bf16.mxu0 0
      %1965 = vmatpush1.bf16.msra.mxu0 %v1033
      %1966 = vmatprep.subr.bf16.mxu0 0
      %1967 = vmatpush2.bf16.msra.mxu0 0
      %1968 = vmatprep.subr.bf16.mxu0 0
      %1969 = vmatpush2.bf16.msra.mxu0 0
      %1970 = vmatprep.subr.bf16.mxu0 0
      %1971 = vmatpush2.bf16.msra.mxu0 0
      %1972 = vmatprep.subr.bf16.mxu0 0
      %1973 = vmatpush2.bf16.msra.mxu0 0
      %1974 = vmatprep.subr.bf16.mxu0 0
      %1975 = vmatpush2.bf16.msra.mxu0 0
      %1976 = vmatprep.subr.bf16.mxu0 0
      %1977 = vmatpush2.bf16.msra.mxu0 0
      %1978 = vmatprep.subr.bf16.mxu0 0
      %1979 = vmatpush2.bf16.msra.mxu0 0
      %1980 = vmatprep.subr.bf16.mxu0 0
      %1981 = vmatpush2.bf16.msra.mxu0 0
      %1982 = vmatprep.mubr.bf16.mxu0 0
      %1983 = vmatmul.mubr.bf16.gmra.mxu0 %v1651
      %v1984 = vpop.f32.mrf.mxu0
      %v1985 = vadd.f32 %v1936, %v1984
      %v1986 = vpop.f32.mrf.mxu0
      %v1987 = vpop.f32.mrf.mxu0
      %v1988 = vadd.f32 %v1939, %v1987
      %v1989 = vpop.f32.mrf.mxu0
      %1990 = vmatprep.mubr.bf16.mxu0 0
      %1991 = vmatmul.mubr.bf16.gmra.mxu0 %v1654
      %v1992 = vpop.f32.mrf.mxu0
      %v1993 = vadd.f32 %v1944, %v1992
      %v1994 = vpop.f32.mrf.mxu0
      %v1995 = vpop.f32.mrf.mxu0
      %v1996 = vadd.f32 %v1947, %v1995
      %v1997 = vpop.f32.mrf.mxu0
      %1998 = vdwg.mxu0
      %v1999 = vmax.f32 %v1985, 0.0
      %v2000 = vmax.f32 %v1988, 0.0
      %v2001 = vmax.f32 %v1993, 0.0
      %v2002 = vmax.f32 %v1996, 0.0
      %v2003 = vmax.f32 %v1487, %v1999
      %v2004 = vmax.f32 %v1488, %v2000
      %v2005 = vmax.f32 %v1489, %v2001
      %v2006 = vmax.f32 %v1490, %v2002
      %s2007 = scalar_lea.vmem %s165, 416
      %v2008 = vld [vmem:[%s2007] sm:$0xff]
      %v2009 = vld [vmem:[%s2007 + $0x8] sm:$0xff]
      %v2010 = vld [vmem:[%s2007 + $0x10] sm:$0xff]
      %v2011 = vld [vmem:[%s2007 + $0x18] sm:$0xff]
      %v2012 = vld [vmem:[%s2007 + $0x20] sm:$0xff]
      %v2013 = vld [vmem:[%s2007 + $0x28] sm:$0xff]
      %v2014 = vld [vmem:[%s2007 + $0x30] sm:$0xf]
      %v2015 = vld [vmem:[%s2007 + $0x34] sm:$0xff]
      %v2016 = vld [vmem:[%s2007 + $0x3c] sm:$0xff]
      %v2017 = vld [vmem:[%s2007 + $0x44] sm:$0xff]
      %v2018 = vld [vmem:[%s2007 + $0x4c] sm:$0xff]
      %v2019 = vld [vmem:[%s2007 + $0x54] sm:$0xff]
      %v2020 = vld [vmem:[%s2007 + $0x5c] sm:$0xff]
      %v2021 = vld [vmem:[%s2007 + $0x64] sm:$0xf]
      %v2022 = vld [vmem:[%s2007 + $0x68] sm:$0xff]
      %v2023 = vld [vmem:[%s2007 + $0x70] sm:$0xff]
      %v2024 = vld [vmem:[%s2007 + $0x78] sm:$0xff]
      %v2025 = vld [vmem:[%s2007 + $0x80] sm:$0xff]
      %v2026 = vld [vmem:[%s2007 + $0x88] sm:$0xff]
      %v2027 = vld [vmem:[%s2007 + $0x90] sm:$0xff]
      %v2028 = vld [vmem:[%s2007 + $0x98] sm:$0xf]
      %v2029 = vld [vmem:[%s2007 + $0x9c] sm:$0x11]
      %v2030 = vld [vmem:[%s2007 + $0xa4] sm:$0x11]
      %v2031 = vld [vmem:[%s2007 + $0xac] sm:$0x11]
      %v2032 = vld [vmem:[%s2007 + $0xb4] sm:$0x11]
      %v2033 = vld [vmem:[%s2007 + $0xbc] sm:$0x11]
      %v2034 = vld [vmem:[%s2007 + $0xc4] sm:$0x11]
      %v2035 = vld [vmem:[%s2007 + $0xcc] sm:$0x1]
      %v2064 = vunpack.c.l.b16 %v2008
      %v2065 = vunpack.c.h.b16 %v2008
      %v2066 = vunpack.c.l.b16 %v2009
      %v2067 = vunpack.c.h.b16 %v2009
      %v2068 = vunpack.c.l.b16 %v2010
      %v2069 = vunpack.c.h.b16 %v2010
      %v2070 = vunpack.c.l.b16 %v2011
      %v2071 = vunpack.c.h.b16 %v2011
      %v2072 = vunpack.c.l.b16 %v2012
      %v2073 = vunpack.c.h.b16 %v2012
      %v2074 = vunpack.c.l.b16 %v2013
      %v2075 = vunpack.c.h.b16 %v2013
      %v2076 = vunpack.c.l.b16 %v2014
      %v2077 = vunpack.c.l.b16 %v2015
      %v2078 = vunpack.c.h.b16 %v2015
      %v2079 = vunpack.c.l.b16 %v2016
      %v2080 = vunpack.c.h.b16 %v2016
      %v2081 = vunpack.c.l.b16 %v2017
      %v2082 = vunpack.c.h.b16 %v2017
      %v2083 = vunpack.c.l.b16 %v2018
      %v2084 = vunpack.c.h.b16 %v2018
      %v2085 = vunpack.c.l.b16 %v2019
      %v2086 = vunpack.c.h.b16 %v2019
      %v2087 = vunpack.c.l.b16 %v2020
      %v2088 = vunpack.c.h.b16 %v2020
      %v2089 = vunpack.c.l.b16 %v2021
      %v2090 = vunpack.c.l.b16 %v2022
      %v2091 = vunpack.c.h.b16 %v2022
      %v2092 = vunpack.c.l.b16 %v2023
      %v2093 = vunpack.c.h.b16 %v2023
      %v2094 = vunpack.c.l.b16 %v2024
      %v2095 = vunpack.c.h.b16 %v2024
      %v2096 = vunpack.c.l.b16 %v2025
      %v2097 = vunpack.c.h.b16 %v2025
      %v2098 = vunpack.c.l.b16 %v2026
      %v2099 = vunpack.c.h.b16 %v2026
      %v2100 = vunpack.c.l.b16 %v2027
      %v2101 = vunpack.c.h.b16 %v2027
      %v2102 = vunpack.c.l.b16 %v2028
      %v2103 = vunpack.c.l.b16 %v2029
      %v2104 = vunpack.c.h.b16 %v2029
      %v2105 = vunpack.c.l.b16 %v2030
      %v2106 = vunpack.c.h.b16 %v2030
      %v2107 = vunpack.c.l.b16 %v2031
      %v2108 = vunpack.c.h.b16 %v2031
      %v2109 = vunpack.c.l.b16 %v2032
      %v2110 = vunpack.c.h.b16 %v2032
      %v2111 = vunpack.c.l.b16 %v2033
      %v2112 = vunpack.c.h.b16 %v2033
      %v2113 = vunpack.c.l.b16 %v2034
      %v2114 = vunpack.c.h.b16 %v2034
      %v2115 = vunpack.c.l.b16 %v2035
      %v2116 = vpack.c.b16 %v2077, %v2064
      %v2117 = vpack.c.b16 %v2078, %v2065
      %v2118 = vpack.c.b16 %v2079, %v2066
      %v2119 = vpack.c.b16 %v2080, %v2067
      %v2120 = vpack.c.b16 %v2081, %v2068
      %v2121 = vpack.c.b16 %v2082, %v2069
      %v2122 = vpack.c.b16 %v2083, %v2070
      %v2123 = vpack.c.b16 %v2084, %v2071
      %v2124 = vpack.c.b16 %v2085, %v2072
      %v2125 = vpack.c.b16 %v2086, %v2073
      %v2126 = vpack.c.b16 %v2087, %v2074
      %v2127 = vpack.c.b16 %v2088, %v2075
      %v2128 = vpack.c.b16 %v2089, %v2076
      %v2129 = vpack.c.b16 %v2103, %v2090
      %v2130 = vpack.c.b16 %v2104, %v2091
      %v2131 = vpack.c.b16 %v2105, %v2092
      %v2132 = vpack.c.b16 %v2106, %v2093
      %v2133 = vpack.c.b16 %v2107, %v2094
      %v2134 = vpack.c.b16 %v2108, %v2095
      %v2135 = vpack.c.b16 %v2109, %v2096
      %v2136 = vpack.c.b16 %v2110, %v2097
      %v2137 = vpack.c.b16 %v2111, %v2098
      %v2138 = vpack.c.b16 %v2112, %v2099
      %v2139 = vpack.c.b16 %v2113, %v2100
      %v2140 = vpack.c.b16 %v2114, %v2101
      %v2141 = vpack.c.b16 %v2115, %v2102
      %v2167 = vsel %vm1137, %v2128, 0
      %v2170 = vsel %vm1137, %v2141, 0
      %2172 = vmatprep.subr.bf16.mxu0 0
      %2173 = vmatpush1.bf16.msra.mxu0 %v944
      %2174 = vmatprep.subr.bf16.mxu0 0
      %2175 = vmatpush1.bf16.msra.mxu0 %v943
      %2176 = vmatprep.subr.bf16.mxu0 0
      %2177 = vmatpush1.bf16.msra.mxu0 %v942
      %2178 = vmatprep.subr.bf16.mxu0 0
      %2179 = vmatpush1.bf16.msra.mxu0 %v941
      %2180 = vmatprep.subr.bf16.mxu0 0
      %2181 = vmatpush1.bf16.msra.mxu0 %v940
      %2182 = vmatprep.subr.bf16.mxu0 0
      %2183 = vmatpush1.bf16.msra.mxu0 %v939
      %2184 = vmatprep.subr.bf16.mxu0 0
      %2185 = vmatpush1.bf16.msra.mxu0 %v938
      %2186 = vmatprep.subr.bf16.mxu0 0
      %2187 = vmatpush1.bf16.msra.mxu0 %v937
      %2188 = vmatprep.subr.bf16.mxu0 0
      %2189 = vmatpush2.bf16.msra.mxu0 %v952
      %2190 = vmatprep.subr.bf16.mxu0 0
      %2191 = vmatpush2.bf16.msra.mxu0 %v951
      %2192 = vmatprep.subr.bf16.mxu0 0
      %2193 = vmatpush2.bf16.msra.mxu0 %v950
      %2194 = vmatprep.subr.bf16.mxu0 0
      %2195 = vmatpush2.bf16.msra.mxu0 %v949
      %2196 = vmatprep.subr.bf16.mxu0 0
      %2197 = vmatpush2.bf16.msra.mxu0 %v948
      %2198 = vmatprep.subr.bf16.mxu0 0
      %2199 = vmatpush2.bf16.msra.mxu0 %v947
      %2200 = vmatprep.subr.bf16.mxu0 0
      %2201 = vmatpush2.bf16.msra.mxu0 %v946
      %2202 = vmatprep.subr.bf16.mxu0 0
      %2203 = vmatpush2.bf16.msra.mxu0 %v945
      %2204 = vmatprep.mubr.bf16.mxu0 %v2117
      %2205 = vmatmul.mubr.bf16.gmra.mxu0 %v2116
      %v2206 = vpop.f32.mrf.mxu0
      %v2207 = vadd.f32 %v405, %v2206
      %v2208 = vpop.f32.mrf.mxu0
      %v2209 = vpop.f32.mrf.mxu0
      %v2210 = vadd.f32 %v405, %v2209
      %v2211 = vpop.f32.mrf.mxu0
      %2212 = vmatprep.mubr.bf16.mxu0 %v2130
      %2213 = vmatmul.mubr.bf16.gmra.mxu0 %v2129
      %v2214 = vpop.f32.mrf.mxu0
      %v2215 = vadd.f32 %v405, %v2214
      %v2216 = vpop.f32.mrf.mxu0
      %v2217 = vpop.f32.mrf.mxu0
      %v2218 = vadd.f32 %v405, %v2217
      %v2219 = vpop.f32.mrf.mxu0
      %2220 = vdwg.mxu0
      %2221 = vmatprep.subr.bf16.mxu0 0
      %2222 = vmatpush1.bf16.msra.mxu0 %v960
      %2223 = vmatprep.subr.bf16.mxu0 0
      %2224 = vmatpush1.bf16.msra.mxu0 %v959
      %2225 = vmatprep.subr.bf16.mxu0 0
      %2226 = vmatpush1.bf16.msra.mxu0 %v958
      %2227 = vmatprep.subr.bf16.mxu0 0
      %2228 = vmatpush1.bf16.msra.mxu0 %v957
      %2229 = vmatprep.subr.bf16.mxu0 0
      %2230 = vmatpush1.bf16.msra.mxu0 %v956
      %2231 = vmatprep.subr.bf16.mxu0 0
      %2232 = vmatpush1.bf16.msra.mxu0 %v955
      %2233 = vmatprep.subr.bf16.mxu0 0
      %2234 = vmatpush1.bf16.msra.mxu0 %v954
      %2235 = vmatprep.subr.bf16.mxu0 0
      %2236 = vmatpush1.bf16.msra.mxu0 %v953
      %2237 = vmatprep.subr.bf16.mxu0 0
      %2238 = vmatpush2.bf16.msra.mxu0 %v968
      %2239 = vmatprep.subr.bf16.mxu0 0
      %2240 = vmatpush2.bf16.msra.mxu0 %v967
      %2241 = vmatprep.subr.bf16.mxu0 0
      %2242 = vmatpush2.bf16.msra.mxu0 %v966
      %2243 = vmatprep.subr.bf16.mxu0 0
      %2244 = vmatpush2.bf16.msra.mxu0 %v965
      %2245 = vmatprep.subr.bf16.mxu0 0
      %2246 = vmatpush2.bf16.msra.mxu0 %v964
      %2247 = vmatprep.subr.bf16.mxu0 0
      %2248 = vmatpush2.bf16.msra.mxu0 %v963
      %2249 = vmatprep.subr.bf16.mxu0 0
      %2250 = vmatpush2.bf16.msra.mxu0 %v962
      %2251 = vmatprep.subr.bf16.mxu0 0
      %2252 = vmatpush2.bf16.msra.mxu0 %v961
      %2253 = vmatprep.mubr.bf16.mxu0 %v2119
      %2254 = vmatmul.mubr.bf16.gmra.mxu0 %v2118
      %v2255 = vpop.f32.mrf.mxu0
      %v2256 = vadd.f32 %v2207, %v2255
      %v2257 = vpop.f32.mrf.mxu0
      %v2258 = vpop.f32.mrf.mxu0
      %v2259 = vadd.f32 %v2210, %v2258
      %v2260 = vpop.f32.mrf.mxu0
      %2261 = vmatprep.mubr.bf16.mxu0 %v2132
      %2262 = vmatmul.mubr.bf16.gmra.mxu0 %v2131
      %v2263 = vpop.f32.mrf.mxu0
      %v2264 = vadd.f32 %v2215, %v2263
      %v2265 = vpop.f32.mrf.mxu0
      %v2266 = vpop.f32.mrf.mxu0
      %v2267 = vadd.f32 %v2218, %v2266
      %v2268 = vpop.f32.mrf.mxu0
      %2269 = vdwg.mxu0
      %2270 = vmatprep.subr.bf16.mxu0 0
      %2271 = vmatpush1.bf16.msra.mxu0 %v976
      %2272 = vmatprep.subr.bf16.mxu0 0
      %2273 = vmatpush1.bf16.msra.mxu0 %v975
      %2274 = vmatprep.subr.bf16.mxu0 0
      %2275 = vmatpush1.bf16.msra.mxu0 %v974
      %2276 = vmatprep.subr.bf16.mxu0 0
      %2277 = vmatpush1.bf16.msra.mxu0 %v973
      %2278 = vmatprep.subr.bf16.mxu0 0
      %2279 = vmatpush1.bf16.msra.mxu0 %v972
      %2280 = vmatprep.subr.bf16.mxu0 0
      %2281 = vmatpush1.bf16.msra.mxu0 %v971
      %2282 = vmatprep.subr.bf16.mxu0 0
      %2283 = vmatpush1.bf16.msra.mxu0 %v970
      %2284 = vmatprep.subr.bf16.mxu0 0
      %2285 = vmatpush1.bf16.msra.mxu0 %v969
      %2286 = vmatprep.subr.bf16.mxu0 0
      %2287 = vmatpush2.bf16.msra.mxu0 %v984
      %2288 = vmatprep.subr.bf16.mxu0 0
      %2289 = vmatpush2.bf16.msra.mxu0 %v983
      %2290 = vmatprep.subr.bf16.mxu0 0
      %2291 = vmatpush2.bf16.msra.mxu0 %v982
      %2292 = vmatprep.subr.bf16.mxu0 0
      %2293 = vmatpush2.bf16.msra.mxu0 %v981
      %2294 = vmatprep.subr.bf16.mxu0 0
      %2295 = vmatpush2.bf16.msra.mxu0 %v980
      %2296 = vmatprep.subr.bf16.mxu0 0
      %2297 = vmatpush2.bf16.msra.mxu0 %v979
      %2298 = vmatprep.subr.bf16.mxu0 0
      %2299 = vmatpush2.bf16.msra.mxu0 %v978
      %2300 = vmatprep.subr.bf16.mxu0 0
      %2301 = vmatpush2.bf16.msra.mxu0 %v977
      %2302 = vmatprep.mubr.bf16.mxu0 %v2121
      %2303 = vmatmul.mubr.bf16.gmra.mxu0 %v2120
      %v2304 = vpop.f32.mrf.mxu0
      %v2305 = vadd.f32 %v2256, %v2304
      %v2306 = vpop.f32.mrf.mxu0
      %v2307 = vpop.f32.mrf.mxu0
      %v2308 = vadd.f32 %v2259, %v2307
      %v2309 = vpop.f32.mrf.mxu0
      %2310 = vmatprep.mubr.bf16.mxu0 %v2134
      %2311 = vmatmul.mubr.bf16.gmra.mxu0 %v2133
      %v2312 = vpop.f32.mrf.mxu0
      %v2313 = vadd.f32 %v2264, %v2312
      %v2314 = vpop.f32.mrf.mxu0
      %v2315 = vpop.f32.mrf.mxu0
      %v2316 = vadd.f32 %v2267, %v2315
      %v2317 = vpop.f32.mrf.mxu0
      %2318 = vdwg.mxu0
      %2319 = vmatprep.subr.bf16.mxu0 0
      %2320 = vmatpush1.bf16.msra.mxu0 %v992
      %2321 = vmatprep.subr.bf16.mxu0 0
      %2322 = vmatpush1.bf16.msra.mxu0 %v991
      %2323 = vmatprep.subr.bf16.mxu0 0
      %2324 = vmatpush1.bf16.msra.mxu0 %v990
      %2325 = vmatprep.subr.bf16.mxu0 0
      %2326 = vmatpush1.bf16.msra.mxu0 %v989
      %2327 = vmatprep.subr.bf16.mxu0 0
      %2328 = vmatpush1.bf16.msra.mxu0 %v988
      %2329 = vmatprep.subr.bf16.mxu0 0
      %2330 = vmatpush1.bf16.msra.mxu0 %v987
      %2331 = vmatprep.subr.bf16.mxu0 0
      %2332 = vmatpush1.bf16.msra.mxu0 %v986
      %2333 = vmatprep.subr.bf16.mxu0 0
      %2334 = vmatpush1.bf16.msra.mxu0 %v985
      %2335 = vmatprep.subr.bf16.mxu0 0
      %2336 = vmatpush2.bf16.msra.mxu0 %v1000
      %2337 = vmatprep.subr.bf16.mxu0 0
      %2338 = vmatpush2.bf16.msra.mxu0 %v999
      %2339 = vmatprep.subr.bf16.mxu0 0
      %2340 = vmatpush2.bf16.msra.mxu0 %v998
      %2341 = vmatprep.subr.bf16.mxu0 0
      %2342 = vmatpush2.bf16.msra.mxu0 %v997
      %2343 = vmatprep.subr.bf16.mxu0 0
      %2344 = vmatpush2.bf16.msra.mxu0 %v996
      %2345 = vmatprep.subr.bf16.mxu0 0
      %2346 = vmatpush2.bf16.msra.mxu0 %v995
      %2347 = vmatprep.subr.bf16.mxu0 0
      %2348 = vmatpush2.bf16.msra.mxu0 %v994
      %2349 = vmatprep.subr.bf16.mxu0 0
      %2350 = vmatpush2.bf16.msra.mxu0 %v993
      %2351 = vmatprep.mubr.bf16.mxu0 %v2123
      %2352 = vmatmul.mubr.bf16.gmra.mxu0 %v2122
      %v2353 = vpop.f32.mrf.mxu0
      %v2354 = vadd.f32 %v2305, %v2353
      %v2355 = vpop.f32.mrf.mxu0
      %v2356 = vpop.f32.mrf.mxu0
      %v2357 = vadd.f32 %v2308, %v2356
      %v2358 = vpop.f32.mrf.mxu0
      %2359 = vmatprep.mubr.bf16.mxu0 %v2136
      %2360 = vmatmul.mubr.bf16.gmra.mxu0 %v2135
      %v2361 = vpop.f32.mrf.mxu0
      %v2362 = vadd.f32 %v2313, %v2361
      %v2363 = vpop.f32.mrf.mxu0
      %v2364 = vpop.f32.mrf.mxu0
      %v2365 = vadd.f32 %v2316, %v2364
      %v2366 = vpop.f32.mrf.mxu0
      %2367 = vdwg.mxu0
      %2368 = vmatprep.subr.bf16.mxu0 0
      %2369 = vmatpush1.bf16.msra.mxu0 %v1008
      %2370 = vmatprep.subr.bf16.mxu0 0
      %2371 = vmatpush1.bf16.msra.mxu0 %v1007
      %2372 = vmatprep.subr.bf16.mxu0 0
      %2373 = vmatpush1.bf16.msra.mxu0 %v1006
      %2374 = vmatprep.subr.bf16.mxu0 0
      %2375 = vmatpush1.bf16.msra.mxu0 %v1005
      %2376 = vmatprep.subr.bf16.mxu0 0
      %2377 = vmatpush1.bf16.msra.mxu0 %v1004
      %2378 = vmatprep.subr.bf16.mxu0 0
      %2379 = vmatpush1.bf16.msra.mxu0 %v1003
      %2380 = vmatprep.subr.bf16.mxu0 0
      %2381 = vmatpush1.bf16.msra.mxu0 %v1002
      %2382 = vmatprep.subr.bf16.mxu0 0
      %2383 = vmatpush1.bf16.msra.mxu0 %v1001
      %2384 = vmatprep.subr.bf16.mxu0 0
      %2385 = vmatpush2.bf16.msra.mxu0 %v1016
      %2386 = vmatprep.subr.bf16.mxu0 0
      %2387 = vmatpush2.bf16.msra.mxu0 %v1015
      %2388 = vmatprep.subr.bf16.mxu0 0
      %2389 = vmatpush2.bf16.msra.mxu0 %v1014
      %2390 = vmatprep.subr.bf16.mxu0 0
      %2391 = vmatpush2.bf16.msra.mxu0 %v1013
      %2392 = vmatprep.subr.bf16.mxu0 0
      %2393 = vmatpush2.bf16.msra.mxu0 %v1012
      %2394 = vmatprep.subr.bf16.mxu0 0
      %2395 = vmatpush2.bf16.msra.mxu0 %v1011
      %2396 = vmatprep.subr.bf16.mxu0 0
      %2397 = vmatpush2.bf16.msra.mxu0 %v1010
      %2398 = vmatprep.subr.bf16.mxu0 0
      %2399 = vmatpush2.bf16.msra.mxu0 %v1009
      %2400 = vmatprep.mubr.bf16.mxu0 %v2125
      %2401 = vmatmul.mubr.bf16.gmra.mxu0 %v2124
      %v2402 = vpop.f32.mrf.mxu0
      %v2403 = vadd.f32 %v2354, %v2402
      %v2404 = vpop.f32.mrf.mxu0
      %v2405 = vpop.f32.mrf.mxu0
      %v2406 = vadd.f32 %v2357, %v2405
      %v2407 = vpop.f32.mrf.mxu0
      %2408 = vmatprep.mubr.bf16.mxu0 %v2138
      %2409 = vmatmul.mubr.bf16.gmra.mxu0 %v2137
      %v2410 = vpop.f32.mrf.mxu0
      %v2411 = vadd.f32 %v2362, %v2410
      %v2412 = vpop.f32.mrf.mxu0
      %v2413 = vpop.f32.mrf.mxu0
      %v2414 = vadd.f32 %v2365, %v2413
      %v2415 = vpop.f32.mrf.mxu0
      %2416 = vdwg.mxu0
      %2417 = vmatprep.subr.bf16.mxu0 0
      %2418 = vmatpush1.bf16.msra.mxu0 %v1024
      %2419 = vmatprep.subr.bf16.mxu0 0
      %2420 = vmatpush1.bf16.msra.mxu0 %v1023
      %2421 = vmatprep.subr.bf16.mxu0 0
      %2422 = vmatpush1.bf16.msra.mxu0 %v1022
      %2423 = vmatprep.subr.bf16.mxu0 0
      %2424 = vmatpush1.bf16.msra.mxu0 %v1021
      %2425 = vmatprep.subr.bf16.mxu0 0
      %2426 = vmatpush1.bf16.msra.mxu0 %v1020
      %2427 = vmatprep.subr.bf16.mxu0 0
      %2428 = vmatpush1.bf16.msra.mxu0 %v1019
      %2429 = vmatprep.subr.bf16.mxu0 0
      %2430 = vmatpush1.bf16.msra.mxu0 %v1018
      %2431 = vmatprep.subr.bf16.mxu0 0
      %2432 = vmatpush1.bf16.msra.mxu0 %v1017
      %2433 = vmatprep.subr.bf16.mxu0 0
      %2434 = vmatpush2.bf16.msra.mxu0 %v1032
      %2435 = vmatprep.subr.bf16.mxu0 0
      %2436 = vmatpush2.bf16.msra.mxu0 %v1031
      %2437 = vmatprep.subr.bf16.mxu0 0
      %2438 = vmatpush2.bf16.msra.mxu0 %v1030
      %2439 = vmatprep.subr.bf16.mxu0 0
      %2440 = vmatpush2.bf16.msra.mxu0 %v1029
      %2441 = vmatprep.subr.bf16.mxu0 0
      %2442 = vmatpush2.bf16.msra.mxu0 %v1028
      %2443 = vmatprep.subr.bf16.mxu0 0
      %2444 = vmatpush2.bf16.msra.mxu0 %v1027
      %2445 = vmatprep.subr.bf16.mxu0 0
      %2446 = vmatpush2.bf16.msra.mxu0 %v1026
      %2447 = vmatprep.subr.bf16.mxu0 0
      %2448 = vmatpush2.bf16.msra.mxu0 %v1025
      %2449 = vmatprep.mubr.bf16.mxu0 %v2127
      %2450 = vmatmul.mubr.bf16.gmra.mxu0 %v2126
      %v2451 = vpop.f32.mrf.mxu0
      %v2452 = vadd.f32 %v2403, %v2451
      %v2453 = vpop.f32.mrf.mxu0
      %v2454 = vpop.f32.mrf.mxu0
      %v2455 = vadd.f32 %v2406, %v2454
      %v2456 = vpop.f32.mrf.mxu0
      %2457 = vmatprep.mubr.bf16.mxu0 %v2140
      %2458 = vmatmul.mubr.bf16.gmra.mxu0 %v2139
      %v2459 = vpop.f32.mrf.mxu0
      %v2460 = vadd.f32 %v2411, %v2459
      %v2461 = vpop.f32.mrf.mxu0
      %v2462 = vpop.f32.mrf.mxu0
      %v2463 = vadd.f32 %v2414, %v2462
      %v2464 = vpop.f32.mrf.mxu0
      %2465 = vdwg.mxu0
      %2466 = vmatprep.subr.bf16.mxu0 0
      %2467 = vmatpush1.bf16.msra.mxu0 0
      %2468 = vmatprep.subr.bf16.mxu0 0
      %2469 = vmatpush1.bf16.msra.mxu0 0
      %2470 = vmatprep.subr.bf16.mxu0 0
      %2471 = vmatpush1.bf16.msra.mxu0 0
      %2472 = vmatprep.subr.bf16.mxu0 0
      %2473 = vmatpush1.bf16.msra.mxu0 0
      %2474 = vmatprep.subr.bf16.mxu0 0
      %2475 = vmatpush1.bf16.msra.mxu0 %v1036
      %2476 = vmatprep.subr.bf16.mxu0 0
      %2477 = vmatpush1.bf16.msra.mxu0 %v1035
      %2478 = vmatprep.subr.bf16.mxu0 0
      %2479 = vmatpush1.bf16.msra.mxu0 %v1034
      %2480 = vmatprep.subr.bf16.mxu0 0
      %2481 = vmatpush1.bf16.msra.mxu0 %v1033
      %2482 = vmatprep.subr.bf16.mxu0 0
      %2483 = vmatpush2.bf16.msra.mxu0 0
      %2484 = vmatprep.subr.bf16.mxu0 0
      %2485 = vmatpush2.bf16.msra.mxu0 0
      %2486 = vmatprep.subr.bf16.mxu0 0
      %2487 = vmatpush2.bf16.msra.mxu0 0
      %2488 = vmatprep.subr.bf16.mxu0 0
      %2489 = vmatpush2.bf16.msra.mxu0 0
      %2490 = vmatprep.subr.bf16.mxu0 0
      %2491 = vmatpush2.bf16.msra.mxu0 0
      %2492 = vmatprep.subr.bf16.mxu0 0
      %2493 = vmatpush2.bf16.msra.mxu0 0
      %2494 = vmatprep.subr.bf16.mxu0 0
      %2495 = vmatpush2.bf16.msra.mxu0 0
      %2496 = vmatprep.subr.bf16.mxu0 0
      %2497 = vmatpush2.bf16.msra.mxu0 0
      %2498 = vmatprep.mubr.bf16.mxu0 0
      %2499 = vmatmul.mubr.bf16.gmra.mxu0 %v2167
      %v2500 = vpop.f32.mrf.mxu0
      %v2501 = vadd.f32 %v2452, %v2500
      %v2502 = vpop.f32.mrf.mxu0
      %v2503 = vpop.f32.mrf.mxu0
      %v2504 = vadd.f32 %v2455, %v2503
      %v2505 = vpop.f32.mrf.mxu0
      %2506 = vmatprep.mubr.bf16.mxu0 0
      %2507 = vmatmul.mubr.bf16.gmra.mxu0 %v2170
      %v2508 = vpop.f32.mrf.mxu0
      %v2509 = vadd.f32 %v2460, %v2508
      %v2510 = vpop.f32.mrf.mxu0
      %v2511 = vpop.f32.mrf.mxu0
      %v2512 = vadd.f32 %v2463, %v2511
      %v2513 = vpop.f32.mrf.mxu0
      %2514 = vdwg.mxu0
      %v2515 = vmax.f32 %v2501, 0.0
      %v2516 = vmax.f32 %v2504, 0.0
      %v2517 = vmax.f32 %v2509, 0.0
      %v2518 = vmax.f32 %v2512, 0.0
      %s2519 = scalar_lea.vmem %s165, 624
      %v2520 = vld [vmem:[%s2519] sm:$0xff]
      %v2521 = vld [vmem:[%s2519 + $0x8] sm:$0xff]
      %v2522 = vld [vmem:[%s2519 + $0x10] sm:$0xff]
      %v2523 = vld [vmem:[%s2519 + $0x18] sm:$0xff]
      %v2524 = vld [vmem:[%s2519 + $0x20] sm:$0xff]
      %v2525 = vld [vmem:[%s2519 + $0x28] sm:$0xff]
      %v2526 = vld [vmem:[%s2519 + $0x30] sm:$0xf]
      %v2527 = vld [vmem:[%s2519 + $0x34] sm:$0xff]
      %v2528 = vld [vmem:[%s2519 + $0x3c] sm:$0xff]
      %v2529 = vld [vmem:[%s2519 + $0x44] sm:$0xff]
      %v2530 = vld [vmem:[%s2519 + $0x4c] sm:$0xff]
      %v2531 = vld [vmem:[%s2519 + $0x54] sm:$0xff]
      %v2532 = vld [vmem:[%s2519 + $0x5c] sm:$0xff]
      %v2533 = vld [vmem:[%s2519 + $0x64] sm:$0xf]
      %v2534 = vld [vmem:[%s2519 + $0x68] sm:$0xff]
      %v2535 = vld [vmem:[%s2519 + $0x70] sm:$0xff]
      %v2536 = vld [vmem:[%s2519 + $0x78] sm:$0xff]
      %v2537 = vld [vmem:[%s2519 + $0x80] sm:$0xff]
      %v2538 = vld [vmem:[%s2519 + $0x88] sm:$0xff]
      %v2539 = vld [vmem:[%s2519 + $0x90] sm:$0xff]
      %v2540 = vld [vmem:[%s2519 + $0x98] sm:$0xf]
      %v2541 = vld [vmem:[%s2519 + $0x9c] sm:$0x11]
      %v2542 = vld [vmem:[%s2519 + $0xa4] sm:$0x11]
      %v2543 = vld [vmem:[%s2519 + $0xac] sm:$0x11]
      %v2544 = vld [vmem:[%s2519 + $0xb4] sm:$0x11]
      %v2545 = vld [vmem:[%s2519 + $0xbc] sm:$0x11]
      %v2546 = vld [vmem:[%s2519 + $0xc4] sm:$0x11]
      %v2547 = vld [vmem:[%s2519 + $0xcc] sm:$0x1]
      %v2576 = vunpack.c.l.b16 %v2520
      %v2577 = vunpack.c.h.b16 %v2520
      %v2578 = vunpack.c.l.b16 %v2521
      %v2579 = vunpack.c.h.b16 %v2521
      %v2580 = vunpack.c.l.b16 %v2522
      %v2581 = vunpack.c.h.b16 %v2522
      %v2582 = vunpack.c.l.b16 %v2523
      %v2583 = vunpack.c.h.b16 %v2523
      %v2584 = vunpack.c.l.b16 %v2524
      %v2585 = vunpack.c.h.b16 %v2524
      %v2586 = vunpack.c.l.b16 %v2525
      %v2587 = vunpack.c.h.b16 %v2525
      %v2588 = vunpack.c.l.b16 %v2526
      %v2589 = vunpack.c.l.b16 %v2527
      %v2590 = vunpack.c.h.b16 %v2527
      %v2591 = vunpack.c.l.b16 %v2528
      %v2592 = vunpack.c.h.b16 %v2528
      %v2593 = vunpack.c.l.b16 %v2529
      %v2594 = vunpack.c.h.b16 %v2529
      %v2595 = vunpack.c.l.b16 %v2530
      %v2596 = vunpack.c.h.b16 %v2530
      %v2597 = vunpack.c.l.b16 %v2531
      %v2598 = vunpack.c.h.b16 %v2531
      %v2599 = vunpack.c.l.b16 %v2532
      %v2600 = vunpack.c.h.b16 %v2532
      %v2601 = vunpack.c.l.b16 %v2533
      %v2602 = vunpack.c.l.b16 %v2534
      %v2603 = vunpack.c.h.b16 %v2534
      %v2604 = vunpack.c.l.b16 %v2535
      %v2605 = vunpack.c.h.b16 %v2535
      %v2606 = vunpack.c.l.b16 %v2536
      %v2607 = vunpack.c.h.b16 %v2536
      %v2608 = vunpack.c.l.b16 %v2537
      %v2609 = vunpack.c.h.b16 %v2537
      %v2610 = vunpack.c.l.b16 %v2538
      %v2611 = vunpack.c.h.b16 %v2538
      %v2612 = vunpack.c.l.b16 %v2539
      %v2613 = vunpack.c.h.b16 %v2539
      %v2614 = vunpack.c.l.b16 %v2540
      %v2615 = vunpack.c.l.b16 %v2541
      %v2616 = vunpack.c.h.b16 %v2541
      %v2617 = vunpack.c.l.b16 %v2542
      %v2618 = vunpack.c.h.b16 %v2542
      %v2619 = vunpack.c.l.b16 %v2543
      %v2620 = vunpack.c.h.b16 %v2543
      %v2621 = vunpack.c.l.b16 %v2544
      %v2622 = vunpack.c.h.b16 %v2544
      %v2623 = vunpack.c.l.b16 %v2545
      %v2624 = vunpack.c.h.b16 %v2545
      %v2625 = vunpack.c.l.b16 %v2546
      %v2626 = vunpack.c.h.b16 %v2546
      %v2627 = vunpack.c.l.b16 %v2547
      %v2628 = vpack.c.b16 %v2589, %v2576
      %v2629 = vpack.c.b16 %v2590, %v2577
      %v2630 = vpack.c.b16 %v2591, %v2578
      %v2631 = vpack.c.b16 %v2592, %v2579
      %v2632 = vpack.c.b16 %v2593, %v2580
      %v2633 = vpack.c.b16 %v2594, %v2581
      %v2634 = vpack.c.b16 %v2595, %v2582
      %v2635 = vpack.c.b16 %v2596, %v2583
      %v2636 = vpack.c.b16 %v2597, %v2584
      %v2637 = vpack.c.b16 %v2598, %v2585
      %v2638 = vpack.c.b16 %v2599, %v2586
      %v2639 = vpack.c.b16 %v2600, %v2587
      %v2640 = vpack.c.b16 %v2601, %v2588
      %v2641 = vpack.c.b16 %v2615, %v2602
      %v2642 = vpack.c.b16 %v2616, %v2603
      %v2643 = vpack.c.b16 %v2617, %v2604
      %v2644 = vpack.c.b16 %v2618, %v2605
      %v2645 = vpack.c.b16 %v2619, %v2606
      %v2646 = vpack.c.b16 %v2620, %v2607
      %v2647 = vpack.c.b16 %v2621, %v2608
      %v2648 = vpack.c.b16 %v2622, %v2609
      %v2649 = vpack.c.b16 %v2623, %v2610
      %v2650 = vpack.c.b16 %v2624, %v2611
      %v2651 = vpack.c.b16 %v2625, %v2612
      %v2652 = vpack.c.b16 %v2626, %v2613
      %v2653 = vpack.c.b16 %v2627, %v2614
      %v2679 = vsel %vm1137, %v2640, 0
      %v2682 = vsel %vm1137, %v2653, 0
      %2684 = vmatprep.subr.bf16.mxu0 0
      %2685 = vmatpush1.bf16.msra.mxu0 %v944
      %2686 = vmatprep.subr.bf16.mxu0 0
      %2687 = vmatpush1.bf16.msra.mxu0 %v943
      %2688 = vmatprep.subr.bf16.mxu0 0
      %2689 = vmatpush1.bf16.msra.mxu0 %v942
      %2690 = vmatprep.subr.bf16.mxu0 0
      %2691 = vmatpush1.bf16.msra.mxu0 %v941
      %2692 = vmatprep.subr.bf16.mxu0 0
      %2693 = vmatpush1.bf16.msra.mxu0 %v940
      %2694 = vmatprep.subr.bf16.mxu0 0
      %2695 = vmatpush1.bf16.msra.mxu0 %v939
      %2696 = vmatprep.subr.bf16.mxu0 0
      %2697 = vmatpush1.bf16.msra.mxu0 %v938
      %2698 = vmatprep.subr.bf16.mxu0 0
      %2699 = vmatpush1.bf16.msra.mxu0 %v937
      %2700 = vmatprep.subr.bf16.mxu0 0
      %2701 = vmatpush2.bf16.msra.mxu0 %v952
      %2702 = vmatprep.subr.bf16.mxu0 0
      %2703 = vmatpush2.bf16.msra.mxu0 %v951
      %2704 = vmatprep.subr.bf16.mxu0 0
      %2705 = vmatpush2.bf16.msra.mxu0 %v950
      %2706 = vmatprep.subr.bf16.mxu0 0
      %2707 = vmatpush2.bf16.msra.mxu0 %v949
      %2708 = vmatprep.subr.bf16.mxu0 0
      %2709 = vmatpush2.bf16.msra.mxu0 %v948
      %2710 = vmatprep.subr.bf16.mxu0 0
      %2711 = vmatpush2.bf16.msra.mxu0 %v947
      %2712 = vmatprep.subr.bf16.mxu0 0
      %2713 = vmatpush2.bf16.msra.mxu0 %v946
      %2714 = vmatprep.subr.bf16.mxu0 0
      %2715 = vmatpush2.bf16.msra.mxu0 %v945
      %2716 = vmatprep.mubr.bf16.mxu0 %v2629
      %2717 = vmatmul.mubr.bf16.gmra.mxu0 %v2628
      %v2718 = vpop.f32.mrf.mxu0
      %v2719 = vadd.f32 %v405, %v2718
      %v2720 = vpop.f32.mrf.mxu0
      %v2721 = vpop.f32.mrf.mxu0
      %v2722 = vadd.f32 %v405, %v2721
      %v2723 = vpop.f32.mrf.mxu0
      %2724 = vmatprep.mubr.bf16.mxu0 %v2642
      %2725 = vmatmul.mubr.bf16.gmra.mxu0 %v2641
      %v2726 = vpop.f32.mrf.mxu0
      %v2727 = vadd.f32 %v405, %v2726
      %v2728 = vpop.f32.mrf.mxu0
      %v2729 = vpop.f32.mrf.mxu0
      %v2730 = vadd.f32 %v405, %v2729
      %v2731 = vpop.f32.mrf.mxu0
      %2732 = vdwg.mxu0
      %2733 = vmatprep.subr.bf16.mxu0 0
      %2734 = vmatpush1.bf16.msra.mxu0 %v960
      %2735 = vmatprep.subr.bf16.mxu0 0
      %2736 = vmatpush1.bf16.msra.mxu0 %v959
      %2737 = vmatprep.subr.bf16.mxu0 0
      %2738 = vmatpush1.bf16.msra.mxu0 %v958
      %2739 = vmatprep.subr.bf16.mxu0 0
      %2740 = vmatpush1.bf16.msra.mxu0 %v957
      %2741 = vmatprep.subr.bf16.mxu0 0
      %2742 = vmatpush1.bf16.msra.mxu0 %v956
      %2743 = vmatprep.subr.bf16.mxu0 0
      %2744 = vmatpush1.bf16.msra.mxu0 %v955
      %2745 = vmatprep.subr.bf16.mxu0 0
      %2746 = vmatpush1.bf16.msra.mxu0 %v954
      %2747 = vmatprep.subr.bf16.mxu0 0
      %2748 = vmatpush1.bf16.msra.mxu0 %v953
      %2749 = vmatprep.subr.bf16.mxu0 0
      %2750 = vmatpush2.bf16.msra.mxu0 %v968
      %2751 = vmatprep.subr.bf16.mxu0 0
      %2752 = vmatpush2.bf16.msra.mxu0 %v967
      %2753 = vmatprep.subr.bf16.mxu0 0
      %2754 = vmatpush2.bf16.msra.mxu0 %v966
      %2755 = vmatprep.subr.bf16.mxu0 0
      %2756 = vmatpush2.bf16.msra.mxu0 %v965
      %2757 = vmatprep.subr.bf16.mxu0 0
      %2758 = vmatpush2.bf16.msra.mxu0 %v964
      %2759 = vmatprep.subr.bf16.mxu0 0
      %2760 = vmatpush2.bf16.msra.mxu0 %v963
      %2761 = vmatprep.subr.bf16.mxu0 0
      %2762 = vmatpush2.bf16.msra.mxu0 %v962
      %2763 = vmatprep.subr.bf16.mxu0 0
      %2764 = vmatpush2.bf16.msra.mxu0 %v961
      %2765 = vmatprep.mubr.bf16.mxu0 %v2631
      %2766 = vmatmul.mubr.bf16.gmra.mxu0 %v2630
      %v2767 = vpop.f32.mrf.mxu0
      %v2768 = vadd.f32 %v2719, %v2767
      %v2769 = vpop.f32.mrf.mxu0
      %v2770 = vpop.f32.mrf.mxu0
      %v2771 = vadd.f32 %v2722, %v2770
      %v2772 = vpop.f32.mrf.mxu0
      %2773 = vmatprep.mubr.bf16.mxu0 %v2644
      %2774 = vmatmul.mubr.bf16.gmra.mxu0 %v2643
      %v2775 = vpop.f32.mrf.mxu0
      %v2776 = vadd.f32 %v2727, %v2775
      %v2777 = vpop.f32.mrf.mxu0
      %v2778 = vpop.f32.mrf.mxu0
      %v2779 = vadd.f32 %v2730, %v2778
      %v2780 = vpop.f32.mrf.mxu0
      %2781 = vdwg.mxu0
      %2782 = vmatprep.subr.bf16.mxu0 0
      %2783 = vmatpush1.bf16.msra.mxu0 %v976
      %2784 = vmatprep.subr.bf16.mxu0 0
      %2785 = vmatpush1.bf16.msra.mxu0 %v975
      %2786 = vmatprep.subr.bf16.mxu0 0
      %2787 = vmatpush1.bf16.msra.mxu0 %v974
      %2788 = vmatprep.subr.bf16.mxu0 0
      %2789 = vmatpush1.bf16.msra.mxu0 %v973
      %2790 = vmatprep.subr.bf16.mxu0 0
      %2791 = vmatpush1.bf16.msra.mxu0 %v972
      %2792 = vmatprep.subr.bf16.mxu0 0
      %2793 = vmatpush1.bf16.msra.mxu0 %v971
      %2794 = vmatprep.subr.bf16.mxu0 0
      %2795 = vmatpush1.bf16.msra.mxu0 %v970
      %2796 = vmatprep.subr.bf16.mxu0 0
      %2797 = vmatpush1.bf16.msra.mxu0 %v969
      %2798 = vmatprep.subr.bf16.mxu0 0
      %2799 = vmatpush2.bf16.msra.mxu0 %v984
      %2800 = vmatprep.subr.bf16.mxu0 0
      %2801 = vmatpush2.bf16.msra.mxu0 %v983
      %2802 = vmatprep.subr.bf16.mxu0 0
      %2803 = vmatpush2.bf16.msra.mxu0 %v982
      %2804 = vmatprep.subr.bf16.mxu0 0
      %2805 = vmatpush2.bf16.msra.mxu0 %v981
      %2806 = vmatprep.subr.bf16.mxu0 0
      %2807 = vmatpush2.bf16.msra.mxu0 %v980
      %2808 = vmatprep.subr.bf16.mxu0 0
      %2809 = vmatpush2.bf16.msra.mxu0 %v979
      %2810 = vmatprep.subr.bf16.mxu0 0
      %2811 = vmatpush2.bf16.msra.mxu0 %v978
      %2812 = vmatprep.subr.bf16.mxu0 0
      %2813 = vmatpush2.bf16.msra.mxu0 %v977
      %2814 = vmatprep.mubr.bf16.mxu0 %v2633
      %2815 = vmatmul.mubr.bf16.gmra.mxu0 %v2632
      %v2816 = vpop.f32.mrf.mxu0
      %v2817 = vadd.f32 %v2768, %v2816
      %v2818 = vpop.f32.mrf.mxu0
      %v2819 = vpop.f32.mrf.mxu0
      %v2820 = vadd.f32 %v2771, %v2819
      %v2821 = vpop.f32.mrf.mxu0
      %2822 = vmatprep.mubr.bf16.mxu0 %v2646
      %2823 = vmatmul.mubr.bf16.gmra.mxu0 %v2645
      %v2824 = vpop.f32.mrf.mxu0
      %v2825 = vadd.f32 %v2776, %v2824
      %v2826 = vpop.f32.mrf.mxu0
      %v2827 = vpop.f32.mrf.mxu0
      %v2828 = vadd.f32 %v2779, %v2827
      %v2829 = vpop.f32.mrf.mxu0
      %2830 = vdwg.mxu0
      %2831 = vmatprep.subr.bf16.mxu0 0
      %2832 = vmatpush1.bf16.msra.mxu0 %v992
      %2833 = vmatprep.subr.bf16.mxu0 0
      %2834 = vmatpush1.bf16.msra.mxu0 %v991
      %2835 = vmatprep.subr.bf16.mxu0 0
      %2836 = vmatpush1.bf16.msra.mxu0 %v990
      %2837 = vmatprep.subr.bf16.mxu0 0
      %2838 = vmatpush1.bf16.msra.mxu0 %v989
      %2839 = vmatprep.subr.bf16.mxu0 0
      %2840 = vmatpush1.bf16.msra.mxu0 %v988
      %2841 = vmatprep.subr.bf16.mxu0 0
      %2842 = vmatpush1.bf16.msra.mxu0 %v987
      %2843 = vmatprep.subr.bf16.mxu0 0
      %2844 = vmatpush1.bf16.msra.mxu0 %v986
      %2845 = vmatprep.subr.bf16.mxu0 0
      %2846 = vmatpush1.bf16.msra.mxu0 %v985
      %2847 = vmatprep.subr.bf16.mxu0 0
      %2848 = vmatpush2.bf16.msra.mxu0 %v1000
      %2849 = vmatprep.subr.bf16.mxu0 0
      %2850 = vmatpush2.bf16.msra.mxu0 %v999
      %2851 = vmatprep.subr.bf16.mxu0 0
      %2852 = vmatpush2.bf16.msra.mxu0 %v998
      %2853 = vmatprep.subr.bf16.mxu0 0
      %2854 = vmatpush2.bf16.msra.mxu0 %v997
      %2855 = vmatprep.subr.bf16.mxu0 0
      %2856 = vmatpush2.bf16.msra.mxu0 %v996
      %2857 = vmatprep.subr.bf16.mxu0 0
      %2858 = vmatpush2.bf16.msra.mxu0 %v995
      %2859 = vmatprep.subr.bf16.mxu0 0
      %2860 = vmatpush2.bf16.msra.mxu0 %v994
      %2861 = vmatprep.subr.bf16.mxu0 0
      %2862 = vmatpush2.bf16.msra.mxu0 %v993
      %2863 = vmatprep.mubr.bf16.mxu0 %v2635
      %2864 = vmatmul.mubr.bf16.gmra.mxu0 %v2634
      %v2865 = vpop.f32.mrf.mxu0
      %v2866 = vadd.f32 %v2817, %v2865
      %v2867 = vpop.f32.mrf.mxu0
      %v2868 = vpop.f32.mrf.mxu0
      %v2869 = vadd.f32 %v2820, %v2868
      %v2870 = vpop.f32.mrf.mxu0
      %2871 = vmatprep.mubr.bf16.mxu0 %v2648
      %2872 = vmatmul.mubr.bf16.gmra.mxu0 %v2647
      %v2873 = vpop.f32.mrf.mxu0
      %v2874 = vadd.f32 %v2825, %v2873
      %v2875 = vpop.f32.mrf.mxu0
      %v2876 = vpop.f32.mrf.mxu0
      %v2877 = vadd.f32 %v2828, %v2876
      %v2878 = vpop.f32.mrf.mxu0
      %2879 = vdwg.mxu0
      %2880 = vmatprep.subr.bf16.mxu0 0
      %2881 = vmatpush1.bf16.msra.mxu0 %v1008
      %2882 = vmatprep.subr.bf16.mxu0 0
      %2883 = vmatpush1.bf16.msra.mxu0 %v1007
      %2884 = vmatprep.subr.bf16.mxu0 0
      %2885 = vmatpush1.bf16.msra.mxu0 %v1006
      %2886 = vmatprep.subr.bf16.mxu0 0
      %2887 = vmatpush1.bf16.msra.mxu0 %v1005
      %2888 = vmatprep.subr.bf16.mxu0 0
      %2889 = vmatpush1.bf16.msra.mxu0 %v1004
      %2890 = vmatprep.subr.bf16.mxu0 0
      %2891 = vmatpush1.bf16.msra.mxu0 %v1003
      %2892 = vmatprep.subr.bf16.mxu0 0
      %2893 = vmatpush1.bf16.msra.mxu0 %v1002
      %2894 = vmatprep.subr.bf16.mxu0 0
      %2895 = vmatpush1.bf16.msra.mxu0 %v1001
      %2896 = vmatprep.subr.bf16.mxu0 0
      %2897 = vmatpush2.bf16.msra.mxu0 %v1016
      %2898 = vmatprep.subr.bf16.mxu0 0
      %2899 = vmatpush2.bf16.msra.mxu0 %v1015
      %2900 = vmatprep.subr.bf16.mxu0 0
      %2901 = vmatpush2.bf16.msra.mxu0 %v1014
      %2902 = vmatprep.subr.bf16.mxu0 0
      %2903 = vmatpush2.bf16.msra.mxu0 %v1013
      %2904 = vmatprep.subr.bf16.mxu0 0
      %2905 = vmatpush2.bf16.msra.mxu0 %v1012
      %2906 = vmatprep.subr.bf16.mxu0 0
      %2907 = vmatpush2.bf16.msra.mxu0 %v1011
      %2908 = vmatprep.subr.bf16.mxu0 0
      %2909 = vmatpush2.bf16.msra.mxu0 %v1010
      %2910 = vmatprep.subr.bf16.mxu0 0
      %2911 = vmatpush2.bf16.msra.mxu0 %v1009
      %2912 = vmatprep.mubr.bf16.mxu0 %v2637
      %2913 = vmatmul.mubr.bf16.gmra.mxu0 %v2636
      %v2914 = vpop.f32.mrf.mxu0
      %v2915 = vadd.f32 %v2866, %v2914
      %v2916 = vpop.f32.mrf.mxu0
      %v2917 = vpop.f32.mrf.mxu0
      %v2918 = vadd.f32 %v2869, %v2917
      %v2919 = vpop.f32.mrf.mxu0
      %2920 = vmatprep.mubr.bf16.mxu0 %v2650
      %2921 = vmatmul.mubr.bf16.gmra.mxu0 %v2649
      %v2922 = vpop.f32.mrf.mxu0
      %v2923 = vadd.f32 %v2874, %v2922
      %v2924 = vpop.f32.mrf.mxu0
      %v2925 = vpop.f32.mrf.mxu0
      %v2926 = vadd.f32 %v2877, %v2925
      %v2927 = vpop.f32.mrf.mxu0
      %2928 = vdwg.mxu0
      %2929 = vmatprep.subr.bf16.mxu0 0
      %2930 = vmatpush1.bf16.msra.mxu0 %v1024
      %2931 = vmatprep.subr.bf16.mxu0 0
      %2932 = vmatpush1.bf16.msra.mxu0 %v1023
      %2933 = vmatprep.subr.bf16.mxu0 0
      %2934 = vmatpush1.bf16.msra.mxu0 %v1022
      %2935 = vmatprep.subr.bf16.mxu0 0
      %2936 = vmatpush1.bf16.msra.mxu0 %v1021
      %2937 = vmatprep.subr.bf16.mxu0 0
      %2938 = vmatpush1.bf16.msra.mxu0 %v1020
      %2939 = vmatprep.subr.bf16.mxu0 0
      %2940 = vmatpush1.bf16.msra.mxu0 %v1019
      %2941 = vmatprep.subr.bf16.mxu0 0
      %2942 = vmatpush1.bf16.msra.mxu0 %v1018
      %2943 = vmatprep.subr.bf16.mxu0 0
      %2944 = vmatpush1.bf16.msra.mxu0 %v1017
      %2945 = vmatprep.subr.bf16.mxu0 0
      %2946 = vmatpush2.bf16.msra.mxu0 %v1032
      %2947 = vmatprep.subr.bf16.mxu0 0
      %2948 = vmatpush2.bf16.msra.mxu0 %v1031
      %2949 = vmatprep.subr.bf16.mxu0 0
      %2950 = vmatpush2.bf16.msra.mxu0 %v1030
      %2951 = vmatprep.subr.bf16.mxu0 0
      %2952 = vmatpush2.bf16.msra.mxu0 %v1029
      %2953 = vmatprep.subr.bf16.mxu0 0
      %2954 = vmatpush2.bf16.msra.mxu0 %v1028
      %2955 = vmatprep.subr.bf16.mxu0 0
      %2956 = vmatpush2.bf16.msra.mxu0 %v1027
      %2957 = vmatprep.subr.bf16.mxu0 0
      %2958 = vmatpush2.bf16.msra.mxu0 %v1026
      %2959 = vmatprep.subr.bf16.mxu0 0
      %2960 = vmatpush2.bf16.msra.mxu0 %v1025
      %2961 = vmatprep.mubr.bf16.mxu0 %v2639
      %2962 = vmatmul.mubr.bf16.gmra.mxu0 %v2638
      %v2963 = vpop.f32.mrf.mxu0
      %v2964 = vadd.f32 %v2915, %v2963
      %v2965 = vpop.f32.mrf.mxu0
      %v2966 = vpop.f32.mrf.mxu0
      %v2967 = vadd.f32 %v2918, %v2966
      %v2968 = vpop.f32.mrf.mxu0
      %2969 = vmatprep.mubr.bf16.mxu0 %v2652
      %2970 = vmatmul.mubr.bf16.gmra.mxu0 %v2651
      %v2971 = vpop.f32.mrf.mxu0
      %v2972 = vadd.f32 %v2923, %v2971
      %v2973 = vpop.f32.mrf.mxu0
      %v2974 = vpop.f32.mrf.mxu0
      %v2975 = vadd.f32 %v2926, %v2974
      %v2976 = vpop.f32.mrf.mxu0
      %2977 = vdwg.mxu0
      %2978 = vmatprep.subr.bf16.mxu0 0
      %2979 = vmatpush1.bf16.msra.mxu0 0
      %2980 = vmatprep.subr.bf16.mxu0 0
      %2981 = vmatpush1.bf16.msra.mxu0 0
      %2982 = vmatprep.subr.bf16.mxu0 0
      %2983 = vmatpush1.bf16.msra.mxu0 0
      %2984 = vmatprep.subr.bf16.mxu0 0
      %2985 = vmatpush1.bf16.msra.mxu0 0
      %2986 = vmatprep.subr.bf16.mxu0 0
      %2987 = vmatpush1.bf16.msra.mxu0 %v1036
      %2988 = vmatprep.subr.bf16.mxu0 0
      %2989 = vmatpush1.bf16.msra.mxu0 %v1035
      %2990 = vmatprep.subr.bf16.mxu0 0
      %2991 = vmatpush1.bf16.msra.mxu0 %v1034
      %2992 = vmatprep.subr.bf16.mxu0 0
      %2993 = vmatpush1.bf16.msra.mxu0 %v1033
      %2994 = vmatprep.subr.bf16.mxu0 0
      %2995 = vmatpush2.bf16.msra.mxu0 0
      %2996 = vmatprep.subr.bf16.mxu0 0
      %2997 = vmatpush2.bf16.msra.mxu0 0
      %2998 = vmatprep.subr.bf16.mxu0 0
      %2999 = vmatpush2.bf16.msra.mxu0 0
      %3000 = vmatprep.subr.bf16.mxu0 0
      %3001 = vmatpush2.bf16.msra.mxu0 0
      %3002 = vmatprep.subr.bf16.mxu0 0
      %3003 = vmatpush2.bf16.msra.mxu0 0
      %3004 = vmatprep.subr.bf16.mxu0 0
      %3005 = vmatpush2.bf16.msra.mxu0 0
      %3006 = vmatprep.subr.bf16.mxu0 0
      %3007 = vmatpush2.bf16.msra.mxu0 0
      %3008 = vmatprep.subr.bf16.mxu0 0
      %3009 = vmatpush2.bf16.msra.mxu0 0
      %3010 = vmatprep.mubr.bf16.mxu0 0
      %3011 = vmatmul.mubr.bf16.gmra.mxu0 %v2679
      %v3012 = vpop.f32.mrf.mxu0
      %v3013 = vadd.f32 %v2964, %v3012
      %v3014 = vpop.f32.mrf.mxu0
      %v3015 = vpop.f32.mrf.mxu0
      %v3016 = vadd.f32 %v2967, %v3015
      %v3017 = vpop.f32.mrf.mxu0
      %3018 = vmatprep.mubr.bf16.mxu0 0
      %3019 = vmatmul.mubr.bf16.gmra.mxu0 %v2682
      %v3020 = vpop.f32.mrf.mxu0
      %v3021 = vadd.f32 %v2972, %v3020
      %v3022 = vpop.f32.mrf.mxu0
      %v3023 = vpop.f32.mrf.mxu0
      %v3024 = vadd.f32 %v2975, %v3023
      %v3025 = vpop.f32.mrf.mxu0
      %3026 = vdwg.mxu0
      %v3027 = vmax.f32 %v3013, 0.0
      %v3028 = vmax.f32 %v3016, 0.0
      %v3029 = vmax.f32 %v3021, 0.0
      %v3030 = vmax.f32 %v3024, 0.0
      %v3031 = vmax.f32 %v2515, %v3027
      %v3032 = vmax.f32 %v2516, %v3028
      %v3033 = vmax.f32 %v2517, %v3029
      %v3034 = vmax.f32 %v2518, %v3030
      %v3035 = vmax.f32 %v2003, %v3031
      %v3036 = vmax.f32 %v2004, %v3032
      %v3037 = vmax.f32 %v2005, %v3033
      %v3038 = vmax.f32 %v2006, %v3034
      %v3039 = vlaneseq
      %v3040 = vand.u32 %v3039, 127
      %vm3041 = vcmp.gt.f32.partialorder 0.0, 0.0
      %v3042 = vsel %vm3041, -inf, %v3035
      %v3043 = vsel %vm3041, -inf, %v3036
      %v3044 = vsel %vm3041, -inf, %v3037
      %v3045 = vsel %vm3041, -inf, %v3038
      %3046 = vmax.xlane.f32.xlu0 %v3042
      %v3047 = vpop.xlane.xlu0 %3046
      %3048 = vmax.xlane.f32.xlu0 %v3043
      %v3049 = vpop.xlane.xlu0 %3048
      %3050 = vmax.xlane.f32.xlu0 %v3044
      %v3051 = vpop.xlane.xlu0 %3050
      %vm3052 = vcmask 1040384
      %v3053 = vsel %vm3052, %v3045, -inf
      %3054 = vmax.xlane.f32.xlu0 %v3053
      %v3055 = vpop.xlane.xlu0 %3054
      %vm3056 = vcmp.eq.f32.partialorder %v3042, %v3047
      %vm3057 = vcmp.eq.f32.partialorder %v3043, %v3049
      %vm3058 = vcmp.eq.f32.partialorder %v3044, %v3051
      %vm3059 = vcmp.eq.f32.partialorder %v3045, %v3055
      %v3060 = vsel %vm3056, %v3040, 128
      %v3061 = vsel %vm3057, %v3040, 128
      %v3062 = vsel %vm3058, %v3040, 128
      %v3063 = vsel %vm3059, %v3040, 128
      %v3064 = vand.u32 %v3060, 65535
      %v3065 = vshra.s32 %v3060, 16
      %v3066 = vcvt.s32.f32 %v3064
      %v3067 = vcvt.s32.f32 %v3065
      %3068 = vmin.xlane.f32.xlu0 %v3067
      %v3069 = vpop.xlane.xlu0 %3068
      %vm3070 = vcmp.eq.f32.partialorder %v3067, %v3069
      %v3071 = vsel %vm3070, %v3066, inf
      %3072 = vmin.xlane.f32.xlu0 %v3071
      %v3073 = vpop.xlane.xlu0 %3072
      %v3074 = vcvt.f32.s32 %v3073
      %v3075 = vcvt.f32.s32 %v3069
      %v3076 = vshll.u32 %v3075, 16
      %v3077 = vadd.s32 %v3076, %v3074
      %v3078 = vand.u32 %v3061, 65535
      %v3079 = vshra.s32 %v3061, 16
      %v3080 = vcvt.s32.f32 %v3078
      %v3081 = vcvt.s32.f32 %v3079
      %3082 = vmin.xlane.f32.xlu0 %v3081
      %v3083 = vpop.xlane.xlu0 %3082
      %vm3084 = vcmp.eq.f32.partialorder %v3081, %v3083
      %v3085 = vsel %vm3084, %v3080, inf
      %3086 = vmin.xlane.f32.xlu0 %v3085
      %v3087 = vpop.xlane.xlu0 %3086
      %v3088 = vcvt.f32.s32 %v3087
      %v3089 = vcvt.f32.s32 %v3083
      %v3090 = vshll.u32 %v3089, 16
      %v3091 = vadd.s32 %v3090, %v3088
      %v3092 = vand.u32 %v3062, 65535
      %v3093 = vshra.s32 %v3062, 16
      %v3094 = vcvt.s32.f32 %v3092
      %v3095 = vcvt.s32.f32 %v3093
      %3096 = vmin.xlane.f32.xlu0 %v3095
      %v3097 = vpop.xlane.xlu0 %3096
      %vm3098 = vcmp.eq.f32.partialorder %v3095, %v3097
      %v3099 = vsel %vm3098, %v3094, inf
      %3100 = vmin.xlane.f32.xlu0 %v3099
      %v3101 = vpop.xlane.xlu0 %3100
      %v3102 = vcvt.f32.s32 %v3101
      %v3103 = vcvt.f32.s32 %v3097
      %v3104 = vshll.u32 %v3103, 16
      %v3105 = vadd.s32 %v3104, %v3102
      %v3106 = vsel %vm3052, %v3063, 2147483647
      %v3107 = vand.u32 %v3106, 65535
      %v3108 = vshra.s32 %v3106, 16
      %v3109 = vcvt.s32.f32 %v3107
      %v3110 = vcvt.s32.f32 %v3108
      %3111 = vmin.xlane.f32.xlu0 %v3110
      %v3112 = vpop.xlane.xlu0 %3111
      %vm3113 = vcmp.eq.f32.partialorder %v3110, %v3112
      %v3114 = vsel %vm3113, %v3109, inf
      %3115 = vmin.xlane.f32.xlu0 %v3114
      %v3116 = vpop.xlane.xlu0 %3115
      %v3117 = vcvt.f32.s32 %v3116
      %v3118 = vcvt.f32.s32 %v3112
      %v3119 = vshll.u32 %v3118, 16
      %v3120 = vadd.s32 %v3119, %v3117
      %vm3121 = vcmp.eq.s32.totalorder %v3040, %v3077
      %vm3122 = vcmp.eq.s32.totalorder %v3040, %v3091
      %vm3123 = vcmp.eq.s32.totalorder %v3040, %v3105
      %vm3124 = vcmp.eq.s32.totalorder %v3040, %v3120
      %v3125 = vsel %vm3121, 1, 0
      %v3126 = vsel %vm3122, 1, 0
      %v3127 = vsel %vm3123, 1, 0
      %v3128 = vsel %vm3124, 1, 0
      %v3129 = vcvt.s32.f32 %v3125
      %v3130 = vcvt.s32.f32 %v3126
      %v3131 = vcvt.s32.f32 %v3127
      %v3132 = vcvt.s32.f32 %v3128
      %v3133 = vmax.f32 %v3129, 0.0
      %v3134 = vmax.f32 %v3130, 0.0
      %v3135 = vmax.f32 %v3131, 0.0
      %v3136 = vmax.f32 %v3132, 0.0
      %vm3137 = vcmp.gt.f32.partialorder %v3133, 0.0
      %vm3138 = vcmp.gt.f32.partialorder %v3134, 0.0
      %vm3139 = vcmp.gt.f32.partialorder %v3135, 0.0
      %vm3140 = vcmp.gt.f32.partialorder %v3136, 0.0
      %v3141 = vsel %vm3137, -inf, %v3035
      %v3142 = vsel %vm3138, -inf, %v3036
      %v3143 = vsel %vm3139, -inf, %v3037
      %v3144 = vsel %vm3140, -inf, %v3038
      %3145 = vmax.xlane.f32.xlu0 %v3141
      %v3146 = vpop.xlane.xlu0 %3145
      %3147 = vmax.xlane.f32.xlu0 %v3142
      %v3148 = vpop.xlane.xlu0 %3147
      %3149 = vmax.xlane.f32.xlu0 %v3143
      %v3150 = vpop.xlane.xlu0 %3149
      %v3151 = vsel %vm3052, %v3144, -inf
      %3152 = vmax.xlane.f32.xlu0 %v3151
      %v3153 = vpop.xlane.xlu0 %3152
      %vm3154 = vcmp.eq.f32.partialorder %v3141, %v3146
      %vm3155 = vcmp.eq.f32.partialorder %v3142, %v3148
      %vm3156 = vcmp.eq.f32.partialorder %v3143, %v3150
      %vm3157 = vcmp.eq.f32.partialorder %v3144, %v3153
      %v3158 = vsel %vm3154, %v3040, 128
      %v3159 = vsel %vm3155, %v3040, 128
      %v3160 = vsel %vm3156, %v3040, 128
      %v3161 = vsel %vm3157, %v3040, 128
      %v3162 = vand.u32 %v3158, 65535
      %v3163 = vshra.s32 %v3158, 16
      %v3164 = vcvt.s32.f32 %v3162
      %v3165 = vcvt.s32.f32 %v3163
      %3166 = vmin.xlane.f32.xlu0 %v3165
      %v3167 = vpop.xlane.xlu0 %3166
      %vm3168 = vcmp.eq.f32.partialorder %v3165, %v3167
      %v3169 = vsel %vm3168, %v3164, inf
      %3170 = vmin.xlane.f32.xlu0 %v3169
      %v3171 = vpop.xlane.xlu0 %3170
      %v3172 = vcvt.f32.s32 %v3171
      %v3173 = vcvt.f32.s32 %v3167
      %v3174 = vshll.u32 %v3173, 16
      %v3175 = vadd.s32 %v3174, %v3172
      %v3176 = vand.u32 %v3159, 65535
      %v3177 = vshra.s32 %v3159, 16
      %v3178 = vcvt.s32.f32 %v3176
      %v3179 = vcvt.s32.f32 %v3177
      %3180 = vmin.xlane.f32.xlu0 %v3179
      %v3181 = vpop.xlane.xlu0 %3180
      %vm3182 = vcmp.eq.f32.partialorder %v3179, %v3181
      %v3183 = vsel %vm3182, %v3178, inf
      %3184 = vmin.xlane.f32.xlu0 %v3183
      %v3185 = vpop.xlane.xlu0 %3184
      %v3186 = vcvt.f32.s32 %v3185
      %v3187 = vcvt.f32.s32 %v3181
      %v3188 = vshll.u32 %v3187, 16
      %v3189 = vadd.s32 %v3188, %v3186
      %v3190 = vand.u32 %v3160, 65535
      %v3191 = vshra.s32 %v3160, 16
      %v3192 = vcvt.s32.f32 %v3190
      %v3193 = vcvt.s32.f32 %v3191
      %3194 = vmin.xlane.f32.xlu0 %v3193
      %v3195 = vpop.xlane.xlu0 %3194
      %vm3196 = vcmp.eq.f32.partialorder %v3193, %v3195
      %v3197 = vsel %vm3196, %v3192, inf
      %3198 = vmin.xlane.f32.xlu0 %v3197
      %v3199 = vpop.xlane.xlu0 %3198
      %v3200 = vcvt.f32.s32 %v3199
      %v3201 = vcvt.f32.s32 %v3195
      %v3202 = vshll.u32 %v3201, 16
      %v3203 = vadd.s32 %v3202, %v3200
      %v3204 = vsel %vm3052, %v3161, 2147483647
      %v3205 = vand.u32 %v3204, 65535
      %v3206 = vshra.s32 %v3204, 16
      %v3207 = vcvt.s32.f32 %v3205
      %v3208 = vcvt.s32.f32 %v3206
      %3209 = vmin.xlane.f32.xlu0 %v3208
      %v3210 = vpop.xlane.xlu0 %3209
      %vm3211 = vcmp.eq.f32.partialorder %v3208, %v3210
      %v3212 = vsel %vm3211, %v3207, inf
      %3213 = vmin.xlane.f32.xlu0 %v3212
      %v3214 = vpop.xlane.xlu0 %3213
      %v3215 = vcvt.f32.s32 %v3214
      %v3216 = vcvt.f32.s32 %v3210
      %v3217 = vshll.u32 %v3216, 16
      %v3218 = vadd.s32 %v3217, %v3215
      %vm3219 = vcmp.eq.s32.totalorder %v3040, %v3175
      %vm3220 = vcmp.eq.s32.totalorder %v3040, %v3189
      %vm3221 = vcmp.eq.s32.totalorder %v3040, %v3203
      %vm3222 = vcmp.eq.s32.totalorder %v3040, %v3218
      %v3223 = vsel %vm3219, 1, 0
      %v3224 = vsel %vm3220, 1, 0
      %v3225 = vsel %vm3221, 1, 0
      %v3226 = vsel %vm3222, 1, 0
      %v3227 = vcvt.s32.f32 %v3223
      %v3228 = vcvt.s32.f32 %v3224
      %v3229 = vcvt.s32.f32 %v3225
      %v3230 = vcvt.s32.f32 %v3226
      %v3231 = vmax.f32 %v3133, %v3227
      %v3232 = vmax.f32 %v3134, %v3228
      %v3233 = vmax.f32 %v3135, %v3229
      %v3234 = vmax.f32 %v3136, %v3230
      %vm3235 = vcmp.gt.f32.partialorder %v3231, 0.0
      %vm3236 = vcmp.gt.f32.partialorder %v3232, 0.0
      %vm3237 = vcmp.gt.f32.partialorder %v3233, 0.0
      %vm3238 = vcmp.gt.f32.partialorder %v3234, 0.0
      %v3239 = vsel %vm3235, -inf, %v3035
      %v3240 = vsel %vm3236, -inf, %v3036
      %v3241 = vsel %vm3237, -inf, %v3037
      %v3242 = vsel %vm3238, -inf, %v3038
      %3243 = vmax.xlane.f32.xlu0 %v3239
      %v3244 = vpop.xlane.xlu0 %3243
      %3245 = vmax.xlane.f32.xlu0 %v3240
      %v3246 = vpop.xlane.xlu0 %3245
      %3247 = vmax.xlane.f32.xlu0 %v3241
      %v3248 = vpop.xlane.xlu0 %3247
      %v3249 = vsel %vm3052, %v3242, -inf
      %3250 = vmax.xlane.f32.xlu0 %v3249
      %v3251 = vpop.xlane.xlu0 %3250
      %vm3252 = vcmp.eq.f32.partialorder %v3239, %v3244
      %vm3253 = vcmp.eq.f32.partialorder %v3240, %v3246
      %vm3254 = vcmp.eq.f32.partialorder %v3241, %v3248
      %vm3255 = vcmp.eq.f32.partialorder %v3242, %v3251
      %v3256 = vsel %vm3252, %v3040, 128
      %v3257 = vsel %vm3253, %v3040, 128
      %v3258 = vsel %vm3254, %v3040, 128
      %v3259 = vsel %vm3255, %v3040, 128
      %v3260 = vand.u32 %v3256, 65535
      %v3261 = vshra.s32 %v3256, 16
      %v3262 = vcvt.s32.f32 %v3260
      %v3263 = vcvt.s32.f32 %v3261
      %3264 = vmin.xlane.f32.xlu0 %v3263
      %v3265 = vpop.xlane.xlu0 %3264
      %vm3266 = vcmp.eq.f32.partialorder %v3263, %v3265
      %v3267 = vsel %vm3266, %v3262, inf
      %3268 = vmin.xlane.f32.xlu0 %v3267
      %v3269 = vpop.xlane.xlu0 %3268
      %v3270 = vcvt.f32.s32 %v3269
      %v3271 = vcvt.f32.s32 %v3265
      %v3272 = vshll.u32 %v3271, 16
      %v3273 = vadd.s32 %v3272, %v3270
      %v3274 = vand.u32 %v3257, 65535
      %v3275 = vshra.s32 %v3257, 16
      %v3276 = vcvt.s32.f32 %v3274
      %v3277 = vcvt.s32.f32 %v3275
      %3278 = vmin.xlane.f32.xlu0 %v3277
      %v3279 = vpop.xlane.xlu0 %3278
      %vm3280 = vcmp.eq.f32.partialorder %v3277, %v3279
      %v3281 = vsel %vm3280, %v3276, inf
      %3282 = vmin.xlane.f32.xlu0 %v3281
      %v3283 = vpop.xlane.xlu0 %3282
      %v3284 = vcvt.f32.s32 %v3283
      %v3285 = vcvt.f32.s32 %v3279
      %v3286 = vshll.u32 %v3285, 16
      %v3287 = vadd.s32 %v3286, %v3284
      %v3288 = vand.u32 %v3258, 65535
      %v3289 = vshra.s32 %v3258, 16
      %v3290 = vcvt.s32.f32 %v3288
      %v3291 = vcvt.s32.f32 %v3289
      %3292 = vmin.xlane.f32.xlu0 %v3291
      %v3293 = vpop.xlane.xlu0 %3292
      %vm3294 = vcmp.eq.f32.partialorder %v3291, %v3293
      %v3295 = vsel %vm3294, %v3290, inf
      %3296 = vmin.xlane.f32.xlu0 %v3295
      %v3297 = vpop.xlane.xlu0 %3296
      %v3298 = vcvt.f32.s32 %v3297
      %v3299 = vcvt.f32.s32 %v3293
      %v3300 = vshll.u32 %v3299, 16
      %v3301 = vadd.s32 %v3300, %v3298
      %v3302 = vsel %vm3052, %v3259, 2147483647
      %v3303 = vand.u32 %v3302, 65535
      %v3304 = vshra.s32 %v3302, 16
      %v3305 = vcvt.s32.f32 %v3303
      %v3306 = vcvt.s32.f32 %v3304
      %3307 = vmin.xlane.f32.xlu0 %v3306
      %v3308 = vpop.xlane.xlu0 %3307
      %vm3309 = vcmp.eq.f32.partialorder %v3306, %v3308
      %v3310 = vsel %vm3309, %v3305, inf
      %3311 = vmin.xlane.f32.xlu0 %v3310
      %v3312 = vpop.xlane.xlu0 %3311
      %v3313 = vcvt.f32.s32 %v3312
      %v3314 = vcvt.f32.s32 %v3308
      %v3315 = vshll.u32 %v3314, 16
      %v3316 = vadd.s32 %v3315, %v3313
      %vm3317 = vcmp.eq.s32.totalorder %v3040, %v3273
      %vm3318 = vcmp.eq.s32.totalorder %v3040, %v3287
      %vm3319 = vcmp.eq.s32.totalorder %v3040, %v3301
      %vm3320 = vcmp.eq.s32.totalorder %v3040, %v3316
      %v3321 = vsel %vm3317, 1, 0
      %v3322 = vsel %vm3318, 1, 0
      %v3323 = vsel %vm3319, 1, 0
      %v3324 = vsel %vm3320, 1, 0
      %v3325 = vcvt.s32.f32 %v3321
      %v3326 = vcvt.s32.f32 %v3322
      %v3327 = vcvt.s32.f32 %v3323
      %v3328 = vcvt.s32.f32 %v3324
      %v3329 = vmax.f32 %v3231, %v3325
      %v3330 = vmax.f32 %v3232, %v3326
      %v3331 = vmax.f32 %v3233, %v3327
      %v3332 = vmax.f32 %v3234, %v3328
      %vm3333 = vcmp.gt.f32.partialorder %v3329, 0.0
      %vm3334 = vcmp.gt.f32.partialorder %v3330, 0.0
      %vm3335 = vcmp.gt.f32.partialorder %v3331, 0.0
      %vm3336 = vcmp.gt.f32.partialorder %v3332, 0.0
      %v3337 = vsel %vm3333, -inf, %v3035
      %v3338 = vsel %vm3334, -inf, %v3036
      %v3339 = vsel %vm3335, -inf, %v3037
      %v3340 = vsel %vm3336, -inf, %v3038
      %3341 = vmax.xlane.f32.xlu0 %v3337
      %v3342 = vpop.xlane.xlu0 %3341
      %3343 = vmax.xlane.f32.xlu0 %v3338
      %v3344 = vpop.xlane.xlu0 %3343
      %3345 = vmax.xlane.f32.xlu0 %v3339
      %v3346 = vpop.xlane.xlu0 %3345
      %v3347 = vsel %vm3052, %v3340, -inf
      %3348 = vmax.xlane.f32.xlu0 %v3347
      %v3349 = vpop.xlane.xlu0 %3348
      %vm3350 = vcmp.eq.f32.partialorder %v3337, %v3342
      %vm3351 = vcmp.eq.f32.partialorder %v3338, %v3344
      %vm3352 = vcmp.eq.f32.partialorder %v3339, %v3346
      %vm3353 = vcmp.eq.f32.partialorder %v3340, %v3349
      %v3354 = vsel %vm3350, %v3040, 128
      %v3355 = vsel %vm3351, %v3040, 128
      %v3356 = vsel %vm3352, %v3040, 128
      %v3357 = vsel %vm3353, %v3040, 128
      %v3358 = vand.u32 %v3354, 65535
      %v3359 = vshra.s32 %v3354, 16
      %v3360 = vcvt.s32.f32 %v3358
      %v3361 = vcvt.s32.f32 %v3359
      %3362 = vmin.xlane.f32.xlu0 %v3361
      %v3363 = vpop.xlane.xlu0 %3362
      %vm3364 = vcmp.eq.f32.partialorder %v3361, %v3363
      %v3365 = vsel %vm3364, %v3360, inf
      %3366 = vmin.xlane.f32.xlu0 %v3365
      %v3367 = vpop.xlane.xlu0 %3366
      %v3368 = vcvt.f32.s32 %v3367
      %v3369 = vcvt.f32.s32 %v3363
      %v3370 = vshll.u32 %v3369, 16
      %v3371 = vadd.s32 %v3370, %v3368
      %v3372 = vand.u32 %v3355, 65535
      %v3373 = vshra.s32 %v3355, 16
      %v3374 = vcvt.s32.f32 %v3372
      %v3375 = vcvt.s32.f32 %v3373
      %3376 = vmin.xlane.f32.xlu0 %v3375
      %v3377 = vpop.xlane.xlu0 %3376
      %vm3378 = vcmp.eq.f32.partialorder %v3375, %v3377
      %v3379 = vsel %vm3378, %v3374, inf
      %3380 = vmin.xlane.f32.xlu0 %v3379
      %v3381 = vpop.xlane.xlu0 %3380
      %v3382 = vcvt.f32.s32 %v3381
      %v3383 = vcvt.f32.s32 %v3377
      %v3384 = vshll.u32 %v3383, 16
      %v3385 = vadd.s32 %v3384, %v3382
      %v3386 = vand.u32 %v3356, 65535
      %v3387 = vshra.s32 %v3356, 16
      %v3388 = vcvt.s32.f32 %v3386
      %v3389 = vcvt.s32.f32 %v3387
      %3390 = vmin.xlane.f32.xlu0 %v3389
      %v3391 = vpop.xlane.xlu0 %3390
      %vm3392 = vcmp.eq.f32.partialorder %v3389, %v3391
      %v3393 = vsel %vm3392, %v3388, inf
      %3394 = vmin.xlane.f32.xlu0 %v3393
      %v3395 = vpop.xlane.xlu0 %3394
      %v3396 = vcvt.f32.s32 %v3395
      %v3397 = vcvt.f32.s32 %v3391
      %v3398 = vshll.u32 %v3397, 16
      %v3399 = vadd.s32 %v3398, %v3396
      %v3400 = vsel %vm3052, %v3357, 2147483647
      %v3401 = vand.u32 %v3400, 65535
      %v3402 = vshra.s32 %v3400, 16
      %v3403 = vcvt.s32.f32 %v3401
      %v3404 = vcvt.s32.f32 %v3402
      %3405 = vmin.xlane.f32.xlu0 %v3404
      %v3406 = vpop.xlane.xlu0 %3405
      %vm3407 = vcmp.eq.f32.partialorder %v3404, %v3406
      %v3408 = vsel %vm3407, %v3403, inf
      %3409 = vmin.xlane.f32.xlu0 %v3408
      %v3410 = vpop.xlane.xlu0 %3409
      %v3411 = vcvt.f32.s32 %v3410
      %v3412 = vcvt.f32.s32 %v3406
      %v3413 = vshll.u32 %v3412, 16
      %v3414 = vadd.s32 %v3413, %v3411
      %vm3415 = vcmp.eq.s32.totalorder %v3040, %v3371
      %vm3416 = vcmp.eq.s32.totalorder %v3040, %v3385
      %vm3417 = vcmp.eq.s32.totalorder %v3040, %v3399
      %vm3418 = vcmp.eq.s32.totalorder %v3040, %v3414
      %v3419 = vsel %vm3415, 1, 0
      %v3420 = vsel %vm3416, 1, 0
      %v3421 = vsel %vm3417, 1, 0
      %v3422 = vsel %vm3418, 1, 0
      %v3423 = vcvt.s32.f32 %v3419
      %v3424 = vcvt.s32.f32 %v3420
      %v3425 = vcvt.s32.f32 %v3421
      %v3426 = vcvt.s32.f32 %v3422
      %v3427 = vmax.f32 %v3329, %v3423
      %v3428 = vmax.f32 %v3330, %v3424
      %v3429 = vmax.f32 %v3331, %v3425
      %v3430 = vmax.f32 %v3332, %v3426
      %vm3431 = vcmp.gt.f32.partialorder %v3427, 0.0
      %vm3432 = vcmp.gt.f32.partialorder %v3428, 0.0
      %vm3433 = vcmp.gt.f32.partialorder %v3429, 0.0
      %vm3434 = vcmp.gt.f32.partialorder %v3430, 0.0
      %v3435 = vsel %vm3431, -inf, %v3035
      %v3436 = vsel %vm3432, -inf, %v3036
      %v3437 = vsel %vm3433, -inf, %v3037
      %v3438 = vsel %vm3434, -inf, %v3038
      %3439 = vmax.xlane.f32.xlu0 %v3435
      %v3440 = vpop.xlane.xlu0 %3439
      %3441 = vmax.xlane.f32.xlu0 %v3436
      %v3442 = vpop.xlane.xlu0 %3441
      %3443 = vmax.xlane.f32.xlu0 %v3437
      %v3444 = vpop.xlane.xlu0 %3443
      %v3445 = vsel %vm3052, %v3438, -inf
      %3446 = vmax.xlane.f32.xlu0 %v3445
      %v3447 = vpop.xlane.xlu0 %3446
      %vm3448 = vcmp.eq.f32.partialorder %v3435, %v3440
      %vm3449 = vcmp.eq.f32.partialorder %v3436, %v3442
      %vm3450 = vcmp.eq.f32.partialorder %v3437, %v3444
      %vm3451 = vcmp.eq.f32.partialorder %v3438, %v3447
      %v3452 = vsel %vm3448, %v3040, 128
      %v3453 = vsel %vm3449, %v3040, 128
      %v3454 = vsel %vm3450, %v3040, 128
      %v3455 = vsel %vm3451, %v3040, 128
      %v3456 = vand.u32 %v3452, 65535
      %v3457 = vshra.s32 %v3452, 16
      %v3458 = vcvt.s32.f32 %v3456
      %v3459 = vcvt.s32.f32 %v3457
      %3460 = vmin.xlane.f32.xlu0 %v3459
      %v3461 = vpop.xlane.xlu0 %3460
      %vm3462 = vcmp.eq.f32.partialorder %v3459, %v3461
      %v3463 = vsel %vm3462, %v3458, inf
      %3464 = vmin.xlane.f32.xlu0 %v3463
      %v3465 = vpop.xlane.xlu0 %3464
      %v3466 = vcvt.f32.s32 %v3465
      %v3467 = vcvt.f32.s32 %v3461
      %v3468 = vshll.u32 %v3467, 16
      %v3469 = vadd.s32 %v3468, %v3466
      %v3470 = vand.u32 %v3453, 65535
      %v3471 = vshra.s32 %v3453, 16
      %v3472 = vcvt.s32.f32 %v3470
      %v3473 = vcvt.s32.f32 %v3471
      %3474 = vmin.xlane.f32.xlu0 %v3473
      %v3475 = vpop.xlane.xlu0 %3474
      %vm3476 = vcmp.eq.f32.partialorder %v3473, %v3475
      %v3477 = vsel %vm3476, %v3472, inf
      %3478 = vmin.xlane.f32.xlu0 %v3477
      %v3479 = vpop.xlane.xlu0 %3478
      %v3480 = vcvt.f32.s32 %v3479
      %v3481 = vcvt.f32.s32 %v3475
      %v3482 = vshll.u32 %v3481, 16
      %v3483 = vadd.s32 %v3482, %v3480
      %v3484 = vand.u32 %v3454, 65535
      %v3485 = vshra.s32 %v3454, 16
      %v3486 = vcvt.s32.f32 %v3484
      %v3487 = vcvt.s32.f32 %v3485
      %3488 = vmin.xlane.f32.xlu0 %v3487
      %v3489 = vpop.xlane.xlu0 %3488
      %vm3490 = vcmp.eq.f32.partialorder %v3487, %v3489
      %v3491 = vsel %vm3490, %v3486, inf
      %3492 = vmin.xlane.f32.xlu0 %v3491
      %v3493 = vpop.xlane.xlu0 %3492
      %v3494 = vcvt.f32.s32 %v3493
      %v3495 = vcvt.f32.s32 %v3489
      %v3496 = vshll.u32 %v3495, 16
      %v3497 = vadd.s32 %v3496, %v3494
      %v3498 = vsel %vm3052, %v3455, 2147483647
      %v3499 = vand.u32 %v3498, 65535
      %v3500 = vshra.s32 %v3498, 16
      %v3501 = vcvt.s32.f32 %v3499
      %v3502 = vcvt.s32.f32 %v3500
      %3503 = vmin.xlane.f32.xlu0 %v3502
      %v3504 = vpop.xlane.xlu0 %3503
      %vm3505 = vcmp.eq.f32.partialorder %v3502, %v3504
      %v3506 = vsel %vm3505, %v3501, inf
      %3507 = vmin.xlane.f32.xlu0 %v3506
      %v3508 = vpop.xlane.xlu0 %3507
      %v3509 = vcvt.f32.s32 %v3508
      %v3510 = vcvt.f32.s32 %v3504
      %v3511 = vshll.u32 %v3510, 16
      %v3512 = vadd.s32 %v3511, %v3509
      %vm3513 = vcmp.eq.s32.totalorder %v3040, %v3469
      %vm3514 = vcmp.eq.s32.totalorder %v3040, %v3483
      %vm3515 = vcmp.eq.s32.totalorder %v3040, %v3497
      %vm3516 = vcmp.eq.s32.totalorder %v3040, %v3512
      %v3517 = vsel %vm3513, 1, 0
      %v3518 = vsel %vm3514, 1, 0
      %v3519 = vsel %vm3515, 1, 0
      %v3520 = vsel %vm3516, 1, 0
      %v3521 = vcvt.s32.f32 %v3517
      %v3522 = vcvt.s32.f32 %v3518
      %v3523 = vcvt.s32.f32 %v3519
      %v3524 = vcvt.s32.f32 %v3520
      %v3525 = vmax.f32 %v3427, %v3521
      %v3526 = vmax.f32 %v3428, %v3522
      %v3527 = vmax.f32 %v3429, %v3523
      %v3528 = vmax.f32 %v3430, %v3524
      %vm3529 = vcmp.gt.f32.partialorder %v3525, 0.0
      %vm3530 = vcmp.gt.f32.partialorder %v3526, 0.0
      %vm3531 = vcmp.gt.f32.partialorder %v3527, 0.0
      %vm3532 = vcmp.gt.f32.partialorder %v3528, 0.0
      %v3533 = vsel %vm3529, -inf, %v3035
      %v3534 = vsel %vm3530, -inf, %v3036
      %v3535 = vsel %vm3531, -inf, %v3037
      %v3536 = vsel %vm3532, -inf, %v3038
      %3537 = vmax.xlane.f32.xlu0 %v3533
      %v3538 = vpop.xlane.xlu0 %3537
      %3539 = vmax.xlane.f32.xlu0 %v3534
      %v3540 = vpop.xlane.xlu0 %3539
      %3541 = vmax.xlane.f32.xlu0 %v3535
      %v3542 = vpop.xlane.xlu0 %3541
      %v3543 = vsel %vm3052, %v3536, -inf
      %3544 = vmax.xlane.f32.xlu0 %v3543
      %v3545 = vpop.xlane.xlu0 %3544
      %vm3546 = vcmp.eq.f32.partialorder %v3533, %v3538
      %vm3547 = vcmp.eq.f32.partialorder %v3534, %v3540
      %vm3548 = vcmp.eq.f32.partialorder %v3535, %v3542
      %vm3549 = vcmp.eq.f32.partialorder %v3536, %v3545
      %v3550 = vsel %vm3546, %v3040, 128
      %v3551 = vsel %vm3547, %v3040, 128
      %v3552 = vsel %vm3548, %v3040, 128
      %v3553 = vsel %vm3549, %v3040, 128
      %v3554 = vand.u32 %v3550, 65535
      %v3555 = vshra.s32 %v3550, 16
      %v3556 = vcvt.s32.f32 %v3554
      %v3557 = vcvt.s32.f32 %v3555
      %3558 = vmin.xlane.f32.xlu0 %v3557
      %v3559 = vpop.xlane.xlu0 %3558
      %vm3560 = vcmp.eq.f32.partialorder %v3557, %v3559
      %v3561 = vsel %vm3560, %v3556, inf
      %3562 = vmin.xlane.f32.xlu0 %v3561
      %v3563 = vpop.xlane.xlu0 %3562
      %v3564 = vcvt.f32.s32 %v3563
      %v3565 = vcvt.f32.s32 %v3559
      %v3566 = vshll.u32 %v3565, 16
      %v3567 = vadd.s32 %v3566, %v3564
      %v3568 = vand.u32 %v3551, 65535
      %v3569 = vshra.s32 %v3551, 16
      %v3570 = vcvt.s32.f32 %v3568
      %v3571 = vcvt.s32.f32 %v3569
      %3572 = vmin.xlane.f32.xlu0 %v3571
      %v3573 = vpop.xlane.xlu0 %3572
      %vm3574 = vcmp.eq.f32.partialorder %v3571, %v3573
      %v3575 = vsel %vm3574, %v3570, inf
      %3576 = vmin.xlane.f32.xlu0 %v3575
      %v3577 = vpop.xlane.xlu0 %3576
      %v3578 = vcvt.f32.s32 %v3577
      %v3579 = vcvt.f32.s32 %v3573
      %v3580 = vshll.u32 %v3579, 16
      %v3581 = vadd.s32 %v3580, %v3578
      %v3582 = vand.u32 %v3552, 65535
      %v3583 = vshra.s32 %v3552, 16
      %v3584 = vcvt.s32.f32 %v3582
      %v3585 = vcvt.s32.f32 %v3583
      %3586 = vmin.xlane.f32.xlu0 %v3585
      %v3587 = vpop.xlane.xlu0 %3586
      %vm3588 = vcmp.eq.f32.partialorder %v3585, %v3587
      %v3589 = vsel %vm3588, %v3584, inf
      %3590 = vmin.xlane.f32.xlu0 %v3589
      %v3591 = vpop.xlane.xlu0 %3590
      %v3592 = vcvt.f32.s32 %v3591
      %v3593 = vcvt.f32.s32 %v3587
      %v3594 = vshll.u32 %v3593, 16
      %v3595 = vadd.s32 %v3594, %v3592
      %v3596 = vsel %vm3052, %v3553, 2147483647
      %v3597 = vand.u32 %v3596, 65535
      %v3598 = vshra.s32 %v3596, 16
      %v3599 = vcvt.s32.f32 %v3597
      %v3600 = vcvt.s32.f32 %v3598
      %3601 = vmin.xlane.f32.xlu0 %v3600
      %v3602 = vpop.xlane.xlu0 %3601
      %vm3603 = vcmp.eq.f32.partialorder %v3600, %v3602
      %v3604 = vsel %vm3603, %v3599, inf
      %3605 = vmin.xlane.f32.xlu0 %v3604
      %v3606 = vpop.xlane.xlu0 %3605
      %v3607 = vcvt.f32.s32 %v3606
      %v3608 = vcvt.f32.s32 %v3602
      %v3609 = vshll.u32 %v3608, 16
      %v3610 = vadd.s32 %v3609, %v3607
      %vm3611 = vcmp.eq.s32.totalorder %v3040, %v3567
      %vm3612 = vcmp.eq.s32.totalorder %v3040, %v3581
      %vm3613 = vcmp.eq.s32.totalorder %v3040, %v3595
      %vm3614 = vcmp.eq.s32.totalorder %v3040, %v3610
      %v3615 = vsel %vm3611, 1, 0
      %v3616 = vsel %vm3612, 1, 0
      %v3617 = vsel %vm3613, 1, 0
      %v3618 = vsel %vm3614, 1, 0
      %v3619 = vcvt.s32.f32 %v3615
      %v3620 = vcvt.s32.f32 %v3616
      %v3621 = vcvt.s32.f32 %v3617
      %v3622 = vcvt.s32.f32 %v3618
      %v3623 = vmax.f32 %v3525, %v3619
      %v3624 = vmax.f32 %v3526, %v3620
      %v3625 = vmax.f32 %v3527, %v3621
      %v3626 = vmax.f32 %v3528, %v3622
      %vm3627 = vcmp.gt.f32.partialorder %v3623, 0.0
      %vm3628 = vcmp.gt.f32.partialorder %v3624, 0.0
      %vm3629 = vcmp.gt.f32.partialorder %v3625, 0.0
      %vm3630 = vcmp.gt.f32.partialorder %v3626, 0.0
      %v3631 = vsel %vm3627, -inf, %v3035
      %v3632 = vsel %vm3628, -inf, %v3036
      %v3633 = vsel %vm3629, -inf, %v3037
      %v3634 = vsel %vm3630, -inf, %v3038
      %3635 = vmax.xlane.f32.xlu0 %v3631
      %v3636 = vpop.xlane.xlu0 %3635
      %3637 = vmax.xlane.f32.xlu0 %v3632
      %v3638 = vpop.xlane.xlu0 %3637
      %3639 = vmax.xlane.f32.xlu0 %v3633
      %v3640 = vpop.xlane.xlu0 %3639
      %v3641 = vsel %vm3052, %v3634, -inf
      %3642 = vmax.xlane.f32.xlu0 %v3641
      %v3643 = vpop.xlane.xlu0 %3642
      %vm3644 = vcmp.eq.f32.partialorder %v3631, %v3636
      %vm3645 = vcmp.eq.f32.partialorder %v3632, %v3638
      %vm3646 = vcmp.eq.f32.partialorder %v3633, %v3640
      %vm3647 = vcmp.eq.f32.partialorder %v3634, %v3643
      %v3648 = vsel %vm3644, %v3040, 128
      %v3649 = vsel %vm3645, %v3040, 128
      %v3650 = vsel %vm3646, %v3040, 128
      %v3651 = vsel %vm3647, %v3040, 128
      %v3652 = vand.u32 %v3648, 65535
      %v3653 = vshra.s32 %v3648, 16
      %v3654 = vcvt.s32.f32 %v3652
      %v3655 = vcvt.s32.f32 %v3653
      %3656 = vmin.xlane.f32.xlu0 %v3655
      %v3657 = vpop.xlane.xlu0 %3656
      %vm3658 = vcmp.eq.f32.partialorder %v3655, %v3657
      %v3659 = vsel %vm3658, %v3654, inf
      %3660 = vmin.xlane.f32.xlu0 %v3659
      %v3661 = vpop.xlane.xlu0 %3660
      %v3662 = vcvt.f32.s32 %v3661
      %v3663 = vcvt.f32.s32 %v3657
      %v3664 = vshll.u32 %v3663, 16
      %v3665 = vadd.s32 %v3664, %v3662
      %v3666 = vand.u32 %v3649, 65535
      %v3667 = vshra.s32 %v3649, 16
      %v3668 = vcvt.s32.f32 %v3666
      %v3669 = vcvt.s32.f32 %v3667
      %3670 = vmin.xlane.f32.xlu0 %v3669
      %v3671 = vpop.xlane.xlu0 %3670
      %vm3672 = vcmp.eq.f32.partialorder %v3669, %v3671
      %v3673 = vsel %vm3672, %v3668, inf
      %3674 = vmin.xlane.f32.xlu0 %v3673
      %v3675 = vpop.xlane.xlu0 %3674
      %v3676 = vcvt.f32.s32 %v3675
      %v3677 = vcvt.f32.s32 %v3671
      %v3678 = vshll.u32 %v3677, 16
      %v3679 = vadd.s32 %v3678, %v3676
      %v3680 = vand.u32 %v3650, 65535
      %v3681 = vshra.s32 %v3650, 16
      %v3682 = vcvt.s32.f32 %v3680
      %v3683 = vcvt.s32.f32 %v3681
      %3684 = vmin.xlane.f32.xlu0 %v3683
      %v3685 = vpop.xlane.xlu0 %3684
      %vm3686 = vcmp.eq.f32.partialorder %v3683, %v3685
      %v3687 = vsel %vm3686, %v3682, inf
      %3688 = vmin.xlane.f32.xlu0 %v3687
      %v3689 = vpop.xlane.xlu0 %3688
      %v3690 = vcvt.f32.s32 %v3689
      %v3691 = vcvt.f32.s32 %v3685
      %v3692 = vshll.u32 %v3691, 16
      %v3693 = vadd.s32 %v3692, %v3690
      %v3694 = vsel %vm3052, %v3651, 2147483647
      %v3695 = vand.u32 %v3694, 65535
      %v3696 = vshra.s32 %v3694, 16
      %v3697 = vcvt.s32.f32 %v3695
      %v3698 = vcvt.s32.f32 %v3696
      %3699 = vmin.xlane.f32.xlu0 %v3698
      %v3700 = vpop.xlane.xlu0 %3699
      %vm3701 = vcmp.eq.f32.partialorder %v3698, %v3700
      %v3702 = vsel %vm3701, %v3697, inf
      %3703 = vmin.xlane.f32.xlu0 %v3702
      %v3704 = vpop.xlane.xlu0 %3703
      %v3705 = vcvt.f32.s32 %v3704
      %v3706 = vcvt.f32.s32 %v3700
      %v3707 = vshll.u32 %v3706, 16
      %v3708 = vadd.s32 %v3707, %v3705
      %vm3709 = vcmp.eq.s32.totalorder %v3040, %v3665
      %vm3710 = vcmp.eq.s32.totalorder %v3040, %v3679
      %vm3711 = vcmp.eq.s32.totalorder %v3040, %v3693
      %vm3712 = vcmp.eq.s32.totalorder %v3040, %v3708
      %v3713 = vsel %vm3709, 1, 0
      %v3714 = vsel %vm3710, 1, 0
      %v3715 = vsel %vm3711, 1, 0
      %v3716 = vsel %vm3712, 1, 0
      %v3717 = vcvt.s32.f32 %v3713
      %v3718 = vcvt.s32.f32 %v3714
      %v3719 = vcvt.s32.f32 %v3715
      %v3720 = vcvt.s32.f32 %v3716
      %v3721 = vmax.f32 %v3623, %v3717
      %v3722 = vmax.f32 %v3624, %v3718
      %v3723 = vmax.f32 %v3625, %v3719
      %v3724 = vmax.f32 %v3626, %v3720
      %vm3725 = vcmp.gt.f32.partialorder %v3721, 0.0
      %vm3726 = vcmp.gt.f32.partialorder %v3722, 0.0
      %vm3727 = vcmp.gt.f32.partialorder %v3723, 0.0
      %vm3728 = vcmp.gt.f32.partialorder %v3724, 0.0
      %v3729 = vsel %vm3725, -inf, %v3035
      %v3730 = vsel %vm3726, -inf, %v3036
      %v3731 = vsel %vm3727, -inf, %v3037
      %v3732 = vsel %vm3728, -inf, %v3038
      %3733 = vmax.xlane.f32.xlu0 %v3729
      %v3734 = vpop.xlane.xlu0 %3733
      %3735 = vmax.xlane.f32.xlu0 %v3730
      %v3736 = vpop.xlane.xlu0 %3735
      %3737 = vmax.xlane.f32.xlu0 %v3731
      %v3738 = vpop.xlane.xlu0 %3737
      %v3739 = vsel %vm3052, %v3732, -inf
      %3740 = vmax.xlane.f32.xlu0 %v3739
      %v3741 = vpop.xlane.xlu0 %3740
      %vm3742 = vcmp.eq.f32.partialorder %v3729, %v3734
      %vm3743 = vcmp.eq.f32.partialorder %v3730, %v3736
      %vm3744 = vcmp.eq.f32.partialorder %v3731, %v3738
      %vm3745 = vcmp.eq.f32.partialorder %v3732, %v3741
      %v3746 = vsel %vm3742, %v3040, 128
      %v3747 = vsel %vm3743, %v3040, 128
      %v3748 = vsel %vm3744, %v3040, 128
      %v3749 = vsel %vm3745, %v3040, 128
      %v3750 = vand.u32 %v3746, 65535
      %v3751 = vshra.s32 %v3746, 16
      %v3752 = vcvt.s32.f32 %v3750
      %v3753 = vcvt.s32.f32 %v3751
      %3754 = vmin.xlane.f32.xlu0 %v3753
      %v3755 = vpop.xlane.xlu0 %3754
      %vm3756 = vcmp.eq.f32.partialorder %v3753, %v3755
      %v3757 = vsel %vm3756, %v3752, inf
      %3758 = vmin.xlane.f32.xlu0 %v3757
      %v3759 = vpop.xlane.xlu0 %3758
      %v3760 = vcvt.f32.s32 %v3759
      %v3761 = vcvt.f32.s32 %v3755
      %v3762 = vshll.u32 %v3761, 16
      %v3763 = vadd.s32 %v3762, %v3760
      %v3764 = vand.u32 %v3747, 65535
      %v3765 = vshra.s32 %v3747, 16
      %v3766 = vcvt.s32.f32 %v3764
      %v3767 = vcvt.s32.f32 %v3765
      %3768 = vmin.xlane.f32.xlu0 %v3767
      %v3769 = vpop.xlane.xlu0 %3768
      %vm3770 = vcmp.eq.f32.partialorder %v3767, %v3769
      %v3771 = vsel %vm3770, %v3766, inf
      %3772 = vmin.xlane.f32.xlu0 %v3771
      %v3773 = vpop.xlane.xlu0 %3772
      %v3774 = vcvt.f32.s32 %v3773
      %v3775 = vcvt.f32.s32 %v3769
      %v3776 = vshll.u32 %v3775, 16
      %v3777 = vadd.s32 %v3776, %v3774
      %v3778 = vand.u32 %v3748, 65535
      %v3779 = vshra.s32 %v3748, 16
      %v3780 = vcvt.s32.f32 %v3778
      %v3781 = vcvt.s32.f32 %v3779
      %3782 = vmin.xlane.f32.xlu0 %v3781
      %v3783 = vpop.xlane.xlu0 %3782
      %vm3784 = vcmp.eq.f32.partialorder %v3781, %v3783
      %v3785 = vsel %vm3784, %v3780, inf
      %3786 = vmin.xlane.f32.xlu0 %v3785
      %v3787 = vpop.xlane.xlu0 %3786
      %v3788 = vcvt.f32.s32 %v3787
      %v3789 = vcvt.f32.s32 %v3783
      %v3790 = vshll.u32 %v3789, 16
      %v3791 = vadd.s32 %v3790, %v3788
      %v3792 = vsel %vm3052, %v3749, 2147483647
      %v3793 = vand.u32 %v3792, 65535
      %v3794 = vshra.s32 %v3792, 16
      %v3795 = vcvt.s32.f32 %v3793
      %v3796 = vcvt.s32.f32 %v3794
      %3797 = vmin.xlane.f32.xlu0 %v3796
      %v3798 = vpop.xlane.xlu0 %3797
      %vm3799 = vcmp.eq.f32.partialorder %v3796, %v3798
      %v3800 = vsel %vm3799, %v3795, inf
      %3801 = vmin.xlane.f32.xlu0 %v3800
      %v3802 = vpop.xlane.xlu0 %3801
      %v3803 = vcvt.f32.s32 %v3802
      %v3804 = vcvt.f32.s32 %v3798
      %v3805 = vshll.u32 %v3804, 16
      %v3806 = vadd.s32 %v3805, %v3803
      %vm3807 = vcmp.eq.s32.totalorder %v3040, %v3763
      %vm3808 = vcmp.eq.s32.totalorder %v3040, %v3777
      %vm3809 = vcmp.eq.s32.totalorder %v3040, %v3791
      %vm3810 = vcmp.eq.s32.totalorder %v3040, %v3806
      %v3811 = vsel %vm3807, 1, 0
      %v3812 = vsel %vm3808, 1, 0
      %v3813 = vsel %vm3809, 1, 0
      %v3814 = vsel %vm3810, 1, 0
      %v3815 = vcvt.s32.f32 %v3811
      %v3816 = vcvt.s32.f32 %v3812
      %v3817 = vcvt.s32.f32 %v3813
      %v3818 = vcvt.s32.f32 %v3814
      %v3819 = vmax.f32 %v3721, %v3815
      %v3820 = vmax.f32 %v3722, %v3816
      %v3821 = vmax.f32 %v3723, %v3817
      %v3822 = vmax.f32 %v3724, %v3818
      %vm3823 = vcmp.gt.f32.partialorder %v3819, 0.0
      %vm3824 = vcmp.gt.f32.partialorder %v3820, 0.0
      %vm3825 = vcmp.gt.f32.partialorder %v3821, 0.0
      %vm3826 = vcmp.gt.f32.partialorder %v3822, 0.0
      %v3827 = vsel %vm3823, -inf, %v3035
      %v3828 = vsel %vm3824, -inf, %v3036
      %v3829 = vsel %vm3825, -inf, %v3037
      %v3830 = vsel %vm3826, -inf, %v3038
      %3831 = vmax.xlane.f32.xlu0 %v3827
      %v3832 = vpop.xlane.xlu0 %3831
      %3833 = vmax.xlane.f32.xlu0 %v3828
      %v3834 = vpop.xlane.xlu0 %3833
      %3835 = vmax.xlane.f32.xlu0 %v3829
      %v3836 = vpop.xlane.xlu0 %3835
      %v3837 = vsel %vm3052, %v3830, -inf
      %3838 = vmax.xlane.f32.xlu0 %v3837
      %v3839 = vpop.xlane.xlu0 %3838
      %vm3840 = vcmp.eq.f32.partialorder %v3827, %v3832
      %vm3841 = vcmp.eq.f32.partialorder %v3828, %v3834
      %vm3842 = vcmp.eq.f32.partialorder %v3829, %v3836
      %vm3843 = vcmp.eq.f32.partialorder %v3830, %v3839
      %v3844 = vsel %vm3840, %v3040, 128
      %v3845 = vsel %vm3841, %v3040, 128
      %v3846 = vsel %vm3842, %v3040, 128
      %v3847 = vsel %vm3843, %v3040, 128
      %v3848 = vand.u32 %v3844, 65535
      %v3849 = vshra.s32 %v3844, 16
      %v3850 = vcvt.s32.f32 %v3848
      %v3851 = vcvt.s32.f32 %v3849
      %3852 = vmin.xlane.f32.xlu0 %v3851
      %v3853 = vpop.xlane.xlu0 %3852
      %vm3854 = vcmp.eq.f32.partialorder %v3851, %v3853
      %v3855 = vsel %vm3854, %v3850, inf
      %3856 = vmin.xlane.f32.xlu0 %v3855
      %v3857 = vpop.xlane.xlu0 %3856
      %v3858 = vcvt.f32.s32 %v3857
      %v3859 = vcvt.f32.s32 %v3853
      %v3860 = vshll.u32 %v3859, 16
      %v3861 = vadd.s32 %v3860, %v3858
      %v3862 = vand.u32 %v3845, 65535
      %v3863 = vshra.s32 %v3845, 16
      %v3864 = vcvt.s32.f32 %v3862
      %v3865 = vcvt.s32.f32 %v3863
      %3866 = vmin.xlane.f32.xlu0 %v3865
      %v3867 = vpop.xlane.xlu0 %3866
      %vm3868 = vcmp.eq.f32.partialorder %v3865, %v3867
      %v3869 = vsel %vm3868, %v3864, inf
      %3870 = vmin.xlane.f32.xlu0 %v3869
      %v3871 = vpop.xlane.xlu0 %3870
      %v3872 = vcvt.f32.s32 %v3871
      %v3873 = vcvt.f32.s32 %v3867
      %v3874 = vshll.u32 %v3873, 16
      %v3875 = vadd.s32 %v3874, %v3872
      %v3876 = vand.u32 %v3846, 65535
      %v3877 = vshra.s32 %v3846, 16
      %v3878 = vcvt.s32.f32 %v3876
      %v3879 = vcvt.s32.f32 %v3877
      %3880 = vmin.xlane.f32.xlu0 %v3879
      %v3881 = vpop.xlane.xlu0 %3880
      %vm3882 = vcmp.eq.f32.partialorder %v3879, %v3881
      %v3883 = vsel %vm3882, %v3878, inf
      %3884 = vmin.xlane.f32.xlu0 %v3883
      %v3885 = vpop.xlane.xlu0 %3884
      %v3886 = vcvt.f32.s32 %v3885
      %v3887 = vcvt.f32.s32 %v3881
      %v3888 = vshll.u32 %v3887, 16
      %v3889 = vadd.s32 %v3888, %v3886
      %v3890 = vsel %vm3052, %v3847, 2147483647
      %v3891 = vand.u32 %v3890, 65535
      %v3892 = vshra.s32 %v3890, 16
      %v3893 = vcvt.s32.f32 %v3891
      %v3894 = vcvt.s32.f32 %v3892
      %3895 = vmin.xlane.f32.xlu0 %v3894
      %v3896 = vpop.xlane.xlu0 %3895
      %vm3897 = vcmp.eq.f32.partialorder %v3894, %v3896
      %v3898 = vsel %vm3897, %v3893, inf
      %3899 = vmin.xlane.f32.xlu0 %v3898
      %v3900 = vpop.xlane.xlu0 %3899
      %v3901 = vcvt.f32.s32 %v3900
      %v3902 = vcvt.f32.s32 %v3896
      %v3903 = vshll.u32 %v3902, 16
      %v3904 = vadd.s32 %v3903, %v3901
      %vm3905 = vcmp.eq.s32.totalorder %v3040, %v3861
      %vm3906 = vcmp.eq.s32.totalorder %v3040, %v3875
      %vm3907 = vcmp.eq.s32.totalorder %v3040, %v3889
      %vm3908 = vcmp.eq.s32.totalorder %v3040, %v3904
      %v3909 = vsel %vm3905, 1, 0
      %v3910 = vsel %vm3906, 1, 0
      %v3911 = vsel %vm3907, 1, 0
      %v3912 = vsel %vm3908, 1, 0
      %v3913 = vcvt.s32.f32 %v3909
      %v3914 = vcvt.s32.f32 %v3910
      %v3915 = vcvt.s32.f32 %v3911
      %v3916 = vcvt.s32.f32 %v3912
      %v3917 = vmax.f32 %v3819, %v3913
      %v3918 = vmax.f32 %v3820, %v3914
      %v3919 = vmax.f32 %v3821, %v3915
      %v3920 = vmax.f32 %v3822, %v3916
      %vm3921 = vcmp.gt.f32.partialorder %v3917, 0.0
      %vm3922 = vcmp.gt.f32.partialorder %v3918, 0.0
      %vm3923 = vcmp.gt.f32.partialorder %v3919, 0.0
      %vm3924 = vcmp.gt.f32.partialorder %v3920, 0.0
      %v3925 = vsel %vm3921, -inf, %v3035
      %v3926 = vsel %vm3922, -inf, %v3036
      %v3927 = vsel %vm3923, -inf, %v3037
      %v3928 = vsel %vm3924, -inf, %v3038
      %3929 = vmax.xlane.f32.xlu0 %v3925
      %v3930 = vpop.xlane.xlu0 %3929
      %3931 = vmax.xlane.f32.xlu0 %v3926
      %v3932 = vpop.xlane.xlu0 %3931
      %3933 = vmax.xlane.f32.xlu0 %v3927
      %v3934 = vpop.xlane.xlu0 %3933
      %v3935 = vsel %vm3052, %v3928, -inf
      %3936 = vmax.xlane.f32.xlu0 %v3935
      %v3937 = vpop.xlane.xlu0 %3936
      %vm3938 = vcmp.eq.f32.partialorder %v3925, %v3930
      %vm3939 = vcmp.eq.f32.partialorder %v3926, %v3932
      %vm3940 = vcmp.eq.f32.partialorder %v3927, %v3934
      %vm3941 = vcmp.eq.f32.partialorder %v3928, %v3937
      %v3942 = vsel %vm3938, %v3040, 128
      %v3943 = vsel %vm3939, %v3040, 128
      %v3944 = vsel %vm3940, %v3040, 128
      %v3945 = vsel %vm3941, %v3040, 128
      %v3946 = vand.u32 %v3942, 65535
      %v3947 = vshra.s32 %v3942, 16
      %v3948 = vcvt.s32.f32 %v3946
      %v3949 = vcvt.s32.f32 %v3947
      %3950 = vmin.xlane.f32.xlu0 %v3949
      %v3951 = vpop.xlane.xlu0 %3950
      %vm3952 = vcmp.eq.f32.partialorder %v3949, %v3951
      %v3953 = vsel %vm3952, %v3948, inf
      %3954 = vmin.xlane.f32.xlu0 %v3953
      %v3955 = vpop.xlane.xlu0 %3954
      %v3956 = vcvt.f32.s32 %v3955
      %v3957 = vcvt.f32.s32 %v3951
      %v3958 = vshll.u32 %v3957, 16
      %v3959 = vadd.s32 %v3958, %v3956
      %v3960 = vand.u32 %v3943, 65535
      %v3961 = vshra.s32 %v3943, 16
      %v3962 = vcvt.s32.f32 %v3960
      %v3963 = vcvt.s32.f32 %v3961
      %3964 = vmin.xlane.f32.xlu0 %v3963
      %v3965 = vpop.xlane.xlu0 %3964
      %vm3966 = vcmp.eq.f32.partialorder %v3963, %v3965
      %v3967 = vsel %vm3966, %v3962, inf
      %3968 = vmin.xlane.f32.xlu0 %v3967
      %v3969 = vpop.xlane.xlu0 %3968
      %v3970 = vcvt.f32.s32 %v3969
      %v3971 = vcvt.f32.s32 %v3965
      %v3972 = vshll.u32 %v3971, 16
      %v3973 = vadd.s32 %v3972, %v3970
      %v3974 = vand.u32 %v3944, 65535
      %v3975 = vshra.s32 %v3944, 16
      %v3976 = vcvt.s32.f32 %v3974
      %v3977 = vcvt.s32.f32 %v3975
      %3978 = vmin.xlane.f32.xlu0 %v3977
      %v3979 = vpop.xlane.xlu0 %3978
      %vm3980 = vcmp.eq.f32.partialorder %v3977, %v3979
      %v3981 = vsel %vm3980, %v3976, inf
      %3982 = vmin.xlane.f32.xlu0 %v3981
      %v3983 = vpop.xlane.xlu0 %3982
      %v3984 = vcvt.f32.s32 %v3983
      %v3985 = vcvt.f32.s32 %v3979
      %v3986 = vshll.u32 %v3985, 16
      %v3987 = vadd.s32 %v3986, %v3984
      %v3988 = vsel %vm3052, %v3945, 2147483647
      %v3989 = vand.u32 %v3988, 65535
      %v3990 = vshra.s32 %v3988, 16
      %v3991 = vcvt.s32.f32 %v3989
      %v3992 = vcvt.s32.f32 %v3990
      %3993 = vmin.xlane.f32.xlu0 %v3992
      %v3994 = vpop.xlane.xlu0 %3993
      %vm3995 = vcmp.eq.f32.partialorder %v3992, %v3994
      %v3996 = vsel %vm3995, %v3991, inf
      %3997 = vmin.xlane.f32.xlu0 %v3996
      %v3998 = vpop.xlane.xlu0 %3997
      %v3999 = vcvt.f32.s32 %v3998
      %v4000 = vcvt.f32.s32 %v3994
      %v4001 = vshll.u32 %v4000, 16
      %v4002 = vadd.s32 %v4001, %v3999
      %vm4003 = vcmp.eq.s32.totalorder %v3040, %v3959
      %vm4004 = vcmp.eq.s32.totalorder %v3040, %v3973
      %vm4005 = vcmp.eq.s32.totalorder %v3040, %v3987
      %vm4006 = vcmp.eq.s32.totalorder %v3040, %v4002
      %v4007 = vsel %vm4003, 1, 0
      %v4008 = vsel %vm4004, 1, 0
      %v4009 = vsel %vm4005, 1, 0
      %v4010 = vsel %vm4006, 1, 0
      %v4011 = vcvt.s32.f32 %v4007
      %v4012 = vcvt.s32.f32 %v4008
      %v4013 = vcvt.s32.f32 %v4009
      %v4014 = vcvt.s32.f32 %v4010
      %v4015 = vmax.f32 %v3917, %v4011
      %v4016 = vmax.f32 %v3918, %v4012
      %v4017 = vmax.f32 %v3919, %v4013
      %v4018 = vmax.f32 %v3920, %v4014
      %vm4019 = vcmp.gt.f32.partialorder %v4015, 0.0
      %vm4020 = vcmp.gt.f32.partialorder %v4016, 0.0
      %vm4021 = vcmp.gt.f32.partialorder %v4017, 0.0
      %vm4022 = vcmp.gt.f32.partialorder %v4018, 0.0
      %v4023 = vsel %vm4019, -inf, %v3035
      %v4024 = vsel %vm4020, -inf, %v3036
      %v4025 = vsel %vm4021, -inf, %v3037
      %v4026 = vsel %vm4022, -inf, %v3038
      %4027 = vmax.xlane.f32.xlu0 %v4023
      %v4028 = vpop.xlane.xlu0 %4027
      %4029 = vmax.xlane.f32.xlu0 %v4024
      %v4030 = vpop.xlane.xlu0 %4029
      %4031 = vmax.xlane.f32.xlu0 %v4025
      %v4032 = vpop.xlane.xlu0 %4031
      %v4033 = vsel %vm3052, %v4026, -inf
      %4034 = vmax.xlane.f32.xlu0 %v4033
      %v4035 = vpop.xlane.xlu0 %4034
      %vm4036 = vcmp.eq.f32.partialorder %v4023, %v4028
      %vm4037 = vcmp.eq.f32.partialorder %v4024, %v4030
      %vm4038 = vcmp.eq.f32.partialorder %v4025, %v4032
      %vm4039 = vcmp.eq.f32.partialorder %v4026, %v4035
      %v4040 = vsel %vm4036, %v3040, 128
      %v4041 = vsel %vm4037, %v3040, 128
      %v4042 = vsel %vm4038, %v3040, 128
      %v4043 = vsel %vm4039, %v3040, 128
      %v4044 = vand.u32 %v4040, 65535
      %v4045 = vshra.s32 %v4040, 16
      %v4046 = vcvt.s32.f32 %v4044
      %v4047 = vcvt.s32.f32 %v4045
      %4048 = vmin.xlane.f32.xlu0 %v4047
      %v4049 = vpop.xlane.xlu0 %4048
      %vm4050 = vcmp.eq.f32.partialorder %v4047, %v4049
      %v4051 = vsel %vm4050, %v4046, inf
      %4052 = vmin.xlane.f32.xlu0 %v4051
      %v4053 = vpop.xlane.xlu0 %4052
      %v4054 = vcvt.f32.s32 %v4053
      %v4055 = vcvt.f32.s32 %v4049
      %v4056 = vshll.u32 %v4055, 16
      %v4057 = vadd.s32 %v4056, %v4054
      %v4058 = vand.u32 %v4041, 65535
      %v4059 = vshra.s32 %v4041, 16
      %v4060 = vcvt.s32.f32 %v4058
      %v4061 = vcvt.s32.f32 %v4059
      %4062 = vmin.xlane.f32.xlu0 %v4061
      %v4063 = vpop.xlane.xlu0 %4062
      %vm4064 = vcmp.eq.f32.partialorder %v4061, %v4063
      %v4065 = vsel %vm4064, %v4060, inf
      %4066 = vmin.xlane.f32.xlu0 %v4065
      %v4067 = vpop.xlane.xlu0 %4066
      %v4068 = vcvt.f32.s32 %v4067
      %v4069 = vcvt.f32.s32 %v4063
      %v4070 = vshll.u32 %v4069, 16
      %v4071 = vadd.s32 %v4070, %v4068
      %v4072 = vand.u32 %v4042, 65535
      %v4073 = vshra.s32 %v4042, 16
      %v4074 = vcvt.s32.f32 %v4072
      %v4075 = vcvt.s32.f32 %v4073
      %4076 = vmin.xlane.f32.xlu0 %v4075
      %v4077 = vpop.xlane.xlu0 %4076
      %vm4078 = vcmp.eq.f32.partialorder %v4075, %v4077
      %v4079 = vsel %vm4078, %v4074, inf
      %4080 = vmin.xlane.f32.xlu0 %v4079
      %v4081 = vpop.xlane.xlu0 %4080
      %v4082 = vcvt.f32.s32 %v4081
      %v4083 = vcvt.f32.s32 %v4077
      %v4084 = vshll.u32 %v4083, 16
      %v4085 = vadd.s32 %v4084, %v4082
      %v4086 = vsel %vm3052, %v4043, 2147483647
      %v4087 = vand.u32 %v4086, 65535
      %v4088 = vshra.s32 %v4086, 16
      %v4089 = vcvt.s32.f32 %v4087
      %v4090 = vcvt.s32.f32 %v4088
      %4091 = vmin.xlane.f32.xlu0 %v4090
      %v4092 = vpop.xlane.xlu0 %4091
      %vm4093 = vcmp.eq.f32.partialorder %v4090, %v4092
      %v4094 = vsel %vm4093, %v4089, inf
      %4095 = vmin.xlane.f32.xlu0 %v4094
      %v4096 = vpop.xlane.xlu0 %4095
      %v4097 = vcvt.f32.s32 %v4096
      %v4098 = vcvt.f32.s32 %v4092
      %v4099 = vshll.u32 %v4098, 16
      %v4100 = vadd.s32 %v4099, %v4097
      %vm4101 = vcmp.eq.s32.totalorder %v3040, %v4057
      %vm4102 = vcmp.eq.s32.totalorder %v3040, %v4071
      %vm4103 = vcmp.eq.s32.totalorder %v3040, %v4085
      %vm4104 = vcmp.eq.s32.totalorder %v3040, %v4100
      %v4105 = vsel %vm4101, 1, 0
      %v4106 = vsel %vm4102, 1, 0
      %v4107 = vsel %vm4103, 1, 0
      %v4108 = vsel %vm4104, 1, 0
      %v4109 = vcvt.s32.f32 %v4105
      %v4110 = vcvt.s32.f32 %v4106
      %v4111 = vcvt.s32.f32 %v4107
      %v4112 = vcvt.s32.f32 %v4108
      %v4113 = vmax.f32 %v4015, %v4109
      %v4114 = vmax.f32 %v4016, %v4110
      %v4115 = vmax.f32 %v4017, %v4111
      %v4116 = vmax.f32 %v4018, %v4112
      %vm4117 = vcmp.gt.f32.partialorder %v4113, 0.0
      %vm4118 = vcmp.gt.f32.partialorder %v4114, 0.0
      %vm4119 = vcmp.gt.f32.partialorder %v4115, 0.0
      %vm4120 = vcmp.gt.f32.partialorder %v4116, 0.0
      %v4121 = vsel %vm4117, -inf, %v3035
      %v4122 = vsel %vm4118, -inf, %v3036
      %v4123 = vsel %vm4119, -inf, %v3037
      %v4124 = vsel %vm4120, -inf, %v3038
      %4125 = vmax.xlane.f32.xlu0 %v4121
      %v4126 = vpop.xlane.xlu0 %4125
      %4127 = vmax.xlane.f32.xlu0 %v4122
      %v4128 = vpop.xlane.xlu0 %4127
      %4129 = vmax.xlane.f32.xlu0 %v4123
      %v4130 = vpop.xlane.xlu0 %4129
      %v4131 = vsel %vm3052, %v4124, -inf
      %4132 = vmax.xlane.f32.xlu0 %v4131
      %v4133 = vpop.xlane.xlu0 %4132
      %vm4134 = vcmp.eq.f32.partialorder %v4121, %v4126
      %vm4135 = vcmp.eq.f32.partialorder %v4122, %v4128
      %vm4136 = vcmp.eq.f32.partialorder %v4123, %v4130
      %vm4137 = vcmp.eq.f32.partialorder %v4124, %v4133
      %v4138 = vsel %vm4134, %v3040, 128
      %v4139 = vsel %vm4135, %v3040, 128
      %v4140 = vsel %vm4136, %v3040, 128
      %v4141 = vsel %vm4137, %v3040, 128
      %v4142 = vand.u32 %v4138, 65535
      %v4143 = vshra.s32 %v4138, 16
      %v4144 = vcvt.s32.f32 %v4142
      %v4145 = vcvt.s32.f32 %v4143
      %4146 = vmin.xlane.f32.xlu0 %v4145
      %v4147 = vpop.xlane.xlu0 %4146
      %vm4148 = vcmp.eq.f32.partialorder %v4145, %v4147
      %v4149 = vsel %vm4148, %v4144, inf
      %4150 = vmin.xlane.f32.xlu0 %v4149
      %v4151 = vpop.xlane.xlu0 %4150
      %v4152 = vcvt.f32.s32 %v4151
      %v4153 = vcvt.f32.s32 %v4147
      %v4154 = vshll.u32 %v4153, 16
      %v4155 = vadd.s32 %v4154, %v4152
      %v4156 = vand.u32 %v4139, 65535
      %v4157 = vshra.s32 %v4139, 16
      %v4158 = vcvt.s32.f32 %v4156
      %v4159 = vcvt.s32.f32 %v4157
      %4160 = vmin.xlane.f32.xlu0 %v4159
      %v4161 = vpop.xlane.xlu0 %4160
      %vm4162 = vcmp.eq.f32.partialorder %v4159, %v4161
      %v4163 = vsel %vm4162, %v4158, inf
      %4164 = vmin.xlane.f32.xlu0 %v4163
      %v4165 = vpop.xlane.xlu0 %4164
      %v4166 = vcvt.f32.s32 %v4165
      %v4167 = vcvt.f32.s32 %v4161
      %v4168 = vshll.u32 %v4167, 16
      %v4169 = vadd.s32 %v4168, %v4166
      %v4170 = vand.u32 %v4140, 65535
      %v4171 = vshra.s32 %v4140, 16
      %v4172 = vcvt.s32.f32 %v4170
      %v4173 = vcvt.s32.f32 %v4171
      %4174 = vmin.xlane.f32.xlu0 %v4173
      %v4175 = vpop.xlane.xlu0 %4174
      %vm4176 = vcmp.eq.f32.partialorder %v4173, %v4175
      %v4177 = vsel %vm4176, %v4172, inf
      %4178 = vmin.xlane.f32.xlu0 %v4177
      %v4179 = vpop.xlane.xlu0 %4178
      %v4180 = vcvt.f32.s32 %v4179
      %v4181 = vcvt.f32.s32 %v4175
      %v4182 = vshll.u32 %v4181, 16
      %v4183 = vadd.s32 %v4182, %v4180
      %v4184 = vsel %vm3052, %v4141, 2147483647
      %v4185 = vand.u32 %v4184, 65535
      %v4186 = vshra.s32 %v4184, 16
      %v4187 = vcvt.s32.f32 %v4185
      %v4188 = vcvt.s32.f32 %v4186
      %4189 = vmin.xlane.f32.xlu0 %v4188
      %v4190 = vpop.xlane.xlu0 %4189
      %vm4191 = vcmp.eq.f32.partialorder %v4188, %v4190
      %v4192 = vsel %vm4191, %v4187, inf
      %4193 = vmin.xlane.f32.xlu0 %v4192
      %v4194 = vpop.xlane.xlu0 %4193
      %v4195 = vcvt.f32.s32 %v4194
      %v4196 = vcvt.f32.s32 %v4190
      %v4197 = vshll.u32 %v4196, 16
      %v4198 = vadd.s32 %v4197, %v4195
      %vm4199 = vcmp.eq.s32.totalorder %v3040, %v4155
      %vm4200 = vcmp.eq.s32.totalorder %v3040, %v4169
      %vm4201 = vcmp.eq.s32.totalorder %v3040, %v4183
      %vm4202 = vcmp.eq.s32.totalorder %v3040, %v4198
      %v4203 = vsel %vm4199, 1, 0
      %v4204 = vsel %vm4200, 1, 0
      %v4205 = vsel %vm4201, 1, 0
      %v4206 = vsel %vm4202, 1, 0
      %v4207 = vcvt.s32.f32 %v4203
      %v4208 = vcvt.s32.f32 %v4204
      %v4209 = vcvt.s32.f32 %v4205
      %v4210 = vcvt.s32.f32 %v4206
      %v4211 = vmax.f32 %v4113, %v4207
      %v4212 = vmax.f32 %v4114, %v4208
      %v4213 = vmax.f32 %v4115, %v4209
      %v4214 = vmax.f32 %v4116, %v4210
      %vm4215 = vcmp.gt.f32.partialorder %v4211, 0.0
      %vm4216 = vcmp.gt.f32.partialorder %v4212, 0.0
      %vm4217 = vcmp.gt.f32.partialorder %v4213, 0.0
      %vm4218 = vcmp.gt.f32.partialorder %v4214, 0.0
      %v4219 = vsel %vm4215, -inf, %v3035
      %v4220 = vsel %vm4216, -inf, %v3036
      %v4221 = vsel %vm4217, -inf, %v3037
      %v4222 = vsel %vm4218, -inf, %v3038
      %4223 = vmax.xlane.f32.xlu0 %v4219
      %v4224 = vpop.xlane.xlu0 %4223
      %4225 = vmax.xlane.f32.xlu0 %v4220
      %v4226 = vpop.xlane.xlu0 %4225
      %4227 = vmax.xlane.f32.xlu0 %v4221
      %v4228 = vpop.xlane.xlu0 %4227
      %v4229 = vsel %vm3052, %v4222, -inf
      %4230 = vmax.xlane.f32.xlu0 %v4229
      %v4231 = vpop.xlane.xlu0 %4230
      %vm4232 = vcmp.eq.f32.partialorder %v4219, %v4224
      %vm4233 = vcmp.eq.f32.partialorder %v4220, %v4226
      %vm4234 = vcmp.eq.f32.partialorder %v4221, %v4228
      %vm4235 = vcmp.eq.f32.partialorder %v4222, %v4231
      %v4236 = vsel %vm4232, %v3040, 128
      %v4237 = vsel %vm4233, %v3040, 128
      %v4238 = vsel %vm4234, %v3040, 128
      %v4239 = vsel %vm4235, %v3040, 128
      %v4240 = vand.u32 %v4236, 65535
      %v4241 = vshra.s32 %v4236, 16
      %v4242 = vcvt.s32.f32 %v4240
      %v4243 = vcvt.s32.f32 %v4241
      %4244 = vmin.xlane.f32.xlu0 %v4243
      %v4245 = vpop.xlane.xlu0 %4244
      %vm4246 = vcmp.eq.f32.partialorder %v4243, %v4245
      %v4247 = vsel %vm4246, %v4242, inf
      %4248 = vmin.xlane.f32.xlu0 %v4247
      %v4249 = vpop.xlane.xlu0 %4248
      %v4250 = vcvt.f32.s32 %v4249
      %v4251 = vcvt.f32.s32 %v4245
      %v4252 = vshll.u32 %v4251, 16
      %v4253 = vadd.s32 %v4252, %v4250
      %v4254 = vand.u32 %v4237, 65535
      %v4255 = vshra.s32 %v4237, 16
      %v4256 = vcvt.s32.f32 %v4254
      %v4257 = vcvt.s32.f32 %v4255
      %4258 = vmin.xlane.f32.xlu0 %v4257
      %v4259 = vpop.xlane.xlu0 %4258
      %vm4260 = vcmp.eq.f32.partialorder %v4257, %v4259
      %v4261 = vsel %vm4260, %v4256, inf
      %4262 = vmin.xlane.f32.xlu0 %v4261
      %v4263 = vpop.xlane.xlu0 %4262
      %v4264 = vcvt.f32.s32 %v4263
      %v4265 = vcvt.f32.s32 %v4259
      %v4266 = vshll.u32 %v4265, 16
      %v4267 = vadd.s32 %v4266, %v4264
      %v4268 = vand.u32 %v4238, 65535
      %v4269 = vshra.s32 %v4238, 16
      %v4270 = vcvt.s32.f32 %v4268
      %v4271 = vcvt.s32.f32 %v4269
      %4272 = vmin.xlane.f32.xlu0 %v4271
      %v4273 = vpop.xlane.xlu0 %4272
      %vm4274 = vcmp.eq.f32.partialorder %v4271, %v4273
      %v4275 = vsel %vm4274, %v4270, inf
      %4276 = vmin.xlane.f32.xlu0 %v4275
      %v4277 = vpop.xlane.xlu0 %4276
      %v4278 = vcvt.f32.s32 %v4277
      %v4279 = vcvt.f32.s32 %v4273
      %v4280 = vshll.u32 %v4279, 16
      %v4281 = vadd.s32 %v4280, %v4278
      %v4282 = vsel %vm3052, %v4239, 2147483647
      %v4283 = vand.u32 %v4282, 65535
      %v4284 = vshra.s32 %v4282, 16
      %v4285 = vcvt.s32.f32 %v4283
      %v4286 = vcvt.s32.f32 %v4284
      %4287 = vmin.xlane.f32.xlu0 %v4286
      %v4288 = vpop.xlane.xlu0 %4287
      %vm4289 = vcmp.eq.f32.partialorder %v4286, %v4288
      %v4290 = vsel %vm4289, %v4285, inf
      %4291 = vmin.xlane.f32.xlu0 %v4290
      %v4292 = vpop.xlane.xlu0 %4291
      %v4293 = vcvt.f32.s32 %v4292
      %v4294 = vcvt.f32.s32 %v4288
      %v4295 = vshll.u32 %v4294, 16
      %v4296 = vadd.s32 %v4295, %v4293
      %vm4297 = vcmp.eq.s32.totalorder %v3040, %v4253
      %vm4298 = vcmp.eq.s32.totalorder %v3040, %v4267
      %vm4299 = vcmp.eq.s32.totalorder %v3040, %v4281
      %vm4300 = vcmp.eq.s32.totalorder %v3040, %v4296
      %v4301 = vsel %vm4297, 1, 0
      %v4302 = vsel %vm4298, 1, 0
      %v4303 = vsel %vm4299, 1, 0
      %v4304 = vsel %vm4300, 1, 0
      %v4305 = vcvt.s32.f32 %v4301
      %v4306 = vcvt.s32.f32 %v4302
      %v4307 = vcvt.s32.f32 %v4303
      %v4308 = vcvt.s32.f32 %v4304
      %v4309 = vmax.f32 %v4211, %v4305
      %v4310 = vmax.f32 %v4212, %v4306
      %v4311 = vmax.f32 %v4213, %v4307
      %v4312 = vmax.f32 %v4214, %v4308
      %vm4313 = vcmp.gt.f32.partialorder %v4309, 0.0
      %vm4314 = vcmp.gt.f32.partialorder %v4310, 0.0
      %vm4315 = vcmp.gt.f32.partialorder %v4311, 0.0
      %vm4316 = vcmp.gt.f32.partialorder %v4312, 0.0
      %v4317 = vsel %vm4313, -inf, %v3035
      %v4318 = vsel %vm4314, -inf, %v3036
      %v4319 = vsel %vm4315, -inf, %v3037
      %v4320 = vsel %vm4316, -inf, %v3038
      %4321 = vmax.xlane.f32.xlu0 %v4317
      %v4322 = vpop.xlane.xlu0 %4321
      %4323 = vmax.xlane.f32.xlu0 %v4318
      %v4324 = vpop.xlane.xlu0 %4323
      %4325 = vmax.xlane.f32.xlu0 %v4319
      %v4326 = vpop.xlane.xlu0 %4325
      %v4327 = vsel %vm3052, %v4320, -inf
      %4328 = vmax.xlane.f32.xlu0 %v4327
      %v4329 = vpop.xlane.xlu0 %4328
      %vm4330 = vcmp.eq.f32.partialorder %v4317, %v4322
      %vm4331 = vcmp.eq.f32.partialorder %v4318, %v4324
      %vm4332 = vcmp.eq.f32.partialorder %v4319, %v4326
      %vm4333 = vcmp.eq.f32.partialorder %v4320, %v4329
      %v4334 = vsel %vm4330, %v3040, 128
      %v4335 = vsel %vm4331, %v3040, 128
      %v4336 = vsel %vm4332, %v3040, 128
      %v4337 = vsel %vm4333, %v3040, 128
      %v4338 = vand.u32 %v4334, 65535
      %v4339 = vshra.s32 %v4334, 16
      %v4340 = vcvt.s32.f32 %v4338
      %v4341 = vcvt.s32.f32 %v4339
      %4342 = vmin.xlane.f32.xlu0 %v4341
      %v4343 = vpop.xlane.xlu0 %4342
      %vm4344 = vcmp.eq.f32.partialorder %v4341, %v4343
      %v4345 = vsel %vm4344, %v4340, inf
      %4346 = vmin.xlane.f32.xlu0 %v4345
      %v4347 = vpop.xlane.xlu0 %4346
      %v4348 = vcvt.f32.s32 %v4347
      %v4349 = vcvt.f32.s32 %v4343
      %v4350 = vshll.u32 %v4349, 16
      %v4351 = vadd.s32 %v4350, %v4348
      %v4352 = vand.u32 %v4335, 65535
      %v4353 = vshra.s32 %v4335, 16
      %v4354 = vcvt.s32.f32 %v4352
      %v4355 = vcvt.s32.f32 %v4353
      %4356 = vmin.xlane.f32.xlu0 %v4355
      %v4357 = vpop.xlane.xlu0 %4356
      %vm4358 = vcmp.eq.f32.partialorder %v4355, %v4357
      %v4359 = vsel %vm4358, %v4354, inf
      %4360 = vmin.xlane.f32.xlu0 %v4359
      %v4361 = vpop.xlane.xlu0 %4360
      %v4362 = vcvt.f32.s32 %v4361
      %v4363 = vcvt.f32.s32 %v4357
      %v4364 = vshll.u32 %v4363, 16
      %v4365 = vadd.s32 %v4364, %v4362
      %v4366 = vand.u32 %v4336, 65535
      %v4367 = vshra.s32 %v4336, 16
      %v4368 = vcvt.s32.f32 %v4366
      %v4369 = vcvt.s32.f32 %v4367
      %4370 = vmin.xlane.f32.xlu0 %v4369
      %v4371 = vpop.xlane.xlu0 %4370
      %vm4372 = vcmp.eq.f32.partialorder %v4369, %v4371
      %v4373 = vsel %vm4372, %v4368, inf
      %4374 = vmin.xlane.f32.xlu0 %v4373
      %v4375 = vpop.xlane.xlu0 %4374
      %v4376 = vcvt.f32.s32 %v4375
      %v4377 = vcvt.f32.s32 %v4371
      %v4378 = vshll.u32 %v4377, 16
      %v4379 = vadd.s32 %v4378, %v4376
      %v4380 = vsel %vm3052, %v4337, 2147483647
      %v4381 = vand.u32 %v4380, 65535
      %v4382 = vshra.s32 %v4380, 16
      %v4383 = vcvt.s32.f32 %v4381
      %v4384 = vcvt.s32.f32 %v4382
      %4385 = vmin.xlane.f32.xlu0 %v4384
      %v4386 = vpop.xlane.xlu0 %4385
      %vm4387 = vcmp.eq.f32.partialorder %v4384, %v4386
      %v4388 = vsel %vm4387, %v4383, inf
      %4389 = vmin.xlane.f32.xlu0 %v4388
      %v4390 = vpop.xlane.xlu0 %4389
      %v4391 = vcvt.f32.s32 %v4390
      %v4392 = vcvt.f32.s32 %v4386
      %v4393 = vshll.u32 %v4392, 16
      %v4394 = vadd.s32 %v4393, %v4391
      %vm4395 = vcmp.eq.s32.totalorder %v3040, %v4351
      %vm4396 = vcmp.eq.s32.totalorder %v3040, %v4365
      %vm4397 = vcmp.eq.s32.totalorder %v3040, %v4379
      %vm4398 = vcmp.eq.s32.totalorder %v3040, %v4394
      %v4399 = vsel %vm4395, 1, 0
      %v4400 = vsel %vm4396, 1, 0
      %v4401 = vsel %vm4397, 1, 0
      %v4402 = vsel %vm4398, 1, 0
      %v4403 = vcvt.s32.f32 %v4399
      %v4404 = vcvt.s32.f32 %v4400
      %v4405 = vcvt.s32.f32 %v4401
      %v4406 = vcvt.s32.f32 %v4402
      %v4407 = vmax.f32 %v4309, %v4403
      %v4408 = vmax.f32 %v4310, %v4404
      %v4409 = vmax.f32 %v4311, %v4405
      %v4410 = vmax.f32 %v4312, %v4406
      %vm4411 = vcmp.gt.f32.partialorder %v4407, 0.0
      %vm4412 = vcmp.gt.f32.partialorder %v4408, 0.0
      %vm4413 = vcmp.gt.f32.partialorder %v4409, 0.0
      %vm4414 = vcmp.gt.f32.partialorder %v4410, 0.0
      %v4415 = vsel %vm4411, -inf, %v3035
      %v4416 = vsel %vm4412, -inf, %v3036
      %v4417 = vsel %vm4413, -inf, %v3037
      %v4418 = vsel %vm4414, -inf, %v3038
      %4419 = vmax.xlane.f32.xlu0 %v4415
      %v4420 = vpop.xlane.xlu0 %4419
      %4421 = vmax.xlane.f32.xlu0 %v4416
      %v4422 = vpop.xlane.xlu0 %4421
      %4423 = vmax.xlane.f32.xlu0 %v4417
      %v4424 = vpop.xlane.xlu0 %4423
      %v4425 = vsel %vm3052, %v4418, -inf
      %4426 = vmax.xlane.f32.xlu0 %v4425
      %v4427 = vpop.xlane.xlu0 %4426
      %vm4428 = vcmp.eq.f32.partialorder %v4415, %v4420
      %vm4429 = vcmp.eq.f32.partialorder %v4416, %v4422
      %vm4430 = vcmp.eq.f32.partialorder %v4417, %v4424
      %vm4431 = vcmp.eq.f32.partialorder %v4418, %v4427
      %v4432 = vsel %vm4428, %v3040, 128
      %v4433 = vsel %vm4429, %v3040, 128
      %v4434 = vsel %vm4430, %v3040, 128
      %v4435 = vsel %vm4431, %v3040, 128
      %v4436 = vand.u32 %v4432, 65535
      %v4437 = vshra.s32 %v4432, 16
      %v4438 = vcvt.s32.f32 %v4436
      %v4439 = vcvt.s32.f32 %v4437
      %4440 = vmin.xlane.f32.xlu0 %v4439
      %v4441 = vpop.xlane.xlu0 %4440
      %vm4442 = vcmp.eq.f32.partialorder %v4439, %v4441
      %v4443 = vsel %vm4442, %v4438, inf
      %4444 = vmin.xlane.f32.xlu0 %v4443
      %v4445 = vpop.xlane.xlu0 %4444
      %v4446 = vcvt.f32.s32 %v4445
      %v4447 = vcvt.f32.s32 %v4441
      %v4448 = vshll.u32 %v4447, 16
      %v4449 = vadd.s32 %v4448, %v4446
      %v4450 = vand.u32 %v4433, 65535
      %v4451 = vshra.s32 %v4433, 16
      %v4452 = vcvt.s32.f32 %v4450
      %v4453 = vcvt.s32.f32 %v4451
      %4454 = vmin.xlane.f32.xlu0 %v4453
      %v4455 = vpop.xlane.xlu0 %4454
      %vm4456 = vcmp.eq.f32.partialorder %v4453, %v4455
      %v4457 = vsel %vm4456, %v4452, inf
      %4458 = vmin.xlane.f32.xlu0 %v4457
      %v4459 = vpop.xlane.xlu0 %4458
      %v4460 = vcvt.f32.s32 %v4459
      %v4461 = vcvt.f32.s32 %v4455
      %v4462 = vshll.u32 %v4461, 16
      %v4463 = vadd.s32 %v4462, %v4460
      %v4464 = vand.u32 %v4434, 65535
      %v4465 = vshra.s32 %v4434, 16
      %v4466 = vcvt.s32.f32 %v4464
      %v4467 = vcvt.s32.f32 %v4465
      %4468 = vmin.xlane.f32.xlu0 %v4467
      %v4469 = vpop.xlane.xlu0 %4468
      %vm4470 = vcmp.eq.f32.partialorder %v4467, %v4469
      %v4471 = vsel %vm4470, %v4466, inf
      %4472 = vmin.xlane.f32.xlu0 %v4471
      %v4473 = vpop.xlane.xlu0 %4472
      %v4474 = vcvt.f32.s32 %v4473
      %v4475 = vcvt.f32.s32 %v4469
      %v4476 = vshll.u32 %v4475, 16
      %v4477 = vadd.s32 %v4476, %v4474
      %v4478 = vsel %vm3052, %v4435, 2147483647
      %v4479 = vand.u32 %v4478, 65535
      %v4480 = vshra.s32 %v4478, 16
      %v4481 = vcvt.s32.f32 %v4479
      %v4482 = vcvt.s32.f32 %v4480
      %4483 = vmin.xlane.f32.xlu0 %v4482
      %v4484 = vpop.xlane.xlu0 %4483
      %vm4485 = vcmp.eq.f32.partialorder %v4482, %v4484
      %v4486 = vsel %vm4485, %v4481, inf
      %4487 = vmin.xlane.f32.xlu0 %v4486
      %v4488 = vpop.xlane.xlu0 %4487
      %v4489 = vcvt.f32.s32 %v4488
      %v4490 = vcvt.f32.s32 %v4484
      %v4491 = vshll.u32 %v4490, 16
      %v4492 = vadd.s32 %v4491, %v4489
      %vm4493 = vcmp.eq.s32.totalorder %v3040, %v4449
      %vm4494 = vcmp.eq.s32.totalorder %v3040, %v4463
      %vm4495 = vcmp.eq.s32.totalorder %v3040, %v4477
      %vm4496 = vcmp.eq.s32.totalorder %v3040, %v4492
      %v4497 = vsel %vm4493, 1, 0
      %v4498 = vsel %vm4494, 1, 0
      %v4499 = vsel %vm4495, 1, 0
      %v4500 = vsel %vm4496, 1, 0
      %v4501 = vcvt.s32.f32 %v4497
      %v4502 = vcvt.s32.f32 %v4498
      %v4503 = vcvt.s32.f32 %v4499
      %v4504 = vcvt.s32.f32 %v4500
      %v4505 = vmax.f32 %v4407, %v4501
      %v4506 = vmax.f32 %v4408, %v4502
      %v4507 = vmax.f32 %v4409, %v4503
      %v4508 = vmax.f32 %v4410, %v4504
      %vm4509 = vcmp.gt.f32.partialorder %v4505, 0.0
      %vm4510 = vcmp.gt.f32.partialorder %v4506, 0.0
      %vm4511 = vcmp.gt.f32.partialorder %v4507, 0.0
      %vm4512 = vcmp.gt.f32.partialorder %v4508, 0.0
      %v4513 = vsel %vm4509, -inf, %v3035
      %v4514 = vsel %vm4510, -inf, %v3036
      %v4515 = vsel %vm4511, -inf, %v3037
      %v4516 = vsel %vm4512, -inf, %v3038
      %4517 = vmax.xlane.f32.xlu0 %v4513
      %v4518 = vpop.xlane.xlu0 %4517
      %4519 = vmax.xlane.f32.xlu0 %v4514
      %v4520 = vpop.xlane.xlu0 %4519
      %4521 = vmax.xlane.f32.xlu0 %v4515
      %v4522 = vpop.xlane.xlu0 %4521
      %v4523 = vsel %vm3052, %v4516, -inf
      %4524 = vmax.xlane.f32.xlu0 %v4523
      %v4525 = vpop.xlane.xlu0 %4524
      %vm4526 = vcmp.eq.f32.partialorder %v4513, %v4518
      %vm4527 = vcmp.eq.f32.partialorder %v4514, %v4520
      %vm4528 = vcmp.eq.f32.partialorder %v4515, %v4522
      %vm4529 = vcmp.eq.f32.partialorder %v4516, %v4525
      %v4530 = vsel %vm4526, %v3040, 128
      %v4531 = vsel %vm4527, %v3040, 128
      %v4532 = vsel %vm4528, %v3040, 128
      %v4533 = vsel %vm4529, %v3040, 128
      %v4534 = vand.u32 %v4530, 65535
      %v4535 = vshra.s32 %v4530, 16
      %v4536 = vcvt.s32.f32 %v4534
      %v4537 = vcvt.s32.f32 %v4535
      %4538 = vmin.xlane.f32.xlu0 %v4537
      %v4539 = vpop.xlane.xlu0 %4538
      %vm4540 = vcmp.eq.f32.partialorder %v4537, %v4539
      %v4541 = vsel %vm4540, %v4536, inf
      %4542 = vmin.xlane.f32.xlu0 %v4541
      %v4543 = vpop.xlane.xlu0 %4542
      %v4544 = vcvt.f32.s32 %v4543
      %v4545 = vcvt.f32.s32 %v4539
      %v4546 = vshll.u32 %v4545, 16
      %v4547 = vadd.s32 %v4546, %v4544
      %v4548 = vand.u32 %v4531, 65535
      %v4549 = vshra.s32 %v4531, 16
      %v4550 = vcvt.s32.f32 %v4548
      %v4551 = vcvt.s32.f32 %v4549
      %4552 = vmin.xlane.f32.xlu0 %v4551
      %v4553 = vpop.xlane.xlu0 %4552
      %vm4554 = vcmp.eq.f32.partialorder %v4551, %v4553
      %v4555 = vsel %vm4554, %v4550, inf
      %4556 = vmin.xlane.f32.xlu0 %v4555
      %v4557 = vpop.xlane.xlu0 %4556
      %v4558 = vcvt.f32.s32 %v4557
      %v4559 = vcvt.f32.s32 %v4553
      %v4560 = vshll.u32 %v4559, 16
      %v4561 = vadd.s32 %v4560, %v4558
      %v4562 = vand.u32 %v4532, 65535
      %v4563 = vshra.s32 %v4532, 16
      %v4564 = vcvt.s32.f32 %v4562
      %v4565 = vcvt.s32.f32 %v4563
      %4566 = vmin.xlane.f32.xlu0 %v4565
      %v4567 = vpop.xlane.xlu0 %4566
      %vm4568 = vcmp.eq.f32.partialorder %v4565, %v4567
      %v4569 = vsel %vm4568, %v4564, inf
      %4570 = vmin.xlane.f32.xlu0 %v4569
      %v4571 = vpop.xlane.xlu0 %4570
      %v4572 = vcvt.f32.s32 %v4571
      %v4573 = vcvt.f32.s32 %v4567
      %v4574 = vshll.u32 %v4573, 16
      %v4575 = vadd.s32 %v4574, %v4572
      %v4576 = vsel %vm3052, %v4533, 2147483647
      %v4577 = vand.u32 %v4576, 65535
      %v4578 = vshra.s32 %v4576, 16
      %v4579 = vcvt.s32.f32 %v4577
      %v4580 = vcvt.s32.f32 %v4578
      %4581 = vmin.xlane.f32.xlu0 %v4580
      %v4582 = vpop.xlane.xlu0 %4581
      %vm4583 = vcmp.eq.f32.partialorder %v4580, %v4582
      %v4584 = vsel %vm4583, %v4579, inf
      %4585 = vmin.xlane.f32.xlu0 %v4584
      %v4586 = vpop.xlane.xlu0 %4585
      %v4587 = vcvt.f32.s32 %v4586
      %v4588 = vcvt.f32.s32 %v4582
      %v4589 = vshll.u32 %v4588, 16
      %v4590 = vadd.s32 %v4589, %v4587
      %vm4591 = vcmp.eq.s32.totalorder %v3040, %v4547
      %vm4592 = vcmp.eq.s32.totalorder %v3040, %v4561
      %vm4593 = vcmp.eq.s32.totalorder %v3040, %v4575
      %vm4594 = vcmp.eq.s32.totalorder %v3040, %v4590
      %v4595 = vsel %vm4591, 1, 0
      %v4596 = vsel %vm4592, 1, 0
      %v4597 = vsel %vm4593, 1, 0
      %v4598 = vsel %vm4594, 1, 0
      %v4599 = vcvt.s32.f32 %v4595
      %v4600 = vcvt.s32.f32 %v4596
      %v4601 = vcvt.s32.f32 %v4597
      %v4602 = vcvt.s32.f32 %v4598
      %v4603 = vmax.f32 %v4505, %v4599
      %v4604 = vmax.f32 %v4506, %v4600
      %v4605 = vmax.f32 %v4507, %v4601
      %v4606 = vmax.f32 %v4508, %v4602
      %vm4607 = vcmp.gt.f32.partialorder %v4603, 0.0
      %vm4608 = vcmp.gt.f32.partialorder %v4604, 0.0
      %vm4609 = vcmp.gt.f32.partialorder %v4605, 0.0
      %vm4610 = vcmp.gt.f32.partialorder %v4606, 0.0
      %v4611 = vsel %vm4607, -inf, %v3035
      %v4612 = vsel %vm4608, -inf, %v3036
      %v4613 = vsel %vm4609, -inf, %v3037
      %v4614 = vsel %vm4610, -inf, %v3038
      %4615 = vmax.xlane.f32.xlu0 %v4611
      %v4616 = vpop.xlane.xlu0 %4615
      %4617 = vmax.xlane.f32.xlu0 %v4612
      %v4618 = vpop.xlane.xlu0 %4617
      %4619 = vmax.xlane.f32.xlu0 %v4613
      %v4620 = vpop.xlane.xlu0 %4619
      %v4621 = vsel %vm3052, %v4614, -inf
      %4622 = vmax.xlane.f32.xlu0 %v4621
      %v4623 = vpop.xlane.xlu0 %4622
      %vm4624 = vcmp.eq.f32.partialorder %v4611, %v4616
      %vm4625 = vcmp.eq.f32.partialorder %v4612, %v4618
      %vm4626 = vcmp.eq.f32.partialorder %v4613, %v4620
      %vm4627 = vcmp.eq.f32.partialorder %v4614, %v4623
      %v4628 = vsel %vm4624, %v3040, 128
      %v4629 = vsel %vm4625, %v3040, 128
      %v4630 = vsel %vm4626, %v3040, 128
      %v4631 = vsel %vm4627, %v3040, 128
      %v4632 = vand.u32 %v4628, 65535
      %v4633 = vshra.s32 %v4628, 16
      %v4634 = vcvt.s32.f32 %v4632
      %v4635 = vcvt.s32.f32 %v4633
      %4636 = vmin.xlane.f32.xlu0 %v4635
      %v4637 = vpop.xlane.xlu0 %4636
      %vm4638 = vcmp.eq.f32.partialorder %v4635, %v4637
      %v4639 = vsel %vm4638, %v4634, inf
      %4640 = vmin.xlane.f32.xlu0 %v4639
      %v4641 = vpop.xlane.xlu0 %4640
      %v4642 = vcvt.f32.s32 %v4641
      %v4643 = vcvt.f32.s32 %v4637
      %v4644 = vshll.u32 %v4643, 16
      %v4645 = vadd.s32 %v4644, %v4642
      %v4646 = vand.u32 %v4629, 65535
      %v4647 = vshra.s32 %v4629, 16
      %v4648 = vcvt.s32.f32 %v4646
      %v4649 = vcvt.s32.f32 %v4647
      %4650 = vmin.xlane.f32.xlu0 %v4649
      %v4651 = vpop.xlane.xlu0 %4650
      %vm4652 = vcmp.eq.f32.partialorder %v4649, %v4651
      %v4653 = vsel %vm4652, %v4648, inf
      %4654 = vmin.xlane.f32.xlu0 %v4653
      %v4655 = vpop.xlane.xlu0 %4654
      %v4656 = vcvt.f32.s32 %v4655
      %v4657 = vcvt.f32.s32 %v4651
      %v4658 = vshll.u32 %v4657, 16
      %v4659 = vadd.s32 %v4658, %v4656
      %v4660 = vand.u32 %v4630, 65535
      %v4661 = vshra.s32 %v4630, 16
      %v4662 = vcvt.s32.f32 %v4660
      %v4663 = vcvt.s32.f32 %v4661
      %4664 = vmin.xlane.f32.xlu0 %v4663
      %v4665 = vpop.xlane.xlu0 %4664
      %vm4666 = vcmp.eq.f32.partialorder %v4663, %v4665
      %v4667 = vsel %vm4666, %v4662, inf
      %4668 = vmin.xlane.f32.xlu0 %v4667
      %v4669 = vpop.xlane.xlu0 %4668
      %v4670 = vcvt.f32.s32 %v4669
      %v4671 = vcvt.f32.s32 %v4665
      %v4672 = vshll.u32 %v4671, 16
      %v4673 = vadd.s32 %v4672, %v4670
      %v4674 = vsel %vm3052, %v4631, 2147483647
      %v4675 = vand.u32 %v4674, 65535
      %v4676 = vshra.s32 %v4674, 16
      %v4677 = vcvt.s32.f32 %v4675
      %v4678 = vcvt.s32.f32 %v4676
      %4679 = vmin.xlane.f32.xlu0 %v4678
      %v4680 = vpop.xlane.xlu0 %4679
      %vm4681 = vcmp.eq.f32.partialorder %v4678, %v4680
      %v4682 = vsel %vm4681, %v4677, inf
      %4683 = vmin.xlane.f32.xlu0 %v4682
      %v4684 = vpop.xlane.xlu0 %4683
      %v4685 = vcvt.f32.s32 %v4684
      %v4686 = vcvt.f32.s32 %v4680
      %v4687 = vshll.u32 %v4686, 16
      %v4688 = vadd.s32 %v4687, %v4685
      %vm4689 = vcmp.eq.s32.totalorder %v3040, %v4645
      %vm4690 = vcmp.eq.s32.totalorder %v3040, %v4659
      %vm4691 = vcmp.eq.s32.totalorder %v3040, %v4673
      %vm4692 = vcmp.eq.s32.totalorder %v3040, %v4688
      %v4693 = vsel %vm4689, 1, 0
      %v4694 = vsel %vm4690, 1, 0
      %v4695 = vsel %vm4691, 1, 0
      %v4696 = vsel %vm4692, 1, 0
      %v4697 = vcvt.s32.f32 %v4693
      %v4698 = vcvt.s32.f32 %v4694
      %v4699 = vcvt.s32.f32 %v4695
      %v4700 = vcvt.s32.f32 %v4696
      %v4701 = vmax.f32 %v4603, %v4697
      %v4702 = vmax.f32 %v4604, %v4698
      %v4703 = vmax.f32 %v4605, %v4699
      %v4704 = vmax.f32 %v4606, %v4700
      %vm4705 = vcmp.gt.f32.partialorder %v4701, 0.0
      %vm4706 = vcmp.gt.f32.partialorder %v4702, 0.0
      %vm4707 = vcmp.gt.f32.partialorder %v4703, 0.0
      %vm4708 = vcmp.gt.f32.partialorder %v4704, 0.0
      %v4709 = vsel %vm4705, -inf, %v3035
      %v4710 = vsel %vm4706, -inf, %v3036
      %v4711 = vsel %vm4707, -inf, %v3037
      %v4712 = vsel %vm4708, -inf, %v3038
      %4713 = vmax.xlane.f32.xlu0 %v4709
      %v4714 = vpop.xlane.xlu0 %4713
      %4715 = vmax.xlane.f32.xlu0 %v4710
      %v4716 = vpop.xlane.xlu0 %4715
      %4717 = vmax.xlane.f32.xlu0 %v4711
      %v4718 = vpop.xlane.xlu0 %4717
      %v4719 = vsel %vm3052, %v4712, -inf
      %4720 = vmax.xlane.f32.xlu0 %v4719
      %v4721 = vpop.xlane.xlu0 %4720
      %vm4722 = vcmp.eq.f32.partialorder %v4709, %v4714
      %vm4723 = vcmp.eq.f32.partialorder %v4710, %v4716
      %vm4724 = vcmp.eq.f32.partialorder %v4711, %v4718
      %vm4725 = vcmp.eq.f32.partialorder %v4712, %v4721
      %v4726 = vsel %vm4722, %v3040, 128
      %v4727 = vsel %vm4723, %v3040, 128
      %v4728 = vsel %vm4724, %v3040, 128
      %v4729 = vsel %vm4725, %v3040, 128
      %v4730 = vand.u32 %v4726, 65535
      %v4731 = vshra.s32 %v4726, 16
      %v4732 = vcvt.s32.f32 %v4730
      %v4733 = vcvt.s32.f32 %v4731
      %4734 = vmin.xlane.f32.xlu0 %v4733
      %v4735 = vpop.xlane.xlu0 %4734
      %vm4736 = vcmp.eq.f32.partialorder %v4733, %v4735
      %v4737 = vsel %vm4736, %v4732, inf
      %4738 = vmin.xlane.f32.xlu0 %v4737
      %v4739 = vpop.xlane.xlu0 %4738
      %v4740 = vcvt.f32.s32 %v4739
      %v4741 = vcvt.f32.s32 %v4735
      %v4742 = vshll.u32 %v4741, 16
      %v4743 = vadd.s32 %v4742, %v4740
      %v4744 = vand.u32 %v4727, 65535
      %v4745 = vshra.s32 %v4727, 16
      %v4746 = vcvt.s32.f32 %v4744
      %v4747 = vcvt.s32.f32 %v4745
      %4748 = vmin.xlane.f32.xlu0 %v4747
      %v4749 = vpop.xlane.xlu0 %4748
      %vm4750 = vcmp.eq.f32.partialorder %v4747, %v4749
      %v4751 = vsel %vm4750, %v4746, inf
      %4752 = vmin.xlane.f32.xlu0 %v4751
      %v4753 = vpop.xlane.xlu0 %4752
      %v4754 = vcvt.f32.s32 %v4753
      %v4755 = vcvt.f32.s32 %v4749
      %v4756 = vshll.u32 %v4755, 16
      %v4757 = vadd.s32 %v4756, %v4754
      %v4758 = vand.u32 %v4728, 65535
      %v4759 = vshra.s32 %v4728, 16
      %v4760 = vcvt.s32.f32 %v4758
      %v4761 = vcvt.s32.f32 %v4759
      %4762 = vmin.xlane.f32.xlu0 %v4761
      %v4763 = vpop.xlane.xlu0 %4762
      %vm4764 = vcmp.eq.f32.partialorder %v4761, %v4763
      %v4765 = vsel %vm4764, %v4760, inf
      %4766 = vmin.xlane.f32.xlu0 %v4765
      %v4767 = vpop.xlane.xlu0 %4766
      %v4768 = vcvt.f32.s32 %v4767
      %v4769 = vcvt.f32.s32 %v4763
      %v4770 = vshll.u32 %v4769, 16
      %v4771 = vadd.s32 %v4770, %v4768
      %v4772 = vsel %vm3052, %v4729, 2147483647
      %v4773 = vand.u32 %v4772, 65535
      %v4774 = vshra.s32 %v4772, 16
      %v4775 = vcvt.s32.f32 %v4773
      %v4776 = vcvt.s32.f32 %v4774
      %4777 = vmin.xlane.f32.xlu0 %v4776
      %v4778 = vpop.xlane.xlu0 %4777
      %vm4779 = vcmp.eq.f32.partialorder %v4776, %v4778
      %v4780 = vsel %vm4779, %v4775, inf
      %4781 = vmin.xlane.f32.xlu0 %v4780
      %v4782 = vpop.xlane.xlu0 %4781
      %v4783 = vcvt.f32.s32 %v4782
      %v4784 = vcvt.f32.s32 %v4778
      %v4785 = vshll.u32 %v4784, 16
      %v4786 = vadd.s32 %v4785, %v4783
      %vm4787 = vcmp.eq.s32.totalorder %v3040, %v4743
      %vm4788 = vcmp.eq.s32.totalorder %v3040, %v4757
      %vm4789 = vcmp.eq.s32.totalorder %v3040, %v4771
      %vm4790 = vcmp.eq.s32.totalorder %v3040, %v4786
      %v4791 = vsel %vm4787, 1, 0
      %v4792 = vsel %vm4788, 1, 0
      %v4793 = vsel %vm4789, 1, 0
      %v4794 = vsel %vm4790, 1, 0
      %v4795 = vcvt.s32.f32 %v4791
      %v4796 = vcvt.s32.f32 %v4792
      %v4797 = vcvt.s32.f32 %v4793
      %v4798 = vcvt.s32.f32 %v4794
      %v4799 = vmax.f32 %v4701, %v4795
      %v4800 = vmax.f32 %v4702, %v4796
      %v4801 = vmax.f32 %v4703, %v4797
      %v4802 = vmax.f32 %v4704, %v4798
      %vm4803 = vcmp.gt.f32.partialorder %v4799, 0.0
      %vm4804 = vcmp.gt.f32.partialorder %v4800, 0.0
      %vm4805 = vcmp.gt.f32.partialorder %v4801, 0.0
      %vm4806 = vcmp.gt.f32.partialorder %v4802, 0.0
      %v4807 = vsel %vm4803, -inf, %v3035
      %v4808 = vsel %vm4804, -inf, %v3036
      %v4809 = vsel %vm4805, -inf, %v3037
      %v4810 = vsel %vm4806, -inf, %v3038
      %4811 = vmax.xlane.f32.xlu0 %v4807
      %v4812 = vpop.xlane.xlu0 %4811
      %4813 = vmax.xlane.f32.xlu0 %v4808
      %v4814 = vpop.xlane.xlu0 %4813
      %4815 = vmax.xlane.f32.xlu0 %v4809
      %v4816 = vpop.xlane.xlu0 %4815
      %v4817 = vsel %vm3052, %v4810, -inf
      %4818 = vmax.xlane.f32.xlu0 %v4817
      %v4819 = vpop.xlane.xlu0 %4818
      %vm4820 = vcmp.eq.f32.partialorder %v4807, %v4812
      %vm4821 = vcmp.eq.f32.partialorder %v4808, %v4814
      %vm4822 = vcmp.eq.f32.partialorder %v4809, %v4816
      %vm4823 = vcmp.eq.f32.partialorder %v4810, %v4819
      %v4824 = vsel %vm4820, %v3040, 128
      %v4825 = vsel %vm4821, %v3040, 128
      %v4826 = vsel %vm4822, %v3040, 128
      %v4827 = vsel %vm4823, %v3040, 128
      %v4828 = vand.u32 %v4824, 65535
      %v4829 = vshra.s32 %v4824, 16
      %v4830 = vcvt.s32.f32 %v4828
      %v4831 = vcvt.s32.f32 %v4829
      %4832 = vmin.xlane.f32.xlu0 %v4831
      %v4833 = vpop.xlane.xlu0 %4832
      %vm4834 = vcmp.eq.f32.partialorder %v4831, %v4833
      %v4835 = vsel %vm4834, %v4830, inf
      %4836 = vmin.xlane.f32.xlu0 %v4835
      %v4837 = vpop.xlane.xlu0 %4836
      %v4838 = vcvt.f32.s32 %v4837
      %v4839 = vcvt.f32.s32 %v4833
      %v4840 = vshll.u32 %v4839, 16
      %v4841 = vadd.s32 %v4840, %v4838
      %v4842 = vand.u32 %v4825, 65535
      %v4843 = vshra.s32 %v4825, 16
      %v4844 = vcvt.s32.f32 %v4842
      %v4845 = vcvt.s32.f32 %v4843
      %4846 = vmin.xlane.f32.xlu0 %v4845
      %v4847 = vpop.xlane.xlu0 %4846
      %vm4848 = vcmp.eq.f32.partialorder %v4845, %v4847
      %v4849 = vsel %vm4848, %v4844, inf
      %4850 = vmin.xlane.f32.xlu0 %v4849
      %v4851 = vpop.xlane.xlu0 %4850
      %v4852 = vcvt.f32.s32 %v4851
      %v4853 = vcvt.f32.s32 %v4847
      %v4854 = vshll.u32 %v4853, 16
      %v4855 = vadd.s32 %v4854, %v4852
      %v4856 = vand.u32 %v4826, 65535
      %v4857 = vshra.s32 %v4826, 16
      %v4858 = vcvt.s32.f32 %v4856
      %v4859 = vcvt.s32.f32 %v4857
      %4860 = vmin.xlane.f32.xlu0 %v4859
      %v4861 = vpop.xlane.xlu0 %4860
      %vm4862 = vcmp.eq.f32.partialorder %v4859, %v4861
      %v4863 = vsel %vm4862, %v4858, inf
      %4864 = vmin.xlane.f32.xlu0 %v4863
      %v4865 = vpop.xlane.xlu0 %4864
      %v4866 = vcvt.f32.s32 %v4865
      %v4867 = vcvt.f32.s32 %v4861
      %v4868 = vshll.u32 %v4867, 16
      %v4869 = vadd.s32 %v4868, %v4866
      %v4870 = vsel %vm3052, %v4827, 2147483647
      %v4871 = vand.u32 %v4870, 65535
      %v4872 = vshra.s32 %v4870, 16
      %v4873 = vcvt.s32.f32 %v4871
      %v4874 = vcvt.s32.f32 %v4872
      %4875 = vmin.xlane.f32.xlu0 %v4874
      %v4876 = vpop.xlane.xlu0 %4875
      %vm4877 = vcmp.eq.f32.partialorder %v4874, %v4876
      %v4878 = vsel %vm4877, %v4873, inf
      %4879 = vmin.xlane.f32.xlu0 %v4878
      %v4880 = vpop.xlane.xlu0 %4879
      %v4881 = vcvt.f32.s32 %v4880
      %v4882 = vcvt.f32.s32 %v4876
      %v4883 = vshll.u32 %v4882, 16
      %v4884 = vadd.s32 %v4883, %v4881
      %vm4885 = vcmp.eq.s32.totalorder %v3040, %v4841
      %vm4886 = vcmp.eq.s32.totalorder %v3040, %v4855
      %vm4887 = vcmp.eq.s32.totalorder %v3040, %v4869
      %vm4888 = vcmp.eq.s32.totalorder %v3040, %v4884
      %v4889 = vsel %vm4885, 1, 0
      %v4890 = vsel %vm4886, 1, 0
      %v4891 = vsel %vm4887, 1, 0
      %v4892 = vsel %vm4888, 1, 0
      %v4893 = vcvt.s32.f32 %v4889
      %v4894 = vcvt.s32.f32 %v4890
      %v4895 = vcvt.s32.f32 %v4891
      %v4896 = vcvt.s32.f32 %v4892
      %v4897 = vmax.f32 %v4799, %v4893
      %v4898 = vmax.f32 %v4800, %v4894
      %v4899 = vmax.f32 %v4801, %v4895
      %v4900 = vmax.f32 %v4802, %v4896
      %v4901 = vmul.f32 %v3035, %v4897
      %v4902 = vmul.f32 %v3036, %v4898
      %v4903 = vmul.f32 %v3037, %v4899
      %v4904 = vmul.f32 %v3038, %v4900
      %4905 = vst [vmem:[%s170] sm:$0xff] %v4901
      %4906 = vst [vmem:[%s170 + $0x8] sm:$0xff] %v4902
      %4907 = vst [vmem:[%s170 + $0x10] sm:$0xff] %v4903
      %4908 = vst [vmem:[%s170 + $0x18] sm:$0x1] %v4904
      %p4909 = scmp.lt.s32.totalorder %s14, 1
      %s4910 = scalar_select %p4909, %s14, 1
      %s4911 = smul.addr %s4910, 4
      %s4912 = smul.addr %s4911, 8
      %s4913 = scalar_lea.vmem %s3, %s4912
      // Predicated region
      $region33: #{sdr_cnn_forward.4} parent=31 // pred_check
        %p4914 = pneg %p100
      $region34: #{sdr_cnn_forward.4} parent=31 // pred_check_branch
        %4916 = sbr.rel (%p4914) target = $region36
      $region35: #{sdr_cnn_forward.4} parent=31 // pred_region
        _
      $region36: #{sdr_cnn_forward.4} parent=31 // pred_fallthru
        _
    $region32: #{sdr_cnn_forward.4} parent=5 // pred_fallthru
      _
    %p4917 = scmp.le.s32.totalorder 2, %s9
    // Predicated region
    $region37: #{sdr_cnn_forward.4} parent=5 // pred_check
      %p4918 = pneg %p4917
    $region38: #{sdr_cnn_forward.4} parent=5 // pred_check_branch
      %4920 = sbr.rel (%p4918) target = $region40
    $region39: #{sdr_cnn_forward.4} parent=5 // pred_region
      %s4921 = ssub.s32 %s9, 2
      // Predicated region
      $region41: #{sdr_cnn_forward.4} parent=39 // pred_check
        %p4922 = pneg %p106
      $region42: #{sdr_cnn_forward.4} parent=39 // pred_check_branch
        %4924 = sbr.rel (%p4922) target = $region44
      $region43: #{sdr_cnn_forward.4} parent=39 // pred_region
        %p4925 = scmp.lt.s32.totalorder %s15, 1
        %s4926 = scalar_select %p4925, %s15, 1
        %s4927 = smul.addr %s4926, 4
        %s4928 = smul.addr %s4927, 8
        %s4929 = scalar_lea.vmem %s3, %s4928
      $region44: #{sdr_cnn_forward.4} parent=39 // pred_fallthru
        _
    $region40: #{sdr_cnn_forward.4} parent=5 // pred_fallthru
      _
  $region6: #{sdr_cnn_forward.4} parent=0 // loop_footer
    %s13 = sadd.s32 1, %s9
  $region7: #{sdr_cnn_forward.4} parent=0 // loop_footer_branch
    %8 = sbr.rel target = $region3
  $region8: #{sdr_cnn_forward.4} parent=0 // loop_exit
    _

// kernel: sdr_cnn_forward.5
$region0: #{sdr_cnn_forward.5}
  #allocation0 [shape = 'u32[]', space=smem, size = 0x4, offset = 0x4, fixed_abs, tag = 'smem constant byte address 0x4 - core index']
  #allocation1 [shape = 'u32[144,128]{1,0:T(1,128)}', space=vmem, size = 0x12000, scoped, tag = 'internal scratch']
  %s0 = inlined_call_operand.vmem [shape: bf16[2,3200], index: 0, kind: input, shape index: {}]
  %s1 = inlined_call_operand.vmem [shape: bf16[3200,256], index: 1, kind: input, shape index: {}]
  %s2 = inlined_call_operand.vmem [shape: f32[1,256], index: 2, kind: input, shape index: {}]
  %s3 = inlined_call_operand.vmem [shape: f32[256,128], index: 3, kind: input, shape index: {}]
  %s4 = inlined_call_operand.vmem [shape: f32[1,128], index: 4, kind: input, shape index: {}]
  %s5 = inlined_call_operand.vmem [shape: f32[128,10], index: 5, kind: input, shape index: {}]
  %s6 = inlined_call_operand.vmem [shape: f32[1,10], index: 6, kind: input, shape index: {}]
  %s7 = inlined_call_operand.hbm [shape: f32[2,10], index: 7, kind: output, shape index: {}]
  %s8 = sld [smem:[#allocation0]]
  $region38: #{sdr_cnn_forward.5} parent=0
    _
  %s10 = ssub.s32 1, %s8
  %s11 = scalar_select 0, %s10, %s8
  $region1: #{sdr_cnn_forward.5} parent=0
    #allocation2 [shape = 'u8[1024]{0}', space=vmem, size = 0x400, scoped, tag = 'output window, operand 0, single buffered']
    #allocation3 [shape = 's32[1]{0}', space=sflag, size = 0x4, scoped, tag = 'scoped memory for sdr_cnn_forward.5']
    %12 = vsyncpa [#allocation3], 0
    // Predicated region
    $region2: #{sdr_cnn_forward.5} parent=1 // pred_check
      _
    $region3: #{sdr_cnn_forward.5} parent=1 // pred_check_branch
      %14 = sbr.rel (0) target = $region5
    $region4: #{sdr_cnn_forward.5} parent=1 // pred_region
      _
    $region5: #{sdr_cnn_forward.5} parent=1 // pred_fallthru
      _
    // Predicated region
    $region6: #{sdr_cnn_forward.5} parent=1 // pred_check
      _
    $region7: #{sdr_cnn_forward.5} parent=1 // pred_check_branch
      %16 = sbr.rel (0) target = $region9
    $region8: #{sdr_cnn_forward.5} parent=1 // pred_region
      _
    $region9: #{sdr_cnn_forward.5} parent=1 // pred_fallthru
      _
    // Predicated region
    $region10: #{sdr_cnn_forward.5} parent=1 // pred_check
      _
    $region11: #{sdr_cnn_forward.5} parent=1 // pred_check_branch
      %18 = sbr.rel (0) target = $region13
    $region12: #{sdr_cnn_forward.5} parent=1 // pred_region
      _
    $region13: #{sdr_cnn_forward.5} parent=1 // pred_fallthru
      _
    // Predicated region
    $region14: #{sdr_cnn_forward.5} parent=1 // pred_check
      _
    $region15: #{sdr_cnn_forward.5} parent=1 // pred_check_branch
      %20 = sbr.rel (0) target = $region17
    $region16: #{sdr_cnn_forward.5} parent=1 // pred_region
      _
    $region17: #{sdr_cnn_forward.5} parent=1 // pred_fallthru
      _
    // Predicated region
    $region18: #{sdr_cnn_forward.5} parent=1 // pred_check
      _
    $region19: #{sdr_cnn_forward.5} parent=1 // pred_check_branch
      %22 = sbr.rel (0) target = $region21
    $region20: #{sdr_cnn_forward.5} parent=1 // pred_region
      _
    $region21: #{sdr_cnn_forward.5} parent=1 // pred_fallthru
      _
    // Predicated region
    $region22: #{sdr_cnn_forward.5} parent=1 // pred_check
      _
    $region23: #{sdr_cnn_forward.5} parent=1 // pred_check_branch
      %24 = sbr.rel (0) target = $region25
    $region24: #{sdr_cnn_forward.5} parent=1 // pred_region
      _
    $region25: #{sdr_cnn_forward.5} parent=1 // pred_fallthru
      _
    // Predicated region
    $region26: #{sdr_cnn_forward.5} parent=1 // pred_check
      _
    $region27: #{sdr_cnn_forward.5} parent=1 // pred_check_branch
      %26 = sbr.rel (0) target = $region29
    $region28: #{sdr_cnn_forward.5} parent=1 // pred_region
      _
    $region29: #{sdr_cnn_forward.5} parent=1 // pred_fallthru
      _
    %v28 = vld [vmem:[%s0] sm:$0xff]
    %v29 = vld [vmem:[%s0 + $0x8] sm:$0xff]
    %v30 = vld [vmem:[%s0 + $0x10] sm:$0xff]
    %v31 = vld [vmem:[%s0 + $0x18] sm:$0x1]
    %v32 = vld [vmem:[%s1] sm:$0xff]
    %v33 = vld [vmem:[%s1 + $0x8] sm:$0xff]
    %v34 = vld [vmem:[%s1 + $0x10] sm:$0xff]
    %v35 = vld [vmem:[%s1 + $0x18] sm:$0xff]
    %v36 = vld [vmem:[%s1 + $0x20] sm:$0xff]
    %v37 = vld [vmem:[%s1 + $0x28] sm:$0xff]
    %v38 = vld [vmem:[%s1 + $0x30] sm:$0xff]
    %v39 = vld [vmem:[%s1 + $0x38] sm:$0xff]
    %v40 = vld [vmem:[%s1 + $0x40] sm:$0xff]
    %v41 = vld [vmem:[%s1 + $0x48] sm:$0xff]
    %v42 = vld [vmem:[%s1 + $0x50] sm:$0xff]
    %v43 = vld [vmem:[%s1 + $0x58] sm:$0xff]
    %v44 = vld [vmem:[%s1 + $0x60] sm:$0xff]
    %v45 = vld [vmem:[%s1 + $0x68] sm:$0xff]
    %v46 = vld [vmem:[%s1 + $0x70] sm:$0xff]
    %v47 = vld [vmem:[%s1 + $0x78] sm:$0xff]
    %v48 = vld [vmem:[%s1 + $0x80] sm:$0xff]
    %v49 = vld [vmem:[%s1 + $0x88] sm:$0xff]
    %v50 = vld [vmem:[%s1 + $0x90] sm:$0xff]
    %v51 = vld [vmem:[%s1 + $0x98] sm:$0xff]
    %v52 = vld [vmem:[%s1 + $0xa0] sm:$0xff]
    %v53 = vld [vmem:[%s1 + $0xa8] sm:$0xff]
    %v54 = vld [vmem:[%s1 + $0xb0] sm:$0xff]
    %v55 = vld [vmem:[%s1 + $0xb8] sm:$0xff]
    %v56 = vld [vmem:[%s1 + $0xc0] sm:$0xff]
    %v57 = vld [vmem:[%s1 + $0xc8] sm:$0xff]
    %v58 = vld [vmem:[%s1 + $0xd0] sm:$0xff]
    %v59 = vld [vmem:[%s1 + $0xd8] sm:$0xff]
    %v60 = vld [vmem:[%s1 + $0xe0] sm:$0xff]
    %v61 = vld [vmem:[%s1 + $0xe8] sm:$0xff]
    %v62 = vld [vmem:[%s1 + $0xf0] sm:$0xff]
    %v63 = vld [vmem:[%s1 + $0xf8] sm:$0xff]
    %v64 = vld [vmem:[%s1 + $0x100] sm:$0xff]
    %v65 = vld [vmem:[%s1 + $0x108] sm:$0xff]
    %v66 = vld [vmem:[%s1 + $0x110] sm:$0xff]
    %v67 = vld [vmem:[%s1 + $0x118] sm:$0xff]
    %v68 = vld [vmem:[%s1 + $0x120] sm:$0xff]
    %v69 = vld [vmem:[%s1 + $0x128] sm:$0xff]
    %v70 = vld [vmem:[%s1 + $0x130] sm:$0xff]
    %v71 = vld [vmem:[%s1 + $0x138] sm:$0xff]
    %v72 = vld [vmem:[%s1 + $0x140] sm:$0xff]
    %v73 = vld [vmem:[%s1 + $0x148] sm:$0xff]
    %v74 = vld [vmem:[%s1 + $0x150] sm:$0xff]
    %v75 = vld [vmem:[%s1 + $0x158] sm:$0xff]
    %v76 = vld [vmem:[%s1 + $0x160] sm:$0xff]
    %v77 = vld [vmem:[%s1 + $0x168] sm:$0xff]
    %v78 = vld [vmem:[%s1 + $0x170] sm:$0xff]
    %v79 = vld [vmem:[%s1 + $0x178] sm:$0xff]
    %v80 = vld [vmem:[%s1 + $0x180] sm:$0xff]
    %v81 = vld [vmem:[%s1 + $0x188] sm:$0xff]
    %v82 = vld [vmem:[%s1 + $0x190] sm:$0xff]
    %v83 = vld [vmem:[%s1 + $0x198] sm:$0xff]
    %v84 = vld [vmem:[%s1 + $0x1a0] sm:$0xff]
    %v85 = vld [vmem:[%s1 + $0x1a8] sm:$0xff]
    %v86 = vld [vmem:[%s1 + $0x1b0] sm:$0xff]
    %v87 = vld [vmem:[%s1 + $0x1b8] sm:$0xff]
    %v88 = vld [vmem:[%s1 + $0x1c0] sm:$0xff]
    %v89 = vld [vmem:[%s1 + $0x1c8] sm:$0xff]
    %v90 = vld [vmem:[%s1 + $0x1d0] sm:$0xff]
    %v91 = vld [vmem:[%s1 + $0x1d8] sm:$0xff]
    %v92 = vld [vmem:[%s1 + $0x1e0] sm:$0xff]
    %v93 = vld [vmem:[%s1 + $0x1e8] sm:$0xff]
    %v94 = vld [vmem:[%s1 + $0x1f0] sm:$0xff]
    %v95 = vld [vmem:[%s1 + $0x1f8] sm:$0xff]
    %v96 = vld [vmem:[%s1 + $0x200] sm:$0xff]
    %v97 = vld [vmem:[%s1 + $0x208] sm:$0xff]
    %v98 = vld [vmem:[%s1 + $0x210] sm:$0xff]
    %v99 = vld [vmem:[%s1 + $0x218] sm:$0xff]
    %v100 = vld [vmem:[%s1 + $0x220] sm:$0xff]
    %v101 = vld [vmem:[%s1 + $0x228] sm:$0xff]
    %v102 = vld [vmem:[%s1 + $0x230] sm:$0xff]
    %v103 = vld [vmem:[%s1 + $0x238] sm:$0xff]
    %v104 = vld [vmem:[%s1 + $0x240] sm:$0xff]
    %v105 = vld [vmem:[%s1 + $0x248] sm:$0xff]
    %v106 = vld [vmem:[%s1 + $0x250] sm:$0xff]
    %v107 = vld [vmem:[%s1 + $0x258] sm:$0xff]
    %v108 = vld [vmem:[%s1 + $0x260] sm:$0xff]
    %v109 = vld [vmem:[%s1 + $0x268] sm:$0xff]
    %v110 = vld [vmem:[%s1 + $0x270] sm:$0xff]
    %v111 = vld [vmem:[%s1 + $0x278] sm:$0xff]
    %v112 = vld [vmem:[%s1 + $0x280] sm:$0xff]
    %v113 = vld [vmem:[%s1 + $0x288] sm:$0xff]
    %v114 = vld [vmem:[%s1 + $0x290] sm:$0xff]
    %v115 = vld [vmem:[%s1 + $0x298] sm:$0xff]
    %v116 = vld [vmem:[%s1 + $0x2a0] sm:$0xff]
    %v117 = vld [vmem:[%s1 + $0x2a8] sm:$0xff]
    %v118 = vld [vmem:[%s1 + $0x2b0] sm:$0xff]
    %v119 = vld [vmem:[%s1 + $0x2b8] sm:$0xff]
    %v120 = vld [vmem:[%s1 + $0x2c0] sm:$0xff]
    %v121 = vld [vmem:[%s1 + $0x2c8] sm:$0xff]
    %v122 = vld [vmem:[%s1 + $0x2d0] sm:$0xff]
    %v123 = vld [vmem:[%s1 + $0x2d8] sm:$0xff]
    %v124 = vld [vmem:[%s1 + $0x2e0] sm:$0xff]
    %v125 = vld [vmem:[%s1 + $0x2e8] sm:$0xff]
    %v126 = vld [vmem:[%s1 + $0x2f0] sm:$0xff]
    %v127 = vld [vmem:[%s1 + $0x2f8] sm:$0xff]
    %v128 = vld [vmem:[%s1 + $0x300] sm:$0xff]
    %v129 = vld [vmem:[%s1 + $0x308] sm:$0xff]
    %v130 = vld [vmem:[%s1 + $0x310] sm:$0xff]
    %v131 = vld [vmem:[%s1 + $0x318] sm:$0xff]
    %v132 = vld [vmem:[%s1 + $0x320] sm:$0xff]
    %v133 = vld [vmem:[%s1 + $0x328] sm:$0xff]
    %v134 = vld [vmem:[%s1 + $0x330] sm:$0xff]
    %v135 = vld [vmem:[%s1 + $0x338] sm:$0xff]
    %v136 = vld [vmem:[%s1 + $0x340] sm:$0xff]
    %v137 = vld [vmem:[%s1 + $0x348] sm:$0xff]
    %v138 = vld [vmem:[%s1 + $0x350] sm:$0xff]
    %v139 = vld [vmem:[%s1 + $0x358] sm:$0xff]
    %v140 = vld [vmem:[%s1 + $0x360] sm:$0xff]
    %v141 = vld [vmem:[%s1 + $0x368] sm:$0xff]
    %v142 = vld [vmem:[%s1 + $0x370] sm:$0xff]
    %v143 = vld [vmem:[%s1 + $0x378] sm:$0xff]
    %v144 = vld [vmem:[%s1 + $0x380] sm:$0xff]
    %v145 = vld [vmem:[%s1 + $0x388] sm:$0xff]
    %v146 = vld [vmem:[%s1 + $0x390] sm:$0xff]
    %v147 = vld [vmem:[%s1 + $0x398] sm:$0xff]
    %v148 = vld [vmem:[%s1 + $0x3a0] sm:$0xff]
    %v149 = vld [vmem:[%s1 + $0x3a8] sm:$0xff]
    %v150 = vld [vmem:[%s1 + $0x3b0] sm:$0xff]
    %v151 = vld [vmem:[%s1 + $0x3b8] sm:$0xff]
    %v152 = vld [vmem:[%s1 + $0x3c0] sm:$0xff]
    %v153 = vld [vmem:[%s1 + $0x3c8] sm:$0xff]
    %v154 = vld [vmem:[%s1 + $0x3d0] sm:$0xff]
    %v155 = vld [vmem:[%s1 + $0x3d8] sm:$0xff]
    %v156 = vld [vmem:[%s1 + $0x3e0] sm:$0xff]
    %v157 = vld [vmem:[%s1 + $0x3e8] sm:$0xff]
    %v158 = vld [vmem:[%s1 + $0x3f0] sm:$0xff]
    %v159 = vld [vmem:[%s1 + $0x3f8] sm:$0xff]
    %v160 = vld [vmem:[%s1 + $0x400] sm:$0xff]
    %v161 = vld [vmem:[%s1 + $0x408] sm:$0xff]
    %v162 = vld [vmem:[%s1 + $0x410] sm:$0xff]
    %v163 = vld [vmem:[%s1 + $0x418] sm:$0xff]
    %v164 = vld [vmem:[%s1 + $0x420] sm:$0xff]
    %v165 = vld [vmem:[%s1 + $0x428] sm:$0xff]
    %v166 = vld [vmem:[%s1 + $0x430] sm:$0xff]
    %v167 = vld [vmem:[%s1 + $0x438] sm:$0xff]
    %v168 = vld [vmem:[%s1 + $0x440] sm:$0xff]
    %v169 = vld [vmem:[%s1 + $0x448] sm:$0xff]
    %v170 = vld [vmem:[%s1 + $0x450] sm:$0xff]
    %v171 = vld [vmem:[%s1 + $0x458] sm:$0xff]
    %v172 = vld [vmem:[%s1 + $0x460] sm:$0xff]
    %v173 = vld [vmem:[%s1 + $0x468] sm:$0xff]
    %v174 = vld [vmem:[%s1 + $0x470] sm:$0xff]
    %v175 = vld [vmem:[%s1 + $0x478] sm:$0xff]
    %v176 = vld [vmem:[%s1 + $0x480] sm:$0xff]
    %v177 = vld [vmem:[%s1 + $0x488] sm:$0xff]
    %v178 = vld [vmem:[%s1 + $0x490] sm:$0xff]
    %v179 = vld [vmem:[%s1 + $0x498] sm:$0xff]
    %v180 = vld [vmem:[%s1 + $0x4a0] sm:$0xff]
    %v181 = vld [vmem:[%s1 + $0x4a8] sm:$0xff]
    %v182 = vld [vmem:[%s1 + $0x4b0] sm:$0xff]
    %v183 = vld [vmem:[%s1 + $0x4b8] sm:$0xff]
    %v184 = vld [vmem:[%s1 + $0x4c0] sm:$0xff]
    %v185 = vld [vmem:[%s1 + $0x4c8] sm:$0xff]
    %v186 = vld [vmem:[%s1 + $0x4d0] sm:$0xff]
    %v187 = vld [vmem:[%s1 + $0x4d8] sm:$0xff]
    %v188 = vld [vmem:[%s1 + $0x4e0] sm:$0xff]
    %v189 = vld [vmem:[%s1 + $0x4e8] sm:$0xff]
    %v190 = vld [vmem:[%s1 + $0x4f0] sm:$0xff]
    %v191 = vld [vmem:[%s1 + $0x4f8] sm:$0xff]
    %v192 = vld [vmem:[%s1 + $0x500] sm:$0xff]
    %v193 = vld [vmem:[%s1 + $0x508] sm:$0xff]
    %v194 = vld [vmem:[%s1 + $0x510] sm:$0xff]
    %v195 = vld [vmem:[%s1 + $0x518] sm:$0xff]
    %v196 = vld [vmem:[%s1 + $0x520] sm:$0xff]
    %v197 = vld [vmem:[%s1 + $0x528] sm:$0xff]
    %v198 = vld [vmem:[%s1 + $0x530] sm:$0xff]
    %v199 = vld [vmem:[%s1 + $0x538] sm:$0xff]
    %v200 = vld [vmem:[%s1 + $0x540] sm:$0xff]
    %v201 = vld [vmem:[%s1 + $0x548] sm:$0xff]
    %v202 = vld [vmem:[%s1 + $0x550] sm:$0xff]
    %v203 = vld [vmem:[%s1 + $0x558] sm:$0xff]
    %v204 = vld [vmem:[%s1 + $0x560] sm:$0xff]
    %v205 = vld [vmem:[%s1 + $0x568] sm:$0xff]
    %v206 = vld [vmem:[%s1 + $0x570] sm:$0xff]
    %v207 = vld [vmem:[%s1 + $0x578] sm:$0xff]
    %v208 = vld [vmem:[%s1 + $0x580] sm:$0xff]
    %v209 = vld [vmem:[%s1 + $0x588] sm:$0xff]
    %v210 = vld [vmem:[%s1 + $0x590] sm:$0xff]
    %v211 = vld [vmem:[%s1 + $0x598] sm:$0xff]
    %v212 = vld [vmem:[%s1 + $0x5a0] sm:$0xff]
    %v213 = vld [vmem:[%s1 + $0x5a8] sm:$0xff]
    %v214 = vld [vmem:[%s1 + $0x5b0] sm:$0xff]
    %v215 = vld [vmem:[%s1 + $0x5b8] sm:$0xff]
    %v216 = vld [vmem:[%s1 + $0x5c0] sm:$0xff]
    %v217 = vld [vmem:[%s1 + $0x5c8] sm:$0xff]
    %v218 = vld [vmem:[%s1 + $0x5d0] sm:$0xff]
    %v219 = vld [vmem:[%s1 + $0x5d8] sm:$0xff]
    %v220 = vld [vmem:[%s1 + $0x5e0] sm:$0xff]
    %v221 = vld [vmem:[%s1 + $0x5e8] sm:$0xff]
    %v222 = vld [vmem:[%s1 + $0x5f0] sm:$0xff]
    %v223 = vld [vmem:[%s1 + $0x5f8] sm:$0xff]
    %v224 = vld [vmem:[%s1 + $0x600] sm:$0xff]
    %v225 = vld [vmem:[%s1 + $0x608] sm:$0xff]
    %v226 = vld [vmem:[%s1 + $0x610] sm:$0xff]
    %v227 = vld [vmem:[%s1 + $0x618] sm:$0xff]
    %v228 = vld [vmem:[%s1 + $0x620] sm:$0xff]
    %v229 = vld [vmem:[%s1 + $0x628] sm:$0xff]
    %v230 = vld [vmem:[%s1 + $0x630] sm:$0xff]
    %v231 = vld [vmem:[%s1 + $0x638] sm:$0xff]
    %v232 = vld [vmem:[%s1 + $0x640] sm:$0xff]
    %v233 = vld [vmem:[%s1 + $0x648] sm:$0xff]
    %v234 = vld [vmem:[%s1 + $0x650] sm:$0xff]
    %v235 = vld [vmem:[%s1 + $0x658] sm:$0xff]
    %v236 = vld [vmem:[%s1 + $0x660] sm:$0xff]
    %v237 = vld [vmem:[%s1 + $0x668] sm:$0xff]
    %v238 = vld [vmem:[%s1 + $0x670] sm:$0xff]
    %v239 = vld [vmem:[%s1 + $0x678] sm:$0xff]
    %v240 = vld [vmem:[%s1 + $0x680] sm:$0xff]
    %v241 = vld [vmem:[%s1 + $0x688] sm:$0xff]
    %v242 = vld [vmem:[%s1 + $0x690] sm:$0xff]
    %v243 = vld [vmem:[%s1 + $0x698] sm:$0xff]
    %v244 = vld [vmem:[%s1 + $0x6a0] sm:$0xff]
    %v245 = vld [vmem:[%s1 + $0x6a8] sm:$0xff]
    %v246 = vld [vmem:[%s1 + $0x6b0] sm:$0xff]
    %v247 = vld [vmem:[%s1 + $0x6b8] sm:$0xff]
    %v248 = vld [vmem:[%s1 + $0x6c0] sm:$0xff]
    %v249 = vld [vmem:[%s1 + $0x6c8] sm:$0xff]
    %v250 = vld [vmem:[%s1 + $0x6d0] sm:$0xff]
    %v251 = vld [vmem:[%s1 + $0x6d8] sm:$0xff]
    %v252 = vld [vmem:[%s1 + $0x6e0] sm:$0xff]
    %v253 = vld [vmem:[%s1 + $0x6e8] sm:$0xff]
    %v254 = vld [vmem:[%s1 + $0x6f0] sm:$0xff]
    %v255 = vld [vmem:[%s1 + $0x6f8] sm:$0xff]
    %v256 = vld [vmem:[%s1 + $0x700] sm:$0xff]
    %v257 = vld [vmem:[%s1 + $0x708] sm:$0xff]
    %v258 = vld [vmem:[%s1 + $0x710] sm:$0xff]
    %v259 = vld [vmem:[%s1 + $0x718] sm:$0xff]
    %v260 = vld [vmem:[%s1 + $0x720] sm:$0xff]
    %v261 = vld [vmem:[%s1 + $0x728] sm:$0xff]
    %v262 = vld [vmem:[%s1 + $0x730] sm:$0xff]
    %v263 = vld [vmem:[%s1 + $0x738] sm:$0xff]
    %v264 = vld [vmem:[%s1 + $0x740] sm:$0xff]
    %v265 = vld [vmem:[%s1 + $0x748] sm:$0xff]
    %v266 = vld [vmem:[%s1 + $0x750] sm:$0xff]
    %v267 = vld [vmem:[%s1 + $0x758] sm:$0xff]
    %v268 = vld [vmem:[%s1 + $0x760] sm:$0xff]
    %v269 = vld [vmem:[%s1 + $0x768] sm:$0xff]
    %v270 = vld [vmem:[%s1 + $0x770] sm:$0xff]
    %v271 = vld [vmem:[%s1 + $0x778] sm:$0xff]
    %v272 = vld [vmem:[%s1 + $0x780] sm:$0xff]
    %v273 = vld [vmem:[%s1 + $0x788] sm:$0xff]
    %v274 = vld [vmem:[%s1 + $0x790] sm:$0xff]
    %v275 = vld [vmem:[%s1 + $0x798] sm:$0xff]
    %v276 = vld [vmem:[%s1 + $0x7a0] sm:$0xff]
    %v277 = vld [vmem:[%s1 + $0x7a8] sm:$0xff]
    %v278 = vld [vmem:[%s1 + $0x7b0] sm:$0xff]
    %v279 = vld [vmem:[%s1 + $0x7b8] sm:$0xff]
    %v280 = vld [vmem:[%s1 + $0x7c0] sm:$0xff]
    %v281 = vld [vmem:[%s1 + $0x7c8] sm:$0xff]
    %v282 = vld [vmem:[%s1 + $0x7d0] sm:$0xff]
    %v283 = vld [vmem:[%s1 + $0x7d8] sm:$0xff]
    %v284 = vld [vmem:[%s1 + $0x7e0] sm:$0xff]
    %v285 = vld [vmem:[%s1 + $0x7e8] sm:$0xff]
    %v286 = vld [vmem:[%s1 + $0x7f0] sm:$0xff]
    %v287 = vld [vmem:[%s1 + $0x7f8] sm:$0xff]
    %v288 = vld [vmem:[%s1 + $0x800] sm:$0xff]
    %v289 = vld [vmem:[%s1 + $0x808] sm:$0xff]
    %v290 = vld [vmem:[%s1 + $0x810] sm:$0xff]
    %v291 = vld [vmem:[%s1 + $0x818] sm:$0xff]
    %v292 = vld [vmem:[%s1 + $0x820] sm:$0xff]
    %v293 = vld [vmem:[%s1 + $0x828] sm:$0xff]
    %v294 = vld [vmem:[%s1 + $0x830] sm:$0xff]
    %v295 = vld [vmem:[%s1 + $0x838] sm:$0xff]
    %v296 = vld [vmem:[%s1 + $0x840] sm:$0xff]
    %v297 = vld [vmem:[%s1 + $0x848] sm:$0xff]
    %v298 = vld [vmem:[%s1 + $0x850] sm:$0xff]
    %v299 = vld [vmem:[%s1 + $0x858] sm:$0xff]
    %v300 = vld [vmem:[%s1 + $0x860] sm:$0xff]
    %v301 = vld [vmem:[%s1 + $0x868] sm:$0xff]
    %v302 = vld [vmem:[%s1 + $0x870] sm:$0xff]
    %v303 = vld [vmem:[%s1 + $0x878] sm:$0xff]
    %v304 = vld [vmem:[%s1 + $0x880] sm:$0xff]
    %v305 = vld [vmem:[%s1 + $0x888] sm:$0xff]
    %v306 = vld [vmem:[%s1 + $0x890] sm:$0xff]
    %v307 = vld [vmem:[%s1 + $0x898] sm:$0xff]
    %v308 = vld [vmem:[%s1 + $0x8a0] sm:$0xff]
    %v309 = vld [vmem:[%s1 + $0x8a8] sm:$0xff]
    %v310 = vld [vmem:[%s1 + $0x8b0] sm:$0xff]
    %v311 = vld [vmem:[%s1 + $0x8b8] sm:$0xff]
    %v312 = vld [vmem:[%s1 + $0x8c0] sm:$0xff]
    %v313 = vld [vmem:[%s1 + $0x8c8] sm:$0xff]
    %v314 = vld [vmem:[%s1 + $0x8d0] sm:$0xff]
    %v315 = vld [vmem:[%s1 + $0x8d8] sm:$0xff]
    %v316 = vld [vmem:[%s1 + $0x8e0] sm:$0xff]
    %v317 = vld [vmem:[%s1 + $0x8e8] sm:$0xff]
    %v318 = vld [vmem:[%s1 + $0x8f0] sm:$0xff]
    %v319 = vld [vmem:[%s1 + $0x8f8] sm:$0xff]
    %v320 = vld [vmem:[%s1 + $0x900] sm:$0xff]
    %v321 = vld [vmem:[%s1 + $0x908] sm:$0xff]
    %v322 = vld [vmem:[%s1 + $0x910] sm:$0xff]
    %v323 = vld [vmem:[%s1 + $0x918] sm:$0xff]
    %v324 = vld [vmem:[%s1 + $0x920] sm:$0xff]
    %v325 = vld [vmem:[%s1 + $0x928] sm:$0xff]
    %v326 = vld [vmem:[%s1 + $0x930] sm:$0xff]
    %v327 = vld [vmem:[%s1 + $0x938] sm:$0xff]
    %v328 = vld [vmem:[%s1 + $0x940] sm:$0xff]
    %v329 = vld [vmem:[%s1 + $0x948] sm:$0xff]
    %v330 = vld [vmem:[%s1 + $0x950] sm:$0xff]
    %v331 = vld [vmem:[%s1 + $0x958] sm:$0xff]
    %v332 = vld [vmem:[%s1 + $0x960] sm:$0xff]
    %v333 = vld [vmem:[%s1 + $0x968] sm:$0xff]
    %v334 = vld [vmem:[%s1 + $0x970] sm:$0xff]
    %v335 = vld [vmem:[%s1 + $0x978] sm:$0xff]
    %v336 = vld [vmem:[%s1 + $0x980] sm:$0xff]
    %v337 = vld [vmem:[%s1 + $0x988] sm:$0xff]
    %v338 = vld [vmem:[%s1 + $0x990] sm:$0xff]
    %v339 = vld [vmem:[%s1 + $0x998] sm:$0xff]
    %v340 = vld [vmem:[%s1 + $0x9a0] sm:$0xff]
    %v341 = vld [vmem:[%s1 + $0x9a8] sm:$0xff]
    %v342 = vld [vmem:[%s1 + $0x9b0] sm:$0xff]
    %v343 = vld [vmem:[%s1 + $0x9b8] sm:$0xff]
    %v344 = vld [vmem:[%s1 + $0x9c0] sm:$0xff]
    %v345 = vld [vmem:[%s1 + $0x9c8] sm:$0xff]
    %v346 = vld [vmem:[%s1 + $0x9d0] sm:$0xff]
    %v347 = vld [vmem:[%s1 + $0x9d8] sm:$0xff]
    %v348 = vld [vmem:[%s1 + $0x9e0] sm:$0xff]
    %v349 = vld [vmem:[%s1 + $0x9e8] sm:$0xff]
    %v350 = vld [vmem:[%s1 + $0x9f0] sm:$0xff]
    %v351 = vld [vmem:[%s1 + $0x9f8] sm:$0xff]
    %v352 = vld [vmem:[%s1 + $0xa00] sm:$0xff]
    %v353 = vld [vmem:[%s1 + $0xa08] sm:$0xff]
    %v354 = vld [vmem:[%s1 + $0xa10] sm:$0xff]
    %v355 = vld [vmem:[%s1 + $0xa18] sm:$0xff]
    %v356 = vld [vmem:[%s1 + $0xa20] sm:$0xff]
    %v357 = vld [vmem:[%s1 + $0xa28] sm:$0xff]
    %v358 = vld [vmem:[%s1 + $0xa30] sm:$0xff]
    %v359 = vld [vmem:[%s1 + $0xa38] sm:$0xff]
    %v360 = vld [vmem:[%s1 + $0xa40] sm:$0xff]
    %v361 = vld [vmem:[%s1 + $0xa48] sm:$0xff]
    %v362 = vld [vmem:[%s1 + $0xa50] sm:$0xff]
    %v363 = vld [vmem:[%s1 + $0xa58] sm:$0xff]
    %v364 = vld [vmem:[%s1 + $0xa60] sm:$0xff]
    %v365 = vld [vmem:[%s1 + $0xa68] sm:$0xff]
    %v366 = vld [vmem:[%s1 + $0xa70] sm:$0xff]
    %v367 = vld [vmem:[%s1 + $0xa78] sm:$0xff]
    %v368 = vld [vmem:[%s1 + $0xa80] sm:$0xff]
    %v369 = vld [vmem:[%s1 + $0xa88] sm:$0xff]
    %v370 = vld [vmem:[%s1 + $0xa90] sm:$0xff]
    %v371 = vld [vmem:[%s1 + $0xa98] sm:$0xff]
    %v372 = vld [vmem:[%s1 + $0xaa0] sm:$0xff]
    %v373 = vld [vmem:[%s1 + $0xaa8] sm:$0xff]
    %v374 = vld [vmem:[%s1 + $0xab0] sm:$0xff]
    %v375 = vld [vmem:[%s1 + $0xab8] sm:$0xff]
    %v376 = vld [vmem:[%s1 + $0xac0] sm:$0xff]
    %v377 = vld [vmem:[%s1 + $0xac8] sm:$0xff]
    %v378 = vld [vmem:[%s1 + $0xad0] sm:$0xff]
    %v379 = vld [vmem:[%s1 + $0xad8] sm:$0xff]
    %v380 = vld [vmem:[%s1 + $0xae0] sm:$0xff]
    %v381 = vld [vmem:[%s1 + $0xae8] sm:$0xff]
    %v382 = vld [vmem:[%s1 + $0xaf0] sm:$0xff]
    %v383 = vld [vmem:[%s1 + $0xaf8] sm:$0xff]
    %v384 = vld [vmem:[%s1 + $0xb00] sm:$0xff]
    %v385 = vld [vmem:[%s1 + $0xb08] sm:$0xff]
    %v386 = vld [vmem:[%s1 + $0xb10] sm:$0xff]
    %v387 = vld [vmem:[%s1 + $0xb18] sm:$0xff]
    %v388 = vld [vmem:[%s1 + $0xb20] sm:$0xff]
    %v389 = vld [vmem:[%s1 + $0xb28] sm:$0xff]
    %v390 = vld [vmem:[%s1 + $0xb30] sm:$0xff]
    %v391 = vld [vmem:[%s1 + $0xb38] sm:$0xff]
    %v392 = vld [vmem:[%s1 + $0xb40] sm:$0xff]
    %v393 = vld [vmem:[%s1 + $0xb48] sm:$0xff]
    %v394 = vld [vmem:[%s1 + $0xb50] sm:$0xff]
    %v395 = vld [vmem:[%s1 + $0xb58] sm:$0xff]
    %v396 = vld [vmem:[%s1 + $0xb60] sm:$0xff]
    %v397 = vld [vmem:[%s1 + $0xb68] sm:$0xff]
    %v398 = vld [vmem:[%s1 + $0xb70] sm:$0xff]
    %v399 = vld [vmem:[%s1 + $0xb78] sm:$0xff]
    %v400 = vld [vmem:[%s1 + $0xb80] sm:$0xff]
    %v401 = vld [vmem:[%s1 + $0xb88] sm:$0xff]
    %v402 = vld [vmem:[%s1 + $0xb90] sm:$0xff]
    %v403 = vld [vmem:[%s1 + $0xb98] sm:$0xff]
    %v404 = vld [vmem:[%s1 + $0xba0] sm:$0xff]
    %v405 = vld [vmem:[%s1 + $0xba8] sm:$0xff]
    %v406 = vld [vmem:[%s1 + $0xbb0] sm:$0xff]
    %v407 = vld [vmem:[%s1 + $0xbb8] sm:$0xff]
    %v408 = vld [vmem:[%s1 + $0xbc0] sm:$0xff]
    %v409 = vld [vmem:[%s1 + $0xbc8] sm:$0xff]
    %v410 = vld [vmem:[%s1 + $0xbd0] sm:$0xff]
    %v411 = vld [vmem:[%s1 + $0xbd8] sm:$0xff]
    %v412 = vld [vmem:[%s1 + $0xbe0] sm:$0xff]
    %v413 = vld [vmem:[%s1 + $0xbe8] sm:$0xff]
    %v414 = vld [vmem:[%s1 + $0xbf0] sm:$0xff]
    %v415 = vld [vmem:[%s1 + $0xbf8] sm:$0xff]
    %v416 = vld [vmem:[%s1 + $0xc00] sm:$0xff]
    %v417 = vld [vmem:[%s1 + $0xc08] sm:$0xff]
    %v418 = vld [vmem:[%s1 + $0xc10] sm:$0xff]
    %v419 = vld [vmem:[%s1 + $0xc18] sm:$0xff]
    %v420 = vld [vmem:[%s1 + $0xc20] sm:$0xff]
    %v421 = vld [vmem:[%s1 + $0xc28] sm:$0xff]
    %v422 = vld [vmem:[%s1 + $0xc30] sm:$0xff]
    %v423 = vld [vmem:[%s1 + $0xc38] sm:$0xff]
    %v424 = vld [vmem:[%s1 + $0xc40] sm:$0xff]
    %v425 = vld [vmem:[%s1 + $0xc48] sm:$0xff]
    %v426 = vld [vmem:[%s1 + $0xc50] sm:$0xff]
    %v427 = vld [vmem:[%s1 + $0xc58] sm:$0xff]
    %v428 = vld [vmem:[%s1 + $0xc60] sm:$0xff]
    %v429 = vld [vmem:[%s1 + $0xc68] sm:$0xff]
    %v430 = vld [vmem:[%s1 + $0xc70] sm:$0xff]
    %v431 = vld [vmem:[%s1 + $0xc78] sm:$0xff]
    %v432 = vld [vmem:[%s2] sm:$0x3]
    %v434 = vlaneseq
    %v435 = vshrl.u32 %v434, 7
    %v436 = vsub.s32 0, %v435
    %v437 = vrot.slane %v432, %v436
    %v438 = vlaneseq
    %v439 = vshrl.u32 %v438, 7
    %v440 = vsub.s32 1, %v439
    %v441 = vrot.slane %v432, %v440
    %v448 = vcombine.high %v28, %v28
    %v450 = vunpack.c.l.s4 1966171168
    %v451 = vunpack.c.0.s8 %v450
    %v452 = vlaneseq
    %v453 = vshrl.u32 %v452, 7
    %v454 = vsub.s32 %v451, %v453
    %v455 = vrot.slane %v28, %v454
    %v457 = vunpack.c.l.s4 1966171168
    %v458 = vunpack.c.0.s8 %v457
    %v459 = vlaneseq
    %v460 = vshrl.u32 %v459, 7
    %v461 = vsub.s32 %v458, %v460
    %v462 = vrot.slane %v448, %v461
    %v463 = vcombine.high %v455, %v455
    %v464 = vcombine.high %v462, %v462
    %v466 = vunpack.c.l.s4 1966171168
    %v467 = vunpack.c.0.s8 %v466
    %v468 = vlaneseq
    %v469 = vshrl.u32 %v468, 7
    %v470 = vsub.s32 %v467, %v469
    %v471 = vrot.slane %v455, %v470
    %v473 = vunpack.c.l.s4 1966171168
    %v474 = vunpack.c.0.s8 %v473
    %v475 = vlaneseq
    %v476 = vshrl.u32 %v475, 7
    %v477 = vsub.s32 %v474, %v476
    %v478 = vrot.slane %v462, %v477
    %v480 = vunpack.c.l.s4 1966171168
    %v481 = vunpack.c.0.s8 %v480
    %v482 = vlaneseq
    %v483 = vshrl.u32 %v482, 7
    %v484 = vsub.s32 %v481, %v483
    %v485 = vrot.slane %v463, %v484
    %v487 = vunpack.c.l.s4 1966171168
    %v488 = vunpack.c.0.s8 %v487
    %v489 = vlaneseq
    %v490 = vshrl.u32 %v489, 7
    %v491 = vsub.s32 %v488, %v490
    %v492 = vrot.slane %v464, %v491
    %v493 = vcombine.high %v471, %v471
    %v494 = vcombine.high %v478, %v478
    %v495 = vcombine.high %v485, %v485
    %v496 = vcombine.high %v492, %v492
    %v497 = vcombine.high %v29, %v29
    %v499 = vunpack.c.l.s4 1966171168
    %v500 = vunpack.c.0.s8 %v499
    %v501 = vlaneseq
    %v502 = vshrl.u32 %v501, 7
    %v503 = vsub.s32 %v500, %v502
    %v504 = vrot.slane %v29, %v503
    %v506 = vunpack.c.l.s4 1966171168
    %v507 = vunpack.c.0.s8 %v506
    %v508 = vlaneseq
    %v509 = vshrl.u32 %v508, 7
    %v510 = vsub.s32 %v507, %v509
    %v511 = vrot.slane %v497, %v510
    %v512 = vcombine.high %v504, %v504
    %v513 = vcombine.high %v511, %v511
    %v515 = vunpack.c.l.s4 1966171168
    %v516 = vunpack.c.0.s8 %v515
    %v517 = vlaneseq
    %v518 = vshrl.u32 %v517, 7
    %v519 = vsub.s32 %v516, %v518
    %v520 = vrot.slane %v504, %v519
    %v522 = vunpack.c.l.s4 1966171168
    %v523 = vunpack.c.0.s8 %v522
    %v524 = vlaneseq
    %v525 = vshrl.u32 %v524, 7
    %v526 = vsub.s32 %v523, %v525
    %v527 = vrot.slane %v511, %v526
    %v529 = vunpack.c.l.s4 1966171168
    %v530 = vunpack.c.0.s8 %v529
    %v531 = vlaneseq
    %v532 = vshrl.u32 %v531, 7
    %v533 = vsub.s32 %v530, %v532
    %v534 = vrot.slane %v512, %v533
    %v536 = vunpack.c.l.s4 1966171168
    %v537 = vunpack.c.0.s8 %v536
    %v538 = vlaneseq
    %v539 = vshrl.u32 %v538, 7
    %v540 = vsub.s32 %v537, %v539
    %v541 = vrot.slane %v513, %v540
    %v542 = vcombine.high %v520, %v520
    %v543 = vcombine.high %v527, %v527
    %v544 = vcombine.high %v534, %v534
    %v545 = vcombine.high %v541, %v541
    %v546 = vcombine.high %v30, %v30
    %v548 = vunpack.c.l.s4 1966171168
    %v549 = vunpack.c.0.s8 %v548
    %v550 = vlaneseq
    %v551 = vshrl.u32 %v550, 7
    %v552 = vsub.s32 %v549, %v551
    %v553 = vrot.slane %v30, %v552
    %v555 = vunpack.c.l.s4 1966171168
    %v556 = vunpack.c.0.s8 %v555
    %v557 = vlaneseq
    %v558 = vshrl.u32 %v557, 7
    %v559 = vsub.s32 %v556, %v558
    %v560 = vrot.slane %v546, %v559
    %v561 = vcombine.high %v553, %v553
    %v562 = vcombine.high %v560, %v560
    %v564 = vunpack.c.l.s4 1966171168
    %v565 = vunpack.c.0.s8 %v564
    %v566 = vlaneseq
    %v567 = vshrl.u32 %v566, 7
    %v568 = vsub.s32 %v565, %v567
    %v569 = vrot.slane %v553, %v568
    %v571 = vunpack.c.l.s4 1966171168
    %v572 = vunpack.c.0.s8 %v571
    %v573 = vlaneseq
    %v574 = vshrl.u32 %v573, 7
    %v575 = vsub.s32 %v572, %v574
    %v576 = vrot.slane %v560, %v575
    %v578 = vunpack.c.l.s4 1966171168
    %v579 = vunpack.c.0.s8 %v578
    %v580 = vlaneseq
    %v581 = vshrl.u32 %v580, 7
    %v582 = vsub.s32 %v579, %v581
    %v583 = vrot.slane %v561, %v582
    %v585 = vunpack.c.l.s4 1966171168
    %v586 = vunpack.c.0.s8 %v585
    %v587 = vlaneseq
    %v588 = vshrl.u32 %v587, 7
    %v589 = vsub.s32 %v586, %v588
    %v590 = vrot.slane %v562, %v589
    %v591 = vcombine.high %v569, %v569
    %v592 = vcombine.high %v576, %v576
    %v593 = vcombine.high %v583, %v583
    %v594 = vcombine.high %v590, %v590
    %v596 = vunpack.c.l.s4 1966171168
    %v597 = vunpack.c.0.s8 %v596
    %v598 = vlaneseq
    %v599 = vshrl.u32 %v598, 7
    %v600 = vsub.s32 %v597, %v599
    %v601 = vrot.slane %v31, %v600
    %v603 = vunpack.c.l.s4 1966171168
    %v604 = vunpack.c.0.s8 %v603
    %v605 = vlaneseq
    %v606 = vshrl.u32 %v605, 7
    %v607 = vsub.s32 %v604, %v606
    %v608 = vrot.slane %v601, %v607
    %v1034 = vunpack.c.l.b16 %v32
    %v1035 = vunpack.c.h.b16 %v32
    %v1036 = vunpack.c.l.b16 %v33
    %v1037 = vunpack.c.h.b16 %v33
    %v1038 = vunpack.c.l.b16 %v34
    %v1039 = vunpack.c.h.b16 %v34
    %v1040 = vunpack.c.l.b16 %v35
    %v1041 = vunpack.c.h.b16 %v35
    %v1042 = vunpack.c.l.b16 %v36
    %v1043 = vunpack.c.h.b16 %v36
    %v1044 = vunpack.c.l.b16 %v37
    %v1045 = vunpack.c.h.b16 %v37
    %v1046 = vunpack.c.l.b16 %v38
    %v1047 = vunpack.c.h.b16 %v38
    %v1048 = vunpack.c.l.b16 %v39
    %v1049 = vunpack.c.h.b16 %v39
    %v1050 = vunpack.c.l.b16 %v40
    %v1051 = vunpack.c.h.b16 %v40
    %v1052 = vunpack.c.l.b16 %v41
    %v1053 = vunpack.c.h.b16 %v41
    %v1054 = vunpack.c.l.b16 %v42
    %v1055 = vunpack.c.h.b16 %v42
    %v1056 = vunpack.c.l.b16 %v43
    %v1057 = vunpack.c.h.b16 %v43
    %v1058 = vunpack.c.l.b16 %v44
    %v1059 = vunpack.c.h.b16 %v44
    %v1060 = vunpack.c.l.b16 %v45
    %v1061 = vunpack.c.h.b16 %v45
    %v1062 = vunpack.c.l.b16 %v46
    %v1063 = vunpack.c.h.b16 %v46
    %v1064 = vunpack.c.l.b16 %v47
    %v1065 = vunpack.c.h.b16 %v47
    %v1066 = vunpack.c.l.b16 %v48
    %v1067 = vunpack.c.h.b16 %v48
    %v1068 = vunpack.c.l.b16 %v49
    %v1069 = vunpack.c.h.b16 %v49
    %v1070 = vunpack.c.l.b16 %v50
    %v1071 = vunpack.c.h.b16 %v50
    %v1072 = vunpack.c.l.b16 %v51
    %v1073 = vunpack.c.h.b16 %v51
    %v1074 = vunpack.c.l.b16 %v52
    %v1075 = vunpack.c.h.b16 %v52
    %v1076 = vunpack.c.l.b16 %v53
    %v1077 = vunpack.c.h.b16 %v53
    %v1078 = vunpack.c.l.b16 %v54
    %v1079 = vunpack.c.h.b16 %v54
    %v1080 = vunpack.c.l.b16 %v55
    %v1081 = vunpack.c.h.b16 %v55
    %v1082 = vunpack.c.l.b16 %v56
    %v1083 = vunpack.c.h.b16 %v56
    %v1084 = vunpack.c.l.b16 %v57
    %v1085 = vunpack.c.h.b16 %v57
    %v1086 = vunpack.c.l.b16 %v58
    %v1087 = vunpack.c.h.b16 %v58
    %v1088 = vunpack.c.l.b16 %v59
    %v1089 = vunpack.c.h.b16 %v59
    %v1090 = vunpack.c.l.b16 %v60
    %v1091 = vunpack.c.h.b16 %v60
    %v1092 = vunpack.c.l.b16 %v61
    %v1093 = vunpack.c.h.b16 %v61
    %v1094 = vunpack.c.l.b16 %v62
    %v1095 = vunpack.c.h.b16 %v62
    %v1096 = vunpack.c.l.b16 %v63
    %v1097 = vunpack.c.h.b16 %v63
    %v1098 = vunpack.c.l.b16 %v64
    %v1099 = vunpack.c.h.b16 %v64
    %v1100 = vunpack.c.l.b16 %v65
    %v1101 = vunpack.c.h.b16 %v65
    %v1102 = vunpack.c.l.b16 %v66
    %v1103 = vunpack.c.h.b16 %v66
    %v1104 = vunpack.c.l.b16 %v67
    %v1105 = vunpack.c.h.b16 %v67
    %v1106 = vunpack.c.l.b16 %v68
    %v1107 = vunpack.c.h.b16 %v68
    %v1108 = vunpack.c.l.b16 %v69
    %v1109 = vunpack.c.h.b16 %v69
    %v1110 = vunpack.c.l.b16 %v70
    %v1111 = vunpack.c.h.b16 %v70
    %v1112 = vunpack.c.l.b16 %v71
    %v1113 = vunpack.c.h.b16 %v71
    %v1114 = vunpack.c.l.b16 %v72
    %v1115 = vunpack.c.h.b16 %v72
    %v1116 = vunpack.c.l.b16 %v73
    %v1117 = vunpack.c.h.b16 %v73
    %v1118 = vunpack.c.l.b16 %v74
    %v1119 = vunpack.c.h.b16 %v74
    %v1120 = vunpack.c.l.b16 %v75
    %v1121 = vunpack.c.h.b16 %v75
    %v1122 = vunpack.c.l.b16 %v76
    %v1123 = vunpack.c.h.b16 %v76
    %v1124 = vunpack.c.l.b16 %v77
    %v1125 = vunpack.c.h.b16 %v77
    %v1126 = vunpack.c.l.b16 %v78
    %v1127 = vunpack.c.h.b16 %v78
    %v1128 = vunpack.c.l.b16 %v79
    %v1129 = vunpack.c.h.b16 %v79
    %v1130 = vunpack.c.l.b16 %v80
    %v1131 = vunpack.c.h.b16 %v80
    %v1132 = vunpack.c.l.b16 %v81
    %v1133 = vunpack.c.h.b16 %v81
    %v1134 = vunpack.c.l.b16 %v82
    %v1135 = vunpack.c.h.b16 %v82
    %v1136 = vunpack.c.l.b16 %v83
    %v1137 = vunpack.c.h.b16 %v83
    %v1138 = vunpack.c.l.b16 %v84
    %v1139 = vunpack.c.h.b16 %v84
    %v1140 = vunpack.c.l.b16 %v85
    %v1141 = vunpack.c.h.b16 %v85
    %v1142 = vunpack.c.l.b16 %v86
    %v1143 = vunpack.c.h.b16 %v86
    %v1144 = vunpack.c.l.b16 %v87
    %v1145 = vunpack.c.h.b16 %v87
    %v1146 = vunpack.c.l.b16 %v88
    %v1147 = vunpack.c.h.b16 %v88
    %v1148 = vunpack.c.l.b16 %v89
    %v1149 = vunpack.c.h.b16 %v89
    %v1150 = vunpack.c.l.b16 %v90
    %v1151 = vunpack.c.h.b16 %v90
    %v1152 = vunpack.c.l.b16 %v91
    %v1153 = vunpack.c.h.b16 %v91
    %v1154 = vunpack.c.l.b16 %v92
    %v1155 = vunpack.c.h.b16 %v92
    %v1156 = vunpack.c.l.b16 %v93
    %v1157 = vunpack.c.h.b16 %v93
    %v1158 = vunpack.c.l.b16 %v94
    %v1159 = vunpack.c.h.b16 %v94
    %v1160 = vunpack.c.l.b16 %v95
    %v1161 = vunpack.c.h.b16 %v95
    %v1162 = vunpack.c.l.b16 %v96
    %v1163 = vunpack.c.h.b16 %v96
    %v1164 = vunpack.c.l.b16 %v97
    %v1165 = vunpack.c.h.b16 %v97
    %v1166 = vunpack.c.l.b16 %v98
    %v1167 = vunpack.c.h.b16 %v98
    %v1168 = vunpack.c.l.b16 %v99
    %v1169 = vunpack.c.h.b16 %v99
    %v1170 = vunpack.c.l.b16 %v100
    %v1171 = vunpack.c.h.b16 %v100
    %v1172 = vunpack.c.l.b16 %v101
    %v1173 = vunpack.c.h.b16 %v101
    %v1174 = vunpack.c.l.b16 %v102
    %v1175 = vunpack.c.h.b16 %v102
    %v1176 = vunpack.c.l.b16 %v103
    %v1177 = vunpack.c.h.b16 %v103
    %v1178 = vunpack.c.l.b16 %v104
    %v1179 = vunpack.c.h.b16 %v104
    %v1180 = vunpack.c.l.b16 %v105
    %v1181 = vunpack.c.h.b16 %v105
    %v1182 = vunpack.c.l.b16 %v106
    %v1183 = vunpack.c.h.b16 %v106
    %v1184 = vunpack.c.l.b16 %v107
    %v1185 = vunpack.c.h.b16 %v107
    %v1186 = vunpack.c.l.b16 %v108
    %v1187 = vunpack.c.h.b16 %v108
    %v1188 = vunpack.c.l.b16 %v109
    %v1189 = vunpack.c.h.b16 %v109
    %v1190 = vunpack.c.l.b16 %v110
    %v1191 = vunpack.c.h.b16 %v110
    %v1192 = vunpack.c.l.b16 %v111
    %v1193 = vunpack.c.h.b16 %v111
    %v1194 = vunpack.c.l.b16 %v112
    %v1195 = vunpack.c.h.b16 %v112
    %v1196 = vunpack.c.l.b16 %v113
    %v1197 = vunpack.c.h.b16 %v113
    %v1198 = vunpack.c.l.b16 %v114
    %v1199 = vunpack.c.h.b16 %v114
    %v1200 = vunpack.c.l.b16 %v115
    %v1201 = vunpack.c.h.b16 %v115
    %v1202 = vunpack.c.l.b16 %v116
    %v1203 = vunpack.c.h.b16 %v116
    %v1204 = vunpack.c.l.b16 %v117
    %v1205 = vunpack.c.h.b16 %v117
    %v1206 = vunpack.c.l.b16 %v118
    %v1207 = vunpack.c.h.b16 %v118
    %v1208 = vunpack.c.l.b16 %v119
    %v1209 = vunpack.c.h.b16 %v119
    %v1210 = vunpack.c.l.b16 %v120
    %v1211 = vunpack.c.h.b16 %v120
    %v1212 = vunpack.c.l.b16 %v121
    %v1213 = vunpack.c.h.b16 %v121
    %v1214 = vunpack.c.l.b16 %v122
    %v1215 = vunpack.c.h.b16 %v122
    %v1216 = vunpack.c.l.b16 %v123
    %v1217 = vunpack.c.h.b16 %v123
    %v1218 = vunpack.c.l.b16 %v124
    %v1219 = vunpack.c.h.b16 %v124
    %v1220 = vunpack.c.l.b16 %v125
    %v1221 = vunpack.c.h.b16 %v125
    %v1222 = vunpack.c.l.b16 %v126
    %v1223 = vunpack.c.h.b16 %v126
    %v1224 = vunpack.c.l.b16 %v127
    %v1225 = vunpack.c.h.b16 %v127
    %v1226 = vunpack.c.l.b16 %v128
    %v1227 = vunpack.c.h.b16 %v128
    %v1228 = vunpack.c.l.b16 %v129
    %v1229 = vunpack.c.h.b16 %v129
    %v1230 = vunpack.c.l.b16 %v130
    %v1231 = vunpack.c.h.b16 %v130
    %v1232 = vunpack.c.l.b16 %v131
    %v1233 = vunpack.c.h.b16 %v131
    %v1234 = vunpack.c.l.b16 %v132
    %v1235 = vunpack.c.h.b16 %v132
    %v1236 = vunpack.c.l.b16 %v133
    %v1237 = vunpack.c.h.b16 %v133
    %v1238 = vunpack.c.l.b16 %v134
    %v1239 = vunpack.c.h.b16 %v134
    %v1240 = vunpack.c.l.b16 %v135
    %v1241 = vunpack.c.h.b16 %v135
    %v1242 = vunpack.c.l.b16 %v136
    %v1243 = vunpack.c.h.b16 %v136
    %v1244 = vunpack.c.l.b16 %v137
    %v1245 = vunpack.c.h.b16 %v137
    %v1246 = vunpack.c.l.b16 %v138
    %v1247 = vunpack.c.h.b16 %v138
    %v1248 = vunpack.c.l.b16 %v139
    %v1249 = vunpack.c.h.b16 %v139
    %v1250 = vunpack.c.l.b16 %v140
    %v1251 = vunpack.c.h.b16 %v140
    %v1252 = vunpack.c.l.b16 %v141
    %v1253 = vunpack.c.h.b16 %v141
    %v1254 = vunpack.c.l.b16 %v142
    %v1255 = vunpack.c.h.b16 %v142
    %v1256 = vunpack.c.l.b16 %v143
    %v1257 = vunpack.c.h.b16 %v143
    %v1258 = vunpack.c.l.b16 %v144
    %v1259 = vunpack.c.h.b16 %v144
    %v1260 = vunpack.c.l.b16 %v145
    %v1261 = vunpack.c.h.b16 %v145
    %v1262 = vunpack.c.l.b16 %v146
    %v1263 = vunpack.c.h.b16 %v146
    %v1264 = vunpack.c.l.b16 %v147
    %v1265 = vunpack.c.h.b16 %v147
    %v1266 = vunpack.c.l.b16 %v148
    %v1267 = vunpack.c.h.b16 %v148
    %v1268 = vunpack.c.l.b16 %v149
    %v1269 = vunpack.c.h.b16 %v149
    %v1270 = vunpack.c.l.b16 %v150
    %v1271 = vunpack.c.h.b16 %v150
    %v1272 = vunpack.c.l.b16 %v151
    %v1273 = vunpack.c.h.b16 %v151
    %v1274 = vunpack.c.l.b16 %v152
    %v1275 = vunpack.c.h.b16 %v152
    %v1276 = vunpack.c.l.b16 %v153
    %v1277 = vunpack.c.h.b16 %v153
    %v1278 = vunpack.c.l.b16 %v154
    %v1279 = vunpack.c.h.b16 %v154
    %v1280 = vunpack.c.l.b16 %v155
    %v1281 = vunpack.c.h.b16 %v155
    %v1282 = vunpack.c.l.b16 %v156
    %v1283 = vunpack.c.h.b16 %v156
    %v1284 = vunpack.c.l.b16 %v157
    %v1285 = vunpack.c.h.b16 %v157
    %v1286 = vunpack.c.l.b16 %v158
    %v1287 = vunpack.c.h.b16 %v158
    %v1288 = vunpack.c.l.b16 %v159
    %v1289 = vunpack.c.h.b16 %v159
    %v1290 = vunpack.c.l.b16 %v160
    %v1291 = vunpack.c.h.b16 %v160
    %v1292 = vunpack.c.l.b16 %v161
    %v1293 = vunpack.c.h.b16 %v161
    %v1294 = vunpack.c.l.b16 %v162
    %v1295 = vunpack.c.h.b16 %v162
    %v1296 = vunpack.c.l.b16 %v163
    %v1297 = vunpack.c.h.b16 %v163
    %v1298 = vunpack.c.l.b16 %v164
    %v1299 = vunpack.c.h.b16 %v164
    %v1300 = vunpack.c.l.b16 %v165
    %v1301 = vunpack.c.h.b16 %v165
    %v1302 = vunpack.c.l.b16 %v166
    %v1303 = vunpack.c.h.b16 %v166
    %v1304 = vunpack.c.l.b16 %v167
    %v1305 = vunpack.c.h.b16 %v167
    %v1306 = vunpack.c.l.b16 %v168
    %v1307 = vunpack.c.h.b16 %v168
    %v1308 = vunpack.c.l.b16 %v169
    %v1309 = vunpack.c.h.b16 %v169
    %v1310 = vunpack.c.l.b16 %v170
    %v1311 = vunpack.c.h.b16 %v170
    %v1312 = vunpack.c.l.b16 %v171
    %v1313 = vunpack.c.h.b16 %v171
    %v1314 = vunpack.c.l.b16 %v172
    %v1315 = vunpack.c.h.b16 %v172
    %v1316 = vunpack.c.l.b16 %v173
    %v1317 = vunpack.c.h.b16 %v173
    %v1318 = vunpack.c.l.b16 %v174
    %v1319 = vunpack.c.h.b16 %v174
    %v1320 = vunpack.c.l.b16 %v175
    %v1321 = vunpack.c.h.b16 %v175
    %v1322 = vunpack.c.l.b16 %v176
    %v1323 = vunpack.c.h.b16 %v176
    %v1324 = vunpack.c.l.b16 %v177
    %v1325 = vunpack.c.h.b16 %v177
    %v1326 = vunpack.c.l.b16 %v178
    %v1327 = vunpack.c.h.b16 %v178
    %v1328 = vunpack.c.l.b16 %v179
    %v1329 = vunpack.c.h.b16 %v179
    %v1330 = vunpack.c.l.b16 %v180
    %v1331 = vunpack.c.h.b16 %v180
    %v1332 = vunpack.c.l.b16 %v181
    %v1333 = vunpack.c.h.b16 %v181
    %v1334 = vunpack.c.l.b16 %v182
    %v1335 = vunpack.c.h.b16 %v182
    %v1336 = vunpack.c.l.b16 %v183
    %v1337 = vunpack.c.h.b16 %v183
    %v1338 = vunpack.c.l.b16 %v184
    %v1339 = vunpack.c.h.b16 %v184
    %v1340 = vunpack.c.l.b16 %v185
    %v1341 = vunpack.c.h.b16 %v185
    %v1342 = vunpack.c.l.b16 %v186
    %v1343 = vunpack.c.h.b16 %v186
    %v1344 = vunpack.c.l.b16 %v187
    %v1345 = vunpack.c.h.b16 %v187
    %v1346 = vunpack.c.l.b16 %v188
    %v1347 = vunpack.c.h.b16 %v188
    %v1348 = vunpack.c.l.b16 %v189
    %v1349 = vunpack.c.h.b16 %v189
    %v1350 = vunpack.c.l.b16 %v190
    %v1351 = vunpack.c.h.b16 %v190
    %v1352 = vunpack.c.l.b16 %v191
    %v1353 = vunpack.c.h.b16 %v191
    %v1354 = vunpack.c.l.b16 %v192
    %v1355 = vunpack.c.h.b16 %v192
    %v1356 = vunpack.c.l.b16 %v193
    %v1357 = vunpack.c.h.b16 %v193
    %v1358 = vunpack.c.l.b16 %v194
    %v1359 = vunpack.c.h.b16 %v194
    %v1360 = vunpack.c.l.b16 %v195
    %v1361 = vunpack.c.h.b16 %v195
    %v1362 = vunpack.c.l.b16 %v196
    %v1363 = vunpack.c.h.b16 %v196
    %v1364 = vunpack.c.l.b16 %v197
    %v1365 = vunpack.c.h.b16 %v197
    %v1366 = vunpack.c.l.b16 %v198
    %v1367 = vunpack.c.h.b16 %v198
    %v1368 = vunpack.c.l.b16 %v199
    %v1369 = vunpack.c.h.b16 %v199
    %v1370 = vunpack.c.l.b16 %v200
    %v1371 = vunpack.c.h.b16 %v200
    %v1372 = vunpack.c.l.b16 %v201
    %v1373 = vunpack.c.h.b16 %v201
    %v1374 = vunpack.c.l.b16 %v202
    %v1375 = vunpack.c.h.b16 %v202
    %v1376 = vunpack.c.l.b16 %v203
    %v1377 = vunpack.c.h.b16 %v203
    %v1378 = vunpack.c.l.b16 %v204
    %v1379 = vunpack.c.h.b16 %v204
    %v1380 = vunpack.c.l.b16 %v205
    %v1381 = vunpack.c.h.b16 %v205
    %v1382 = vunpack.c.l.b16 %v206
    %v1383 = vunpack.c.h.b16 %v206
    %v1384 = vunpack.c.l.b16 %v207
    %v1385 = vunpack.c.h.b16 %v207
    %v1386 = vunpack.c.l.b16 %v208
    %v1387 = vunpack.c.h.b16 %v208
    %v1388 = vunpack.c.l.b16 %v209
    %v1389 = vunpack.c.h.b16 %v209
    %v1390 = vunpack.c.l.b16 %v210
    %v1391 = vunpack.c.h.b16 %v210
    %v1392 = vunpack.c.l.b16 %v211
    %v1393 = vunpack.c.h.b16 %v211
    %v1394 = vunpack.c.l.b16 %v212
    %v1395 = vunpack.c.h.b16 %v212
    %v1396 = vunpack.c.l.b16 %v213
    %v1397 = vunpack.c.h.b16 %v213
    %v1398 = vunpack.c.l.b16 %v214
    %v1399 = vunpack.c.h.b16 %v214
    %v1400 = vunpack.c.l.b16 %v215
    %v1401 = vunpack.c.h.b16 %v215
    %v1402 = vunpack.c.l.b16 %v216
    %v1403 = vunpack.c.h.b16 %v216
    %v1404 = vunpack.c.l.b16 %v217
    %v1405 = vunpack.c.h.b16 %v217
    %v1406 = vunpack.c.l.b16 %v218
    %v1407 = vunpack.c.h.b16 %v218
    %v1408 = vunpack.c.l.b16 %v219
    %v1409 = vunpack.c.h.b16 %v219
    %v1410 = vunpack.c.l.b16 %v220
    %v1411 = vunpack.c.h.b16 %v220
    %v1412 = vunpack.c.l.b16 %v221
    %v1413 = vunpack.c.h.b16 %v221
    %v1414 = vunpack.c.l.b16 %v222
    %v1415 = vunpack.c.h.b16 %v222
    %v1416 = vunpack.c.l.b16 %v223
    %v1417 = vunpack.c.h.b16 %v223
    %v1418 = vunpack.c.l.b16 %v224
    %v1419 = vunpack.c.h.b16 %v224
    %v1420 = vunpack.c.l.b16 %v225
    %v1421 = vunpack.c.h.b16 %v225
    %v1422 = vunpack.c.l.b16 %v226
    %v1423 = vunpack.c.h.b16 %v226
    %v1424 = vunpack.c.l.b16 %v227
    %v1425 = vunpack.c.h.b16 %v227
    %v1426 = vunpack.c.l.b16 %v228
    %v1427 = vunpack.c.h.b16 %v228
    %v1428 = vunpack.c.l.b16 %v229
    %v1429 = vunpack.c.h.b16 %v229
    %v1430 = vunpack.c.l.b16 %v230
    %v1431 = vunpack.c.h.b16 %v230
    %v1432 = vunpack.c.l.b16 %v231
    %v1433 = vunpack.c.h.b16 %v231
    %v1434 = vunpack.c.l.b16 %v232
    %v1435 = vunpack.c.h.b16 %v232
    %v1436 = vunpack.c.l.b16 %v233
    %v1437 = vunpack.c.h.b16 %v233
    %v1438 = vunpack.c.l.b16 %v234
    %v1439 = vunpack.c.h.b16 %v234
    %v1440 = vunpack.c.l.b16 %v235
    %v1441 = vunpack.c.h.b16 %v235
    %v1442 = vunpack.c.l.b16 %v236
    %v1443 = vunpack.c.h.b16 %v236
    %v1444 = vunpack.c.l.b16 %v237
    %v1445 = vunpack.c.h.b16 %v237
    %v1446 = vunpack.c.l.b16 %v238
    %v1447 = vunpack.c.h.b16 %v238
    %v1448 = vunpack.c.l.b16 %v239
    %v1449 = vunpack.c.h.b16 %v239
    %v1450 = vunpack.c.l.b16 %v240
    %v1451 = vunpack.c.h.b16 %v240
    %v1452 = vunpack.c.l.b16 %v241
    %v1453 = vunpack.c.h.b16 %v241
    %v1454 = vunpack.c.l.b16 %v242
    %v1455 = vunpack.c.h.b16 %v242
    %v1456 = vunpack.c.l.b16 %v243
    %v1457 = vunpack.c.h.b16 %v243
    %v1458 = vunpack.c.l.b16 %v244
    %v1459 = vunpack.c.h.b16 %v244
    %v1460 = vunpack.c.l.b16 %v245
    %v1461 = vunpack.c.h.b16 %v245
    %v1462 = vunpack.c.l.b16 %v246
    %v1463 = vunpack.c.h.b16 %v246
    %v1464 = vunpack.c.l.b16 %v247
    %v1465 = vunpack.c.h.b16 %v247
    %v1466 = vunpack.c.l.b16 %v248
    %v1467 = vunpack.c.h.b16 %v248
    %v1468 = vunpack.c.l.b16 %v249
    %v1469 = vunpack.c.h.b16 %v249
    %v1470 = vunpack.c.l.b16 %v250
    %v1471 = vunpack.c.h.b16 %v250
    %v1472 = vunpack.c.l.b16 %v251
    %v1473 = vunpack.c.h.b16 %v251
    %v1474 = vunpack.c.l.b16 %v252
    %v1475 = vunpack.c.h.b16 %v252
    %v1476 = vunpack.c.l.b16 %v253
    %v1477 = vunpack.c.h.b16 %v253
    %v1478 = vunpack.c.l.b16 %v254
    %v1479 = vunpack.c.h.b16 %v254
    %v1480 = vunpack.c.l.b16 %v255
    %v1481 = vunpack.c.h.b16 %v255
    %v1482 = vunpack.c.l.b16 %v256
    %v1483 = vunpack.c.h.b16 %v256
    %v1484 = vunpack.c.l.b16 %v257
    %v1485 = vunpack.c.h.b16 %v257
    %v1486 = vunpack.c.l.b16 %v258
    %v1487 = vunpack.c.h.b16 %v258
    %v1488 = vunpack.c.l.b16 %v259
    %v1489 = vunpack.c.h.b16 %v259
    %v1490 = vunpack.c.l.b16 %v260
    %v1491 = vunpack.c.h.b16 %v260
    %v1492 = vunpack.c.l.b16 %v261
    %v1493 = vunpack.c.h.b16 %v261
    %v1494 = vunpack.c.l.b16 %v262
    %v1495 = vunpack.c.h.b16 %v262
    %v1496 = vunpack.c.l.b16 %v263
    %v1497 = vunpack.c.h.b16 %v263
    %v1498 = vunpack.c.l.b16 %v264
    %v1499 = vunpack.c.h.b16 %v264
    %v1500 = vunpack.c.l.b16 %v265
    %v1501 = vunpack.c.h.b16 %v265
    %v1502 = vunpack.c.l.b16 %v266
    %v1503 = vunpack.c.h.b16 %v266
    %v1504 = vunpack.c.l.b16 %v267
    %v1505 = vunpack.c.h.b16 %v267
    %v1506 = vunpack.c.l.b16 %v268
    %v1507 = vunpack.c.h.b16 %v268
    %v1508 = vunpack.c.l.b16 %v269
    %v1509 = vunpack.c.h.b16 %v269
    %v1510 = vunpack.c.l.b16 %v270
    %v1511 = vunpack.c.h.b16 %v270
    %v1512 = vunpack.c.l.b16 %v271
    %v1513 = vunpack.c.h.b16 %v271
    %v1514 = vunpack.c.l.b16 %v272
    %v1515 = vunpack.c.h.b16 %v272
    %v1516 = vunpack.c.l.b16 %v273
    %v1517 = vunpack.c.h.b16 %v273
    %v1518 = vunpack.c.l.b16 %v274
    %v1519 = vunpack.c.h.b16 %v274
    %v1520 = vunpack.c.l.b16 %v275
    %v1521 = vunpack.c.h.b16 %v275
    %v1522 = vunpack.c.l.b16 %v276
    %v1523 = vunpack.c.h.b16 %v276
    %v1524 = vunpack.c.l.b16 %v277
    %v1525 = vunpack.c.h.b16 %v277
    %v1526 = vunpack.c.l.b16 %v278
    %v1527 = vunpack.c.h.b16 %v278
    %v1528 = vunpack.c.l.b16 %v279
    %v1529 = vunpack.c.h.b16 %v279
    %v1530 = vunpack.c.l.b16 %v280
    %v1531 = vunpack.c.h.b16 %v280
    %v1532 = vunpack.c.l.b16 %v281
    %v1533 = vunpack.c.h.b16 %v281
    %v1534 = vunpack.c.l.b16 %v282
    %v1535 = vunpack.c.h.b16 %v282
    %v1536 = vunpack.c.l.b16 %v283
    %v1537 = vunpack.c.h.b16 %v283
    %v1538 = vunpack.c.l.b16 %v284
    %v1539 = vunpack.c.h.b16 %v284
    %v1540 = vunpack.c.l.b16 %v285
    %v1541 = vunpack.c.h.b16 %v285
    %v1542 = vunpack.c.l.b16 %v286
    %v1543 = vunpack.c.h.b16 %v286
    %v1544 = vunpack.c.l.b16 %v287
    %v1545 = vunpack.c.h.b16 %v287
    %v1546 = vunpack.c.l.b16 %v288
    %v1547 = vunpack.c.h.b16 %v288
    %v1548 = vunpack.c.l.b16 %v289
    %v1549 = vunpack.c.h.b16 %v289
    %v1550 = vunpack.c.l.b16 %v290
    %v1551 = vunpack.c.h.b16 %v290
    %v1552 = vunpack.c.l.b16 %v291
    %v1553 = vunpack.c.h.b16 %v291
    %v1554 = vunpack.c.l.b16 %v292
    %v1555 = vunpack.c.h.b16 %v292
    %v1556 = vunpack.c.l.b16 %v293
    %v1557 = vunpack.c.h.b16 %v293
    %v1558 = vunpack.c.l.b16 %v294
    %v1559 = vunpack.c.h.b16 %v294
    %v1560 = vunpack.c.l.b16 %v295
    %v1561 = vunpack.c.h.b16 %v295
    %v1562 = vunpack.c.l.b16 %v296
    %v1563 = vunpack.c.h.b16 %v296
    %v1564 = vunpack.c.l.b16 %v297
    %v1565 = vunpack.c.h.b16 %v297
    %v1566 = vunpack.c.l.b16 %v298
    %v1567 = vunpack.c.h.b16 %v298
    %v1568 = vunpack.c.l.b16 %v299
    %v1569 = vunpack.c.h.b16 %v299
    %v1570 = vunpack.c.l.b16 %v300
    %v1571 = vunpack.c.h.b16 %v300
    %v1572 = vunpack.c.l.b16 %v301
    %v1573 = vunpack.c.h.b16 %v301
    %v1574 = vunpack.c.l.b16 %v302
    %v1575 = vunpack.c.h.b16 %v302
    %v1576 = vunpack.c.l.b16 %v303
    %v1577 = vunpack.c.h.b16 %v303
    %v1578 = vunpack.c.l.b16 %v304
    %v1579 = vunpack.c.h.b16 %v304
    %v1580 = vunpack.c.l.b16 %v305
    %v1581 = vunpack.c.h.b16 %v305
    %v1582 = vunpack.c.l.b16 %v306
    %v1583 = vunpack.c.h.b16 %v306
    %v1584 = vunpack.c.l.b16 %v307
    %v1585 = vunpack.c.h.b16 %v307
    %v1586 = vunpack.c.l.b16 %v308
    %v1587 = vunpack.c.h.b16 %v308
    %v1588 = vunpack.c.l.b16 %v309
    %v1589 = vunpack.c.h.b16 %v309
    %v1590 = vunpack.c.l.b16 %v310
    %v1591 = vunpack.c.h.b16 %v310
    %v1592 = vunpack.c.l.b16 %v311
    %v1593 = vunpack.c.h.b16 %v311
    %v1594 = vunpack.c.l.b16 %v312
    %v1595 = vunpack.c.h.b16 %v312
    %v1596 = vunpack.c.l.b16 %v313
    %v1597 = vunpack.c.h.b16 %v313
    %v1598 = vunpack.c.l.b16 %v314
    %v1599 = vunpack.c.h.b16 %v314
    %v1600 = vunpack.c.l.b16 %v315
    %v1601 = vunpack.c.h.b16 %v315
    %v1602 = vunpack.c.l.b16 %v316
    %v1603 = vunpack.c.h.b16 %v316
    %v1604 = vunpack.c.l.b16 %v317
    %v1605 = vunpack.c.h.b16 %v317
    %v1606 = vunpack.c.l.b16 %v318
    %v1607 = vunpack.c.h.b16 %v318
    %v1608 = vunpack.c.l.b16 %v319
    %v1609 = vunpack.c.h.b16 %v319
    %v1610 = vunpack.c.l.b16 %v320
    %v1611 = vunpack.c.h.b16 %v320
    %v1612 = vunpack.c.l.b16 %v321
    %v1613 = vunpack.c.h.b16 %v321
    %v1614 = vunpack.c.l.b16 %v322
    %v1615 = vunpack.c.h.b16 %v322
    %v1616 = vunpack.c.l.b16 %v323
    %v1617 = vunpack.c.h.b16 %v323
    %v1618 = vunpack.c.l.b16 %v324
    %v1619 = vunpack.c.h.b16 %v324
    %v1620 = vunpack.c.l.b16 %v325
    %v1621 = vunpack.c.h.b16 %v325
    %v1622 = vunpack.c.l.b16 %v326
    %v1623 = vunpack.c.h.b16 %v326
    %v1624 = vunpack.c.l.b16 %v327
    %v1625 = vunpack.c.h.b16 %v327
    %v1626 = vunpack.c.l.b16 %v328
    %v1627 = vunpack.c.h.b16 %v328
    %v1628 = vunpack.c.l.b16 %v329
    %v1629 = vunpack.c.h.b16 %v329
    %v1630 = vunpack.c.l.b16 %v330
    %v1631 = vunpack.c.h.b16 %v330
    %v1632 = vunpack.c.l.b16 %v331
    %v1633 = vunpack.c.h.b16 %v331
    %v1634 = vunpack.c.l.b16 %v332
    %v1635 = vunpack.c.h.b16 %v332
    %v1636 = vunpack.c.l.b16 %v333
    %v1637 = vunpack.c.h.b16 %v333
    %v1638 = vunpack.c.l.b16 %v334
    %v1639 = vunpack.c.h.b16 %v334
    %v1640 = vunpack.c.l.b16 %v335
    %v1641 = vunpack.c.h.b16 %v335
    %v1642 = vunpack.c.l.b16 %v336
    %v1643 = vunpack.c.h.b16 %v336
    %v1644 = vunpack.c.l.b16 %v337
    %v1645 = vunpack.c.h.b16 %v337
    %v1646 = vunpack.c.l.b16 %v338
    %v1647 = vunpack.c.h.b16 %v338
    %v1648 = vunpack.c.l.b16 %v339
    %v1649 = vunpack.c.h.b16 %v339
    %v1650 = vunpack.c.l.b16 %v340
    %v1651 = vunpack.c.h.b16 %v340
    %v1652 = vunpack.c.l.b16 %v341
    %v1653 = vunpack.c.h.b16 %v341
    %v1654 = vunpack.c.l.b16 %v342
    %v1655 = vunpack.c.h.b16 %v342
    %v1656 = vunpack.c.l.b16 %v343
    %v1657 = vunpack.c.h.b16 %v343
    %v1658 = vunpack.c.l.b16 %v344
    %v1659 = vunpack.c.h.b16 %v344
    %v1660 = vunpack.c.l.b16 %v345
    %v1661 = vunpack.c.h.b16 %v345
    %v1662 = vunpack.c.l.b16 %v346
    %v1663 = vunpack.c.h.b16 %v346
    %v1664 = vunpack.c.l.b16 %v347
    %v1665 = vunpack.c.h.b16 %v347
    %v1666 = vunpack.c.l.b16 %v348
    %v1667 = vunpack.c.h.b16 %v348
    %v1668 = vunpack.c.l.b16 %v349
    %v1669 = vunpack.c.h.b16 %v349
    %v1670 = vunpack.c.l.b16 %v350
    %v1671 = vunpack.c.h.b16 %v350
    %v1672 = vunpack.c.l.b16 %v351
    %v1673 = vunpack.c.h.b16 %v351
    %v1674 = vunpack.c.l.b16 %v352
    %v1675 = vunpack.c.h.b16 %v352
    %v1676 = vunpack.c.l.b16 %v353
    %v1677 = vunpack.c.h.b16 %v353
    %v1678 = vunpack.c.l.b16 %v354
    %v1679 = vunpack.c.h.b16 %v354
    %v1680 = vunpack.c.l.b16 %v355
    %v1681 = vunpack.c.h.b16 %v355
    %v1682 = vunpack.c.l.b16 %v356
    %v1683 = vunpack.c.h.b16 %v356
    %v1684 = vunpack.c.l.b16 %v357
    %v1685 = vunpack.c.h.b16 %v357
    %v1686 = vunpack.c.l.b16 %v358
    %v1687 = vunpack.c.h.b16 %v358
    %v1688 = vunpack.c.l.b16 %v359
    %v1689 = vunpack.c.h.b16 %v359
    %v1690 = vunpack.c.l.b16 %v360
    %v1691 = vunpack.c.h.b16 %v360
    %v1692 = vunpack.c.l.b16 %v361
    %v1693 = vunpack.c.h.b16 %v361
    %v1694 = vunpack.c.l.b16 %v362
    %v1695 = vunpack.c.h.b16 %v362
    %v1696 = vunpack.c.l.b16 %v363
    %v1697 = vunpack.c.h.b16 %v363
    %v1698 = vunpack.c.l.b16 %v364
    %v1699 = vunpack.c.h.b16 %v364
    %v1700 = vunpack.c.l.b16 %v365
    %v1701 = vunpack.c.h.b16 %v365
    %v1702 = vunpack.c.l.b16 %v366
    %v1703 = vunpack.c.h.b16 %v366
    %v1704 = vunpack.c.l.b16 %v367
    %v1705 = vunpack.c.h.b16 %v367
    %v1706 = vunpack.c.l.b16 %v368
    %v1707 = vunpack.c.h.b16 %v368
    %v1708 = vunpack.c.l.b16 %v369
    %v1709 = vunpack.c.h.b16 %v369
    %v1710 = vunpack.c.l.b16 %v370
    %v1711 = vunpack.c.h.b16 %v370
    %v1712 = vunpack.c.l.b16 %v371
    %v1713 = vunpack.c.h.b16 %v371
    %v1714 = vunpack.c.l.b16 %v372
    %v1715 = vunpack.c.h.b16 %v372
    %v1716 = vunpack.c.l.b16 %v373
    %v1717 = vunpack.c.h.b16 %v373
    %v1718 = vunpack.c.l.b16 %v374
    %v1719 = vunpack.c.h.b16 %v374
    %v1720 = vunpack.c.l.b16 %v375
    %v1721 = vunpack.c.h.b16 %v375
    %v1722 = vunpack.c.l.b16 %v376
    %v1723 = vunpack.c.h.b16 %v376
    %v1724 = vunpack.c.l.b16 %v377
    %v1725 = vunpack.c.h.b16 %v377
    %v1726 = vunpack.c.l.b16 %v378
    %v1727 = vunpack.c.h.b16 %v378
    %v1728 = vunpack.c.l.b16 %v379
    %v1729 = vunpack.c.h.b16 %v379
    %v1730 = vunpack.c.l.b16 %v380
    %v1731 = vunpack.c.h.b16 %v380
    %v1732 = vunpack.c.l.b16 %v381
    %v1733 = vunpack.c.h.b16 %v381
    %v1734 = vunpack.c.l.b16 %v382
    %v1735 = vunpack.c.h.b16 %v382
    %v1736 = vunpack.c.l.b16 %v383
    %v1737 = vunpack.c.h.b16 %v383
    %v1738 = vunpack.c.l.b16 %v384
    %v1739 = vunpack.c.h.b16 %v384
    %v1740 = vunpack.c.l.b16 %v385
    %v1741 = vunpack.c.h.b16 %v385
    %v1742 = vunpack.c.l.b16 %v386
    %v1743 = vunpack.c.h.b16 %v386
    %v1744 = vunpack.c.l.b16 %v387
    %v1745 = vunpack.c.h.b16 %v387
    %v1746 = vunpack.c.l.b16 %v388
    %v1747 = vunpack.c.h.b16 %v388
    %v1748 = vunpack.c.l.b16 %v389
    %v1749 = vunpack.c.h.b16 %v389
    %v1750 = vunpack.c.l.b16 %v390
    %v1751 = vunpack.c.h.b16 %v390
    %v1752 = vunpack.c.l.b16 %v391
    %v1753 = vunpack.c.h.b16 %v391
    %v1754 = vunpack.c.l.b16 %v392
    %v1755 = vunpack.c.h.b16 %v392
    %v1756 = vunpack.c.l.b16 %v393
    %v1757 = vunpack.c.h.b16 %v393
    %v1758 = vunpack.c.l.b16 %v394
    %v1759 = vunpack.c.h.b16 %v394
    %v1760 = vunpack.c.l.b16 %v395
    %v1761 = vunpack.c.h.b16 %v395
    %v1762 = vunpack.c.l.b16 %v396
    %v1763 = vunpack.c.h.b16 %v396
    %v1764 = vunpack.c.l.b16 %v397
    %v1765 = vunpack.c.h.b16 %v397
    %v1766 = vunpack.c.l.b16 %v398
    %v1767 = vunpack.c.h.b16 %v398
    %v1768 = vunpack.c.l.b16 %v399
    %v1769 = vunpack.c.h.b16 %v399
    %v1770 = vunpack.c.l.b16 %v400
    %v1771 = vunpack.c.h.b16 %v400
    %v1772 = vunpack.c.l.b16 %v401
    %v1773 = vunpack.c.h.b16 %v401
    %v1774 = vunpack.c.l.b16 %v402
    %v1775 = vunpack.c.h.b16 %v402
    %v1776 = vunpack.c.l.b16 %v403
    %v1777 = vunpack.c.h.b16 %v403
    %v1778 = vunpack.c.l.b16 %v404
    %v1779 = vunpack.c.h.b16 %v404
    %v1780 = vunpack.c.l.b16 %v405
    %v1781 = vunpack.c.h.b16 %v405
    %v1782 = vunpack.c.l.b16 %v406
    %v1783 = vunpack.c.h.b16 %v406
    %v1784 = vunpack.c.l.b16 %v407
    %v1785 = vunpack.c.h.b16 %v407
    %v1786 = vunpack.c.l.b16 %v408
    %v1787 = vunpack.c.h.b16 %v408
    %v1788 = vunpack.c.l.b16 %v409
    %v1789 = vunpack.c.h.b16 %v409
    %v1790 = vunpack.c.l.b16 %v410
    %v1791 = vunpack.c.h.b16 %v410
    %v1792 = vunpack.c.l.b16 %v411
    %v1793 = vunpack.c.h.b16 %v411
    %v1794 = vunpack.c.l.b16 %v412
    %v1795 = vunpack.c.h.b16 %v412
    %v1796 = vunpack.c.l.b16 %v413
    %v1797 = vunpack.c.h.b16 %v413
    %v1798 = vunpack.c.l.b16 %v414
    %v1799 = vunpack.c.h.b16 %v414
    %v1800 = vunpack.c.l.b16 %v415
    %v1801 = vunpack.c.h.b16 %v415
    %v1802 = vunpack.c.l.b16 %v416
    %v1803 = vunpack.c.h.b16 %v416
    %v1804 = vunpack.c.l.b16 %v417
    %v1805 = vunpack.c.h.b16 %v417
    %v1806 = vunpack.c.l.b16 %v418
    %v1807 = vunpack.c.h.b16 %v418
    %v1808 = vunpack.c.l.b16 %v419
    %v1809 = vunpack.c.h.b16 %v419
    %v1810 = vunpack.c.l.b16 %v420
    %v1811 = vunpack.c.h.b16 %v420
    %v1812 = vunpack.c.l.b16 %v421
    %v1813 = vunpack.c.h.b16 %v421
    %v1814 = vunpack.c.l.b16 %v422
    %v1815 = vunpack.c.h.b16 %v422
    %v1816 = vunpack.c.l.b16 %v423
    %v1817 = vunpack.c.h.b16 %v423
    %v1818 = vunpack.c.l.b16 %v424
    %v1819 = vunpack.c.h.b16 %v424
    %v1820 = vunpack.c.l.b16 %v425
    %v1821 = vunpack.c.h.b16 %v425
    %v1822 = vunpack.c.l.b16 %v426
    %v1823 = vunpack.c.h.b16 %v426
    %v1824 = vunpack.c.l.b16 %v427
    %v1825 = vunpack.c.h.b16 %v427
    %v1826 = vunpack.c.l.b16 %v428
    %v1827 = vunpack.c.h.b16 %v428
    %v1828 = vunpack.c.l.b16 %v429
    %v1829 = vunpack.c.h.b16 %v429
    %v1830 = vunpack.c.l.b16 %v430
    %v1831 = vunpack.c.h.b16 %v430
    %v1832 = vunpack.c.l.b16 %v431
    %v1833 = vunpack.c.h.b16 %v431
    %v1834 = vpack.c.b16 %v1036, %v1034
    %v1835 = vpack.c.b16 %v1037, %v1035
    %v1836 = vpack.c.b16 %v1040, %v1038
    %v1837 = vpack.c.b16 %v1041, %v1039
    %v1838 = vpack.c.b16 %v1044, %v1042
    %v1839 = vpack.c.b16 %v1045, %v1043
    %v1840 = vpack.c.b16 %v1048, %v1046
    %v1841 = vpack.c.b16 %v1049, %v1047
    %v1842 = vpack.c.b16 %v1052, %v1050
    %v1843 = vpack.c.b16 %v1053, %v1051
    %v1844 = vpack.c.b16 %v1056, %v1054
    %v1845 = vpack.c.b16 %v1057, %v1055
    %v1846 = vpack.c.b16 %v1060, %v1058
    %v1847 = vpack.c.b16 %v1061, %v1059
    %v1848 = vpack.c.b16 %v1064, %v1062
    %v1849 = vpack.c.b16 %v1065, %v1063
    %v1850 = vpack.c.b16 %v1068, %v1066
    %v1851 = vpack.c.b16 %v1069, %v1067
    %v1852 = vpack.c.b16 %v1072, %v1070
    %v1853 = vpack.c.b16 %v1073, %v1071
    %v1854 = vpack.c.b16 %v1076, %v1074
    %v1855 = vpack.c.b16 %v1077, %v1075
    %v1856 = vpack.c.b16 %v1080, %v1078
    %v1857 = vpack.c.b16 %v1081, %v1079
    %v1858 = vpack.c.b16 %v1084, %v1082
    %v1859 = vpack.c.b16 %v1085, %v1083
    %v1860 = vpack.c.b16 %v1088, %v1086
    %v1861 = vpack.c.b16 %v1089, %v1087
    %v1862 = vpack.c.b16 %v1092, %v1090
    %v1863 = vpack.c.b16 %v1093, %v1091
    %v1864 = vpack.c.b16 %v1096, %v1094
    %v1865 = vpack.c.b16 %v1097, %v1095
    %v1866 = vpack.c.b16 %v1100, %v1098
    %v1867 = vpack.c.b16 %v1101, %v1099
    %v1868 = vpack.c.b16 %v1104, %v1102
    %v1869 = vpack.c.b16 %v1105, %v1103
    %v1870 = vpack.c.b16 %v1108, %v1106
    %v1871 = vpack.c.b16 %v1109, %v1107
    %v1872 = vpack.c.b16 %v1112, %v1110
    %v1873 = vpack.c.b16 %v1113, %v1111
    %v1874 = vpack.c.b16 %v1116, %v1114
    %v1875 = vpack.c.b16 %v1117, %v1115
    %v1876 = vpack.c.b16 %v1120, %v1118
    %v1877 = vpack.c.b16 %v1121, %v1119
    %v1878 = vpack.c.b16 %v1124, %v1122
    %v1879 = vpack.c.b16 %v1125, %v1123
    %v1880 = vpack.c.b16 %v1128, %v1126
    %v1881 = vpack.c.b16 %v1129, %v1127
    %v1882 = vpack.c.b16 %v1132, %v1130
    %v1883 = vpack.c.b16 %v1133, %v1131
    %v1884 = vpack.c.b16 %v1136, %v1134
    %v1885 = vpack.c.b16 %v1137, %v1135
    %v1886 = vpack.c.b16 %v1140, %v1138
    %v1887 = vpack.c.b16 %v1141, %v1139
    %v1888 = vpack.c.b16 %v1144, %v1142
    %v1889 = vpack.c.b16 %v1145, %v1143
    %v1890 = vpack.c.b16 %v1148, %v1146
    %v1891 = vpack.c.b16 %v1149, %v1147
    %v1892 = vpack.c.b16 %v1152, %v1150
    %v1893 = vpack.c.b16 %v1153, %v1151
    %v1894 = vpack.c.b16 %v1156, %v1154
    %v1895 = vpack.c.b16 %v1157, %v1155
    %v1896 = vpack.c.b16 %v1160, %v1158
    %v1897 = vpack.c.b16 %v1161, %v1159
    %v1898 = vpack.c.b16 %v1164, %v1162
    %v1899 = vpack.c.b16 %v1165, %v1163
    %v1900 = vpack.c.b16 %v1168, %v1166
    %v1901 = vpack.c.b16 %v1169, %v1167
    %v1902 = vpack.c.b16 %v1172, %v1170
    %v1903 = vpack.c.b16 %v1173, %v1171
    %v1904 = vpack.c.b16 %v1176, %v1174
    %v1905 = vpack.c.b16 %v1177, %v1175
    %v1906 = vpack.c.b16 %v1180, %v1178
    %v1907 = vpack.c.b16 %v1181, %v1179
    %v1908 = vpack.c.b16 %v1184, %v1182
    %v1909 = vpack.c.b16 %v1185, %v1183
    %v1910 = vpack.c.b16 %v1188, %v1186
    %v1911 = vpack.c.b16 %v1189, %v1187
    %v1912 = vpack.c.b16 %v1192, %v1190
    %v1913 = vpack.c.b16 %v1193, %v1191
    %v1914 = vpack.c.b16 %v1196, %v1194
    %v1915 = vpack.c.b16 %v1197, %v1195
    %v1916 = vpack.c.b16 %v1200, %v1198
    %v1917 = vpack.c.b16 %v1201, %v1199
    %v1918 = vpack.c.b16 %v1204, %v1202
    %v1919 = vpack.c.b16 %v1205, %v1203
    %v1920 = vpack.c.b16 %v1208, %v1206
    %v1921 = vpack.c.b16 %v1209, %v1207
    %v1922 = vpack.c.b16 %v1212, %v1210
    %v1923 = vpack.c.b16 %v1213, %v1211
    %v1924 = vpack.c.b16 %v1216, %v1214
    %v1925 = vpack.c.b16 %v1217, %v1215
    %v1926 = vpack.c.b16 %v1220, %v1218
    %v1927 = vpack.c.b16 %v1221, %v1219
    %v1928 = vpack.c.b16 %v1224, %v1222
    %v1929 = vpack.c.b16 %v1225, %v1223
    %v1930 = vpack.c.b16 %v1228, %v1226
    %v1931 = vpack.c.b16 %v1229, %v1227
    %v1932 = vpack.c.b16 %v1232, %v1230
    %v1933 = vpack.c.b16 %v1233, %v1231
    %v1934 = vpack.c.b16 %v1236, %v1234
    %v1935 = vpack.c.b16 %v1237, %v1235
    %v1936 = vpack.c.b16 %v1240, %v1238
    %v1937 = vpack.c.b16 %v1241, %v1239
    %v1938 = vpack.c.b16 %v1244, %v1242
    %v1939 = vpack.c.b16 %v1245, %v1243
    %v1940 = vpack.c.b16 %v1248, %v1246
    %v1941 = vpack.c.b16 %v1249, %v1247
    %v1942 = vpack.c.b16 %v1252, %v1250
    %v1943 = vpack.c.b16 %v1253, %v1251
    %v1944 = vpack.c.b16 %v1256, %v1254
    %v1945 = vpack.c.b16 %v1257, %v1255
    %v1946 = vpack.c.b16 %v1260, %v1258
    %v1947 = vpack.c.b16 %v1261, %v1259
    %v1948 = vpack.c.b16 %v1264, %v1262
    %v1949 = vpack.c.b16 %v1265, %v1263
    %v1950 = vpack.c.b16 %v1268, %v1266
    %v1951 = vpack.c.b16 %v1269, %v1267
    %v1952 = vpack.c.b16 %v1272, %v1270
    %v1953 = vpack.c.b16 %v1273, %v1271
    %v1954 = vpack.c.b16 %v1276, %v1274
    %v1955 = vpack.c.b16 %v1277, %v1275
    %v1956 = vpack.c.b16 %v1280, %v1278
    %v1957 = vpack.c.b16 %v1281, %v1279
    %v1958 = vpack.c.b16 %v1284, %v1282
    %v1959 = vpack.c.b16 %v1285, %v1283
    %v1960 = vpack.c.b16 %v1288, %v1286
    %v1961 = vpack.c.b16 %v1289, %v1287
    %v1962 = vpack.c.b16 %v1292, %v1290
    %v1963 = vpack.c.b16 %v1293, %v1291
    %v1964 = vpack.c.b16 %v1296, %v1294
    %v1965 = vpack.c.b16 %v1297, %v1295
    %v1966 = vpack.c.b16 %v1300, %v1298
    %v1967 = vpack.c.b16 %v1301, %v1299
    %v1968 = vpack.c.b16 %v1304, %v1302
    %v1969 = vpack.c.b16 %v1305, %v1303
    %v1970 = vpack.c.b16 %v1308, %v1306
    %v1971 = vpack.c.b16 %v1309, %v1307
    %v1972 = vpack.c.b16 %v1312, %v1310
    %v1973 = vpack.c.b16 %v1313, %v1311
    %v1974 = vpack.c.b16 %v1316, %v1314
    %v1975 = vpack.c.b16 %v1317, %v1315
    %v1976 = vpack.c.b16 %v1320, %v1318
    %v1977 = vpack.c.b16 %v1321, %v1319
    %v1978 = vpack.c.b16 %v1324, %v1322
    %v1979 = vpack.c.b16 %v1325, %v1323
    %v1980 = vpack.c.b16 %v1328, %v1326
    %v1981 = vpack.c.b16 %v1329, %v1327
    %v1982 = vpack.c.b16 %v1332, %v1330
    %v1983 = vpack.c.b16 %v1333, %v1331
    %v1984 = vpack.c.b16 %v1336, %v1334
    %v1985 = vpack.c.b16 %v1337, %v1335
    %v1986 = vpack.c.b16 %v1340, %v1338
    %v1987 = vpack.c.b16 %v1341, %v1339
    %v1988 = vpack.c.b16 %v1344, %v1342
    %v1989 = vpack.c.b16 %v1345, %v1343
    %v1990 = vpack.c.b16 %v1348, %v1346
    %v1991 = vpack.c.b16 %v1349, %v1347
    %v1992 = vpack.c.b16 %v1352, %v1350
    %v1993 = vpack.c.b16 %v1353, %v1351
    %v1994 = vpack.c.b16 %v1356, %v1354
    %v1995 = vpack.c.b16 %v1357, %v1355
    %v1996 = vpack.c.b16 %v1360, %v1358
    %v1997 = vpack.c.b16 %v1361, %v1359
    %v1998 = vpack.c.b16 %v1364, %v1362
    %v1999 = vpack.c.b16 %v1365, %v1363
    %v2000 = vpack.c.b16 %v1368, %v1366
    %v2001 = vpack.c.b16 %v1369, %v1367
    %v2002 = vpack.c.b16 %v1372, %v1370
    %v2003 = vpack.c.b16 %v1373, %v1371
    %v2004 = vpack.c.b16 %v1376, %v1374
    %v2005 = vpack.c.b16 %v1377, %v1375
    %v2006 = vpack.c.b16 %v1380, %v1378
    %v2007 = vpack.c.b16 %v1381, %v1379
    %v2008 = vpack.c.b16 %v1384, %v1382
    %v2009 = vpack.c.b16 %v1385, %v1383
    %v2010 = vpack.c.b16 %v1388, %v1386
    %v2011 = vpack.c.b16 %v1389, %v1387
    %v2012 = vpack.c.b16 %v1392, %v1390
    %v2013 = vpack.c.b16 %v1393, %v1391
    %v2014 = vpack.c.b16 %v1396, %v1394
    %v2015 = vpack.c.b16 %v1397, %v1395
    %v2016 = vpack.c.b16 %v1400, %v1398
    %v2017 = vpack.c.b16 %v1401, %v1399
    %v2018 = vpack.c.b16 %v1404, %v1402
    %v2019 = vpack.c.b16 %v1405, %v1403
    %v2020 = vpack.c.b16 %v1408, %v1406
    %v2021 = vpack.c.b16 %v1409, %v1407
    %v2022 = vpack.c.b16 %v1412, %v1410
    %v2023 = vpack.c.b16 %v1413, %v1411
    %v2024 = vpack.c.b16 %v1416, %v1414
    %v2025 = vpack.c.b16 %v1417, %v1415
    %v2026 = vpack.c.b16 %v1420, %v1418
    %v2027 = vpack.c.b16 %v1421, %v1419
    %v2028 = vpack.c.b16 %v1424, %v1422
    %v2029 = vpack.c.b16 %v1425, %v1423
    %v2030 = vpack.c.b16 %v1428, %v1426
    %v2031 = vpack.c.b16 %v1429, %v1427
    %v2032 = vpack.c.b16 %v1432, %v1430
    %v2033 = vpack.c.b16 %v1433, %v1431
    %v2034 = vpack.c.b16 %v1436, %v1434
    %v2035 = vpack.c.b16 %v1437, %v1435
    %v2036 = vpack.c.b16 %v1440, %v1438
    %v2037 = vpack.c.b16 %v1441, %v1439
    %v2038 = vpack.c.b16 %v1444, %v1442
    %v2039 = vpack.c.b16 %v1445, %v1443
    %v2040 = vpack.c.b16 %v1448, %v1446
    %v2041 = vpack.c.b16 %v1449, %v1447
    %v2042 = vpack.c.b16 %v1452, %v1450
    %v2043 = vpack.c.b16 %v1453, %v1451
    %v2044 = vpack.c.b16 %v1456, %v1454
    %v2045 = vpack.c.b16 %v1457, %v1455
    %v2046 = vpack.c.b16 %v1460, %v1458
    %v2047 = vpack.c.b16 %v1461, %v1459
    %v2048 = vpack.c.b16 %v1464, %v1462
    %v2049 = vpack.c.b16 %v1465, %v1463
    %v2050 = vpack.c.b16 %v1468, %v1466
    %v2051 = vpack.c.b16 %v1469, %v1467
    %v2052 = vpack.c.b16 %v1472, %v1470
    %v2053 = vpack.c.b16 %v1473, %v1471
    %v2054 = vpack.c.b16 %v1476, %v1474
    %v2055 = vpack.c.b16 %v1477, %v1475
    %v2056 = vpack.c.b16 %v1480, %v1478
    %v2057 = vpack.c.b16 %v1481, %v1479
    %v2058 = vpack.c.b16 %v1484, %v1482
    %v2059 = vpack.c.b16 %v1485, %v1483
    %v2060 = vpack.c.b16 %v1488, %v1486
    %v2061 = vpack.c.b16 %v1489, %v1487
    %v2062 = vpack.c.b16 %v1492, %v1490
    %v2063 = vpack.c.b16 %v1493, %v1491
    %v2064 = vpack.c.b16 %v1496, %v1494
    %v2065 = vpack.c.b16 %v1497, %v1495
    %v2066 = vpack.c.b16 %v1500, %v1498
    %v2067 = vpack.c.b16 %v1501, %v1499
    %v2068 = vpack.c.b16 %v1504, %v1502
    %v2069 = vpack.c.b16 %v1505, %v1503
    %v2070 = vpack.c.b16 %v1508, %v1506
    %v2071 = vpack.c.b16 %v1509, %v1507
    %v2072 = vpack.c.b16 %v1512, %v1510
    %v2073 = vpack.c.b16 %v1513, %v1511
    %v2074 = vpack.c.b16 %v1516, %v1514
    %v2075 = vpack.c.b16 %v1517, %v1515
    %v2076 = vpack.c.b16 %v1520, %v1518
    %v2077 = vpack.c.b16 %v1521, %v1519
    %v2078 = vpack.c.b16 %v1524, %v1522
    %v2079 = vpack.c.b16 %v1525, %v1523
    %v2080 = vpack.c.b16 %v1528, %v1526
    %v2081 = vpack.c.b16 %v1529, %v1527
    %v2082 = vpack.c.b16 %v1532, %v1530
    %v2083 = vpack.c.b16 %v1533, %v1531
    %v2084 = vpack.c.b16 %v1536, %v1534
    %v2085 = vpack.c.b16 %v1537, %v1535
    %v2086 = vpack.c.b16 %v1540, %v1538
    %v2087 = vpack.c.b16 %v1541, %v1539
    %v2088 = vpack.c.b16 %v1544, %v1542
    %v2089 = vpack.c.b16 %v1545, %v1543
    %v2090 = vpack.c.b16 %v1548, %v1546
    %v2091 = vpack.c.b16 %v1549, %v1547
    %v2092 = vpack.c.b16 %v1552, %v1550
    %v2093 = vpack.c.b16 %v1553, %v1551
    %v2094 = vpack.c.b16 %v1556, %v1554
    %v2095 = vpack.c.b16 %v1557, %v1555
    %v2096 = vpack.c.b16 %v1560, %v1558
    %v2097 = vpack.c.b16 %v1561, %v1559
    %v2098 = vpack.c.b16 %v1564, %v1562
    %v2099 = vpack.c.b16 %v1565, %v1563
    %v2100 = vpack.c.b16 %v1568, %v1566
    %v2101 = vpack.c.b16 %v1569, %v1567
    %v2102 = vpack.c.b16 %v1572, %v1570
    %v2103 = vpack.c.b16 %v1573, %v1571
    %v2104 = vpack.c.b16 %v1576, %v1574
    %v2105 = vpack.c.b16 %v1577, %v1575
    %v2106 = vpack.c.b16 %v1580, %v1578
    %v2107 = vpack.c.b16 %v1581, %v1579
    %v2108 = vpack.c.b16 %v1584, %v1582
    %v2109 = vpack.c.b16 %v1585, %v1583
    %v2110 = vpack.c.b16 %v1588, %v1586
    %v2111 = vpack.c.b16 %v1589, %v1587
    %v2112 = vpack.c.b16 %v1592, %v1590
    %v2113 = vpack.c.b16 %v1593, %v1591
    %v2114 = vpack.c.b16 %v1596, %v1594
    %v2115 = vpack.c.b16 %v1597, %v1595
    %v2116 = vpack.c.b16 %v1600, %v1598
    %v2117 = vpack.c.b16 %v1601, %v1599
    %v2118 = vpack.c.b16 %v1604, %v1602
    %v2119 = vpack.c.b16 %v1605, %v1603
    %v2120 = vpack.c.b16 %v1608, %v1606
    %v2121 = vpack.c.b16 %v1609, %v1607
    %v2122 = vpack.c.b16 %v1612, %v1610
    %v2123 = vpack.c.b16 %v1613, %v1611
    %v2124 = vpack.c.b16 %v1616, %v1614
    %v2125 = vpack.c.b16 %v1617, %v1615
    %v2126 = vpack.c.b16 %v1620, %v1618
    %v2127 = vpack.c.b16 %v1621, %v1619
    %v2128 = vpack.c.b16 %v1624, %v1622
    %v2129 = vpack.c.b16 %v1625, %v1623
    %v2130 = vpack.c.b16 %v1628, %v1626
    %v2131 = vpack.c.b16 %v1629, %v1627
    %v2132 = vpack.c.b16 %v1632, %v1630
    %v2133 = vpack.c.b16 %v1633, %v1631
    %v2134 = vpack.c.b16 %v1636, %v1634
    %v2135 = vpack.c.b16 %v1637, %v1635
    %v2136 = vpack.c.b16 %v1640, %v1638
    %v2137 = vpack.c.b16 %v1641, %v1639
    %v2138 = vpack.c.b16 %v1644, %v1642
    %v2139 = vpack.c.b16 %v1645, %v1643
    %v2140 = vpack.c.b16 %v1648, %v1646
    %v2141 = vpack.c.b16 %v1649, %v1647
    %v2142 = vpack.c.b16 %v1652, %v1650
    %v2143 = vpack.c.b16 %v1653, %v1651
    %v2144 = vpack.c.b16 %v1656, %v1654
    %v2145 = vpack.c.b16 %v1657, %v1655
    %v2146 = vpack.c.b16 %v1660, %v1658
    %v2147 = vpack.c.b16 %v1661, %v1659
    %v2148 = vpack.c.b16 %v1664, %v1662
    %v2149 = vpack.c.b16 %v1665, %v1663
    %v2150 = vpack.c.b16 %v1668, %v1666
    %v2151 = vpack.c.b16 %v1669, %v1667
    %v2152 = vpack.c.b16 %v1672, %v1670
    %v2153 = vpack.c.b16 %v1673, %v1671
    %v2154 = vpack.c.b16 %v1676, %v1674
    %v2155 = vpack.c.b16 %v1677, %v1675
    %v2156 = vpack.c.b16 %v1680, %v1678
    %v2157 = vpack.c.b16 %v1681, %v1679
    %v2158 = vpack.c.b16 %v1684, %v1682
    %v2159 = vpack.c.b16 %v1685, %v1683
    %v2160 = vpack.c.b16 %v1688, %v1686
    %v2161 = vpack.c.b16 %v1689, %v1687
    %v2162 = vpack.c.b16 %v1692, %v1690
    %v2163 = vpack.c.b16 %v1693, %v1691
    %v2164 = vpack.c.b16 %v1696, %v1694
    %v2165 = vpack.c.b16 %v1697, %v1695
    %v2166 = vpack.c.b16 %v1700, %v1698
    %v2167 = vpack.c.b16 %v1701, %v1699
    %v2168 = vpack.c.b16 %v1704, %v1702
    %v2169 = vpack.c.b16 %v1705, %v1703
    %v2170 = vpack.c.b16 %v1708, %v1706
    %v2171 = vpack.c.b16 %v1709, %v1707
    %v2172 = vpack.c.b16 %v1712, %v1710
    %v2173 = vpack.c.b16 %v1713, %v1711
    %v2174 = vpack.c.b16 %v1716, %v1714
    %v2175 = vpack.c.b16 %v1717, %v1715
    %v2176 = vpack.c.b16 %v1720, %v1718
    %v2177 = vpack.c.b16 %v1721, %v1719
    %v2178 = vpack.c.b16 %v1724, %v1722
    %v2179 = vpack.c.b16 %v1725, %v1723
    %v2180 = vpack.c.b16 %v1728, %v1726
    %v2181 = vpack.c.b16 %v1729, %v1727
    %v2182 = vpack.c.b16 %v1732, %v1730
    %v2183 = vpack.c.b16 %v1733, %v1731
    %v2184 = vpack.c.b16 %v1736, %v1734
    %v2185 = vpack.c.b16 %v1737, %v1735
    %v2186 = vpack.c.b16 %v1740, %v1738
    %v2187 = vpack.c.b16 %v1741, %v1739
    %v2188 = vpack.c.b16 %v1744, %v1742
    %v2189 = vpack.c.b16 %v1745, %v1743
    %v2190 = vpack.c.b16 %v1748, %v1746
    %v2191 = vpack.c.b16 %v1749, %v1747
    %v2192 = vpack.c.b16 %v1752, %v1750
    %v2193 = vpack.c.b16 %v1753, %v1751
    %v2194 = vpack.c.b16 %v1756, %v1754
    %v2195 = vpack.c.b16 %v1757, %v1755
    %v2196 = vpack.c.b16 %v1760, %v1758
    %v2197 = vpack.c.b16 %v1761, %v1759
    %v2198 = vpack.c.b16 %v1764, %v1762
    %v2199 = vpack.c.b16 %v1765, %v1763
    %v2200 = vpack.c.b16 %v1768, %v1766
    %v2201 = vpack.c.b16 %v1769, %v1767
    %v2202 = vpack.c.b16 %v1772, %v1770
    %v2203 = vpack.c.b16 %v1773, %v1771
    %v2204 = vpack.c.b16 %v1776, %v1774
    %v2205 = vpack.c.b16 %v1777, %v1775
    %v2206 = vpack.c.b16 %v1780, %v1778
    %v2207 = vpack.c.b16 %v1781, %v1779
    %v2208 = vpack.c.b16 %v1784, %v1782
    %v2209 = vpack.c.b16 %v1785, %v1783
    %v2210 = vpack.c.b16 %v1788, %v1786
    %v2211 = vpack.c.b16 %v1789, %v1787
    %v2212 = vpack.c.b16 %v1792, %v1790
    %v2213 = vpack.c.b16 %v1793, %v1791
    %v2214 = vpack.c.b16 %v1796, %v1794
    %v2215 = vpack.c.b16 %v1797, %v1795
    %v2216 = vpack.c.b16 %v1800, %v1798
    %v2217 = vpack.c.b16 %v1801, %v1799
    %v2218 = vpack.c.b16 %v1804, %v1802
    %v2219 = vpack.c.b16 %v1805, %v1803
    %v2220 = vpack.c.b16 %v1808, %v1806
    %v2221 = vpack.c.b16 %v1809, %v1807
    %v2222 = vpack.c.b16 %v1812, %v1810
    %v2223 = vpack.c.b16 %v1813, %v1811
    %v2224 = vpack.c.b16 %v1816, %v1814
    %v2225 = vpack.c.b16 %v1817, %v1815
    %v2226 = vpack.c.b16 %v1820, %v1818
    %v2227 = vpack.c.b16 %v1821, %v1819
    %v2228 = vpack.c.b16 %v1824, %v1822
    %v2229 = vpack.c.b16 %v1825, %v1823
    %v2230 = vpack.c.b16 %v1828, %v1826
    %v2231 = vpack.c.b16 %v1829, %v1827
    %v2232 = vpack.c.b16 %v1832, %v1830
    %v2233 = vpack.c.b16 %v1833, %v1831
    %2634 = vmatprep.subr.bf16.mxu0 %v1849
    %2635 = vmatpush1.bf16.msra.mxu0 %v1848
    %2636 = vmatprep.subr.bf16.mxu0 %v1847
    %2637 = vmatpush1.bf16.msra.mxu0 %v1846
    %2638 = vmatprep.subr.bf16.mxu0 %v1845
    %2639 = vmatpush1.bf16.msra.mxu0 %v1844
    %2640 = vmatprep.subr.bf16.mxu0 %v1843
    %2641 = vmatpush1.bf16.msra.mxu0 %v1842
    %2642 = vmatprep.subr.bf16.mxu0 %v1841
    %2643 = vmatpush1.bf16.msra.mxu0 %v1840
    %2644 = vmatprep.subr.bf16.mxu0 %v1839
    %2645 = vmatpush1.bf16.msra.mxu0 %v1838
    %2646 = vmatprep.subr.bf16.mxu0 %v1837
    %2647 = vmatpush1.bf16.msra.mxu0 %v1836
    %2648 = vmatprep.subr.bf16.mxu0 %v1835
    %2649 = vmatpush1.bf16.msra.mxu0 %v1834
    %2650 = vmatprep.subr.bf16.mxu0 %v1865
    %2651 = vmatpush2.bf16.msra.mxu0 %v1864
    %2652 = vmatprep.subr.bf16.mxu0 %v1863
    %2653 = vmatpush2.bf16.msra.mxu0 %v1862
    %2654 = vmatprep.subr.bf16.mxu0 %v1861
    %2655 = vmatpush2.bf16.msra.mxu0 %v1860
    %2656 = vmatprep.subr.bf16.mxu0 %v1859
    %2657 = vmatpush2.bf16.msra.mxu0 %v1858
    %2658 = vmatprep.subr.bf16.mxu0 %v1857
    %2659 = vmatpush2.bf16.msra.mxu0 %v1856
    %2660 = vmatprep.subr.bf16.mxu0 %v1855
    %2661 = vmatpush2.bf16.msra.mxu0 %v1854
    %2662 = vmatprep.subr.bf16.mxu0 %v1853
    %2663 = vmatpush2.bf16.msra.mxu0 %v1852
    %2664 = vmatprep.subr.bf16.mxu0 %v1851
    %2665 = vmatpush2.bf16.msra.mxu0 %v1850
    %2666 = vmatprep.mubr.bf16.mxu0 %v485
    %2667 = vmatmul.mubr.bf16.gmra.mxu0 %v471
    %v2668 = vpop.f32.mrf.mxu0
    %v2669 = vadd.f32 %v437, %v2668
    %v2670 = vpop.f32.mrf.mxu0
    %v2671 = vadd.f32 %v441, %v2670
    %v2672 = vpop.f32.mrf.mxu0
    %v2673 = vpop.f32.mrf.mxu0
    %2674 = vdwg.mxu0
    %2675 = vmatprep.subr.bf16.mxu0 %v1881
    %2676 = vmatpush1.bf16.msra.mxu0 %v1880
    %2677 = vmatprep.subr.bf16.mxu0 %v1879
    %2678 = vmatpush1.bf16.msra.mxu0 %v1878
    %2679 = vmatprep.subr.bf16.mxu0 %v1877
    %2680 = vmatpush1.bf16.msra.mxu0 %v1876
    %2681 = vmatprep.subr.bf16.mxu0 %v1875
    %2682 = vmatpush1.bf16.msra.mxu0 %v1874
    %2683 = vmatprep.subr.bf16.mxu0 %v1873
    %2684 = vmatpush1.bf16.msra.mxu0 %v1872
    %2685 = vmatprep.subr.bf16.mxu0 %v1871
    %2686 = vmatpush1.bf16.msra.mxu0 %v1870
    %2687 = vmatprep.subr.bf16.mxu0 %v1869
    %2688 = vmatpush1.bf16.msra.mxu0 %v1868
    %2689 = vmatprep.subr.bf16.mxu0 %v1867
    %2690 = vmatpush1.bf16.msra.mxu0 %v1866
    %2691 = vmatprep.subr.bf16.mxu0 %v1897
    %2692 = vmatpush2.bf16.msra.mxu0 %v1896
    %2693 = vmatprep.subr.bf16.mxu0 %v1895
    %2694 = vmatpush2.bf16.msra.mxu0 %v1894
    %2695 = vmatprep.subr.bf16.mxu0 %v1893
    %2696 = vmatpush2.bf16.msra.mxu0 %v1892
    %2697 = vmatprep.subr.bf16.mxu0 %v1891
    %2698 = vmatpush2.bf16.msra.mxu0 %v1890
    %2699 = vmatprep.subr.bf16.mxu0 %v1889
    %2700 = vmatpush2.bf16.msra.mxu0 %v1888
    %2701 = vmatprep.subr.bf16.mxu0 %v1887
    %2702 = vmatpush2.bf16.msra.mxu0 %v1886
    %2703 = vmatprep.subr.bf16.mxu0 %v1885
    %2704 = vmatpush2.bf16.msra.mxu0 %v1884
    %2705 = vmatprep.subr.bf16.mxu0 %v1883
    %2706 = vmatpush2.bf16.msra.mxu0 %v1882
    %2707 = vmatprep.mubr.bf16.mxu0 %v495
    %2708 = vmatmul.mubr.bf16.gmra.mxu0 %v493
    %v2709 = vpop.f32.mrf.mxu0
    %v2710 = vadd.f32 %v2669, %v2709
    %v2711 = vpop.f32.mrf.mxu0
    %v2712 = vadd.f32 %v2671, %v2711
    %v2713 = vpop.f32.mrf.mxu0
    %v2714 = vpop.f32.mrf.mxu0
    %2715 = vdwg.mxu0
    %2716 = vmatprep.subr.bf16.mxu0 %v1913
    %2717 = vmatpush1.bf16.msra.mxu0 %v1912
    %2718 = vmatprep.subr.bf16.mxu0 %v1911
    %2719 = vmatpush1.bf16.msra.mxu0 %v1910
    %2720 = vmatprep.subr.bf16.mxu0 %v1909
    %2721 = vmatpush1.bf16.msra.mxu0 %v1908
    %2722 = vmatprep.subr.bf16.mxu0 %v1907
    %2723 = vmatpush1.bf16.msra.mxu0 %v1906
    %2724 = vmatprep.subr.bf16.mxu0 %v1905
    %2725 = vmatpush1.bf16.msra.mxu0 %v1904
    %2726 = vmatprep.subr.bf16.mxu0 %v1903
    %2727 = vmatpush1.bf16.msra.mxu0 %v1902
    %2728 = vmatprep.subr.bf16.mxu0 %v1901
    %2729 = vmatpush1.bf16.msra.mxu0 %v1900
    %2730 = vmatprep.subr.bf16.mxu0 %v1899
    %2731 = vmatpush1.bf16.msra.mxu0 %v1898
    %2732 = vmatprep.subr.bf16.mxu0 %v1929
    %2733 = vmatpush2.bf16.msra.mxu0 %v1928
    %2734 = vmatprep.subr.bf16.mxu0 %v1927
    %2735 = vmatpush2.bf16.msra.mxu0 %v1926
    %2736 = vmatprep.subr.bf16.mxu0 %v1925
    %2737 = vmatpush2.bf16.msra.mxu0 %v1924
    %2738 = vmatprep.subr.bf16.mxu0 %v1923
    %2739 = vmatpush2.bf16.msra.mxu0 %v1922
    %2740 = vmatprep.subr.bf16.mxu0 %v1921
    %2741 = vmatpush2.bf16.msra.mxu0 %v1920
    %2742 = vmatprep.subr.bf16.mxu0 %v1919
    %2743 = vmatpush2.bf16.msra.mxu0 %v1918
    %2744 = vmatprep.subr.bf16.mxu0 %v1917
    %2745 = vmatpush2.bf16.msra.mxu0 %v1916
    %2746 = vmatprep.subr.bf16.mxu0 %v1915
    %2747 = vmatpush2.bf16.msra.mxu0 %v1914
    %2748 = vmatprep.mubr.bf16.mxu0 %v492
    %2749 = vmatmul.mubr.bf16.gmra.mxu0 %v478
    %v2750 = vpop.f32.mrf.mxu0
    %v2751 = vadd.f32 %v2710, %v2750
    %v2752 = vpop.f32.mrf.mxu0
    %v2753 = vadd.f32 %v2712, %v2752
    %v2754 = vpop.f32.mrf.mxu0
    %v2755 = vpop.f32.mrf.mxu0
    %2756 = vdwg.mxu0
    %2757 = vmatprep.subr.bf16.mxu0 %v1945
    %2758 = vmatpush1.bf16.msra.mxu0 %v1944
    %2759 = vmatprep.subr.bf16.mxu0 %v1943
    %2760 = vmatpush1.bf16.msra.mxu0 %v1942
    %2761 = vmatprep.subr.bf16.mxu0 %v1941
    %2762 = vmatpush1.bf16.msra.mxu0 %v1940
    %2763 = vmatprep.subr.bf16.mxu0 %v1939
    %2764 = vmatpush1.bf16.msra.mxu0 %v1938
    %2765 = vmatprep.subr.bf16.mxu0 %v1937
    %2766 = vmatpush1.bf16.msra.mxu0 %v1936
    %2767 = vmatprep.subr.bf16.mxu0 %v1935
    %2768 = vmatpush1.bf16.msra.mxu0 %v1934
    %2769 = vmatprep.subr.bf16.mxu0 %v1933
    %2770 = vmatpush1.bf16.msra.mxu0 %v1932
    %2771 = vmatprep.subr.bf16.mxu0 %v1931
    %2772 = vmatpush1.bf16.msra.mxu0 %v1930
    %2773 = vmatprep.subr.bf16.mxu0 %v1961
    %2774 = vmatpush2.bf16.msra.mxu0 %v1960
    %2775 = vmatprep.subr.bf16.mxu0 %v1959
    %2776 = vmatpush2.bf16.msra.mxu0 %v1958
    %2777 = vmatprep.subr.bf16.mxu0 %v1957
    %2778 = vmatpush2.bf16.msra.mxu0 %v1956
    %2779 = vmatprep.subr.bf16.mxu0 %v1955
    %2780 = vmatpush2.bf16.msra.mxu0 %v1954
    %2781 = vmatprep.subr.bf16.mxu0 %v1953
    %2782 = vmatpush2.bf16.msra.mxu0 %v1952
    %2783 = vmatprep.subr.bf16.mxu0 %v1951
    %2784 = vmatpush2.bf16.msra.mxu0 %v1950
    %2785 = vmatprep.subr.bf16.mxu0 %v1949
    %2786 = vmatpush2.bf16.msra.mxu0 %v1948
    %2787 = vmatprep.subr.bf16.mxu0 %v1947
    %2788 = vmatpush2.bf16.msra.mxu0 %v1946
    %2789 = vmatprep.mubr.bf16.mxu0 %v496
    %2790 = vmatmul.mubr.bf16.gmra.mxu0 %v494
    %v2791 = vpop.f32.mrf.mxu0
    %v2792 = vadd.f32 %v2751, %v2791
    %v2793 = vpop.f32.mrf.mxu0
    %v2794 = vadd.f32 %v2753, %v2793
    %v2795 = vpop.f32.mrf.mxu0
    %v2796 = vpop.f32.mrf.mxu0
    %2797 = vdwg.mxu0
    %2798 = vmatprep.subr.bf16.mxu0 %v1977
    %2799 = vmatpush1.bf16.msra.mxu0 %v1976
    %2800 = vmatprep.subr.bf16.mxu0 %v1975
    %2801 = vmatpush1.bf16.msra.mxu0 %v1974
    %2802 = vmatprep.subr.bf16.mxu0 %v1973
    %2803 = vmatpush1.bf16.msra.mxu0 %v1972
    %2804 = vmatprep.subr.bf16.mxu0 %v1971
    %2805 = vmatpush1.bf16.msra.mxu0 %v1970
    %2806 = vmatprep.subr.bf16.mxu0 %v1969
    %2807 = vmatpush1.bf16.msra.mxu0 %v1968
    %2808 = vmatprep.subr.bf16.mxu0 %v1967
    %2809 = vmatpush1.bf16.msra.mxu0 %v1966
    %2810 = vmatprep.subr.bf16.mxu0 %v1965
    %2811 = vmatpush1.bf16.msra.mxu0 %v1964
    %2812 = vmatprep.subr.bf16.mxu0 %v1963
    %2813 = vmatpush1.bf16.msra.mxu0 %v1962
    %2814 = vmatprep.subr.bf16.mxu0 %v1993
    %2815 = vmatpush2.bf16.msra.mxu0 %v1992
    %2816 = vmatprep.subr.bf16.mxu0 %v1991
    %2817 = vmatpush2.bf16.msra.mxu0 %v1990
    %2818 = vmatprep.subr.bf16.mxu0 %v1989
    %2819 = vmatpush2.bf16.msra.mxu0 %v1988
    %2820 = vmatprep.subr.bf16.mxu0 %v1987
    %2821 = vmatpush2.bf16.msra.mxu0 %v1986
    %2822 = vmatprep.subr.bf16.mxu0 %v1985
    %2823 = vmatpush2.bf16.msra.mxu0 %v1984
    %2824 = vmatprep.subr.bf16.mxu0 %v1983
    %2825 = vmatpush2.bf16.msra.mxu0 %v1982
    %2826 = vmatprep.subr.bf16.mxu0 %v1981
    %2827 = vmatpush2.bf16.msra.mxu0 %v1980
    %2828 = vmatprep.subr.bf16.mxu0 %v1979
    %2829 = vmatpush2.bf16.msra.mxu0 %v1978
    %2830 = vmatprep.mubr.bf16.mxu0 %v534
    %2831 = vmatmul.mubr.bf16.gmra.mxu0 %v520
    %v2832 = vpop.f32.mrf.mxu0
    %v2833 = vadd.f32 %v2792, %v2832
    %v2834 = vpop.f32.mrf.mxu0
    %v2835 = vadd.f32 %v2794, %v2834
    %v2836 = vpop.f32.mrf.mxu0
    %v2837 = vpop.f32.mrf.mxu0
    %2838 = vdwg.mxu0
    %2839 = vmatprep.subr.bf16.mxu0 %v2009
    %2840 = vmatpush1.bf16.msra.mxu0 %v2008
    %2841 = vmatprep.subr.bf16.mxu0 %v2007
    %2842 = vmatpush1.bf16.msra.mxu0 %v2006
    %2843 = vmatprep.subr.bf16.mxu0 %v2005
    %2844 = vmatpush1.bf16.msra.mxu0 %v2004
    %2845 = vmatprep.subr.bf16.mxu0 %v2003
    %2846 = vmatpush1.bf16.msra.mxu0 %v2002
    %2847 = vmatprep.subr.bf16.mxu0 %v2001
    %2848 = vmatpush1.bf16.msra.mxu0 %v2000
    %2849 = vmatprep.subr.bf16.mxu0 %v1999
    %2850 = vmatpush1.bf16.msra.mxu0 %v1998
    %2851 = vmatprep.subr.bf16.mxu0 %v1997
    %2852 = vmatpush1.bf16.msra.mxu0 %v1996
    %2853 = vmatprep.subr.bf16.mxu0 %v1995
    %2854 = vmatpush1.bf16.msra.mxu0 %v1994
    %2855 = vmatprep.subr.bf16.mxu0 %v2025
    %2856 = vmatpush2.bf16.msra.mxu0 %v2024
    %2857 = vmatprep.subr.bf16.mxu0 %v2023
    %2858 = vmatpush2.bf16.msra.mxu0 %v2022
    %2859 = vmatprep.subr.bf16.mxu0 %v2021
    %2860 = vmatpush2.bf16.msra.mxu0 %v2020
    %2861 = vmatprep.subr.bf16.mxu0 %v2019
    %2862 = vmatpush2.bf16.msra.mxu0 %v2018
    %2863 = vmatprep.subr.bf16.mxu0 %v2017
    %2864 = vmatpush2.bf16.msra.mxu0 %v2016
    %2865 = vmatprep.subr.bf16.mxu0 %v2015
    %2866 = vmatpush2.bf16.msra.mxu0 %v2014
    %2867 = vmatprep.subr.bf16.mxu0 %v2013
    %2868 = vmatpush2.bf16.msra.mxu0 %v2012
    %2869 = vmatprep.subr.bf16.mxu0 %v2011
    %2870 = vmatpush2.bf16.msra.mxu0 %v2010
    %2871 = vmatprep.mubr.bf16.mxu0 %v544
    %2872 = vmatmul.mubr.bf16.gmra.mxu0 %v542
    %v2873 = vpop.f32.mrf.mxu0
    %v2874 = vadd.f32 %v2833, %v2873
    %v2875 = vpop.f32.mrf.mxu0
    %v2876 = vadd.f32 %v2835, %v2875
    %v2877 = vpop.f32.mrf.mxu0
    %v2878 = vpop.f32.mrf.mxu0
    %2879 = vdwg.mxu0
    %2880 = vmatprep.subr.bf16.mxu0 %v2041
    %2881 = vmatpush1.bf16.msra.mxu0 %v2040
    %2882 = vmatprep.subr.bf16.mxu0 %v2039
    %2883 = vmatpush1.bf16.msra.mxu0 %v2038
    %2884 = vmatprep.subr.bf16.mxu0 %v2037
    %2885 = vmatpush1.bf16.msra.mxu0 %v2036
    %2886 = vmatprep.subr.bf16.mxu0 %v2035
    %2887 = vmatpush1.bf16.msra.mxu0 %v2034
    %2888 = vmatprep.subr.bf16.mxu0 %v2033
    %2889 = vmatpush1.bf16.msra.mxu0 %v2032
    %2890 = vmatprep.subr.bf16.mxu0 %v2031
    %2891 = vmatpush1.bf16.msra.mxu0 %v2030
    %2892 = vmatprep.subr.bf16.mxu0 %v2029
    %2893 = vmatpush1.bf16.msra.mxu0 %v2028
    %2894 = vmatprep.subr.bf16.mxu0 %v2027
    %2895 = vmatpush1.bf16.msra.mxu0 %v2026
    %2896 = vmatprep.subr.bf16.mxu0 %v2057
    %2897 = vmatpush2.bf16.msra.mxu0 %v2056
    %2898 = vmatprep.subr.bf16.mxu0 %v2055
    %2899 = vmatpush2.bf16.msra.mxu0 %v2054
    %2900 = vmatprep.subr.bf16.mxu0 %v2053
    %2901 = vmatpush2.bf16.msra.mxu0 %v2052
    %2902 = vmatprep.subr.bf16.mxu0 %v2051
    %2903 = vmatpush2.bf16.msra.mxu0 %v2050
    %2904 = vmatprep.subr.bf16.mxu0 %v2049
    %2905 = vmatpush2.bf16.msra.mxu0 %v2048
    %2906 = vmatprep.subr.bf16.mxu0 %v2047
    %2907 = vmatpush2.bf16.msra.mxu0 %v2046
    %2908 = vmatprep.subr.bf16.mxu0 %v2045
    %2909 = vmatpush2.bf16.msra.mxu0 %v2044
    %2910 = vmatprep.subr.bf16.mxu0 %v2043
    %2911 = vmatpush2.bf16.msra.mxu0 %v2042
    %2912 = vmatprep.mubr.bf16.mxu0 %v541
    %2913 = vmatmul.mubr.bf16.gmra.mxu0 %v527
    %v2914 = vpop.f32.mrf.mxu0
    %v2915 = vadd.f32 %v2874, %v2914
    %v2916 = vpop.f32.mrf.mxu0
    %v2917 = vadd.f32 %v2876, %v2916
    %v2918 = vpop.f32.mrf.mxu0
    %v2919 = vpop.f32.mrf.mxu0
    %2920 = vdwg.mxu0
    %2921 = vmatprep.subr.bf16.mxu0 %v2073
    %2922 = vmatpush1.bf16.msra.mxu0 %v2072
    %2923 = vmatprep.subr.bf16.mxu0 %v2071
    %2924 = vmatpush1.bf16.msra.mxu0 %v2070
    %2925 = vmatprep.subr.bf16.mxu0 %v2069
    %2926 = vmatpush1.bf16.msra.mxu0 %v2068
    %2927 = vmatprep.subr.bf16.mxu0 %v2067
    %2928 = vmatpush1.bf16.msra.mxu0 %v2066
    %2929 = vmatprep.subr.bf16.mxu0 %v2065
    %2930 = vmatpush1.bf16.msra.mxu0 %v2064
    %2931 = vmatprep.subr.bf16.mxu0 %v2063
    %2932 = vmatpush1.bf16.msra.mxu0 %v2062
    %2933 = vmatprep.subr.bf16.mxu0 %v2061
    %2934 = vmatpush1.bf16.msra.mxu0 %v2060
    %2935 = vmatprep.subr.bf16.mxu0 %v2059
    %2936 = vmatpush1.bf16.msra.mxu0 %v2058
    %2937 = vmatprep.subr.bf16.mxu0 %v2089
    %2938 = vmatpush2.bf16.msra.mxu0 %v2088
    %2939 = vmatprep.subr.bf16.mxu0 %v2087
    %2940 = vmatpush2.bf16.msra.mxu0 %v2086
    %2941 = vmatprep.subr.bf16.mxu0 %v2085
    %2942 = vmatpush2.bf16.msra.mxu0 %v2084
    %2943 = vmatprep.subr.bf16.mxu0 %v2083
    %2944 = vmatpush2.bf16.msra.mxu0 %v2082
    %2945 = vmatprep.subr.bf16.mxu0 %v2081
    %2946 = vmatpush2.bf16.msra.mxu0 %v2080
    %2947 = vmatprep.subr.bf16.mxu0 %v2079
    %2948 = vmatpush2.bf16.msra.mxu0 %v2078
    %2949 = vmatprep.subr.bf16.mxu0 %v2077
    %2950 = vmatpush2.bf16.msra.mxu0 %v2076
    %2951 = vmatprep.subr.bf16.mxu0 %v2075
    %2952 = vmatpush2.bf16.msra.mxu0 %v2074
    %2953 = vmatprep.mubr.bf16.mxu0 %v545
    %2954 = vmatmul.mubr.bf16.gmra.mxu0 %v543
    %v2955 = vpop.f32.mrf.mxu0
    %v2956 = vadd.f32 %v2915, %v2955
    %v2957 = vpop.f32.mrf.mxu0
    %v2958 = vadd.f32 %v2917, %v2957
    %v2959 = vpop.f32.mrf.mxu0
    %v2960 = vpop.f32.mrf.mxu0
    %2961 = vdwg.mxu0
    %2962 = vmatprep.subr.bf16.mxu0 %v2105
    %2963 = vmatpush1.bf16.msra.mxu0 %v2104
    %2964 = vmatprep.subr.bf16.mxu0 %v2103
    %2965 = vmatpush1.bf16.msra.mxu0 %v2102
    %2966 = vmatprep.subr.bf16.mxu0 %v2101
    %2967 = vmatpush1.bf16.msra.mxu0 %v2100
    %2968 = vmatprep.subr.bf16.mxu0 %v2099
    %2969 = vmatpush1.bf16.msra.mxu0 %v2098
    %2970 = vmatprep.subr.bf16.mxu0 %v2097
    %2971 = vmatpush1.bf16.msra.mxu0 %v2096
    %2972 = vmatprep.subr.bf16.mxu0 %v2095
    %2973 = vmatpush1.bf16.msra.mxu0 %v2094
    %2974 = vmatprep.subr.bf16.mxu0 %v2093
    %2975 = vmatpush1.bf16.msra.mxu0 %v2092
    %2976 = vmatprep.subr.bf16.mxu0 %v2091
    %2977 = vmatpush1.bf16.msra.mxu0 %v2090
    %2978 = vmatprep.subr.bf16.mxu0 %v2121
    %2979 = vmatpush2.bf16.msra.mxu0 %v2120
    %2980 = vmatprep.subr.bf16.mxu0 %v2119
    %2981 = vmatpush2.bf16.msra.mxu0 %v2118
    %2982 = vmatprep.subr.bf16.mxu0 %v2117
    %2983 = vmatpush2.bf16.msra.mxu0 %v2116
    %2984 = vmatprep.subr.bf16.mxu0 %v2115
    %2985 = vmatpush2.bf16.msra.mxu0 %v2114
    %2986 = vmatprep.subr.bf16.mxu0 %v2113
    %2987 = vmatpush2.bf16.msra.mxu0 %v2112
    %2988 = vmatprep.subr.bf16.mxu0 %v2111
    %2989 = vmatpush2.bf16.msra.mxu0 %v2110
    %2990 = vmatprep.subr.bf16.mxu0 %v2109
    %2991 = vmatpush2.bf16.msra.mxu0 %v2108
    %2992 = vmatprep.subr.bf16.mxu0 %v2107
    %2993 = vmatpush2.bf16.msra.mxu0 %v2106
    %2994 = vmatprep.mubr.bf16.mxu0 %v583
    %2995 = vmatmul.mubr.bf16.gmra.mxu0 %v569
    %v2996 = vpop.f32.mrf.mxu0
    %v2997 = vadd.f32 %v2956, %v2996
    %v2998 = vpop.f32.mrf.mxu0
    %v2999 = vadd.f32 %v2958, %v2998
    %v3000 = vpop.f32.mrf.mxu0
    %v3001 = vpop.f32.mrf.mxu0
    %3002 = vdwg.mxu0
    %3003 = vmatprep.subr.bf16.mxu0 %v2137
    %3004 = vmatpush1.bf16.msra.mxu0 %v2136
    %3005 = vmatprep.subr.bf16.mxu0 %v2135
    %3006 = vmatpush1.bf16.msra.mxu0 %v2134
    %3007 = vmatprep.subr.bf16.mxu0 %v2133
    %3008 = vmatpush1.bf16.msra.mxu0 %v2132
    %3009 = vmatprep.subr.bf16.mxu0 %v2131
    %3010 = vmatpush1.bf16.msra.mxu0 %v2130
    %3011 = vmatprep.subr.bf16.mxu0 %v2129
    %3012 = vmatpush1.bf16.msra.mxu0 %v2128
    %3013 = vmatprep.subr.bf16.mxu0 %v2127
    %3014 = vmatpush1.bf16.msra.mxu0 %v2126
    %3015 = vmatprep.subr.bf16.mxu0 %v2125
    %3016 = vmatpush1.bf16.msra.mxu0 %v2124
    %3017 = vmatprep.subr.bf16.mxu0 %v2123
    %3018 = vmatpush1.bf16.msra.mxu0 %v2122
    %3019 = vmatprep.subr.bf16.mxu0 %v2153
    %3020 = vmatpush2.bf16.msra.mxu0 %v2152
    %3021 = vmatprep.subr.bf16.mxu0 %v2151
    %3022 = vmatpush2.bf16.msra.mxu0 %v2150
    %3023 = vmatprep.subr.bf16.mxu0 %v2149
    %3024 = vmatpush2.bf16.msra.mxu0 %v2148
    %3025 = vmatprep.subr.bf16.mxu0 %v2147
    %3026 = vmatpush2.bf16.msra.mxu0 %v2146
    %3027 = vmatprep.subr.bf16.mxu0 %v2145
    %3028 = vmatpush2.bf16.msra.mxu0 %v2144
    %3029 = vmatprep.subr.bf16.mxu0 %v2143
    %3030 = vmatpush2.bf16.msra.mxu0 %v2142
    %3031 = vmatprep.subr.bf16.mxu0 %v2141
    %3032 = vmatpush2.bf16.msra.mxu0 %v2140
    %3033 = vmatprep.subr.bf16.mxu0 %v2139
    %3034 = vmatpush2.bf16.msra.mxu0 %v2138
    %3035 = vmatprep.mubr.bf16.mxu0 %v593
    %3036 = vmatmul.mubr.bf16.gmra.mxu0 %v591
    %v3037 = vpop.f32.mrf.mxu0
    %v3038 = vadd.f32 %v2997, %v3037
    %v3039 = vpop.f32.mrf.mxu0
    %v3040 = vadd.f32 %v2999, %v3039
    %v3041 = vpop.f32.mrf.mxu0
    %v3042 = vpop.f32.mrf.mxu0
    %3043 = vdwg.mxu0
    %3044 = vmatprep.subr.bf16.mxu0 %v2169
    %3045 = vmatpush1.bf16.msra.mxu0 %v2168
    %3046 = vmatprep.subr.bf16.mxu0 %v2167
    %3047 = vmatpush1.bf16.msra.mxu0 %v2166
    %3048 = vmatprep.subr.bf16.mxu0 %v2165
    %3049 = vmatpush1.bf16.msra.mxu0 %v2164
    %3050 = vmatprep.subr.bf16.mxu0 %v2163
    %3051 = vmatpush1.bf16.msra.mxu0 %v2162
    %3052 = vmatprep.subr.bf16.mxu0 %v2161
    %3053 = vmatpush1.bf16.msra.mxu0 %v2160
    %3054 = vmatprep.subr.bf16.mxu0 %v2159
    %3055 = vmatpush1.bf16.msra.mxu0 %v2158
    %3056 = vmatprep.subr.bf16.mxu0 %v2157
    %3057 = vmatpush1.bf16.msra.mxu0 %v2156
    %3058 = vmatprep.subr.bf16.mxu0 %v2155
    %3059 = vmatpush1.bf16.msra.mxu0 %v2154
    %3060 = vmatprep.subr.bf16.mxu0 %v2185
    %3061 = vmatpush2.bf16.msra.mxu0 %v2184
    %3062 = vmatprep.subr.bf16.mxu0 %v2183
    %3063 = vmatpush2.bf16.msra.mxu0 %v2182
    %3064 = vmatprep.subr.bf16.mxu0 %v2181
    %3065 = vmatpush2.bf16.msra.mxu0 %v2180
    %3066 = vmatprep.subr.bf16.mxu0 %v2179
    %3067 = vmatpush2.bf16.msra.mxu0 %v2178
    %3068 = vmatprep.subr.bf16.mxu0 %v2177
    %3069 = vmatpush2.bf16.msra.mxu0 %v2176
    %3070 = vmatprep.subr.bf16.mxu0 %v2175
    %3071 = vmatpush2.bf16.msra.mxu0 %v2174
    %3072 = vmatprep.subr.bf16.mxu0 %v2173
    %3073 = vmatpush2.bf16.msra.mxu0 %v2172
    %3074 = vmatprep.subr.bf16.mxu0 %v2171
    %3075 = vmatpush2.bf16.msra.mxu0 %v2170
    %3076 = vmatprep.mubr.bf16.mxu0 %v590
    %3077 = vmatmul.mubr.bf16.gmra.mxu0 %v576
    %v3078 = vpop.f32.mrf.mxu0
    %v3079 = vadd.f32 %v3038, %v3078
    %v3080 = vpop.f32.mrf.mxu0
    %v3081 = vadd.f32 %v3040, %v3080
    %v3082 = vpop.f32.mrf.mxu0
    %v3083 = vpop.f32.mrf.mxu0
    %3084 = vdwg.mxu0
    %3085 = vmatprep.subr.bf16.mxu0 %v2201
    %3086 = vmatpush1.bf16.msra.mxu0 %v2200
    %3087 = vmatprep.subr.bf16.mxu0 %v2199
    %3088 = vmatpush1.bf16.msra.mxu0 %v2198
    %3089 = vmatprep.subr.bf16.mxu0 %v2197
    %3090 = vmatpush1.bf16.msra.mxu0 %v2196
    %3091 = vmatprep.subr.bf16.mxu0 %v2195
    %3092 = vmatpush1.bf16.msra.mxu0 %v2194
    %3093 = vmatprep.subr.bf16.mxu0 %v2193
    %3094 = vmatpush1.bf16.msra.mxu0 %v2192
    %3095 = vmatprep.subr.bf16.mxu0 %v2191
    %3096 = vmatpush1.bf16.msra.mxu0 %v2190
    %3097 = vmatprep.subr.bf16.mxu0 %v2189
    %3098 = vmatpush1.bf16.msra.mxu0 %v2188
    %3099 = vmatprep.subr.bf16.mxu0 %v2187
    %3100 = vmatpush1.bf16.msra.mxu0 %v2186
    %3101 = vmatprep.subr.bf16.mxu0 %v2217
    %3102 = vmatpush2.bf16.msra.mxu0 %v2216
    %3103 = vmatprep.subr.bf16.mxu0 %v2215
    %3104 = vmatpush2.bf16.msra.mxu0 %v2214
    %3105 = vmatprep.subr.bf16.mxu0 %v2213
    %3106 = vmatpush2.bf16.msra.mxu0 %v2212
    %3107 = vmatprep.subr.bf16.mxu0 %v2211
    %3108 = vmatpush2.bf16.msra.mxu0 %v2210
    %3109 = vmatprep.subr.bf16.mxu0 %v2209
    %3110 = vmatpush2.bf16.msra.mxu0 %v2208
    %3111 = vmatprep.subr.bf16.mxu0 %v2207
    %3112 = vmatpush2.bf16.msra.mxu0 %v2206
    %3113 = vmatprep.subr.bf16.mxu0 %v2205
    %3114 = vmatpush2.bf16.msra.mxu0 %v2204
    %3115 = vmatprep.subr.bf16.mxu0 %v2203
    %3116 = vmatpush2.bf16.msra.mxu0 %v2202
    %3117 = vmatprep.mubr.bf16.mxu0 %v594
    %3118 = vmatmul.mubr.bf16.gmra.mxu0 %v592
    %v3119 = vpop.f32.mrf.mxu0
    %v3120 = vadd.f32 %v3079, %v3119
    %v3121 = vpop.f32.mrf.mxu0
    %v3122 = vadd.f32 %v3081, %v3121
    %v3123 = vpop.f32.mrf.mxu0
    %v3124 = vpop.f32.mrf.mxu0
    %3125 = vdwg.mxu0
    %3126 = vmatprep.subr.bf16.mxu0 %v2233
    %3127 = vmatpush1.bf16.msra.mxu0 %v2232
    %3128 = vmatprep.subr.bf16.mxu0 %v2231
    %3129 = vmatpush1.bf16.msra.mxu0 %v2230
    %3130 = vmatprep.subr.bf16.mxu0 %v2229
    %3131 = vmatpush1.bf16.msra.mxu0 %v2228
    %3132 = vmatprep.subr.bf16.mxu0 %v2227
    %3133 = vmatpush1.bf16.msra.mxu0 %v2226
    %3134 = vmatprep.subr.bf16.mxu0 %v2225
    %3135 = vmatpush1.bf16.msra.mxu0 %v2224
    %3136 = vmatprep.subr.bf16.mxu0 %v2223
    %3137 = vmatpush1.bf16.msra.mxu0 %v2222
    %3138 = vmatprep.subr.bf16.mxu0 %v2221
    %3139 = vmatpush1.bf16.msra.mxu0 %v2220
    %3140 = vmatprep.subr.bf16.mxu0 %v2219
    %3141 = vmatpush1.bf16.msra.mxu0 %v2218
    %3142 = vmatprep.subr.bf16.mxu0 0
    %3143 = vmatpush2.bf16.msra.mxu0 0
    %3144 = vmatprep.subr.bf16.mxu0 0
    %3145 = vmatpush2.bf16.msra.mxu0 0
    %3146 = vmatprep.subr.bf16.mxu0 0
    %3147 = vmatpush2.bf16.msra.mxu0 0
    %3148 = vmatprep.subr.bf16.mxu0 0
    %3149 = vmatpush2.bf16.msra.mxu0 0
    %3150 = vmatprep.subr.bf16.mxu0 0
    %3151 = vmatpush2.bf16.msra.mxu0 0
    %3152 = vmatprep.subr.bf16.mxu0 0
    %3153 = vmatpush2.bf16.msra.mxu0 0
    %3154 = vmatprep.subr.bf16.mxu0 0
    %3155 = vmatpush2.bf16.msra.mxu0 0
    %3156 = vmatprep.subr.bf16.mxu0 0
    %3157 = vmatpush2.bf16.msra.mxu0 0
    %3158 = vmatprep.mubr.bf16.mxu0 0
    %3159 = vmatmul.mubr.bf16.gmra.mxu0 %v608
    %v3160 = vpop.f32.mrf.mxu0
    %v3161 = vadd.f32 %v3120, %v3160
    %v3162 = vpop.f32.mrf.mxu0
    %v3163 = vadd.f32 %v3122, %v3162
    %v3164 = vpop.f32.mrf.mxu0
    %v3165 = vpop.f32.mrf.mxu0
    %3166 = vdwg.mxu0
    %v3167 = vmax.f32 %v3161, 0.0
    %v3168 = vmax.f32 %v3163, 0.0
    %v3169 = vld [vmem:[%s3] sm:$0xff]
    %v3170 = vld [vmem:[%s3 + $0x8] sm:$0xff]
    %v3171 = vld [vmem:[%s3 + $0x10] sm:$0xff]
    %v3172 = vld [vmem:[%s3 + $0x18] sm:$0xff]
    %v3173 = vld [vmem:[%s3 + $0x20] sm:$0xff]
    %v3174 = vld [vmem:[%s3 + $0x28] sm:$0xff]
    %v3175 = vld [vmem:[%s3 + $0x30] sm:$0xff]
    %v3176 = vld [vmem:[%s3 + $0x38] sm:$0xff]
    %v3177 = vld [vmem:[%s3 + $0x40] sm:$0xff]
    %v3178 = vld [vmem:[%s3 + $0x48] sm:$0xff]
    %v3179 = vld [vmem:[%s3 + $0x50] sm:$0xff]
    %v3180 = vld [vmem:[%s3 + $0x58] sm:$0xff]
    %v3181 = vld [vmem:[%s3 + $0x60] sm:$0xff]
    %v3182 = vld [vmem:[%s3 + $0x68] sm:$0xff]
    %v3183 = vld [vmem:[%s3 + $0x70] sm:$0xff]
    %v3184 = vld [vmem:[%s3 + $0x78] sm:$0xff]
    %v3185 = vld [vmem:[%s3 + $0x80] sm:$0xff]
    %v3186 = vld [vmem:[%s3 + $0x88] sm:$0xff]
    %v3187 = vld [vmem:[%s3 + $0x90] sm:$0xff]
    %v3188 = vld [vmem:[%s3 + $0x98] sm:$0xff]
    %v3189 = vld [vmem:[%s3 + $0xa0] sm:$0xff]
    %v3190 = vld [vmem:[%s3 + $0xa8] sm:$0xff]
    %v3191 = vld [vmem:[%s3 + $0xb0] sm:$0xff]
    %v3192 = vld [vmem:[%s3 + $0xb8] sm:$0xff]
    %v3193 = vld [vmem:[%s3 + $0xc0] sm:$0xff]
    %v3194 = vld [vmem:[%s3 + $0xc8] sm:$0xff]
    %v3195 = vld [vmem:[%s3 + $0xd0] sm:$0xff]
    %v3196 = vld [vmem:[%s3 + $0xd8] sm:$0xff]
    %v3197 = vld [vmem:[%s3 + $0xe0] sm:$0xff]
    %v3198 = vld [vmem:[%s3 + $0xe8] sm:$0xff]
    %v3199 = vld [vmem:[%s3 + $0xf0] sm:$0xff]
    %v3200 = vld [vmem:[%s3 + $0xf8] sm:$0xff]
    %v3201 = vld [vmem:[%s4] sm:$0x1]
    %v3203 = vlaneseq
    %v3204 = vshrl.u32 %v3203, 7
    %v3205 = vsub.s32 0, %v3204
    %v3206 = vrot.slane %v3201, %v3205
    %3208 = vmatprep.subr.mxu0 0.0
    %3209 = vmatpush1.msra.mxu0 %v3184
    %3210 = vmatprep.subr.mxu0 0.0
    %3211 = vmatpush1.msra.mxu0 %v3183
    %3212 = vmatprep.subr.mxu0 0.0
    %3213 = vmatpush1.msra.mxu0 %v3182
    %3214 = vmatprep.subr.mxu0 0.0
    %3215 = vmatpush1.msra.mxu0 %v3181
    %3216 = vmatprep.subr.mxu0 0.0
    %3217 = vmatpush1.msra.mxu0 %v3180
    %3218 = vmatprep.subr.mxu0 0.0
    %3219 = vmatpush1.msra.mxu0 %v3179
    %3220 = vmatprep.subr.mxu0 0.0
    %3221 = vmatpush1.msra.mxu0 %v3178
    %3222 = vmatprep.subr.mxu0 0.0
    %3223 = vmatpush1.msra.mxu0 %v3177
    %3224 = vmatprep.subr.mxu0 0.0
    %3225 = vmatpush1.msra.mxu0 %v3176
    %3226 = vmatprep.subr.mxu0 0.0
    %3227 = vmatpush1.msra.mxu0 %v3175
    %3228 = vmatprep.subr.mxu0 0.0
    %3229 = vmatpush1.msra.mxu0 %v3174
    %3230 = vmatprep.subr.mxu0 0.0
    %3231 = vmatpush1.msra.mxu0 %v3173
    %3232 = vmatprep.subr.mxu0 0.0
    %3233 = vmatpush1.msra.mxu0 %v3172
    %3234 = vmatprep.subr.mxu0 0.0
    %3235 = vmatpush1.msra.mxu0 %v3171
    %3236 = vmatprep.subr.mxu0 0.0
    %3237 = vmatpush1.msra.mxu0 %v3170
    %3238 = vmatprep.subr.mxu0 0.0
    %3239 = vmatpush1.msra.mxu0 %v3169
    %3240 = vmatprep.subr.mxu0 0.0
    %3241 = vmatpush2.msra.mxu0 %v3200
    %3242 = vmatprep.subr.mxu0 0.0
    %3243 = vmatpush2.msra.mxu0 %v3199
    %3244 = vmatprep.subr.mxu0 0.0
    %3245 = vmatpush2.msra.mxu0 %v3198
    %3246 = vmatprep.subr.mxu0 0.0
    %3247 = vmatpush2.msra.mxu0 %v3197
    %3248 = vmatprep.subr.mxu0 0.0
    %3249 = vmatpush2.msra.mxu0 %v3196
    %3250 = vmatprep.subr.mxu0 0.0
    %3251 = vmatpush2.msra.mxu0 %v3195
    %3252 = vmatprep.subr.mxu0 0.0
    %3253 = vmatpush2.msra.mxu0 %v3194
    %3254 = vmatprep.subr.mxu0 0.0
    %3255 = vmatpush2.msra.mxu0 %v3193
    %3256 = vmatprep.subr.mxu0 0.0
    %3257 = vmatpush2.msra.mxu0 %v3192
    %3258 = vmatprep.subr.mxu0 0.0
    %3259 = vmatpush2.msra.mxu0 %v3191
    %3260 = vmatprep.subr.mxu0 0.0
    %3261 = vmatpush2.msra.mxu0 %v3190
    %3262 = vmatprep.subr.mxu0 0.0
    %3263 = vmatpush2.msra.mxu0 %v3189
    %3264 = vmatprep.subr.mxu0 0.0
    %3265 = vmatpush2.msra.mxu0 %v3188
    %3266 = vmatprep.subr.mxu0 0.0
    %3267 = vmatpush2.msra.mxu0 %v3187
    %3268 = vmatprep.subr.mxu0 0.0
    %3269 = vmatpush2.msra.mxu0 %v3186
    %3270 = vmatprep.subr.mxu0 0.0
    %3271 = vmatpush2.msra.mxu0 %v3185
    %3272 = vmatprep.mubr.f32.mxu0 %v3168
    %3273 = vmatmul.mubr.f32.gmra.mxu0 %v3167
    %v3274 = vpop.f32.mrf.mxu0
    %v3275 = vadd.f32 %v3206, %v3274
    %v3276 = vpop.f32.mrf.mxu0
    %3277 = vdwg.mxu0
    %v3278 = vmax.f32 %v3275, 0.0
    %v3279 = vld [vmem:[%s5] sm:$0xff]
    %v3280 = vld [vmem:[%s5 + $0x8] sm:$0xff]
    %v3281 = vld [vmem:[%s5 + $0x10] sm:$0xff]
    %v3282 = vld [vmem:[%s5 + $0x18] sm:$0xff]
    %v3283 = vld [vmem:[%s5 + $0x20] sm:$0xff]
    %v3284 = vld [vmem:[%s5 + $0x28] sm:$0xff]
    %v3285 = vld [vmem:[%s5 + $0x30] sm:$0xff]
    %v3286 = vld [vmem:[%s5 + $0x38] sm:$0xff]
    %v3287 = vld [vmem:[%s5 + $0x40] sm:$0xff]
    %v3288 = vld [vmem:[%s5 + $0x48] sm:$0xff]
    %v3289 = vld [vmem:[%s5 + $0x50] sm:$0xff]
    %v3290 = vld [vmem:[%s5 + $0x58] sm:$0xff]
    %v3291 = vld [vmem:[%s5 + $0x60] sm:$0xff]
    %v3292 = vld [vmem:[%s5 + $0x68] sm:$0xff]
    %v3293 = vld [vmem:[%s5 + $0x70] sm:$0xff]
    %v3294 = vld [vmem:[%s5 + $0x78] sm:$0xff]
    %v3295 = vld [vmem:[%s6] sm:$0x1]
    %v3297 = vlaneseq
    %v3298 = vshrl.u32 %v3297, 7
    %v3299 = vsub.s32 0, %v3298
    %v3300 = vrot.slane %v3295, %v3299
    %3302 = vmatprep.subr.mxu0 0.0
    %3303 = vmatpush1.msra.mxu0 %v3294
    %3304 = vmatprep.subr.mxu0 0.0
    %3305 = vmatpush1.msra.mxu0 %v3293
    %3306 = vmatprep.subr.mxu0 0.0
    %3307 = vmatpush1.msra.mxu0 %v3292
    %3308 = vmatprep.subr.mxu0 0.0
    %3309 = vmatpush1.msra.mxu0 %v3291
    %3310 = vmatprep.subr.mxu0 0.0
    %3311 = vmatpush1.msra.mxu0 %v3290
    %3312 = vmatprep.subr.mxu0 0.0
    %3313 = vmatpush1.msra.mxu0 %v3289
    %3314 = vmatprep.subr.mxu0 0.0
    %3315 = vmatpush1.msra.mxu0 %v3288
    %3316 = vmatprep.subr.mxu0 0.0
    %3317 = vmatpush1.msra.mxu0 %v3287
    %3318 = vmatprep.subr.mxu0 0.0
    %3319 = vmatpush1.msra.mxu0 %v3286
    %3320 = vmatprep.subr.mxu0 0.0
    %3321 = vmatpush1.msra.mxu0 %v3285
    %3322 = vmatprep.subr.mxu0 0.0
    %3323 = vmatpush1.msra.mxu0 %v3284
    %3324 = vmatprep.subr.mxu0 0.0
    %3325 = vmatpush1.msra.mxu0 %v3283
    %3326 = vmatprep.subr.mxu0 0.0
    %3327 = vmatpush1.msra.mxu0 %v3282
    %3328 = vmatprep.subr.mxu0 0.0
    %3329 = vmatpush1.msra.mxu0 %v3281
    %3330 = vmatprep.subr.mxu0 0.0
    %3331 = vmatpush1.msra.mxu0 %v3280
    %3332 = vmatprep.subr.mxu0 0.0
    %3333 = vmatpush1.msra.mxu0 %v3279
    %3334 = vmatprep.subr.mxu0 0.0
    %3335 = vmatpush2.msra.mxu0 0.0
    %3336 = vmatprep.subr.mxu0 0.0
    %3337 = vmatpush2.msra.mxu0 0.0
    %3338 = vmatprep.subr.mxu0 0.0
    %3339 = vmatpush2.msra.mxu0 0.0
    %3340 = vmatprep.subr.mxu0 0.0
    %3341 = vmatpush2.msra.mxu0 0.0
    %3342 = vmatprep.subr.mxu0 0.0
    %3343 = vmatpush2.msra.mxu0 0.0
    %3344 = vmatprep.subr.mxu0 0.0
    %3345 = vmatpush2.msra.mxu0 0.0
    %3346 = vmatprep.subr.mxu0 0.0
    %3347 = vmatpush2.msra.mxu0 0.0
    %3348 = vmatprep.subr.mxu0 0.0
    %3349 = vmatpush2.msra.mxu0 0.0
    %3350 = vmatprep.subr.mxu0 0.0
    %3351 = vmatpush2.msra.mxu0 0.0
    %3352 = vmatprep.subr.mxu0 0.0
    %3353 = vmatpush2.msra.mxu0 0.0
    %3354 = vmatprep.subr.mxu0 0.0
    %3355 = vmatpush2.msra.mxu0 0.0
    %3356 = vmatprep.subr.mxu0 0.0
    %3357 = vmatpush2.msra.mxu0 0.0
    %3358 = vmatprep.subr.mxu0 0.0
    %3359 = vmatpush2.msra.mxu0 0.0
    %3360 = vmatprep.subr.mxu0 0.0
    %3361 = vmatpush2.msra.mxu0 0.0
    %3362 = vmatprep.subr.mxu0 0.0
    %3363 = vmatpush2.msra.mxu0 0.0
    %3364 = vmatprep.subr.mxu0 0.0
    %3365 = vmatpush2.msra.mxu0 0.0
    %3366 = vmatprep.mubr.f32.mxu0 0.0
    %3367 = vmatmul.mubr.f32.gmra.mxu0 %v3278
    %v3368 = vpop.f32.mrf.mxu0
    %v3369 = vadd.f32 %v3300, %v3368
    %v3370 = vpop.f32.mrf.mxu0
    %3371 = vdwg.mxu0
    %vm3372 = vcmask 74752
    %v3373 = vsel %vm3372, %v3369, -inf
    %3374 = vmax.xlane.f32.xlu0 %v3373
    %v3375 = vpop.xlane.xlu0 %3374
    %v3376 = vsub.f32 %v3369, %v3375
    %v3377 = vmul.f32 %v3376, 1.442695
    %v3378 = vpow.pop %v3377
    %v3379 = vsel %vm3372, %v3378, 0.0
    %3380 = vadd.xlane.f32.xlu0 %v3379
    %v3381 = vpop.xlane.xlu0 %3380
    %v3382 = vlog2.pop %v3381
    %v3383 = vmul.f32 %v3382, 0.6931472
    %v3384 = vsub.f32 %v3376, %v3383
    %3385 = vst.msk [vmem:[#allocation2] sm:$0x3] %vm3372, %v3384
    // Predicated region
    $region30: #{sdr_cnn_forward.5} parent=1 // pred_check
      _
    $region31: #{sdr_cnn_forward.5} parent=1 // pred_check_branch
      %3387 = sbr.rel (0) target = $region33
    $region32: #{sdr_cnn_forward.5} parent=1 // pred_region
      %s3389 = ssub.s32 32, 32
      %3390 = vsyncadd [#allocation3], %s3389
      %s3392 = sshll.u32 [#allocation2], 4
      %s3393 = int_to_ptr.vmem [resolvable:$true] %s3392
      %3395 = dma.vmem_to_hbm [thread:$0]  %s3393, 32, %s7, [#allocation3]
    $region33: #{sdr_cnn_forward.5} parent=1 // pred_fallthru
      _
    // Predicated region
    $region34: #{sdr_cnn_forward.5} parent=1 // pred_check
      _
    $region35: #{sdr_cnn_forward.5} parent=1 // pred_check_branch
      %3397 = sbr.rel (0) target = $region37
    $region36: #{sdr_cnn_forward.5} parent=1 // pred_region
      %3398 = dma.done [#allocation3], 32
    $region37: #{sdr_cnn_forward.5} parent=1 // pred_fallthru
      _
    %3399 = vsyncpa [#allocation3], 1

</llo_original>
